<compile_context>
chip_gen: v7x
topology: tpu7x:2x2x1
jax: 0.10.0
libtpu: 0.0.40
codegen_flags: <defaults>
</compile_context>

<pallas_src>
import math

import numpy as np

import jax
import jax.numpy as jnp
from jax.experimental import pallas as pl
from jax.experimental.pallas import tpu as pltpu


# ------------------------------ fused Pallas kernel ------------------------------


def _conv3x3_bn_relu(x, pad_ref, col_ref, w_ref, scale_ref, bias_ref):
    """3x3 'same' conv + folded BatchNorm + ReLU for one batch element.

    x:         (H, W, Cin)     f32 value (unpadded activation)
    pad_ref:   (H+2, W+2, Cin) VMEM scratch (zeroed border + interior copy)
    col_ref:   (H*W, 9*Cin)    VMEM scratch (im2col matrix)
    w_ref:     (9*Cin, Cout)   conv weight, row index = (ky*3 + kx)*Cin + ci  (HWIO order)
    scale_ref: (1, Cout)       gamma / sqrt(var + eps)
    bias_ref:  (1, Cout)       beta - mean * scale
    returns    (H*W, Cout) f32, rows in row-major (h, w) order.
    """
    Hp, Wp, Cin = pad_ref.shape
    H, W = Hp - 2, Wp - 2
    # In-kernel 'same' padding: zero the (tiny) padded scratch, then store the interior.
    pad_ref[...] = jnp.zeros_like(pad_ref)
    pad_ref[1:H + 1, 1:W + 1, :] = x
    # Build the im2col matrix once -> a single MXU matmul with K = 9*Cin.
    for ky in range(3):
        for kx in range(3):
            t = ky * 3 + kx
            col_ref[:, t * Cin:(t + 1) * Cin] = (
                pad_ref[ky:ky + H, kx:kx + W, :].reshape(H * W, Cin))
    z = jnp.dot(col_ref[...], w_ref[...], preferred_element_type=jnp.float32)
    return jnp.maximum(z * scale_ref[...] + bias_ref[...], 0.0)


def _maxpool2x2(z, H, W, C):
    """2x2 stride-2 max pool on z = (H*W, C) in row-major (h, w) order -> (H//2, W//2, C)."""
    z = jnp.max(z.reshape(H * W // 2, 2, C), axis=1)       # pair-max along w
    z = jnp.max(z.reshape(H // 2, 2, W // 2, C), axis=1)   # pair-max along h
    return z


def locnet_fused_kernel(x_ref,
                        w0_ref, s0_ref, b0_ref,
                        w1_ref, s1_ref, b1_ref,
                        w2_ref, s2_ref, b2_ref,
                        w3_ref, s3_ref, b3_ref,
                        fw1_ref, fb1_ref, fw2_ref, fb2_ref,
                        out_ref, feat_ref,
                        pad0, col0, pad1, col1, pad2, col2, pad3, col3):
    """Whole LocalizationNetwork forward for one batch element (grid iterates the batch)."""
    x = x_ref[0]                                                  # (H, W, Cin)

    # Blocks 0..2: conv+BN+ReLU then 2x2 max pool. Activations never leave VMEM.
    for pad_r, col_r, w_r, s_r, b_r in (
            (pad0, col0, w0_ref, s0_ref, b0_ref),
            (pad1, col1, w1_ref, s1_ref, b1_ref),
            (pad2, col2, w2_ref, s2_ref, b2_ref)):
        H, W = pad_r.shape[0] - 2, pad_r.shape[1] - 2
        C = w_r.shape[1]
        z = _conv3x3_bn_relu(x, pad_r, col_r, w_r, s_r, b_r)      # (H*W, C)
        x = _maxpool2x2(z, H, W, C)                               # (H//2, W//2, C)

    # Block 3: conv+BN+ReLU then global average pool (AdaptiveAvgPool2d(1)).
    z = _conv3x3_bn_relu(x, pad3, col3, w3_ref, s3_ref, b3_ref)   # (H3*W3, C3)
    feat = jnp.mean(z, axis=0, keepdims=True)                     # (1, C3)
    feat_ref[0] = feat.astype(feat_ref.dtype)

    # Head: fc1 -> ReLU -> fc2 (weights stored as (in, out), i.e. already transposed).
    h = jnp.dot(feat, fw1_ref[...], preferred_element_type=jnp.float32)
    h = jnp.maximum(h + fb1_ref[...], 0.0)
    o = jnp.dot(h, fw2_ref[...], preferred_element_type=jnp.float32) + fb2_ref[...]
    out_ref[0] = o.astype(out_ref.dtype)


# --------------------------------- Pallas wrapper ---------------------------------


def localization_forward(x_nchw, params, num_fiducial):
    """Forward pass of LocalizationNetwork (single fused pallas_call).

    Input is NCHW (PyTorch convention). Returns (batch_C_prime (N, F, 2), feat (N, C_last)).
    """
    x = jnp.transpose(x_nchw, (0, 2, 3, 1)).astype(jnp.float32)   # NCHW -> NHWC
    N, H, W, Cin = x.shape
    assert H % 8 == 0 and W % 8 == 0, "three 2x2 max-pool stages need H, W divisible by 8"

    conv_params = list(params["conv"])
    assert len(conv_params) == 4
    couts = [w.shape[1] for (w, _, _) in conv_params]
    cins = [Cin] + couts[:-1]
    C3 = couts[-1]
    F2 = params["w2"].shape[1]

    conv_args, conv_specs = [], []
    for (w, s, b) in conv_params:
        conv_args += [w, s, b]
        conv_specs += [pl.BlockSpec(w.shape, lambda n: (0, 0)),
                       pl.BlockSpec(s.shape, lambda n: (0, 0)),
                       pl.BlockSpec(b.shape, lambda n: (0, 0))]
    head_args = [params["w1"], params["b1"], params["w2"], params["b2"]]
    head_specs = [pl.BlockSpec(a.shape, lambda n: (0, 0)) for a in head_args]

    # Per-block VMEM scratch: padded activation + im2col matrix (a few hundred KB total).
    scratch = []
    for i in range(4):
        h_i, w_i = H >> i, W >> i
        scratch.append(pltpu.VMEM((h_i + 2, w_i + 2, cins[i]), jnp.float32))
        scratch.append(pltpu.VMEM((h_i * w_i, 9 * cins[i]), jnp.float32))

    out, feat = pl.pallas_call(
        locnet_fused_kernel,
        grid=(N,),
        in_specs=[pl.BlockSpec((1, H, W, Cin), lambda n: (n, 0, 0, 0))]
                 + conv_specs + head_specs,
        out_specs=[pl.BlockSpec((1, 1, F2), lambda n: (n, 0, 0)),
                   pl.BlockSpec((1, 1, C3), lambda n: (n, 0, 0))],
        out_shape=(jax.ShapeDtypeStruct((N, 1, F2), jnp.float32),
                   jax.ShapeDtypeStruct((N, 1, C3), jnp.float32)),
        scratch_shapes=scratch,
        compiler_params=pltpu.CompilerParams(dimension_semantics=("parallel",)),
    )(x, *conv_args, *head_args)

    return out.reshape(-1, num_fiducial, 2), feat.reshape(N, C3)


# ------------------------------ parameters / reference ----------------------------


def get_initial_fiducials(F):
    """RARE paper Fig. 6(a): initial control points (exactly as in the PyTorch module)."""
    ctrl_pts_x = np.linspace(-1.0, 1.0, int(F / 2))
    ctrl_pts_y_top = np.linspace(0.0, -1.0, num=int(F / 2))
    ctrl_pts_y_bottom = np.linspace(1.0, 0.0, num=int(F / 2))
    ctrl_pts_top = np.stack([ctrl_pts_x, ctrl_pts_y_top], axis=1)
    ctrl_pts_bottom = np.stack([ctrl_pts_x, ctrl_pts_y_bottom], axis=1)
    return np.concatenate([ctrl_pts_top, ctrl_pts_bottom], axis=0).astype(np.float32)


def init_params(key, in_channels, num_fiducial, model_name="small"):
    if model_name == "large":
        num_filters_list = [64, 128, 256, 512]
        fc_dim = 256
    else:
        num_filters_list = [16, 32, 64, 128]
        fc_dim = 64
    params = {"conv": []}
    c_in = in_channels
    eps = 1e-5
    for c_out in num_filters_list:
        key, kw, kg, kb, km, kv = jax.random.split(key, 6)
        # Conv weight in HWIO, stored in the im2col layout (9*Cin, Cout); BN folded (eval).
        w = jax.random.normal(kw, (3, 3, c_in, c_out), jnp.float32) / math.sqrt(9.0 * c_in)
        gamma = 1.0 + 0.1 * jax.random.normal(kg, (c_out,), jnp.float32)
        beta = 0.1 * jax.random.normal(kb, (c_out,), jnp.float32)
        mean = 0.1 * jax.random.normal(km, (c_out,), jnp.float32)
        var = 0.5 + jnp.abs(jax.random.normal(kv, (c_out,), jnp.float32))
        scale = gamma / jnp.sqrt(var + eps)
        bias = beta - mean * scale
        params["conv"].append((w.reshape(9 * c_in, c_out),
                               scale.reshape(1, c_out), bias.reshape(1, c_out)))
        c_in = c_out
    stdv = 1.0 / math.sqrt(num_filters_list[-1] * 1.0)
    key, k1, k2 = jax.random.split(key, 3)
    # fc weights stored as (in, out) == PyTorch weight.T
    params["w1"] = jax.random.uniform(k1, (c_in, fc_dim), jnp.float32, -stdv, stdv)
    params["b1"] = jax.random.uniform(k2, (1, fc_dim), jnp.float32, -stdv, stdv)
    params["w2"] = jnp.zeros((fc_dim, num_fiducial * 2), jnp.float32)   # fc2 zero-init
    params["b2"] = jnp.asarray(get_initial_fiducials(num_fiducial).reshape(1, -1))
    return params


def reference_forward(x_nchw, params, num_fiducial):
    """Pure-JAX reference (lax.conv / reduce_window) for correctness checking."""
    x = jnp.transpose(x_nchw, (0, 2, 3, 1)).astype(jnp.float32)
    n_blocks = len(params["conv"])
    for i, (wim, scale, bias) in enumerate(params["conv"]):
        c_out = wim.shape[1]
        c_in = wim.shape[0] // 9
        w = wim.reshape(3, 3, c_in, c_out)
        y = jax.lax.conv_general_dilated(
            x, w, (1, 1), "SAME", dimension_numbers=("NHWC", "HWIO", "NHWC"))
        y = jnp.maximum(y * scale.reshape(1, 1, 1, -1) + bias.reshape(1, 1, 1, -1), 0.0)
        if i < n_blocks - 1:
            x = jax.lax.reduce_window(y, -jnp.inf, jax.lax.max,
                                      (1, 2, 2, 1), (1, 2, 2, 1), "VALID")
        else:
            x = jnp.mean(y, axis=(1, 2), keepdims=True)
    feat = x.reshape(x.shape[0], x.shape[-1])
    h = jnp.maximum(feat @ params["w1"] + params["b1"], 0.0)
    out = h @ params["w2"] + params["b2"]
    return out.reshape(-1, num_fiducial, 2), feat


# ----------------------------------------- main -----------------------------------------


if __name__ == "__main__":
    F_fid = 8            # num_fiducial
    N, C, H, W = 2, 4, 16, 16

    key = jax.random.PRNGKey(0)
    key, kx, kp = jax.random.split(key, 3)
    x = jax.random.normal(kx, (N, C, H, W), jnp.float32)          # NCHW input (PyTorch-style)
    params = init_params(kp, in_channels=C, num_fiducial=F_fid, model_name="small")

    out, feat = localization_forward(x, params, F_fid)
    out = jax.block_until_ready(out)
    feat = jax.block_until_ready(feat)

    ref_out, ref_feat = reference_forward(x, params, F_fid)
    ref_out = jax.block_until_ready(ref_out)

    assert out.shape == (N, F_fid, 2)
    np.testing.assert_allclose(np.asarray(feat), np.asarray(ref_feat), rtol=1e-2, atol=1e-2)
    np.testing.assert_allclose(np.asarray(out), np.asarray(ref_out), rtol=1e-2, atol=1e-2)

    print("KERNEL_OK")
</pallas_src>

<mosaic_0001>
module attributes {stable_mosaic.version = 11 : i64} {
  func.func @locnet_fused_kernel(%arg0: i32, %arg1: memref<1x16x16x4xf32, #tpu.memory_space<vmem>>, %arg2: memref<36x16xf32, #tpu.memory_space<vmem>>, %arg3: memref<1x16xf32, #tpu.memory_space<vmem>>, %arg4: memref<1x16xf32, #tpu.memory_space<vmem>>, %arg5: memref<144x32xf32, #tpu.memory_space<vmem>>, %arg6: memref<1x32xf32, #tpu.memory_space<vmem>>, %arg7: memref<1x32xf32, #tpu.memory_space<vmem>>, %arg8: memref<288x64xf32, #tpu.memory_space<vmem>>, %arg9: memref<1x64xf32, #tpu.memory_space<vmem>>, %arg10: memref<1x64xf32, #tpu.memory_space<vmem>>, %arg11: memref<576x128xf32, #tpu.memory_space<vmem>>, %arg12: memref<1x128xf32, #tpu.memory_space<vmem>>, %arg13: memref<1x128xf32, #tpu.memory_space<vmem>>, %arg14: memref<128x64xf32, #tpu.memory_space<vmem>>, %arg15: memref<1x64xf32, #tpu.memory_space<vmem>>, %arg16: memref<64x16xf32, #tpu.memory_space<vmem>>, %arg17: memref<1x16xf32, #tpu.memory_space<vmem>>, %arg18: memref<1x1x16xf32, #tpu.memory_space<vmem>>, %arg19: memref<1x1x128xf32, #tpu.memory_space<vmem>>, %arg20: memref<18x18x4xf32, #tpu.memory_space<vmem>>, %arg21: memref<256x36xf32, #tpu.memory_space<vmem>>, %arg22: memref<10x10x16xf32, #tpu.memory_space<vmem>>, %arg23: memref<64x144xf32, #tpu.memory_space<vmem>>, %arg24: memref<6x6x32xf32, #tpu.memory_space<vmem>>, %arg25: memref<16x288xf32, #tpu.memory_space<vmem>>, %arg26: memref<4x4x64xf32, #tpu.memory_space<vmem>>, %arg27: memref<4x576xf32, #tpu.memory_space<vmem>>) attributes {dimension_semantics = [#tpu.dimension_semantics<parallel>], iteration_bounds = array<i64: 2>, scalar_prefetch = 0 : i64, scratch_operands = 8 : i64, tpu.core_type = #tpu.core_type<tc>, window_params = [{transform_indices = @transform_0, window_bounds = array<i64: 1, 16, 16, 4>}, {pipeline_mode = #tpu.pipeline_mode<synchronous>, transform_indices = @transform_1, window_bounds = array<i64: 36, 16>}, {pipeline_mode = #tpu.pipeline_mode<synchronous>, transform_indices = @transform_2, window_bounds = array<i64: 1, 16>}, {pipeline_mode = #tpu.pipeline_mode<synchronous>, transform_indices = @transform_3, window_bounds = array<i64: 1, 16>}, {pipeline_mode = #tpu.pipeline_mode<synchronous>, transform_indices = @transform_4, window_bounds = array<i64: 144, 32>}, {pipeline_mode = #tpu.pipeline_mode<synchronous>, transform_indices = @transform_5, window_bounds = array<i64: 1, 32>}, {pipeline_mode = #tpu.pipeline_mode<synchronous>, transform_indices = @transform_6, window_bounds = array<i64: 1, 32>}, {pipeline_mode = #tpu.pipeline_mode<synchronous>, transform_indices = @transform_7, window_bounds = array<i64: 288, 64>}, {pipeline_mode = #tpu.pipeline_mode<synchronous>, transform_indices = @transform_8, window_bounds = array<i64: 1, 64>}, {pipeline_mode = #tpu.pipeline_mode<synchronous>, transform_indices = @transform_9, window_bounds = array<i64: 1, 64>}, {pipeline_mode = #tpu.pipeline_mode<synchronous>, transform_indices = @transform_10, window_bounds = array<i64: 576, 128>}, {pipeline_mode = #tpu.pipeline_mode<synchronous>, transform_indices = @transform_11, window_bounds = array<i64: 1, 128>}, {pipeline_mode = #tpu.pipeline_mode<synchronous>, transform_indices = @transform_12, window_bounds = array<i64: 1, 128>}, {pipeline_mode = #tpu.pipeline_mode<synchronous>, transform_indices = @transform_13, window_bounds = array<i64: 128, 64>}, {pipeline_mode = #tpu.pipeline_mode<synchronous>, transform_indices = @transform_14, window_bounds = array<i64: 1, 64>}, {pipeline_mode = #tpu.pipeline_mode<synchronous>, transform_indices = @transform_15, window_bounds = array<i64: 64, 16>}, {pipeline_mode = #tpu.pipeline_mode<synchronous>, transform_indices = @transform_16, window_bounds = array<i64: 1, 16>}, {transform_indices = @transform_17, window_bounds = array<i64: 1, 1, 16>}, {transform_indices = @transform_18, window_bounds = array<i64: 1, 1, 128>}]} {
    %c0 = arith.constant 0 : index
    %c0_0 = arith.constant 0 : index
    %c0_1 = arith.constant 0 : index
    %c0_2 = arith.constant 0 : index
    %0 = vector.load %arg1[%c0, %c0_0, %c0_1, %c0_2] : memref<1x16x16x4xf32, #tpu.memory_space<vmem>>, vector<1x16x16x4xf32>
    %1 = vector.shape_cast %0 : vector<1x16x16x4xf32> to vector<16x16x4xf32>
    %cst = arith.constant 0.000000e+00 : f32
    %2 = vector.broadcast %cst : f32 to vector<18x18x4xf32>
    %c0_3 = arith.constant 0 : index
    %c0_4 = arith.constant 0 : index
    %c0_5 = arith.constant 0 : index
    %3 = vector.load %arg20[%c0_3, %c0_4, %c0_5] : memref<18x18x4xf32, #tpu.memory_space<vmem>>, vector<18x18x4xf32>
    tpu.vector_store %arg20[%c0_3, %c0_4, %c0_5], %2 {strides = array<i32>} : memref<18x18x4xf32, #tpu.memory_space<vmem>>, vector<18x18x4xf32>,
    %c1 = arith.constant 1 : index
    %c1_6 = arith.constant 1 : index
    %c0_7 = arith.constant 0 : index
    %4 = vector.load %arg20[%c1, %c1_6, %c0_7] : memref<18x18x4xf32, #tpu.memory_space<vmem>>, vector<16x16x4xf32>
    tpu.vector_store %arg20[%c1, %c1_6, %c0_7], %1 {strides = array<i32>} : memref<18x18x4xf32, #tpu.memory_space<vmem>>, vector<16x16x4xf32>,
    %c0_8 = arith.constant 0 : index
    %c0_9 = arith.constant 0 : index
    %c0_10 = arith.constant 0 : index
    %5 = vector.load %arg20[%c0_8, %c0_9, %c0_10] : memref<18x18x4xf32, #tpu.memory_space<vmem>>, vector<16x16x4xf32>
    %6 = vector.shape_cast %5 : vector<16x16x4xf32> to vector<256x4xf32>
    %c0_11 = arith.constant 0 : index
    %c0_12 = arith.constant 0 : index
    %7 = vector.load %arg21[%c0_11, %c0_12] : memref<256x36xf32, #tpu.memory_space<vmem>>, vector<256x4xf32>
    tpu.vector_store %arg21[%c0_11, %c0_12], %6 {strides = array<i32>} : memref<256x36xf32, #tpu.memory_space<vmem>>, vector<256x4xf32>,
    %c0_13 = arith.constant 0 : index
    %c1_14 = arith.constant 1 : index
    %c0_15 = arith.constant 0 : index
    %8 = vector.load %arg20[%c0_13, %c1_14, %c0_15] : memref<18x18x4xf32, #tpu.memory_space<vmem>>, vector<16x16x4xf32>
    %9 = vector.shape_cast %8 : vector<16x16x4xf32> to vector<256x4xf32>
    %c0_16 = arith.constant 0 : index
    %c4 = arith.constant 4 : index
    %10 = vector.load %arg21[%c0_16, %c4] : memref<256x36xf32, #tpu.memory_space<vmem>>, vector<256x4xf32>
    tpu.vector_store %arg21[%c0_16, %c4], %9 {strides = array<i32>} : memref<256x36xf32, #tpu.memory_space<vmem>>, vector<256x4xf32>,
    %c0_17 = arith.constant 0 : index
    %c2 = arith.constant 2 : index
    %c0_18 = arith.constant 0 : index
    %11 = vector.load %arg20[%c0_17, %c2, %c0_18] : memref<18x18x4xf32, #tpu.memory_space<vmem>>, vector<16x16x4xf32>
    %12 = vector.shape_cast %11 : vector<16x16x4xf32> to vector<256x4xf32>
    %c0_19 = arith.constant 0 : index
    %c8 = arith.constant 8 : index
    %13 = vector.load %arg21[%c0_19, %c8] : memref<256x36xf32, #tpu.memory_space<vmem>>, vector<256x4xf32>
    tpu.vector_store %arg21[%c0_19, %c8], %12 {strides = array<i32>} : memref<256x36xf32, #tpu.memory_space<vmem>>, vector<256x4xf32>,
    %c1_20 = arith.constant 1 : index
    %c0_21 = arith.constant 0 : index
    %c0_22 = arith.constant 0 : index
    %14 = vector.load %arg20[%c1_20, %c0_21, %c0_22] : memref<18x18x4xf32, #tpu.memory_space<vmem>>, vector<16x16x4xf32>
    %15 = vector.shape_cast %14 : vector<16x16x4xf32> to vector<256x4xf32>
    %c0_23 = arith.constant 0 : index
    %c12 = arith.constant 12 : index
    %16 = vector.load %arg21[%c0_23, %c12] : memref<256x36xf32, #tpu.memory_space<vmem>>, vector<256x4xf32>
    tpu.vector_store %arg21[%c0_23, %c12], %15 {strides = array<i32>} : memref<256x36xf32, #tpu.memory_space<vmem>>, vector<256x4xf32>,
    %c1_24 = arith.constant 1 : index
    %c1_25 = arith.constant 1 : index
    %c0_26 = arith.constant 0 : index
    %17 = vector.load %arg20[%c1_24, %c1_25, %c0_26] : memref<18x18x4xf32, #tpu.memory_space<vmem>>, vector<16x16x4xf32>
    %18 = vector.shape_cast %17 : vector<16x16x4xf32> to vector<256x4xf32>
    %c0_27 = arith.constant 0 : index
    %c16 = arith.constant 16 : index
    %19 = vector.load %arg21[%c0_27, %c16] : memref<256x36xf32, #tpu.memory_space<vmem>>, vector<256x4xf32>
    tpu.vector_store %arg21[%c0_27, %c16], %18 {strides = array<i32>} : memref<256x36xf32, #tpu.memory_space<vmem>>, vector<256x4xf32>,
    %c1_28 = arith.constant 1 : index
    %c2_29 = arith.constant 2 : index
    %c0_30 = arith.constant 0 : index
    %20 = vector.load %arg20[%c1_28, %c2_29, %c0_30] : memref<18x18x4xf32, #tpu.memory_space<vmem>>, vector<16x16x4xf32>
    %21 = vector.shape_cast %20 : vector<16x16x4xf32> to vector<256x4xf32>
    %c0_31 = arith.constant 0 : index
    %c20 = arith.constant 20 : index
    %22 = vector.load %arg21[%c0_31, %c20] : memref<256x36xf32, #tpu.memory_space<vmem>>, vector<256x4xf32>
    tpu.vector_store %arg21[%c0_31, %c20], %21 {strides = array<i32>} : memref<256x36xf32, #tpu.memory_space<vmem>>, vector<256x4xf32>,
    %c2_32 = arith.constant 2 : index
    %c0_33 = arith.constant 0 : index
    %c0_34 = arith.constant 0 : index
    %23 = vector.load %arg20[%c2_32, %c0_33, %c0_34] : memref<18x18x4xf32, #tpu.memory_space<vmem>>, vector<16x16x4xf32>
    %24 = vector.shape_cast %23 : vector<16x16x4xf32> to vector<256x4xf32>
    %c0_35 = arith.constant 0 : index
    %c24 = arith.constant 24 : index
    %25 = vector.load %arg21[%c0_35, %c24] : memref<256x36xf32, #tpu.memory_space<vmem>>, vector<256x4xf32>
    tpu.vector_store %arg21[%c0_35, %c24], %24 {strides = array<i32>} : memref<256x36xf32, #tpu.memory_space<vmem>>, vector<256x4xf32>,
    %c2_36 = arith.constant 2 : index
    %c1_37 = arith.constant 1 : index
    %c0_38 = arith.constant 0 : index
    %26 = vector.load %arg20[%c2_36, %c1_37, %c0_38] : memref<18x18x4xf32, #tpu.memory_space<vmem>>, vector<16x16x4xf32>
    %27 = vector.shape_cast %26 : vector<16x16x4xf32> to vector<256x4xf32>
    %c0_39 = arith.constant 0 : index
    %c28 = arith.constant 28 : index
    %28 = vector.load %arg21[%c0_39, %c28] : memref<256x36xf32, #tpu.memory_space<vmem>>, vector<256x4xf32>
    tpu.vector_store %arg21[%c0_39, %c28], %27 {strides = array<i32>} : memref<256x36xf32, #tpu.memory_space<vmem>>, vector<256x4xf32>,
    %c2_40 = arith.constant 2 : index
    %c2_41 = arith.constant 2 : index
    %c0_42 = arith.constant 0 : index
    %29 = vector.load %arg20[%c2_40, %c2_41, %c0_42] : memref<18x18x4xf32, #tpu.memory_space<vmem>>, vector<16x16x4xf32>
    %30 = vector.shape_cast %29 : vector<16x16x4xf32> to vector<256x4xf32>
    %c0_43 = arith.constant 0 : index
    %c32 = arith.constant 32 : index
    %31 = vector.load %arg21[%c0_43, %c32] : memref<256x36xf32, #tpu.memory_space<vmem>>, vector<256x4xf32>
    tpu.vector_store %arg21[%c0_43, %c32], %30 {strides = array<i32>} : memref<256x36xf32, #tpu.memory_space<vmem>>, vector<256x4xf32>,
    %c0_44 = arith.constant 0 : index
    %c0_45 = arith.constant 0 : index
    %32 = vector.load %arg21[%c0_44, %c0_45] : memref<256x36xf32, #tpu.memory_space<vmem>>, vector<256x36xf32>
    %c0_46 = arith.constant 0 : index
    %c0_47 = arith.constant 0 : index
    %33 = vector.load %arg2[%c0_46, %c0_47] : memref<36x16xf32, #tpu.memory_space<vmem>>, vector<36x16xf32>
    %cst_48 = arith.constant dense<0.000000e+00> : vector<256x16xf32>
    %34 = tpu.matmul %32, %33, %cst_48 {dimension_numbers = #tpu.dot_dimension_numbers<[1], [0], [0], [1], [0, 0, 1, 1], [], []>} : vector<256x36xf32>, vector<36x16xf32>, vector<256x16xf32> -> vector<256x16xf32>
    %c0_49 = arith.constant 0 : index
    %c0_50 = arith.constant 0 : index
    %35 = vector.load %arg3[%c0_49, %c0_50] : memref<1x16xf32, #tpu.memory_space<vmem>>, vector<1x16xf32>
    %36 = vector.broadcast %35 : vector<1x16xf32> to vector<256x16xf32>
    %37 = arith.mulf %34, %36 : vector<256x16xf32>
    %c0_51 = arith.constant 0 : index
    %c0_52 = arith.constant 0 : index
    %38 = vector.load %arg4[%c0_51, %c0_52] : memref<1x16xf32, #tpu.memory_space<vmem>>, vector<1x16xf32>
    %39 = vector.broadcast %38 : vector<1x16xf32> to vector<256x16xf32>
    %40 = arith.addf %37, %39 : vector<256x16xf32>
    %cst_53 = arith.constant 0.000000e+00 : f32
    %41 = vector.broadcast %cst_53 : f32 to vector<256x16xf32>
    %42 = arith.maximumf %40, %41 : vector<256x16xf32>
    %43 = vector.shape_cast %42 : vector<256x16xf32> to vector<128x2x16xf32>
    %cst_54 = arith.constant dense<0xFF800000> : vector<128x16xf32>
    %44 = vector.multi_reduction <maximumf>, %43, %cst_54 [1] : vector<128x2x16xf32> to vector<128x16xf32>
    %45 = vector.shape_cast %44 : vector<128x16xf32> to vector<8x2x8x16xf32>
    %cst_55 = arith.constant dense<0xFF800000> : vector<8x8x16xf32>
    %46 = vector.multi_reduction <maximumf>, %45, %cst_55 [1] : vector<8x2x8x16xf32> to vector<8x8x16xf32>
    %cst_56 = arith.constant 0.000000e+00 : f32
    %47 = vector.broadcast %cst_56 : f32 to vector<10x10x16xf32>
    %c0_57 = arith.constant 0 : index
    %c0_58 = arith.constant 0 : index
    %c0_59 = arith.constant 0 : index
    %48 = vector.load %arg22[%c0_57, %c0_58, %c0_59] : memref<10x10x16xf32, #tpu.memory_space<vmem>>, vector<10x10x16xf32>
    tpu.vector_store %arg22[%c0_57, %c0_58, %c0_59], %47 {strides = array<i32>} : memref<10x10x16xf32, #tpu.memory_space<vmem>>, vector<10x10x16xf32>,
    %c1_60 = arith.constant 1 : index
    %c1_61 = arith.constant 1 : index
    %c0_62 = arith.constant 0 : index
    %49 = vector.load %arg22[%c1_60, %c1_61, %c0_62] : memref<10x10x16xf32, #tpu.memory_space<vmem>>, vector<8x8x16xf32>
    tpu.vector_store %arg22[%c1_60, %c1_61, %c0_62], %46 {strides = array<i32>} : memref<10x10x16xf32, #tpu.memory_space<vmem>>, vector<8x8x16xf32>,
    %c0_63 = arith.constant 0 : index
    %c0_64 = arith.constant 0 : index
    %c0_65 = arith.constant 0 : index
    %50 = vector.load %arg22[%c0_63, %c0_64, %c0_65] : memref<10x10x16xf32, #tpu.memory_space<vmem>>, vector<8x8x16xf32>
    %51 = vector.shape_cast %50 : vector<8x8x16xf32> to vector<64x16xf32>
    %c0_66 = arith.constant 0 : index
    %c0_67 = arith.constant 0 : index
    %52 = vector.load %arg23[%c0_66, %c0_67] : memref<64x144xf32, #tpu.memory_space<vmem>>, vector<64x16xf32>
    tpu.vector_store %arg23[%c0_66, %c0_67], %51 {strides = array<i32>} : memref<64x144xf32, #tpu.memory_space<vmem>>, vector<64x16xf32>,
    %c0_68 = arith.constant 0 : index
    %c1_69 = arith.constant 1 : index
    %c0_70 = arith.constant 0 : index
    %53 = vector.load %arg22[%c0_68, %c1_69, %c0_70] : memref<10x10x16xf32, #tpu.memory_space<vmem>>, vector<8x8x16xf32>
    %54 = vector.shape_cast %53 : vector<8x8x16xf32> to vector<64x16xf32>
    %c0_71 = arith.constant 0 : index
    %c16_72 = arith.constant 16 : index
    %55 = vector.load %arg23[%c0_71, %c16_72] : memref<64x144xf32, #tpu.memory_space<vmem>>, vector<64x16xf32>
    tpu.vector_store %arg23[%c0_71, %c16_72], %54 {strides = array<i32>} : memref<64x144xf32, #tpu.memory_space<vmem>>, vector<64x16xf32>,
    %c0_73 = arith.constant 0 : index
    %c2_74 = arith.constant 2 : index
    %c0_75 = arith.constant 0 : index
    %56 = vector.load %arg22[%c0_73, %c2_74, %c0_75] : memref<10x10x16xf32, #tpu.memory_space<vmem>>, vector<8x8x16xf32>
    %57 = vector.shape_cast %56 : vector<8x8x16xf32> to vector<64x16xf32>
    %c0_76 = arith.constant 0 : index
    %c32_77 = arith.constant 32 : index
    %58 = vector.load %arg23[%c0_76, %c32_77] : memref<64x144xf32, #tpu.memory_space<vmem>>, vector<64x16xf32>
    tpu.vector_store %arg23[%c0_76, %c32_77], %57 {strides = array<i32>} : memref<64x144xf32, #tpu.memory_space<vmem>>, vector<64x16xf32>,
    %c1_78 = arith.constant 1 : index
    %c0_79 = arith.constant 0 : index
    %c0_80 = arith.constant 0 : index
    %59 = vector.load %arg22[%c1_78, %c0_79, %c0_80] : memref<10x10x16xf32, #tpu.memory_space<vmem>>, vector<8x8x16xf32>
    %60 = vector.shape_cast %59 : vector<8x8x16xf32> to vector<64x16xf32>
    %c0_81 = arith.constant 0 : index
    %c48 = arith.constant 48 : index
    %61 = vector.load %arg23[%c0_81, %c48] : memref<64x144xf32, #tpu.memory_space<vmem>>, vector<64x16xf32>
    tpu.vector_store %arg23[%c0_81, %c48], %60 {strides = array<i32>} : memref<64x144xf32, #tpu.memory_space<vmem>>, vector<64x16xf32>,
    %c1_82 = arith.constant 1 : index
    %c1_83 = arith.constant 1 : index
    %c0_84 = arith.constant 0 : index
    %62 = vector.load %arg22[%c1_82, %c1_83, %c0_84] : memref<10x10x16xf32, #tpu.memory_space<vmem>>, vector<8x8x16xf32>
    %63 = vector.shape_cast %62 : vector<8x8x16xf32> to vector<64x16xf32>
    %c0_85 = arith.constant 0 : index
    %c64 = arith.constant 64 : index
    %64 = vector.load %arg23[%c0_85, %c64] : memref<64x144xf32, #tpu.memory_space<vmem>>, vector<64x16xf32>
    tpu.vector_store %arg23[%c0_85, %c64], %63 {strides = array<i32>} : memref<64x144xf32, #tpu.memory_space<vmem>>, vector<64x16xf32>,
    %c1_86 = arith.constant 1 : index
    %c2_87 = arith.constant 2 : index
    %c0_88 = arith.constant 0 : index
    %65 = vector.load %arg22[%c1_86, %c2_87, %c0_88] : memref<10x10x16xf32, #tpu.memory_space<vmem>>, vector<8x8x16xf32>
    %66 = vector.shape_cast %65 : vector<8x8x16xf32> to vector<64x16xf32>
    %c0_89 = arith.constant 0 : index
    %c80 = arith.constant 80 : index
    %67 = vector.load %arg23[%c0_89, %c80] : memref<64x144xf32, #tpu.memory_space<vmem>>, vector<64x16xf32>
    tpu.vector_store %arg23[%c0_89, %c80], %66 {strides = array<i32>} : memref<64x144xf32, #tpu.memory_space<vmem>>, vector<64x16xf32>,
    %c2_90 = arith.constant 2 : index
    %c0_91 = arith.constant 0 : index
    %c0_92 = arith.constant 0 : index
    %68 = vector.load %arg22[%c2_90, %c0_91, %c0_92] : memref<10x10x16xf32, #tpu.memory_space<vmem>>, vector<8x8x16xf32>
    %69 = vector.shape_cast %68 : vector<8x8x16xf32> to vector<64x16xf32>
    %c0_93 = arith.constant 0 : index
    %c96 = arith.constant 96 : index
    %70 = vector.load %arg23[%c0_93, %c96] : memref<64x144xf32, #tpu.memory_space<vmem>>, vector<64x16xf32>
    tpu.vector_store %arg23[%c0_93, %c96], %69 {strides = array<i32>} : memref<64x144xf32, #tpu.memory_space<vmem>>, vector<64x16xf32>,
    %c2_94 = arith.constant 2 : index
    %c1_95 = arith.constant 1 : index
    %c0_96 = arith.constant 0 : index
    %71 = vector.load %arg22[%c2_94, %c1_95, %c0_96] : memref<10x10x16xf32, #tpu.memory_space<vmem>>, vector<8x8x16xf32>
    %72 = vector.shape_cast %71 : vector<8x8x16xf32> to vector<64x16xf32>
    %c0_97 = arith.constant 0 : index
    %c112 = arith.constant 112 : index
    %73 = vector.load %arg23[%c0_97, %c112] : memref<64x144xf32, #tpu.memory_space<vmem>>, vector<64x16xf32>
    tpu.vector_store %arg23[%c0_97, %c112], %72 {strides = array<i32>} : memref<64x144xf32, #tpu.memory_space<vmem>>, vector<64x16xf32>,
    %c2_98 = arith.constant 2 : index
    %c2_99 = arith.constant 2 : index
    %c0_100 = arith.constant 0 : index
    %74 = vector.load %arg22[%c2_98, %c2_99, %c0_100] : memref<10x10x16xf32, #tpu.memory_space<vmem>>, vector<8x8x16xf32>
    %75 = vector.shape_cast %74 : vector<8x8x16xf32> to vector<64x16xf32>
    %c0_101 = arith.constant 0 : index
    %c128 = arith.constant 128 : index
    %76 = vector.load %arg23[%c0_101, %c128] : memref<64x144xf32, #tpu.memory_space<vmem>>, vector<64x16xf32>
    tpu.vector_store %arg23[%c0_101, %c128], %75 {strides = array<i32>} : memref<64x144xf32, #tpu.memory_space<vmem>>, vector<64x16xf32>,
    %c0_102 = arith.constant 0 : index
    %c0_103 = arith.constant 0 : index
    %77 = vector.load %arg23[%c0_102, %c0_103] : memref<64x144xf32, #tpu.memory_space<vmem>>, vector<64x144xf32>
    %c0_104 = arith.constant 0 : index
    %c0_105 = arith.constant 0 : index
    %78 = vector.load %arg5[%c0_104, %c0_105] : memref<144x32xf32, #tpu.memory_space<vmem>>, vector<144x32xf32>
    %cst_106 = arith.constant dense<0.000000e+00> : vector<64x32xf32>
    %79 = tpu.matmul %77, %78, %cst_106 {dimension_numbers = #tpu.dot_dimension_numbers<[1], [0], [0], [1], [0, 0, 1, 1], [], []>} : vector<64x144xf32>, vector<144x32xf32>, vector<64x32xf32> -> vector<64x32xf32>
    %c0_107 = arith.constant 0 : index
    %c0_108 = arith.constant 0 : index
    %80 = vector.load %arg6[%c0_107, %c0_108] : memref<1x32xf32, #tpu.memory_space<vmem>>, vector<1x32xf32>
    %81 = vector.broadcast %80 : vector<1x32xf32> to vector<64x32xf32>
    %82 = arith.mulf %79, %81 : vector<64x32xf32>
    %c0_109 = arith.constant 0 : index
    %c0_110 = arith.constant 0 : index
    %83 = vector.load %arg7[%c0_109, %c0_110] : memref<1x32xf32, #tpu.memory_space<vmem>>, vector<1x32xf32>
    %84 = vector.broadcast %83 : vector<1x32xf32> to vector<64x32xf32>
    %85 = arith.addf %82, %84 : vector<64x32xf32>
    %cst_111 = arith.constant 0.000000e+00 : f32
    %86 = vector.broadcast %cst_111 : f32 to vector<64x32xf32>
    %87 = arith.maximumf %85, %86 : vector<64x32xf32>
    %88 = vector.shape_cast %87 : vector<64x32xf32> to vector<32x2x32xf32>
    %cst_112 = arith.constant dense<0xFF800000> : vector<32x32xf32>
    %89 = vector.multi_reduction <maximumf>, %88, %cst_112 [1] : vector<32x2x32xf32> to vector<32x32xf32>
    %90 = vector.shape_cast %89 : vector<32x32xf32> to vector<4x2x4x32xf32>
    %cst_113 = arith.constant dense<0xFF800000> : vector<4x4x32xf32>
    %91 = vector.multi_reduction <maximumf>, %90, %cst_113 [1] : vector<4x2x4x32xf32> to vector<4x4x32xf32>
    %cst_114 = arith.constant 0.000000e+00 : f32
    %92 = vector.broadcast %cst_114 : f32 to vector<6x6x32xf32>
    %c0_115 = arith.constant 0 : index
    %c0_116 = arith.constant 0 : index
    %c0_117 = arith.constant 0 : index
    %93 = vector.load %arg24[%c0_115, %c0_116, %c0_117] : memref<6x6x32xf32, #tpu.memory_space<vmem>>, vector<6x6x32xf32>
    tpu.vector_store %arg24[%c0_115, %c0_116, %c0_117], %92 {strides = array<i32>} : memref<6x6x32xf32, #tpu.memory_space<vmem>>, vector<6x6x32xf32>,
    %c1_118 = arith.constant 1 : index
    %c1_119 = arith.constant 1 : index
    %c0_120 = arith.constant 0 : index
    %94 = vector.load %arg24[%c1_118, %c1_119, %c0_120] : memref<6x6x32xf32, #tpu.memory_space<vmem>>, vector<4x4x32xf32>
    tpu.vector_store %arg24[%c1_118, %c1_119, %c0_120], %91 {strides = array<i32>} : memref<6x6x32xf32, #tpu.memory_space<vmem>>, vector<4x4x32xf32>,
    %c0_121 = arith.constant 0 : index
    %c0_122 = arith.constant 0 : index
    %c0_123 = arith.constant 0 : index
    %95 = vector.load %arg24[%c0_121, %c0_122, %c0_123] : memref<6x6x32xf32, #tpu.memory_space<vmem>>, vector<4x4x32xf32>
    %96 = vector.shape_cast %95 : vector<4x4x32xf32> to vector<16x32xf32>
    %c0_124 = arith.constant 0 : index
    %c0_125 = arith.constant 0 : index
    %97 = vector.load %arg25[%c0_124, %c0_125] : memref<16x288xf32, #tpu.memory_space<vmem>>, vector<16x32xf32>
    tpu.vector_store %arg25[%c0_124, %c0_125], %96 {strides = array<i32>} : memref<16x288xf32, #tpu.memory_space<vmem>>, vector<16x32xf32>,
    %c0_126 = arith.constant 0 : index
    %c1_127 = arith.constant 1 : index
    %c0_128 = arith.constant 0 : index
    %98 = vector.load %arg24[%c0_126, %c1_127, %c0_128] : memref<6x6x32xf32, #tpu.memory_space<vmem>>, vector<4x4x32xf32>
    %99 = vector.shape_cast %98 : vector<4x4x32xf32> to vector<16x32xf32>
    %c0_129 = arith.constant 0 : index
    %c32_130 = arith.constant 32 : index
    %100 = vector.load %arg25[%c0_129, %c32_130] : memref<16x288xf32, #tpu.memory_space<vmem>>, vector<16x32xf32>
    tpu.vector_store %arg25[%c0_129, %c32_130], %99 {strides = array<i32>} : memref<16x288xf32, #tpu.memory_space<vmem>>, vector<16x32xf32>,
    %c0_131 = arith.constant 0 : index
    %c2_132 = arith.constant 2 : index
    %c0_133 = arith.constant 0 : index
    %101 = vector.load %arg24[%c0_131, %c2_132, %c0_133] : memref<6x6x32xf32, #tpu.memory_space<vmem>>, vector<4x4x32xf32>
    %102 = vector.shape_cast %101 : vector<4x4x32xf32> to vector<16x32xf32>
    %c0_134 = arith.constant 0 : index
    %c64_135 = arith.constant 64 : index
    %103 = vector.load %arg25[%c0_134, %c64_135] : memref<16x288xf32, #tpu.memory_space<vmem>>, vector<16x32xf32>
    tpu.vector_store %arg25[%c0_134, %c64_135], %102 {strides = array<i32>} : memref<16x288xf32, #tpu.memory_space<vmem>>, vector<16x32xf32>,
    %c1_136 = arith.constant 1 : index
    %c0_137 = arith.constant 0 : index
    %c0_138 = arith.constant 0 : index
    %104 = vector.load %arg24[%c1_136, %c0_137, %c0_138] : memref<6x6x32xf32, #tpu.memory_space<vmem>>, vector<4x4x32xf32>
    %105 = vector.shape_cast %104 : vector<4x4x32xf32> to vector<16x32xf32>
    %c0_139 = arith.constant 0 : index
    %c96_140 = arith.constant 96 : index
    %106 = vector.load %arg25[%c0_139, %c96_140] : memref<16x288xf32, #tpu.memory_space<vmem>>, vector<16x32xf32>
    tpu.vector_store %arg25[%c0_139, %c96_140], %105 {strides = array<i32>} : memref<16x288xf32, #tpu.memory_space<vmem>>, vector<16x32xf32>,
    %c1_141 = arith.constant 1 : index
    %c1_142 = arith.constant 1 : index
    %c0_143 = arith.constant 0 : index
    %107 = vector.load %arg24[%c1_141, %c1_142, %c0_143] : memref<6x6x32xf32, #tpu.memory_space<vmem>>, vector<4x4x32xf32>
    %108 = vector.shape_cast %107 : vector<4x4x32xf32> to vector<16x32xf32>
    %c0_144 = arith.constant 0 : index
    %c128_145 = arith.constant 128 : index
    %109 = vector.load %arg25[%c0_144, %c128_145] : memref<16x288xf32, #tpu.memory_space<vmem>>, vector<16x32xf32>
    tpu.vector_store %arg25[%c0_144, %c128_145], %108 {strides = array<i32>} : memref<16x288xf32, #tpu.memory_space<vmem>>, vector<16x32xf32>,
    %c1_146 = arith.constant 1 : index
    %c2_147 = arith.constant 2 : index
    %c0_148 = arith.constant 0 : index
    %110 = vector.load %arg24[%c1_146, %c2_147, %c0_148] : memref<6x6x32xf32, #tpu.memory_space<vmem>>, vector<4x4x32xf32>
    %111 = vector.shape_cast %110 : vector<4x4x32xf32> to vector<16x32xf32>
    %c0_149 = arith.constant 0 : index
    %c160 = arith.constant 160 : index
    %112 = vector.load %arg25[%c0_149, %c160] : memref<16x288xf32, #tpu.memory_space<vmem>>, vector<16x32xf32>
    tpu.vector_store %arg25[%c0_149, %c160], %111 {strides = array<i32>} : memref<16x288xf32, #tpu.memory_space<vmem>>, vector<16x32xf32>,
    %c2_150 = arith.constant 2 : index
    %c0_151 = arith.constant 0 : index
    %c0_152 = arith.constant 0 : index
    %113 = vector.load %arg24[%c2_150, %c0_151, %c0_152] : memref<6x6x32xf32, #tpu.memory_space<vmem>>, vector<4x4x32xf32>
    %114 = vector.shape_cast %113 : vector<4x4x32xf32> to vector<16x32xf32>
    %c0_153 = arith.constant 0 : index
    %c192 = arith.constant 192 : index
    %115 = vector.load %arg25[%c0_153, %c192] : memref<16x288xf32, #tpu.memory_space<vmem>>, vector<16x32xf32>
    tpu.vector_store %arg25[%c0_153, %c192], %114 {strides = array<i32>} : memref<16x288xf32, #tpu.memory_space<vmem>>, vector<16x32xf32>,
    %c2_154 = arith.constant 2 : index
    %c1_155 = arith.constant 1 : index
    %c0_156 = arith.constant 0 : index
    %116 = vector.load %arg24[%c2_154, %c1_155, %c0_156] : memref<6x6x32xf32, #tpu.memory_space<vmem>>, vector<4x4x32xf32>
    %117 = vector.shape_cast %116 : vector<4x4x32xf32> to vector<16x32xf32>
    %c0_157 = arith.constant 0 : index
    %c224 = arith.constant 224 : index
    %118 = vector.load %arg25[%c0_157, %c224] : memref<16x288xf32, #tpu.memory_space<vmem>>, vector<16x32xf32>
    tpu.vector_store %arg25[%c0_157, %c224], %117 {strides = array<i32>} : memref<16x288xf32, #tpu.memory_space<vmem>>, vector<16x32xf32>,
    %c2_158 = arith.constant 2 : index
    %c2_159 = arith.constant 2 : index
    %c0_160 = arith.constant 0 : index
    %119 = vector.load %arg24[%c2_158, %c2_159, %c0_160] : memref<6x6x32xf32, #tpu.memory_space<vmem>>, vector<4x4x32xf32>
    %120 = vector.shape_cast %119 : vector<4x4x32xf32> to vector<16x32xf32>
    %c0_161 = arith.constant 0 : index
    %c256 = arith.constant 256 : index
    %121 = vector.load %arg25[%c0_161, %c256] : memref<16x288xf32, #tpu.memory_space<vmem>>, vector<16x32xf32>
    tpu.vector_store %arg25[%c0_161, %c256], %120 {strides = array<i32>} : memref<16x288xf32, #tpu.memory_space<vmem>>, vector<16x32xf32>,
    %c0_162 = arith.constant 0 : index
    %c0_163 = arith.constant 0 : index
    %122 = vector.load %arg25[%c0_162, %c0_163] : memref<16x288xf32, #tpu.memory_space<vmem>>, vector<16x288xf32>
    %c0_164 = arith.constant 0 : index
    %c0_165 = arith.constant 0 : index
    %123 = vector.load %arg8[%c0_164, %c0_165] : memref<288x64xf32, #tpu.memory_space<vmem>>, vector<288x64xf32>
    %cst_166 = arith.constant dense<0.000000e+00> : vector<16x64xf32>
    %124 = tpu.matmul %122, %123, %cst_166 {dimension_numbers = #tpu.dot_dimension_numbers<[1], [0], [0], [1], [0, 0, 1, 1], [], []>} : vector<16x288xf32>, vector<288x64xf32>, vector<16x64xf32> -> vector<16x64xf32>
    %c0_167 = arith.constant 0 : index
    %c0_168 = arith.constant 0 : index
    %125 = vector.load %arg9[%c0_167, %c0_168] : memref<1x64xf32, #tpu.memory_space<vmem>>, vector<1x64xf32>
    %126 = vector.broadcast %125 : vector<1x64xf32> to vector<16x64xf32>
    %127 = arith.mulf %124, %126 : vector<16x64xf32>
    %c0_169 = arith.constant 0 : index
    %c0_170 = arith.constant 0 : index
    %128 = vector.load %arg10[%c0_169, %c0_170] : memref<1x64xf32, #tpu.memory_space<vmem>>, vector<1x64xf32>
    %129 = vector.broadcast %128 : vector<1x64xf32> to vector<16x64xf32>
    %130 = arith.addf %127, %129 : vector<16x64xf32>
    %cst_171 = arith.constant 0.000000e+00 : f32
    %131 = vector.broadcast %cst_171 : f32 to vector<16x64xf32>
    %132 = arith.maximumf %130, %131 : vector<16x64xf32>
    %133 = vector.shape_cast %132 : vector<16x64xf32> to vector<8x2x64xf32>
    %cst_172 = arith.constant dense<0xFF800000> : vector<8x64xf32>
    %134 = vector.multi_reduction <maximumf>, %133, %cst_172 [1] : vector<8x2x64xf32> to vector<8x64xf32>
    %135 = vector.shape_cast %134 : vector<8x64xf32> to vector<2x2x2x64xf32>
    %cst_173 = arith.constant dense<0xFF800000> : vector<2x2x64xf32>
    %136 = vector.multi_reduction <maximumf>, %135, %cst_173 [1] : vector<2x2x2x64xf32> to vector<2x2x64xf32>
    %cst_174 = arith.constant 0.000000e+00 : f32
    %137 = vector.broadcast %cst_174 : f32 to vector<4x4x64xf32>
    %c0_175 = arith.constant 0 : index
    %c0_176 = arith.constant 0 : index
    %c0_177 = arith.constant 0 : index
    %138 = vector.load %arg26[%c0_175, %c0_176, %c0_177] : memref<4x4x64xf32, #tpu.memory_space<vmem>>, vector<4x4x64xf32>
    tpu.vector_store %arg26[%c0_175, %c0_176, %c0_177], %137 {strides = array<i32>} : memref<4x4x64xf32, #tpu.memory_space<vmem>>, vector<4x4x64xf32>,
    %c1_178 = arith.constant 1 : index
    %c1_179 = arith.constant 1 : index
    %c0_180 = arith.constant 0 : index
    %139 = vector.load %arg26[%c1_178, %c1_179, %c0_180] : memref<4x4x64xf32, #tpu.memory_space<vmem>>, vector<2x2x64xf32>
    tpu.vector_store %arg26[%c1_178, %c1_179, %c0_180], %136 {strides = array<i32>} : memref<4x4x64xf32, #tpu.memory_space<vmem>>, vector<2x2x64xf32>,
    %c0_181 = arith.constant 0 : index
    %c0_182 = arith.constant 0 : index
    %c0_183 = arith.constant 0 : index
    %140 = vector.load %arg26[%c0_181, %c0_182, %c0_183] : memref<4x4x64xf32, #tpu.memory_space<vmem>>, vector<2x2x64xf32>
    %141 = vector.shape_cast %140 : vector<2x2x64xf32> to vector<4x64xf32>
    %c0_184 = arith.constant 0 : index
    %c0_185 = arith.constant 0 : index
    %142 = vector.load %arg27[%c0_184, %c0_185] : memref<4x576xf32, #tpu.memory_space<vmem>>, vector<4x64xf32>
    tpu.vector_store %arg27[%c0_184, %c0_185], %141 {strides = array<i32>} : memref<4x576xf32, #tpu.memory_space<vmem>>, vector<4x64xf32>,
    %c0_186 = arith.constant 0 : index
    %c1_187 = arith.constant 1 : index
    %c0_188 = arith.constant 0 : index
    %143 = vector.load %arg26[%c0_186, %c1_187, %c0_188] : memref<4x4x64xf32, #tpu.memory_space<vmem>>, vector<2x2x64xf32>
    %144 = vector.shape_cast %143 : vector<2x2x64xf32> to vector<4x64xf32>
    %c0_189 = arith.constant 0 : index
    %c64_190 = arith.constant 64 : index
    %145 = vector.load %arg27[%c0_189, %c64_190] : memref<4x576xf32, #tpu.memory_space<vmem>>, vector<4x64xf32>
    tpu.vector_store %arg27[%c0_189, %c64_190], %144 {strides = array<i32>} : memref<4x576xf32, #tpu.memory_space<vmem>>, vector<4x64xf32>,
    %c0_191 = arith.constant 0 : index
    %c2_192 = arith.constant 2 : index
    %c0_193 = arith.constant 0 : index
    %146 = vector.load %arg26[%c0_191, %c2_192, %c0_193] : memref<4x4x64xf32, #tpu.memory_space<vmem>>, vector<2x2x64xf32>
    %147 = vector.shape_cast %146 : vector<2x2x64xf32> to vector<4x64xf32>
    %c0_194 = arith.constant 0 : index
    %c128_195 = arith.constant 128 : index
    %148 = vector.load %arg27[%c0_194, %c128_195] : memref<4x576xf32, #tpu.memory_space<vmem>>, vector<4x64xf32>
    tpu.vector_store %arg27[%c0_194, %c128_195], %147 {strides = array<i32>} : memref<4x576xf32, #tpu.memory_space<vmem>>, vector<4x64xf32>,
    %c1_196 = arith.constant 1 : index
    %c0_197 = arith.constant 0 : index
    %c0_198 = arith.constant 0 : index
    %149 = vector.load %arg26[%c1_196, %c0_197, %c0_198] : memref<4x4x64xf32, #tpu.memory_space<vmem>>, vector<2x2x64xf32>
    %150 = vector.shape_cast %149 : vector<2x2x64xf32> to vector<4x64xf32>
    %c0_199 = arith.constant 0 : index
    %c192_200 = arith.constant 192 : index
    %151 = vector.load %arg27[%c0_199, %c192_200] : memref<4x576xf32, #tpu.memory_space<vmem>>, vector<4x64xf32>
    tpu.vector_store %arg27[%c0_199, %c192_200], %150 {strides = array<i32>} : memref<4x576xf32, #tpu.memory_space<vmem>>, vector<4x64xf32>,
    %c1_201 = arith.constant 1 : index
    %c1_202 = arith.constant 1 : index
    %c0_203 = arith.constant 0 : index
    %152 = vector.load %arg26[%c1_201, %c1_202, %c0_203] : memref<4x4x64xf32, #tpu.memory_space<vmem>>, vector<2x2x64xf32>
    %153 = vector.shape_cast %152 : vector<2x2x64xf32> to vector<4x64xf32>
    %c0_204 = arith.constant 0 : index
    %c256_205 = arith.constant 256 : index
    %154 = vector.load %arg27[%c0_204, %c256_205] : memref<4x576xf32, #tpu.memory_space<vmem>>, vector<4x64xf32>
    tpu.vector_store %arg27[%c0_204, %c256_205], %153 {strides = array<i32>} : memref<4x576xf32, #tpu.memory_space<vmem>>, vector<4x64xf32>,
    %c1_206 = arith.constant 1 : index
    %c2_207 = arith.constant 2 : index
    %c0_208 = arith.constant 0 : index
    %155 = vector.load %arg26[%c1_206, %c2_207, %c0_208] : memref<4x4x64xf32, #tpu.memory_space<vmem>>, vector<2x2x64xf32>
    %156 = vector.shape_cast %155 : vector<2x2x64xf32> to vector<4x64xf32>
    %c0_209 = arith.constant 0 : index
    %c320 = arith.constant 320 : index
    %157 = vector.load %arg27[%c0_209, %c320] : memref<4x576xf32, #tpu.memory_space<vmem>>, vector<4x64xf32>
    tpu.vector_store %arg27[%c0_209, %c320], %156 {strides = array<i32>} : memref<4x576xf32, #tpu.memory_space<vmem>>, vector<4x64xf32>,
    %c2_210 = arith.constant 2 : index
    %c0_211 = arith.constant 0 : index
    %c0_212 = arith.constant 0 : index
    %158 = vector.load %arg26[%c2_210, %c0_211, %c0_212] : memref<4x4x64xf32, #tpu.memory_space<vmem>>, vector<2x2x64xf32>
    %159 = vector.shape_cast %158 : vector<2x2x64xf32> to vector<4x64xf32>
    %c0_213 = arith.constant 0 : index
    %c384 = arith.constant 384 : index
    %160 = vector.load %arg27[%c0_213, %c384] : memref<4x576xf32, #tpu.memory_space<vmem>>, vector<4x64xf32>
    tpu.vector_store %arg27[%c0_213, %c384], %159 {strides = array<i32>} : memref<4x576xf32, #tpu.memory_space<vmem>>, vector<4x64xf32>,
    %c2_214 = arith.constant 2 : index
    %c1_215 = arith.constant 1 : index
    %c0_216 = arith.constant 0 : index
    %161 = vector.load %arg26[%c2_214, %c1_215, %c0_216] : memref<4x4x64xf32, #tpu.memory_space<vmem>>, vector<2x2x64xf32>
    %162 = vector.shape_cast %161 : vector<2x2x64xf32> to vector<4x64xf32>
    %c0_217 = arith.constant 0 : index
    %c448 = arith.constant 448 : index
    %163 = vector.load %arg27[%c0_217, %c448] : memref<4x576xf32, #tpu.memory_space<vmem>>, vector<4x64xf32>
    tpu.vector_store %arg27[%c0_217, %c448], %162 {strides = array<i32>} : memref<4x576xf32, #tpu.memory_space<vmem>>, vector<4x64xf32>,
    %c2_218 = arith.constant 2 : index
    %c2_219 = arith.constant 2 : index
    %c0_220 = arith.constant 0 : index
    %164 = vector.load %arg26[%c2_218, %c2_219, %c0_220] : memref<4x4x64xf32, #tpu.memory_space<vmem>>, vector<2x2x64xf32>
    %165 = vector.shape_cast %164 : vector<2x2x64xf32> to vector<4x64xf32>
    %c0_221 = arith.constant 0 : index
    %c512 = arith.constant 512 : index
    %166 = vector.load %arg27[%c0_221, %c512] : memref<4x576xf32, #tpu.memory_space<vmem>>, vector<4x64xf32>
    tpu.vector_store %arg27[%c0_221, %c512], %165 {strides = array<i32>} : memref<4x576xf32, #tpu.memory_space<vmem>>, vector<4x64xf32>,
    %c0_222 = arith.constant 0 : index
    %c0_223 = arith.constant 0 : index
    %167 = vector.load %arg27[%c0_222, %c0_223] : memref<4x576xf32, #tpu.memory_space<vmem>>, vector<4x576xf32>
    %c0_224 = arith.constant 0 : index
    %c0_225 = arith.constant 0 : index
    %168 = vector.load %arg11[%c0_224, %c0_225] : memref<576x128xf32, #tpu.memory_space<vmem>>, vector<576x128xf32>
    %cst_226 = arith.constant dense<0.000000e+00> : vector<4x128xf32>
    %169 = tpu.matmul %167, %168, %cst_226 {dimension_numbers = #tpu.dot_dimension_numbers<[1], [0], [0], [1], [0, 0, 1, 1], [], []>} : vector<4x576xf32>, vector<576x128xf32>, vector<4x128xf32> -> vector<4x128xf32>
    %c0_227 = arith.constant 0 : index
    %c0_228 = arith.constant 0 : index
    %170 = vector.load %arg12[%c0_227, %c0_228] : memref<1x128xf32, #tpu.memory_space<vmem>>, vector<1x128xf32>
    %171 = vector.broadcast %170 : vector<1x128xf32> to vector<4x128xf32>
    %172 = arith.mulf %169, %171 : vector<4x128xf32>
    %c0_229 = arith.constant 0 : index
    %c0_230 = arith.constant 0 : index
    %173 = vector.load %arg13[%c0_229, %c0_230] : memref<1x128xf32, #tpu.memory_space<vmem>>, vector<1x128xf32>
    %174 = vector.broadcast %173 : vector<1x128xf32> to vector<4x128xf32>
    %175 = arith.addf %172, %174 : vector<4x128xf32>
    %cst_231 = arith.constant 0.000000e+00 : f32
    %176 = vector.broadcast %cst_231 : f32 to vector<4x128xf32>
    %177 = arith.maximumf %175, %176 : vector<4x128xf32>
    %cst_232 = arith.constant dense<0.000000e+00> : vector<128xf32>
    %178 = vector.multi_reduction <add>, %177, %cst_232 [0] : vector<4x128xf32> to vector<128xf32>
    %179 = vector.shape_cast %178 : vector<128xf32> to vector<1x128xf32>
    %cst_233 = arith.constant 4.000000e+00 : f32
    %180 = vector.broadcast %cst_233 : f32 to vector<1x128xf32>
    %181 = arith.divf %179, %180 : vector<1x128xf32>
    %c0_234 = arith.constant 0 : index
    %c0_235 = arith.constant 0 : index
    %c0_236 = arith.constant 0 : index
    %182 = vector.load %arg19[%c0_234, %c0_235, %c0_236] : memref<1x1x128xf32, #tpu.memory_space<vmem>>, vector<1x1x128xf32>
    %183 = vector.shape_cast %182 : vector<1x1x128xf32> to vector<1x128xf32>
    %184 = vector.shape_cast %181 : vector<1x128xf32> to vector<1x1x128xf32>
    tpu.vector_store %arg19[%c0_234, %c0_235, %c0_236], %184 {strides = array<i32>} : memref<1x1x128xf32, #tpu.memory_space<vmem>>, vector<1x1x128xf32>,
    %c0_237 = arith.constant 0 : index
    %c0_238 = arith.constant 0 : index
    %185 = vector.load %arg14[%c0_237, %c0_238] : memref<128x64xf32, #tpu.memory_space<vmem>>, vector<128x64xf32>
    %cst_239 = arith.constant dense<0.000000e+00> : vector<1x64xf32>
    %186 = tpu.matmul %181, %185, %cst_239 {dimension_numbers = #tpu.dot_dimension_numbers<[1], [0], [0], [1], [0, 0, 1, 1], [], []>} : vector<1x128xf32>, vector<128x64xf32>, vector<1x64xf32> -> vector<1x64xf32>
    %c0_240 = arith.constant 0 : index
    %c0_241 = arith.constant 0 : index
    %187 = vector.load %arg15[%c0_240, %c0_241] : memref<1x64xf32, #tpu.memory_space<vmem>>, vector<1x64xf32>
    %188 = arith.addf %186, %187 : vector<1x64xf32>
    %cst_242 = arith.constant 0.000000e+00 : f32
    %189 = vector.broadcast %cst_242 : f32 to vector<1x64xf32>
    %190 = arith.maximumf %188, %189 : vector<1x64xf32>
    %c0_243 = arith.constant 0 : index
    %c0_244 = arith.constant 0 : index
    %191 = vector.load %arg16[%c0_243, %c0_244] : memref<64x16xf32, #tpu.memory_space<vmem>>, vector<64x16xf32>
    %cst_245 = arith.constant dense<0.000000e+00> : vector<1x16xf32>
    %192 = tpu.matmul %190, %191, %cst_245 {dimension_numbers = #tpu.dot_dimension_numbers<[1], [0], [0], [1], [0, 0, 1, 1], [], []>} : vector<1x64xf32>, vector<64x16xf32>, vector<1x16xf32> -> vector<1x16xf32>
    %c0_246 = arith.constant 0 : index
    %c0_247 = arith.constant 0 : index
    %193 = vector.load %arg17[%c0_246, %c0_247] : memref<1x16xf32, #tpu.memory_space<vmem>>, vector<1x16xf32>
    %194 = arith.addf %192, %193 : vector<1x16xf32>
    %c0_248 = arith.constant 0 : index
    %c0_249 = arith.constant 0 : index
    %c0_250 = arith.constant 0 : index
    %195 = vector.load %arg18[%c0_248, %c0_249, %c0_250] : memref<1x1x16xf32, #tpu.memory_space<vmem>>, vector<1x1x16xf32>
    %196 = vector.shape_cast %195 : vector<1x1x16xf32> to vector<1x16xf32>
    %197 = vector.shape_cast %194 : vector<1x16xf32> to vector<1x1x16xf32>
    tpu.vector_store %arg18[%c0_248, %c0_249, %c0_250], %197 {strides = array<i32>} : memref<1x1x16xf32, #tpu.memory_space<vmem>>, vector<1x1x16xf32>,
    return
  }
  func.func @transform_0(%arg0: i32) -> (i32, i32, i32, i32) {
    %c0_i32 = arith.constant 0 : i32
    %c0_i32_0 = arith.constant 0 : i32
    %c0_i32_1 = arith.constant 0 : i32
    %c0_i32_2 = arith.constant 0 : i32
    return %arg0, %c0_i32, %c0_i32_0, %c0_i32_1 : i32, i32, i32, i32
  }
  func.func @transform_1(%arg0: i32) -> (i32, i32) {
    %c0_i32 = arith.constant 0 : i32
    %c0_i32_0 = arith.constant 0 : i32
    %c0_i32_1 = arith.constant 0 : i32
    return %c0_i32, %c0_i32_0 : i32, i32
  }
  func.func @transform_2(%arg0: i32) -> (i32, i32) {
    %c0_i32 = arith.constant 0 : i32
    %c0_i32_0 = arith.constant 0 : i32
    %c0_i32_1 = arith.constant 0 : i32
    return %c0_i32, %c0_i32_0 : i32, i32
  }
  func.func @transform_3(%arg0: i32) -> (i32, i32) {
    %c0_i32 = arith.constant 0 : i32
    %c0_i32_0 = arith.constant 0 : i32
    %c0_i32_1 = arith.constant 0 : i32
    return %c0_i32, %c0_i32_0 : i32, i32
  }
  func.func @transform_4(%arg0: i32) -> (i32, i32) {
    %c0_i32 = arith.constant 0 : i32
    %c0_i32_0 = arith.constant 0 : i32
    %c0_i32_1 = arith.constant 0 : i32
    return %c0_i32, %c0_i32_0 : i32, i32
  }
  func.func @transform_5(%arg0: i32) -> (i32, i32) {
    %c0_i32 = arith.constant 0 : i32
    %c0_i32_0 = arith.constant 0 : i32
    %c0_i32_1 = arith.constant 0 : i32
    return %c0_i32, %c0_i32_0 : i32, i32
  }
  func.func @transform_6(%arg0: i32) -> (i32, i32) {
    %c0_i32 = arith.constant 0 : i32
    %c0_i32_0 = arith.constant 0 : i32
    %c0_i32_1 = arith.constant 0 : i32
    return %c0_i32, %c0_i32_0 : i32, i32
  }
  func.func @transform_7(%arg0: i32) -> (i32, i32) {
    %c0_i32 = arith.constant 0 : i32
    %c0_i32_0 = arith.constant 0 : i32
    %c0_i32_1 = arith.constant 0 : i32
    return %c0_i32, %c0_i32_0 : i32, i32
  }
  func.func @transform_8(%arg0: i32) -> (i32, i32) {
    %c0_i32 = arith.constant 0 : i32
    %c0_i32_0 = arith.constant 0 : i32
    %c0_i32_1 = arith.constant 0 : i32
    return %c0_i32, %c0_i32_0 : i32, i32
  }
  func.func @transform_9(%arg0: i32) -> (i32, i32) {
    %c0_i32 = arith.constant 0 : i32
    %c0_i32_0 = arith.constant 0 : i32
    %c0_i32_1 = arith.constant 0 : i32
    return %c0_i32, %c0_i32_0 : i32, i32
  }
  func.func @transform_10(%arg0: i32) -> (i32, i32) {
    %c0_i32 = arith.constant 0 : i32
    %c0_i32_0 = arith.constant 0 : i32
    %c0_i32_1 = arith.constant 0 : i32
    return %c0_i32, %c0_i32_0 : i32, i32
  }
  func.func @transform_11(%arg0: i32) -> (i32, i32) {
    %c0_i32 = arith.constant 0 : i32
    %c0_i32_0 = arith.constant 0 : i32
    %c0_i32_1 = arith.constant 0 : i32
    return %c0_i32, %c0_i32_0 : i32, i32
  }
  func.func @transform_12(%arg0: i32) -> (i32, i32) {
    %c0_i32 = arith.constant 0 : i32
    %c0_i32_0 = arith.constant 0 : i32
    %c0_i32_1 = arith.constant 0 : i32
    return %c0_i32, %c0_i32_0 : i32, i32
  }
  func.func @transform_13(%arg0: i32) -> (i32, i32) {
    %c0_i32 = arith.constant 0 : i32
    %c0_i32_0 = arith.constant 0 : i32
    %c0_i32_1 = arith.constant 0 : i32
    return %c0_i32, %c0_i32_0 : i32, i32
  }
  func.func @transform_14(%arg0: i32) -> (i32, i32) {
    %c0_i32 = arith.constant 0 : i32
    %c0_i32_0 = arith.constant 0 : i32
    %c0_i32_1 = arith.constant 0 : i32
    return %c0_i32, %c0_i32_0 : i32, i32
  }
  func.func @transform_15(%arg0: i32) -> (i32, i32) {
    %c0_i32 = arith.constant 0 : i32
    %c0_i32_0 = arith.constant 0 : i32
    %c0_i32_1 = arith.constant 0 : i32
    return %c0_i32, %c0_i32_0 : i32, i32
  }
  func.func @transform_16(%arg0: i32) -> (i32, i32) {
    %c0_i32 = arith.constant 0 : i32
    %c0_i32_0 = arith.constant 0 : i32
    %c0_i32_1 = arith.constant 0 : i32
    return %c0_i32, %c0_i32_0 : i32, i32
  }
  func.func @transform_17(%arg0: i32) -> (i32, i32, i32) {
    %c0_i32 = arith.constant 0 : i32
    %c0_i32_0 = arith.constant 0 : i32
    %c0_i32_1 = arith.constant 0 : i32
    return %arg0, %c0_i32, %c0_i32_0 : i32, i32, i32
  }
  func.func @transform_18(%arg0: i32) -> (i32, i32, i32) {
    %c0_i32 = arith.constant 0 : i32
    %c0_i32_0 = arith.constant 0 : i32
    %c0_i32_1 = arith.constant 0 : i32
    return %arg0, %c0_i32, %c0_i32_0 : i32, i32, i32
  }
}

</mosaic_0001>

<llo_original>
// kernel: tpu_custom_call.1
$region0: #{tpu_custom_call.1}
  #allocation0 [shape = 'u32[]', space=smem, size = 0x4, offset = 0x4, fixed_abs, tag = 'smem constant byte address 0x4 - core index']
  #allocation1 [shape = 'u32[144,128]{1,0:T(1,128)}', space=vmem, size = 0x12000, scoped, tag = 'internal scratch']
  #allocation2 [shape = 'f32[18,18,4]{2,1,0:T(8,128)}', space=vmem, size = 0x36000, scoped, tag = 'scratch operand']
  #allocation3 [shape = 'f32[256,36]{1,0:T(8,128)}', space=vmem, size = 0x20000, scoped, tag = 'scratch operand']
  #allocation4 [shape = 'f32[10,10,16]{2,1,0:T(8,128)}', space=vmem, size = 0x14000, scoped, tag = 'scratch operand']
  #allocation5 [shape = 'f32[64,144]{1,0:T(8,128)}', space=vmem, size = 0x10000, scoped, tag = 'scratch operand']
  #allocation6 [shape = 'f32[6,6,32]{2,1,0:T(8,128)}', space=vmem, size = 0x6000, scoped, tag = 'scratch operand']
  #allocation7 [shape = 'f32[16,288]{1,0:T(8,128)}', space=vmem, size = 0x6000, scoped, tag = 'scratch operand']
  #allocation8 [shape = 'f32[4,4,64]{2,1,0:T(4,128)}', space=vmem, size = 0x2000, scoped, tag = 'scratch operand']
  #allocation9 [shape = 'f32[4,576]{1,0:T(4,128)}', space=vmem, size = 0x2800, scoped, tag = 'scratch operand']
  %s0 = inlined_call_operand.vmem [shape: f32[2,16,16,4], index: 0, kind: input, shape index: {}]
  %s1 = inlined_call_operand.vmem [shape: f32[36,16], index: 1, kind: input, shape index: {}]
  %s2 = inlined_call_operand.vmem [shape: f32[1,16], index: 2, kind: input, shape index: {}]
  %s3 = inlined_call_operand.vmem [shape: f32[1,16], index: 3, kind: input, shape index: {}]
  %s4 = inlined_call_operand.vmem [shape: f32[144,32], index: 4, kind: input, shape index: {}]
  %s5 = inlined_call_operand.vmem [shape: f32[1,32], index: 5, kind: input, shape index: {}]
  %s6 = inlined_call_operand.vmem [shape: f32[1,32], index: 6, kind: input, shape index: {}]
  %s7 = inlined_call_operand.vmem [shape: f32[288,64], index: 7, kind: input, shape index: {}]
  %s8 = inlined_call_operand.vmem [shape: f32[1,64], index: 8, kind: input, shape index: {}]
  %s9 = inlined_call_operand.vmem [shape: f32[1,64], index: 9, kind: input, shape index: {}]
  %s10 = inlined_call_operand.vmem [shape: f32[576,128], index: 10, kind: input, shape index: {}]
  %s11 = inlined_call_operand.vmem [shape: f32[1,128], index: 11, kind: input, shape index: {}]
  %s12 = inlined_call_operand.vmem [shape: f32[1,128], index: 12, kind: input, shape index: {}]
  %s13 = inlined_call_operand.vmem [shape: f32[128,64], index: 13, kind: input, shape index: {}]
  %s14 = inlined_call_operand.vmem [shape: f32[1,64], index: 14, kind: input, shape index: {}]
  %s15 = inlined_call_operand.vmem [shape: f32[64,16], index: 15, kind: input, shape index: {}]
  %s16 = inlined_call_operand.vmem [shape: f32[1,16], index: 16, kind: input, shape index: {}]
  %s17 = inlined_call_operand.hbm [shape: f32[2,1,16], index: 17, kind: output, shape index: {0}]
  %s18 = inlined_call_operand.hbm [shape: f32[2,1,128], index: 18, kind: output, shape index: {1}]
  %19 = xla_tuple %s17, %s18
  %s20 = sld [smem:[#allocation0]]
  $region109: #{tpu_custom_call.1} parent=0
    _
  %s22 = ssub.s32 1, %s20
  %s23 = scalar_select 0, %s22, %s20
  $region1: #{tpu_custom_call.1} parent=0
    #allocation10 [shape = 'u8[1024]{0}', space=vmem, size = 0x400, scoped, tag = 'output window, operand 0']
    #allocation11 [shape = 's32[2]{0}', space=sflag, size = 0x8, scoped, tag = 'scoped memory for tpu_custom_call.1']
    #allocation12 [shape = 'u8[1024]{0}', space=vmem, size = 0x400, scoped, tag = 'output window, operand 1']
    #allocation13 [shape = 's32[2]{0}', space=sflag, size = 0x8, scoped, tag = 'scoped memory for tpu_custom_call.1']
    %24 = vsyncpa [#allocation11], 0
    %s25 = scalar_lea.sflag [#allocation11], 1
    %26 = vsyncpa %s25, 0
    %27 = vsyncpa [#allocation13], 0
    %s28 = scalar_lea.sflag [#allocation13], 1
    %29 = vsyncpa %s28, 0
    loop: start=0, step=1, limit=4
    $region2: #{tpu_custom_call.1} parent=1 // loop_pre_header
      _
    $region3: #{tpu_custom_call.1} parent=1 // loop_header
      %s31 = sphi 0, %s35
      %p32 = scmp.ge.s32.totalorder %s31, 4
      %s41 = sphi 0, %s43
      %s44 = sphi 0, %s41
      %s45 = sphi 0, %s44
      %s61 = sphi 0, %s45
      %s65 = sphi 0, %s65
      %s67 = sphi 0, %s65
      %s68 = sphi 0, %s67
      %s82 = sphi 0, %s68
      %s86 = sphi 0, %s86
      %s88 = sphi 0, %s86
      %s89 = sphi 0, %s88
      %s103 = sphi 0, %s89
      %s107 = sphi 0, %s107
      %s109 = sphi 0, %s107
      %s110 = sphi 0, %s109
      %s124 = sphi 0, %s110
      %s128 = sphi 0, %s128
      %s130 = sphi 0, %s128
      %s131 = sphi 0, %s130
      %s145 = sphi 0, %s131
      %s149 = sphi 0, %s149
      %s151 = sphi 0, %s149
      %s152 = sphi 0, %s151
      %s166 = sphi 0, %s152
      %s170 = sphi 0, %s170
      %s172 = sphi 0, %s170
      %s173 = sphi 0, %s172
      %s187 = sphi 0, %s173
      %s191 = sphi 0, %s191
      %s193 = sphi 0, %s191
      %s194 = sphi 0, %s193
      %s208 = sphi 0, %s194
      %s212 = sphi 0, %s212
      %s214 = sphi 0, %s212
      %s215 = sphi 0, %s214
      %s229 = sphi 0, %s215
      %s233 = sphi 0, %s233
      %s235 = sphi 0, %s233
      %s236 = sphi 0, %s235
      %s250 = sphi 0, %s236
      %s254 = sphi 0, %s254
      %s256 = sphi 0, %s254
      %s257 = sphi 0, %s256
      %s271 = sphi 0, %s257
      %s275 = sphi 0, %s275
      %s277 = sphi 0, %s275
      %s278 = sphi 0, %s277
      %s292 = sphi 0, %s278
      %s296 = sphi 0, %s296
      %s298 = sphi 0, %s296
      %s299 = sphi 0, %s298
      %s313 = sphi 0, %s299
      %s317 = sphi 0, %s317
      %s319 = sphi 0, %s317
      %s320 = sphi 0, %s319
      %s334 = sphi 0, %s320
      %s338 = sphi 0, %s338
      %s340 = sphi 0, %s338
      %s341 = sphi 0, %s340
      %s355 = sphi 0, %s341
      %s359 = sphi 0, %s359
      %s361 = sphi 0, %s359
      %s362 = sphi 0, %s361
      %s376 = sphi 0, %s362
      %s380 = sphi 0, %s380
      %s382 = sphi 0, %s380
      %s383 = sphi 0, %s382
      %s397 = sphi 0, %s383
      %s403 = sphi 0, %s405
      %s406 = sphi 0, %s403
      %s407 = sphi 0, %s406
      %s423 = sphi 0, %s407
      %s429 = sphi 0, %s431
      %s432 = sphi 0, %s429
      %s433 = sphi 0, %s432
      %s449 = sphi 0, %s433
    $region4: #{tpu_custom_call.1} parent=1 // loop_header_branch
      %34 = sbr.rel (%p32) target = $region8
    $region5: #{tpu_custom_call.1} parent=1 // loop_body
      %s36 = ssub.s32 %s31, 1
      %s37 = ssub.s32 %s31, 2
      %s38 = sadd.s32 %s31, 1
      %s39 = ssub.s32 %s31, %s38
      %p40 = scmp.eq.s32.totalorder %s39, 0
      %s42 = sadd.s32 %s41, 1
      %s43 = scalar_select %p40, %s41, %s42
      %p46 = pneg %p40
      %p47 = scmp.eq.s32.totalorder %s31, 1
      %p48 = por %p46, %p47
      %p49 = scmp.ne.s32.totalorder %s41, %s44
      %p50 = scmp.eq.s32.totalorder %s31, 0
      %p51 = por %p49, %p50
      %p52 = scmp.ne.s32.totalorder %s41, %s44
      %p53 = scmp.eq.s32.totalorder %s36, 1
      %p54 = por %p52, %p53
      %p55 = scmp.ne.s32.totalorder %s44, %s45
      %p56 = scmp.eq.s32.totalorder %s36, 0
      %p57 = por %p55, %p56
      %p58 = scmp.ne.s32.totalorder %s44, %s45
      %p59 = scmp.eq.s32.totalorder %s37, 1
      %p60 = por %p58, %p59
      %p62 = scmp.ne.s32.totalorder %s45, %s61
      %p63 = scmp.eq.s32.totalorder %s37, 0
      %p64 = por %p62, %p63
      %s66 = sadd.s32 %s65, 1
      %p69 = scmp.eq.s32.totalorder %s31, 1
      %p70 = scmp.ne.s32.totalorder %s65, %s67
      %p71 = scmp.eq.s32.totalorder %s31, 0
      %p72 = por %p70, %p71
      %p73 = scmp.ne.s32.totalorder %s65, %s67
      %p74 = scmp.eq.s32.totalorder %s36, 1
      %p75 = por %p73, %p74
      %p76 = scmp.ne.s32.totalorder %s67, %s68
      %p77 = scmp.eq.s32.totalorder %s36, 0
      %p78 = por %p76, %p77
      %p79 = scmp.ne.s32.totalorder %s67, %s68
      %p80 = scmp.eq.s32.totalorder %s37, 1
      %p81 = por %p79, %p80
      %p83 = scmp.ne.s32.totalorder %s68, %s82
      %p84 = scmp.eq.s32.totalorder %s37, 0
      %p85 = por %p83, %p84
      %s87 = sadd.s32 %s86, 1
      %p90 = scmp.eq.s32.totalorder %s31, 1
      %p91 = scmp.ne.s32.totalorder %s86, %s88
      %p92 = scmp.eq.s32.totalorder %s31, 0
      %p93 = por %p91, %p92
      %p94 = scmp.ne.s32.totalorder %s86, %s88
      %p95 = scmp.eq.s32.totalorder %s36, 1
      %p96 = por %p94, %p95
      %p97 = scmp.ne.s32.totalorder %s88, %s89
      %p98 = scmp.eq.s32.totalorder %s36, 0
      %p99 = por %p97, %p98
      %p100 = scmp.ne.s32.totalorder %s88, %s89
      %p101 = scmp.eq.s32.totalorder %s37, 1
      %p102 = por %p100, %p101
      %p104 = scmp.ne.s32.totalorder %s89, %s103
      %p105 = scmp.eq.s32.totalorder %s37, 0
      %p106 = por %p104, %p105
      %s108 = sadd.s32 %s107, 1
      %p111 = scmp.eq.s32.totalorder %s31, 1
      %p112 = scmp.ne.s32.totalorder %s107, %s109
      %p113 = scmp.eq.s32.totalorder %s31, 0
      %p114 = por %p112, %p113
      %p115 = scmp.ne.s32.totalorder %s107, %s109
      %p116 = scmp.eq.s32.totalorder %s36, 1
      %p117 = por %p115, %p116
      %p118 = scmp.ne.s32.totalorder %s109, %s110
      %p119 = scmp.eq.s32.totalorder %s36, 0
      %p120 = por %p118, %p119
      %p121 = scmp.ne.s32.totalorder %s109, %s110
      %p122 = scmp.eq.s32.totalorder %s37, 1
      %p123 = por %p121, %p122
      %p125 = scmp.ne.s32.totalorder %s110, %s124
      %p126 = scmp.eq.s32.totalorder %s37, 0
      %p127 = por %p125, %p126
      %s129 = sadd.s32 %s128, 1
      %p132 = scmp.eq.s32.totalorder %s31, 1
      %p133 = scmp.ne.s32.totalorder %s128, %s130
      %p134 = scmp.eq.s32.totalorder %s31, 0
      %p135 = por %p133, %p134
      %p136 = scmp.ne.s32.totalorder %s128, %s130
      %p137 = scmp.eq.s32.totalorder %s36, 1
      %p138 = por %p136, %p137
      %p139 = scmp.ne.s32.totalorder %s130, %s131
      %p140 = scmp.eq.s32.totalorder %s36, 0
      %p141 = por %p139, %p140
      %p142 = scmp.ne.s32.totalorder %s130, %s131
      %p143 = scmp.eq.s32.totalorder %s37, 1
      %p144 = por %p142, %p143
      %p146 = scmp.ne.s32.totalorder %s131, %s145
      %p147 = scmp.eq.s32.totalorder %s37, 0
      %p148 = por %p146, %p147
      %s150 = sadd.s32 %s149, 1
      %p153 = scmp.eq.s32.totalorder %s31, 1
      %p154 = scmp.ne.s32.totalorder %s149, %s151
      %p155 = scmp.eq.s32.totalorder %s31, 0
      %p156 = por %p154, %p155
      %p157 = scmp.ne.s32.totalorder %s149, %s151
      %p158 = scmp.eq.s32.totalorder %s36, 1
      %p159 = por %p157, %p158
      %p160 = scmp.ne.s32.totalorder %s151, %s152
      %p161 = scmp.eq.s32.totalorder %s36, 0
      %p162 = por %p160, %p161
      %p163 = scmp.ne.s32.totalorder %s151, %s152
      %p164 = scmp.eq.s32.totalorder %s37, 1
      %p165 = por %p163, %p164
      %p167 = scmp.ne.s32.totalorder %s152, %s166
      %p168 = scmp.eq.s32.totalorder %s37, 0
      %p169 = por %p167, %p168
      %s171 = sadd.s32 %s170, 1
      %p174 = scmp.eq.s32.totalorder %s31, 1
      %p175 = scmp.ne.s32.totalorder %s170, %s172
      %p176 = scmp.eq.s32.totalorder %s31, 0
      %p177 = por %p175, %p176
      %p178 = scmp.ne.s32.totalorder %s170, %s172
      %p179 = scmp.eq.s32.totalorder %s36, 1
      %p180 = por %p178, %p179
      %p181 = scmp.ne.s32.totalorder %s172, %s173
      %p182 = scmp.eq.s32.totalorder %s36, 0
      %p183 = por %p181, %p182
      %p184 = scmp.ne.s32.totalorder %s172, %s173
      %p185 = scmp.eq.s32.totalorder %s37, 1
      %p186 = por %p184, %p185
      %p188 = scmp.ne.s32.totalorder %s173, %s187
      %p189 = scmp.eq.s32.totalorder %s37, 0
      %p190 = por %p188, %p189
      %s192 = sadd.s32 %s191, 1
      %p195 = scmp.eq.s32.totalorder %s31, 1
      %p196 = scmp.ne.s32.totalorder %s191, %s193
      %p197 = scmp.eq.s32.totalorder %s31, 0
      %p198 = por %p196, %p197
      %p199 = scmp.ne.s32.totalorder %s191, %s193
      %p200 = scmp.eq.s32.totalorder %s36, 1
      %p201 = por %p199, %p200
      %p202 = scmp.ne.s32.totalorder %s193, %s194
      %p203 = scmp.eq.s32.totalorder %s36, 0
      %p204 = por %p202, %p203
      %p205 = scmp.ne.s32.totalorder %s193, %s194
      %p206 = scmp.eq.s32.totalorder %s37, 1
      %p207 = por %p205, %p206
      %p209 = scmp.ne.s32.totalorder %s194, %s208
      %p210 = scmp.eq.s32.totalorder %s37, 0
      %p211 = por %p209, %p210
      %s213 = sadd.s32 %s212, 1
      %p216 = scmp.eq.s32.totalorder %s31, 1
      %p217 = scmp.ne.s32.totalorder %s212, %s214
      %p218 = scmp.eq.s32.totalorder %s31, 0
      %p219 = por %p217, %p218
      %p220 = scmp.ne.s32.totalorder %s212, %s214
      %p221 = scmp.eq.s32.totalorder %s36, 1
      %p222 = por %p220, %p221
      %p223 = scmp.ne.s32.totalorder %s214, %s215
      %p224 = scmp.eq.s32.totalorder %s36, 0
      %p225 = por %p223, %p224
      %p226 = scmp.ne.s32.totalorder %s214, %s215
      %p227 = scmp.eq.s32.totalorder %s37, 1
      %p228 = por %p226, %p227
      %p230 = scmp.ne.s32.totalorder %s215, %s229
      %p231 = scmp.eq.s32.totalorder %s37, 0
      %p232 = por %p230, %p231
      %s234 = sadd.s32 %s233, 1
      %p237 = scmp.eq.s32.totalorder %s31, 1
      %p238 = scmp.ne.s32.totalorder %s233, %s235
      %p239 = scmp.eq.s32.totalorder %s31, 0
      %p240 = por %p238, %p239
      %p241 = scmp.ne.s32.totalorder %s233, %s235
      %p242 = scmp.eq.s32.totalorder %s36, 1
      %p243 = por %p241, %p242
      %p244 = scmp.ne.s32.totalorder %s235, %s236
      %p245 = scmp.eq.s32.totalorder %s36, 0
      %p246 = por %p244, %p245
      %p247 = scmp.ne.s32.totalorder %s235, %s236
      %p248 = scmp.eq.s32.totalorder %s37, 1
      %p249 = por %p247, %p248
      %p251 = scmp.ne.s32.totalorder %s236, %s250
      %p252 = scmp.eq.s32.totalorder %s37, 0
      %p253 = por %p251, %p252
      %s255 = sadd.s32 %s254, 1
      %p258 = scmp.eq.s32.totalorder %s31, 1
      %p259 = scmp.ne.s32.totalorder %s254, %s256
      %p260 = scmp.eq.s32.totalorder %s31, 0
      %p261 = por %p259, %p260
      %p262 = scmp.ne.s32.totalorder %s254, %s256
      %p263 = scmp.eq.s32.totalorder %s36, 1
      %p264 = por %p262, %p263
      %p265 = scmp.ne.s32.totalorder %s256, %s257
      %p266 = scmp.eq.s32.totalorder %s36, 0
      %p267 = por %p265, %p266
      %p268 = scmp.ne.s32.totalorder %s256, %s257
      %p269 = scmp.eq.s32.totalorder %s37, 1
      %p270 = por %p268, %p269
      %p272 = scmp.ne.s32.totalorder %s257, %s271
      %p273 = scmp.eq.s32.totalorder %s37, 0
      %p274 = por %p272, %p273
      %s276 = sadd.s32 %s275, 1
      %p279 = scmp.eq.s32.totalorder %s31, 1
      %p280 = scmp.ne.s32.totalorder %s275, %s277
      %p281 = scmp.eq.s32.totalorder %s31, 0
      %p282 = por %p280, %p281
      %p283 = scmp.ne.s32.totalorder %s275, %s277
      %p284 = scmp.eq.s32.totalorder %s36, 1
      %p285 = por %p283, %p284
      %p286 = scmp.ne.s32.totalorder %s277, %s278
      %p287 = scmp.eq.s32.totalorder %s36, 0
      %p288 = por %p286, %p287
      %p289 = scmp.ne.s32.totalorder %s277, %s278
      %p290 = scmp.eq.s32.totalorder %s37, 1
      %p291 = por %p289, %p290
      %p293 = scmp.ne.s32.totalorder %s278, %s292
      %p294 = scmp.eq.s32.totalorder %s37, 0
      %p295 = por %p293, %p294
      %s297 = sadd.s32 %s296, 1
      %p300 = scmp.eq.s32.totalorder %s31, 1
      %p301 = scmp.ne.s32.totalorder %s296, %s298
      %p302 = scmp.eq.s32.totalorder %s31, 0
      %p303 = por %p301, %p302
      %p304 = scmp.ne.s32.totalorder %s296, %s298
      %p305 = scmp.eq.s32.totalorder %s36, 1
      %p306 = por %p304, %p305
      %p307 = scmp.ne.s32.totalorder %s298, %s299
      %p308 = scmp.eq.s32.totalorder %s36, 0
      %p309 = por %p307, %p308
      %p310 = scmp.ne.s32.totalorder %s298, %s299
      %p311 = scmp.eq.s32.totalorder %s37, 1
      %p312 = por %p310, %p311
      %p314 = scmp.ne.s32.totalorder %s299, %s313
      %p315 = scmp.eq.s32.totalorder %s37, 0
      %p316 = por %p314, %p315
      %s318 = sadd.s32 %s317, 1
      %p321 = scmp.eq.s32.totalorder %s31, 1
      %p322 = scmp.ne.s32.totalorder %s317, %s319
      %p323 = scmp.eq.s32.totalorder %s31, 0
      %p324 = por %p322, %p323
      %p325 = scmp.ne.s32.totalorder %s317, %s319
      %p326 = scmp.eq.s32.totalorder %s36, 1
      %p327 = por %p325, %p326
      %p328 = scmp.ne.s32.totalorder %s319, %s320
      %p329 = scmp.eq.s32.totalorder %s36, 0
      %p330 = por %p328, %p329
      %p331 = scmp.ne.s32.totalorder %s319, %s320
      %p332 = scmp.eq.s32.totalorder %s37, 1
      %p333 = por %p331, %p332
      %p335 = scmp.ne.s32.totalorder %s320, %s334
      %p336 = scmp.eq.s32.totalorder %s37, 0
      %p337 = por %p335, %p336
      %s339 = sadd.s32 %s338, 1
      %p342 = scmp.eq.s32.totalorder %s31, 1
      %p343 = scmp.ne.s32.totalorder %s338, %s340
      %p344 = scmp.eq.s32.totalorder %s31, 0
      %p345 = por %p343, %p344
      %p346 = scmp.ne.s32.totalorder %s338, %s340
      %p347 = scmp.eq.s32.totalorder %s36, 1
      %p348 = por %p346, %p347
      %p349 = scmp.ne.s32.totalorder %s340, %s341
      %p350 = scmp.eq.s32.totalorder %s36, 0
      %p351 = por %p349, %p350
      %p352 = scmp.ne.s32.totalorder %s340, %s341
      %p353 = scmp.eq.s32.totalorder %s37, 1
      %p354 = por %p352, %p353
      %p356 = scmp.ne.s32.totalorder %s341, %s355
      %p357 = scmp.eq.s32.totalorder %s37, 0
      %p358 = por %p356, %p357
      %s360 = sadd.s32 %s359, 1
      %p363 = scmp.eq.s32.totalorder %s31, 1
      %p364 = scmp.ne.s32.totalorder %s359, %s361
      %p365 = scmp.eq.s32.totalorder %s31, 0
      %p366 = por %p364, %p365
      %p367 = scmp.ne.s32.totalorder %s359, %s361
      %p368 = scmp.eq.s32.totalorder %s36, 1
      %p369 = por %p367, %p368
      %p370 = scmp.ne.s32.totalorder %s361, %s362
      %p371 = scmp.eq.s32.totalorder %s36, 0
      %p372 = por %p370, %p371
      %p373 = scmp.ne.s32.totalorder %s361, %s362
      %p374 = scmp.eq.s32.totalorder %s37, 1
      %p375 = por %p373, %p374
      %p377 = scmp.ne.s32.totalorder %s362, %s376
      %p378 = scmp.eq.s32.totalorder %s37, 0
      %p379 = por %p377, %p378
      %s381 = sadd.s32 %s380, 1
      %p384 = scmp.eq.s32.totalorder %s31, 1
      %p385 = scmp.ne.s32.totalorder %s380, %s382
      %p386 = scmp.eq.s32.totalorder %s31, 0
      %p387 = por %p385, %p386
      %p388 = scmp.ne.s32.totalorder %s380, %s382
      %p389 = scmp.eq.s32.totalorder %s36, 1
      %p390 = por %p388, %p389
      %p391 = scmp.ne.s32.totalorder %s382, %s383
      %p392 = scmp.eq.s32.totalorder %s36, 0
      %p393 = por %p391, %p392
      %p394 = scmp.ne.s32.totalorder %s382, %s383
      %p395 = scmp.eq.s32.totalorder %s37, 1
      %p396 = por %p394, %p395
      %p398 = scmp.ne.s32.totalorder %s383, %s397
      %p399 = scmp.eq.s32.totalorder %s37, 0
      %p400 = por %p398, %p399
      %s401 = ssub.s32 %s31, %s38
      %p402 = scmp.eq.s32.totalorder %s401, 0
      %s404 = sadd.s32 %s403, 1
      %s405 = scalar_select %p402, %s403, %s404
      %p408 = pneg %p402
      %p409 = scmp.eq.s32.totalorder %s31, 1
      %p410 = por %p408, %p409
      %p411 = scmp.ne.s32.totalorder %s403, %s406
      %p412 = scmp.eq.s32.totalorder %s31, 0
      %p413 = por %p411, %p412
      %p414 = scmp.ne.s32.totalorder %s403, %s406
      %p415 = scmp.eq.s32.totalorder %s36, 1
      %p416 = por %p414, %p415
      %p417 = scmp.ne.s32.totalorder %s406, %s407
      %p418 = scmp.eq.s32.totalorder %s36, 0
      %p419 = por %p417, %p418
      %p420 = scmp.ne.s32.totalorder %s406, %s407
      %p421 = scmp.eq.s32.totalorder %s37, 1
      %p422 = por %p420, %p421
      %p424 = scmp.ne.s32.totalorder %s407, %s423
      %p425 = scmp.eq.s32.totalorder %s37, 0
      %p426 = por %p424, %p425
      %s427 = ssub.s32 %s31, %s38
      %p428 = scmp.eq.s32.totalorder %s427, 0
      %s430 = sadd.s32 %s429, 1
      %s431 = scalar_select %p428, %s429, %s430
      %p434 = pneg %p428
      %p435 = scmp.eq.s32.totalorder %s31, 1
      %p436 = por %p434, %p435
      %p437 = scmp.ne.s32.totalorder %s429, %s432
      %p438 = scmp.eq.s32.totalorder %s31, 0
      %p439 = por %p437, %p438
      %p440 = scmp.ne.s32.totalorder %s429, %s432
      %p441 = scmp.eq.s32.totalorder %s36, 1
      %p442 = por %p440, %p441
      %p443 = scmp.ne.s32.totalorder %s432, %s433
      %p444 = scmp.eq.s32.totalorder %s36, 0
      %p445 = por %p443, %p444
      %p446 = scmp.ne.s32.totalorder %s432, %s433
      %p447 = scmp.eq.s32.totalorder %s37, 1
      %p448 = por %p446, %p447
      %p450 = scmp.ne.s32.totalorder %s433, %s449
      %p451 = scmp.eq.s32.totalorder %s37, 0
      %p452 = por %p450, %p451
      %p453 = scmp.le.s32.totalorder 1, %s31
      %p454 = scmp.lt.s32.totalorder %s31, 3
      %p455 = pnand %p453, %p454
      %p456 = pneg %p455
      // Predicated region
      $region9: #{tpu_custom_call.1} parent=5 // pred_check
        _
      $region10: #{tpu_custom_call.1} parent=5 // pred_check_branch
        %458 = sbr.rel (%p455) target = $region12
      $region11: #{tpu_custom_call.1} parent=5 // pred_region
        %s459 = ssub.s32 %s31, 1
        // Predicated region
        $region13: #{tpu_custom_call.1} parent=11 // pred_check
          %p460 = pneg %p78
        $region14: #{tpu_custom_call.1} parent=11 // pred_check_branch
          %462 = sbr.rel (%p460) target = $region16
        $region15: #{tpu_custom_call.1} parent=11 // pred_region
          _
        $region16: #{tpu_custom_call.1} parent=11 // pred_fallthru
          _
        // Predicated region
        $region17: #{tpu_custom_call.1} parent=11 // pred_check
          %p463 = pneg %p99
        $region18: #{tpu_custom_call.1} parent=11 // pred_check_branch
          %465 = sbr.rel (%p463) target = $region20
        $region19: #{tpu_custom_call.1} parent=11 // pred_region
          _
        $region20: #{tpu_custom_call.1} parent=11 // pred_fallthru
          _
        // Predicated region
        $region21: #{tpu_custom_call.1} parent=11 // pred_check
          %p466 = pneg %p120
        $region22: #{tpu_custom_call.1} parent=11 // pred_check_branch
          %468 = sbr.rel (%p466) target = $region24
        $region23: #{tpu_custom_call.1} parent=11 // pred_region
          _
        $region24: #{tpu_custom_call.1} parent=11 // pred_fallthru
          _
        // Predicated region
        $region25: #{tpu_custom_call.1} parent=11 // pred_check
          %p469 = pneg %p141
        $region26: #{tpu_custom_call.1} parent=11 // pred_check_branch
          %471 = sbr.rel (%p469) target = $region28
        $region27: #{tpu_custom_call.1} parent=11 // pred_region
          _
        $region28: #{tpu_custom_call.1} parent=11 // pred_fallthru
          _
        // Predicated region
        $region29: #{tpu_custom_call.1} parent=11 // pred_check
          %p472 = pneg %p162
        $region30: #{tpu_custom_call.1} parent=11 // pred_check_branch
          %474 = sbr.rel (%p472) target = $region32
        $region31: #{tpu_custom_call.1} parent=11 // pred_region
          _
        $region32: #{tpu_custom_call.1} parent=11 // pred_fallthru
          _
        // Predicated region
        $region33: #{tpu_custom_call.1} parent=11 // pred_check
          %p475 = pneg %p183
        $region34: #{tpu_custom_call.1} parent=11 // pred_check_branch
          %477 = sbr.rel (%p475) target = $region36
        $region35: #{tpu_custom_call.1} parent=11 // pred_region
          _
        $region36: #{tpu_custom_call.1} parent=11 // pred_fallthru
          _
        // Predicated region
        $region37: #{tpu_custom_call.1} parent=11 // pred_check
          %p478 = pneg %p204
        $region38: #{tpu_custom_call.1} parent=11 // pred_check_branch
          %480 = sbr.rel (%p478) target = $region40
        $region39: #{tpu_custom_call.1} parent=11 // pred_region
          _
        $region40: #{tpu_custom_call.1} parent=11 // pred_fallthru
          _
        // Predicated region
        $region41: #{tpu_custom_call.1} parent=11 // pred_check
          %p481 = pneg %p225
        $region42: #{tpu_custom_call.1} parent=11 // pred_check_branch
          %483 = sbr.rel (%p481) target = $region44
        $region43: #{tpu_custom_call.1} parent=11 // pred_region
          _
        $region44: #{tpu_custom_call.1} parent=11 // pred_fallthru
          _
        // Predicated region
        $region45: #{tpu_custom_call.1} parent=11 // pred_check
          %p484 = pneg %p246
        $region46: #{tpu_custom_call.1} parent=11 // pred_check_branch
          %486 = sbr.rel (%p484) target = $region48
        $region47: #{tpu_custom_call.1} parent=11 // pred_region
          _
        $region48: #{tpu_custom_call.1} parent=11 // pred_fallthru
          _
        // Predicated region
        $region49: #{tpu_custom_call.1} parent=11 // pred_check
          %p487 = pneg %p267
        $region50: #{tpu_custom_call.1} parent=11 // pred_check_branch
          %489 = sbr.rel (%p487) target = $region52
        $region51: #{tpu_custom_call.1} parent=11 // pred_region
          _
        $region52: #{tpu_custom_call.1} parent=11 // pred_fallthru
          _
        // Predicated region
        $region53: #{tpu_custom_call.1} parent=11 // pred_check
          %p490 = pneg %p288
        $region54: #{tpu_custom_call.1} parent=11 // pred_check_branch
          %492 = sbr.rel (%p490) target = $region56
        $region55: #{tpu_custom_call.1} parent=11 // pred_region
          _
        $region56: #{tpu_custom_call.1} parent=11 // pred_fallthru
          _
        // Predicated region
        $region57: #{tpu_custom_call.1} parent=11 // pred_check
          %p493 = pneg %p309
        $region58: #{tpu_custom_call.1} parent=11 // pred_check_branch
          %495 = sbr.rel (%p493) target = $region60
        $region59: #{tpu_custom_call.1} parent=11 // pred_region
          _
        $region60: #{tpu_custom_call.1} parent=11 // pred_fallthru
          _
        // Predicated region
        $region61: #{tpu_custom_call.1} parent=11 // pred_check
          %p496 = pneg %p330
        $region62: #{tpu_custom_call.1} parent=11 // pred_check_branch
          %498 = sbr.rel (%p496) target = $region64
        $region63: #{tpu_custom_call.1} parent=11 // pred_region
          _
        $region64: #{tpu_custom_call.1} parent=11 // pred_fallthru
          _
        // Predicated region
        $region65: #{tpu_custom_call.1} parent=11 // pred_check
          %p499 = pneg %p351
        $region66: #{tpu_custom_call.1} parent=11 // pred_check_branch
          %501 = sbr.rel (%p499) target = $region68
        $region67: #{tpu_custom_call.1} parent=11 // pred_region
          _
        $region68: #{tpu_custom_call.1} parent=11 // pred_fallthru
          _
        // Predicated region
        $region69: #{tpu_custom_call.1} parent=11 // pred_check
          %p502 = pneg %p372
        $region70: #{tpu_custom_call.1} parent=11 // pred_check_branch
          %504 = sbr.rel (%p502) target = $region72
        $region71: #{tpu_custom_call.1} parent=11 // pred_region
          _
        $region72: #{tpu_custom_call.1} parent=11 // pred_fallthru
          _
        // Predicated region
        $region73: #{tpu_custom_call.1} parent=11 // pred_check
          %p505 = pneg %p393
        $region74: #{tpu_custom_call.1} parent=11 // pred_check_branch
          %507 = sbr.rel (%p505) target = $region76
        $region75: #{tpu_custom_call.1} parent=11 // pred_region
          _
        $region76: #{tpu_custom_call.1} parent=11 // pred_fallthru
          _
      $region12: #{tpu_custom_call.1} parent=5 // pred_fallthru
        _
      %p508 = scmp.lt.s32.totalorder %s31, 2
      // Predicated region
      $region77: #{tpu_custom_call.1} parent=5 // pred_check
        %p509 = pneg %p508
      $region78: #{tpu_custom_call.1} parent=5 // pred_check_branch
        %511 = sbr.rel (%p509) target = $region80
      $region79: #{tpu_custom_call.1} parent=5 // pred_region
        // Predicated region
        $region81: #{tpu_custom_call.1} parent=79 // pred_check
          %p512 = pneg %p51
        $region82: #{tpu_custom_call.1} parent=79 // pred_check_branch
          %514 = sbr.rel (%p512) target = $region84
        $region83: #{tpu_custom_call.1} parent=79 // pred_region
          %p515 = scmp.lt.s32.totalorder %s31, 1
          %s516 = scalar_select %p515, %s31, 1
          %s517 = smul.addr %s516, 32
          %s518 = smul.addr %s517, 8
          %s519 = scalar_lea.vmem %s0, %s518
        $region84: #{tpu_custom_call.1} parent=79 // pred_fallthru
          _
      $region80: #{tpu_custom_call.1} parent=5 // pred_fallthru
        _
      %p520 = scmp.le.s32.totalorder 1, %s31
      %p521 = scmp.lt.s32.totalorder %s31, 3
      %p522 = pnand %p520, %p521
      %p523 = pneg %p522
      // Predicated region
      $region85: #{tpu_custom_call.1} parent=5 // pred_check
        _
      $region86: #{tpu_custom_call.1} parent=5 // pred_check_branch
        %525 = sbr.rel (%p522) target = $region88
      $region87: #{tpu_custom_call.1} parent=5 // pred_region
        %s526 = ssub.s32 %s31, 1
        %p527 = scmp.lt.s32.totalorder %s36, 1
        %s528 = scalar_select %p527, %s36, 1
        %s529 = smul.addr %s528, 32
        %s530 = smul.addr %s529, 8
        %s531 = scalar_lea.vmem %s0, %s530
        %p532 = pneg %p57
        %p533 = pneg %p54
        %p534 = pneg %p78
        %p535 = pneg %p75
        %p536 = pneg %p99
        %p537 = pneg %p96
        %p538 = pneg %p120
        %p539 = pneg %p117
        %p540 = pneg %p141
        %p541 = pneg %p138
        %p542 = pneg %p162
        %p543 = pneg %p159
        %p544 = pneg %p183
        %p545 = pneg %p180
        %p546 = pneg %p204
        %p547 = pneg %p201
        %p548 = pneg %p225
        %p549 = pneg %p222
        %p550 = pneg %p246
        %p551 = pneg %p243
        %p552 = pneg %p267
        %p553 = pneg %p264
        %p554 = pneg %p288
        %p555 = pneg %p285
        %p556 = pneg %p309
        %p557 = pneg %p306
        %p558 = pneg %p330
        %p559 = pneg %p327
        %p560 = pneg %p351
        %p561 = pneg %p348
        %p562 = pneg %p372
        %p563 = pneg %p369
        %p564 = pneg %p393
        %p565 = pneg %p390
        %p566 = pneg %p419
        %p567 = pneg %p416
        %s568 = sand.u32 %s406, 1
        %s569 = scalar_lea.sflag [#allocation11], %s568
        %s570 = sand.u32 %s406, 1
        %s571 = scalar_lea.vmem [#allocation10], %s570
        %p572 = pneg %p445
        %p573 = pneg %p442
        %s574 = sand.u32 %s432, 1
        %s575 = scalar_lea.sflag [#allocation13], %s574
        %s576 = sand.u32 %s432, 1
        %s577 = scalar_lea.vmem [#allocation12], %s576
        %p578 = scmp.lt.s32.totalorder %s36, 1
        %s579 = scalar_select %p578, %s36, 1
        %s580 = smul.addr %s579, 32
        %s581 = smul.addr %s580, 8
        %s582 = scalar_lea.vmem %s0, %s581
        %v583 = vld [vmem:[%s582] sm:$0xff]
        %v584 = vld [vmem:[%s582 + $0x8] sm:$0xff]
        %v585 = vld [vmem:[%s582 + $0x10] sm:$0xff]
        %v586 = vld [vmem:[%s582 + $0x18] sm:$0xff]
        %v587 = vld [vmem:[%s582 + $0x20] sm:$0xff]
        %v588 = vld [vmem:[%s582 + $0x28] sm:$0xff]
        %v589 = vld [vmem:[%s582 + $0x30] sm:$0xff]
        %v590 = vld [vmem:[%s582 + $0x38] sm:$0xff]
        %v591 = vld [vmem:[%s582 + $0x40] sm:$0xff]
        %v592 = vld [vmem:[%s582 + $0x48] sm:$0xff]
        %v593 = vld [vmem:[%s582 + $0x50] sm:$0xff]
        %v594 = vld [vmem:[%s582 + $0x58] sm:$0xff]
        %v595 = vld [vmem:[%s582 + $0x60] sm:$0xff]
        %v596 = vld [vmem:[%s582 + $0x68] sm:$0xff]
        %v597 = vld [vmem:[%s582 + $0x70] sm:$0xff]
        %v598 = vld [vmem:[%s582 + $0x78] sm:$0xff]
        %v599 = vld [vmem:[%s582 + $0x80] sm:$0xff]
        %v600 = vld [vmem:[%s582 + $0x88] sm:$0xff]
        %v601 = vld [vmem:[%s582 + $0x90] sm:$0xff]
        %v602 = vld [vmem:[%s582 + $0x98] sm:$0xff]
        %v603 = vld [vmem:[%s582 + $0xa0] sm:$0xff]
        %v604 = vld [vmem:[%s582 + $0xa8] sm:$0xff]
        %v605 = vld [vmem:[%s582 + $0xb0] sm:$0xff]
        %v606 = vld [vmem:[%s582 + $0xb8] sm:$0xff]
        %v607 = vld [vmem:[%s582 + $0xc0] sm:$0xff]
        %v608 = vld [vmem:[%s582 + $0xc8] sm:$0xff]
        %v609 = vld [vmem:[%s582 + $0xd0] sm:$0xff]
        %v610 = vld [vmem:[%s582 + $0xd8] sm:$0xff]
        %v611 = vld [vmem:[%s582 + $0xe0] sm:$0xff]
        %v612 = vld [vmem:[%s582 + $0xe8] sm:$0xff]
        %v613 = vld [vmem:[%s582 + $0xf0] sm:$0xff]
        %v614 = vld [vmem:[%s582 + $0xf8] sm:$0xff]
        %vm615 = vcmask 31744
        %616 = vst.msk [vmem:[#allocation2] sm:$0xff] %vm615, 0.0
        %617 = vst.msk [vmem:[#allocation2 + $0x8] sm:$0xff] %vm615, 0.0
        %vm618 = vcmask 25600
        %619 = vst.msk [vmem:[#allocation2 + $0x10] sm:$0x3] %vm618, 0.0
        %620 = vst.msk [vmem:[#allocation2 + $0x18] sm:$0xff] %vm615, 0.0
        %621 = vst.msk [vmem:[#allocation2 + $0x20] sm:$0xff] %vm615, 0.0
        %622 = vst.msk [vmem:[#allocation2 + $0x28] sm:$0x3] %vm618, 0.0
        %623 = vst.msk [vmem:[#allocation2 + $0x30] sm:$0xff] %vm615, 0.0
        %624 = vst.msk [vmem:[#allocation2 + $0x38] sm:$0xff] %vm615, 0.0
        %625 = vst.msk [vmem:[#allocation2 + $0x40] sm:$0x3] %vm618, 0.0
        %626 = vst.msk [vmem:[#allocation2 + $0x48] sm:$0xff] %vm615, 0.0
        %627 = vst.msk [vmem:[#allocation2 + $0x50] sm:$0xff] %vm615, 0.0
        %628 = vst.msk [vmem:[#allocation2 + $0x58] sm:$0x3] %vm618, 0.0
        %629 = vst.msk [vmem:[#allocation2 + $0x60] sm:$0xff] %vm615, 0.0
        %630 = vst.msk [vmem:[#allocation2 + $0x68] sm:$0xff] %vm615, 0.0
        %631 = vst.msk [vmem:[#allocation2 + $0x70] sm:$0x3] %vm618, 0.0
        %632 = vst.msk [vmem:[#allocation2 + $0x78] sm:$0xff] %vm615, 0.0
        %633 = vst.msk [vmem:[#allocation2 + $0x80] sm:$0xff] %vm615, 0.0
        %634 = vst.msk [vmem:[#allocation2 + $0x88] sm:$0x3] %vm618, 0.0
        %635 = vst.msk [vmem:[#allocation2 + $0x90] sm:$0xff] %vm615, 0.0
        %636 = vst.msk [vmem:[#allocation2 + $0x98] sm:$0xff] %vm615, 0.0
        %637 = vst.msk [vmem:[#allocation2 + $0xa0] sm:$0x3] %vm618, 0.0
        %638 = vst.msk [vmem:[#allocation2 + $0xa8] sm:$0xff] %vm615, 0.0
        %639 = vst.msk [vmem:[#allocation2 + $0xb0] sm:$0xff] %vm615, 0.0
        %640 = vst.msk [vmem:[#allocation2 + $0xb8] sm:$0x3] %vm618, 0.0
        %641 = vst.msk [vmem:[#allocation2 + $0xc0] sm:$0xff] %vm615, 0.0
        %642 = vst.msk [vmem:[#allocation2 + $0xc8] sm:$0xff] %vm615, 0.0
        %643 = vst.msk [vmem:[#allocation2 + $0xd0] sm:$0x3] %vm618, 0.0
        %644 = vst.msk [vmem:[#allocation2 + $0xd8] sm:$0xff] %vm615, 0.0
        %645 = vst.msk [vmem:[#allocation2 + $0xe0] sm:$0xff] %vm615, 0.0
        %646 = vst.msk [vmem:[#allocation2 + $0xe8] sm:$0x3] %vm618, 0.0
        %647 = vst.msk [vmem:[#allocation2 + $0xf0] sm:$0xff] %vm615, 0.0
        %648 = vst.msk [vmem:[#allocation2 + $0xf8] sm:$0xff] %vm615, 0.0
        %649 = vst.msk [vmem:[#allocation2 + $0x100] sm:$0x3] %vm618, 0.0
        %650 = vst.msk [vmem:[#allocation2 + $0x108] sm:$0xff] %vm615, 0.0
        %651 = vst.msk [vmem:[#allocation2 + $0x110] sm:$0xff] %vm615, 0.0
        %652 = vst.msk [vmem:[#allocation2 + $0x118] sm:$0x3] %vm618, 0.0
        %653 = vst.msk [vmem:[#allocation2 + $0x120] sm:$0xff] %vm615, 0.0
        %654 = vst.msk [vmem:[#allocation2 + $0x128] sm:$0xff] %vm615, 0.0
        %655 = vst.msk [vmem:[#allocation2 + $0x130] sm:$0x3] %vm618, 0.0
        %656 = vst.msk [vmem:[#allocation2 + $0x138] sm:$0xff] %vm615, 0.0
        %657 = vst.msk [vmem:[#allocation2 + $0x140] sm:$0xff] %vm615, 0.0
        %658 = vst.msk [vmem:[#allocation2 + $0x148] sm:$0x3] %vm618, 0.0
        %659 = vst.msk [vmem:[#allocation2 + $0x150] sm:$0xff] %vm615, 0.0
        %660 = vst.msk [vmem:[#allocation2 + $0x158] sm:$0xff] %vm615, 0.0
        %661 = vst.msk [vmem:[#allocation2 + $0x160] sm:$0x3] %vm618, 0.0
        %662 = vst.msk [vmem:[#allocation2 + $0x168] sm:$0xff] %vm615, 0.0
        %663 = vst.msk [vmem:[#allocation2 + $0x170] sm:$0xff] %vm615, 0.0
        %664 = vst.msk [vmem:[#allocation2 + $0x178] sm:$0x3] %vm618, 0.0
        %665 = vst.msk [vmem:[#allocation2 + $0x180] sm:$0xff] %vm615, 0.0
        %666 = vst.msk [vmem:[#allocation2 + $0x188] sm:$0xff] %vm615, 0.0
        %667 = vst.msk [vmem:[#allocation2 + $0x190] sm:$0x3] %vm618, 0.0
        %668 = vst.msk [vmem:[#allocation2 + $0x198] sm:$0xff] %vm615, 0.0
        %669 = vst.msk [vmem:[#allocation2 + $0x1a0] sm:$0xff] %vm615, 0.0
        %670 = vst.msk [vmem:[#allocation2 + $0x1a8] sm:$0x3] %vm618, 0.0
        %s671 = scalar_lea.vmem [#allocation2], 24
        %672 = vst.msk [vmem:[%s671 + $0x1] sm:$0xff] %vm615, %v583
        %673 = vst.msk [vmem:[%s671 + $0x9] sm:$0xff] %vm615, %v584
        %674 = vst.msk [vmem:[%s671 + $0x19] sm:$0xff] %vm615, %v585
        %675 = vst.msk [vmem:[%s671 + $0x21] sm:$0xff] %vm615, %v586
        %676 = vst.msk [vmem:[%s671 + $0x31] sm:$0xff] %vm615, %v587
        %677 = vst.msk [vmem:[%s671 + $0x39] sm:$0xff] %vm615, %v588
        %678 = vst.msk [vmem:[%s671 + $0x49] sm:$0xff] %vm615, %v589
        %679 = vst.msk [vmem:[%s671 + $0x51] sm:$0xff] %vm615, %v590
        %680 = vst.msk [vmem:[%s671 + $0x61] sm:$0xff] %vm615, %v591
        %681 = vst.msk [vmem:[%s671 + $0x69] sm:$0xff] %vm615, %v592
        %682 = vst.msk [vmem:[%s671 + $0x79] sm:$0xff] %vm615, %v593
        %683 = vst.msk [vmem:[%s671 + $0x81] sm:$0xff] %vm615, %v594
        %684 = vst.msk [vmem:[%s671 + $0x91] sm:$0xff] %vm615, %v595
        %685 = vst.msk [vmem:[%s671 + $0x99] sm:$0xff] %vm615, %v596
        %686 = vst.msk [vmem:[%s671 + $0xa9] sm:$0xff] %vm615, %v597
        %687 = vst.msk [vmem:[%s671 + $0xb1] sm:$0xff] %vm615, %v598
        %688 = vst.msk [vmem:[%s671 + $0xc1] sm:$0xff] %vm615, %v599
        %689 = vst.msk [vmem:[%s671 + $0xc9] sm:$0xff] %vm615, %v600
        %690 = vst.msk [vmem:[%s671 + $0xd9] sm:$0xff] %vm615, %v601
        %691 = vst.msk [vmem:[%s671 + $0xe1] sm:$0xff] %vm615, %v602
        %692 = vst.msk [vmem:[%s671 + $0xf1] sm:$0xff] %vm615, %v603
        %693 = vst.msk [vmem:[%s671 + $0xf9] sm:$0xff] %vm615, %v604
        %694 = vst.msk [vmem:[%s671 + $0x109] sm:$0xff] %vm615, %v605
        %695 = vst.msk [vmem:[%s671 + $0x111] sm:$0xff] %vm615, %v606
        %696 = vst.msk [vmem:[%s671 + $0x121] sm:$0xff] %vm615, %v607
        %697 = vst.msk [vmem:[%s671 + $0x129] sm:$0xff] %vm615, %v608
        %698 = vst.msk [vmem:[%s671 + $0x139] sm:$0xff] %vm615, %v609
        %699 = vst.msk [vmem:[%s671 + $0x141] sm:$0xff] %vm615, %v610
        %700 = vst.msk [vmem:[%s671 + $0x151] sm:$0xff] %vm615, %v611
        %701 = vst.msk [vmem:[%s671 + $0x159] sm:$0xff] %vm615, %v612
        %702 = vst.msk [vmem:[%s671 + $0x169] sm:$0xff] %vm615, %v613
        %703 = vst.msk [vmem:[%s671 + $0x171] sm:$0xff] %vm615, %v614
        %v704 = vld [vmem:[#allocation2] sm:$0xff]
        %v705 = vld [vmem:[#allocation2 + $0x8] sm:$0xff]
        %v706 = vld [vmem:[#allocation2 + $0x18] sm:$0xff]
        %v707 = vld [vmem:[#allocation2 + $0x20] sm:$0xff]
        %v708 = vld [vmem:[#allocation2 + $0x30] sm:$0xff]
        %v709 = vld [vmem:[#allocation2 + $0x38] sm:$0xff]
        %v710 = vld [vmem:[#allocation2 + $0x48] sm:$0xff]
        %v711 = vld [vmem:[#allocation2 + $0x50] sm:$0xff]
        %v712 = vld [vmem:[#allocation2 + $0x60] sm:$0xff]
        %v713 = vld [vmem:[#allocation2 + $0x68] sm:$0xff]
        %v714 = vld [vmem:[#allocation2 + $0x78] sm:$0xff]
        %v715 = vld [vmem:[#allocation2 + $0x80] sm:$0xff]
        %v716 = vld [vmem:[#allocation2 + $0x90] sm:$0xff]
        %v717 = vld [vmem:[#allocation2 + $0x98] sm:$0xff]
        %v718 = vld [vmem:[#allocation2 + $0xa8] sm:$0xff]
        %v719 = vld [vmem:[#allocation2 + $0xb0] sm:$0xff]
        %v720 = vld [vmem:[#allocation2 + $0xc0] sm:$0xff]
        %v721 = vld [vmem:[#allocation2 + $0xc8] sm:$0xff]
        %v722 = vld [vmem:[#allocation2 + $0xd8] sm:$0xff]
        %v723 = vld [vmem:[#allocation2 + $0xe0] sm:$0xff]
        %v724 = vld [vmem:[#allocation2 + $0xf0] sm:$0xff]
        %v725 = vld [vmem:[#allocation2 + $0xf8] sm:$0xff]
        %v726 = vld [vmem:[#allocation2 + $0x108] sm:$0xff]
        %v727 = vld [vmem:[#allocation2 + $0x110] sm:$0xff]
        %v728 = vld [vmem:[#allocation2 + $0x120] sm:$0xff]
        %v729 = vld [vmem:[#allocation2 + $0x128] sm:$0xff]
        %v730 = vld [vmem:[#allocation2 + $0x138] sm:$0xff]
        %v731 = vld [vmem:[#allocation2 + $0x140] sm:$0xff]
        %v732 = vld [vmem:[#allocation2 + $0x150] sm:$0xff]
        %v733 = vld [vmem:[#allocation2 + $0x158] sm:$0xff]
        %v734 = vld [vmem:[#allocation2 + $0x168] sm:$0xff]
        %v735 = vld [vmem:[#allocation2 + $0x170] sm:$0xff]
        %736 = vst.msk [vmem:[#allocation3] sm:$0xff] %vm615, %v704
        %737 = vst.msk [vmem:[#allocation3 + $0x8] sm:$0xff] %vm615, %v705
        %738 = vst.msk [vmem:[#allocation3 + $0x10] sm:$0xff] %vm615, %v706
        %739 = vst.msk [vmem:[#allocation3 + $0x18] sm:$0xff] %vm615, %v707
        %740 = vst.msk [vmem:[#allocation3 + $0x20] sm:$0xff] %vm615, %v708
        %741 = vst.msk [vmem:[#allocation3 + $0x28] sm:$0xff] %vm615, %v709
        %742 = vst.msk [vmem:[#allocation3 + $0x30] sm:$0xff] %vm615, %v710
        %743 = vst.msk [vmem:[#allocation3 + $0x38] sm:$0xff] %vm615, %v711
        %744 = vst.msk [vmem:[#allocation3 + $0x40] sm:$0xff] %vm615, %v712
        %745 = vst.msk [vmem:[#allocation3 + $0x48] sm:$0xff] %vm615, %v713
        %746 = vst.msk [vmem:[#allocation3 + $0x50] sm:$0xff] %vm615, %v714
        %747 = vst.msk [vmem:[#allocation3 + $0x58] sm:$0xff] %vm615, %v715
        %748 = vst.msk [vmem:[#allocation3 + $0x60] sm:$0xff] %vm615, %v716
        %749 = vst.msk [vmem:[#allocation3 + $0x68] sm:$0xff] %vm615, %v717
        %750 = vst.msk [vmem:[#allocation3 + $0x70] sm:$0xff] %vm615, %v718
        %751 = vst.msk [vmem:[#allocation3 + $0x78] sm:$0xff] %vm615, %v719
        %752 = vst.msk [vmem:[#allocation3 + $0x80] sm:$0xff] %vm615, %v720
        %753 = vst.msk [vmem:[#allocation3 + $0x88] sm:$0xff] %vm615, %v721
        %754 = vst.msk [vmem:[#allocation3 + $0x90] sm:$0xff] %vm615, %v722
        %755 = vst.msk [vmem:[#allocation3 + $0x98] sm:$0xff] %vm615, %v723
        %756 = vst.msk [vmem:[#allocation3 + $0xa0] sm:$0xff] %vm615, %v724
        %757 = vst.msk [vmem:[#allocation3 + $0xa8] sm:$0xff] %vm615, %v725
        %758 = vst.msk [vmem:[#allocation3 + $0xb0] sm:$0xff] %vm615, %v726
        %759 = vst.msk [vmem:[#allocation3 + $0xb8] sm:$0xff] %vm615, %v727
        %760 = vst.msk [vmem:[#allocation3 + $0xc0] sm:$0xff] %vm615, %v728
        %761 = vst.msk [vmem:[#allocation3 + $0xc8] sm:$0xff] %vm615, %v729
        %762 = vst.msk [vmem:[#allocation3 + $0xd0] sm:$0xff] %vm615, %v730
        %763 = vst.msk [vmem:[#allocation3 + $0xd8] sm:$0xff] %vm615, %v731
        %764 = vst.msk [vmem:[#allocation3 + $0xe0] sm:$0xff] %vm615, %v732
        %765 = vst.msk [vmem:[#allocation3 + $0xe8] sm:$0xff] %vm615, %v733
        %766 = vst.msk [vmem:[#allocation3 + $0xf0] sm:$0xff] %vm615, %v734
        %767 = vst.msk [vmem:[#allocation3 + $0xf8] sm:$0xff] %vm615, %v735
        %v768 = vld [vmem:[#allocation2 + $0x1] sm:$0xff]
        %v769 = vld [vmem:[#allocation2 + $0x9] sm:$0xff]
        %v770 = vld [vmem:[#allocation2 + $0x19] sm:$0xff]
        %v771 = vld [vmem:[#allocation2 + $0x21] sm:$0xff]
        %v772 = vld [vmem:[#allocation2 + $0x31] sm:$0xff]
        %v773 = vld [vmem:[#allocation2 + $0x39] sm:$0xff]
        %v774 = vld [vmem:[#allocation2 + $0x49] sm:$0xff]
        %v775 = vld [vmem:[#allocation2 + $0x51] sm:$0xff]
        %v776 = vld [vmem:[#allocation2 + $0x61] sm:$0xff]
        %v777 = vld [vmem:[#allocation2 + $0x69] sm:$0xff]
        %v778 = vld [vmem:[#allocation2 + $0x79] sm:$0xff]
        %v779 = vld [vmem:[#allocation2 + $0x81] sm:$0xff]
        %v780 = vld [vmem:[#allocation2 + $0x91] sm:$0xff]
        %v781 = vld [vmem:[#allocation2 + $0x99] sm:$0xff]
        %v782 = vld [vmem:[#allocation2 + $0xa9] sm:$0xff]
        %v783 = vld [vmem:[#allocation2 + $0xb1] sm:$0xff]
        %v784 = vld [vmem:[#allocation2 + $0xc1] sm:$0xff]
        %v785 = vld [vmem:[#allocation2 + $0xc9] sm:$0xff]
        %v786 = vld [vmem:[#allocation2 + $0xd9] sm:$0xff]
        %v787 = vld [vmem:[#allocation2 + $0xe1] sm:$0xff]
        %v788 = vld [vmem:[#allocation2 + $0xf1] sm:$0xff]
        %v789 = vld [vmem:[#allocation2 + $0xf9] sm:$0xff]
        %v790 = vld [vmem:[#allocation2 + $0x109] sm:$0xff]
        %v791 = vld [vmem:[#allocation2 + $0x111] sm:$0xff]
        %v792 = vld [vmem:[#allocation2 + $0x121] sm:$0xff]
        %v793 = vld [vmem:[#allocation2 + $0x129] sm:$0xff]
        %v794 = vld [vmem:[#allocation2 + $0x139] sm:$0xff]
        %v795 = vld [vmem:[#allocation2 + $0x141] sm:$0xff]
        %v796 = vld [vmem:[#allocation2 + $0x151] sm:$0xff]
        %v797 = vld [vmem:[#allocation2 + $0x159] sm:$0xff]
        %v798 = vld [vmem:[#allocation2 + $0x169] sm:$0xff]
        %v799 = vld [vmem:[#allocation2 + $0x171] sm:$0xff]
        %832 = vrot.lane.b32.xlu0 %v768, 4
        %v833 = vpop.permute.xlu0 %832
        %834 = vrot.lane.b32.xlu0 %v769, 4
        %v835 = vpop.permute.xlu0 %834
        %836 = vrot.lane.b32.xlu0 %v770, 4
        %v837 = vpop.permute.xlu0 %836
        %838 = vrot.lane.b32.xlu0 %v771, 4
        %v839 = vpop.permute.xlu0 %838
        %840 = vrot.lane.b32.xlu0 %v772, 4
        %v841 = vpop.permute.xlu0 %840
        %842 = vrot.lane.b32.xlu0 %v773, 4
        %v843 = vpop.permute.xlu0 %842
        %844 = vrot.lane.b32.xlu0 %v774, 4
        %v845 = vpop.permute.xlu0 %844
        %846 = vrot.lane.b32.xlu0 %v775, 4
        %v847 = vpop.permute.xlu0 %846
        %848 = vrot.lane.b32.xlu0 %v776, 4
        %v849 = vpop.permute.xlu0 %848
        %850 = vrot.lane.b32.xlu0 %v777, 4
        %v851 = vpop.permute.xlu0 %850
        %852 = vrot.lane.b32.xlu0 %v778, 4
        %v853 = vpop.permute.xlu0 %852
        %854 = vrot.lane.b32.xlu0 %v779, 4
        %v855 = vpop.permute.xlu0 %854
        %856 = vrot.lane.b32.xlu0 %v780, 4
        %v857 = vpop.permute.xlu0 %856
        %858 = vrot.lane.b32.xlu0 %v781, 4
        %v859 = vpop.permute.xlu0 %858
        %860 = vrot.lane.b32.xlu0 %v782, 4
        %v861 = vpop.permute.xlu0 %860
        %862 = vrot.lane.b32.xlu0 %v783, 4
        %v863 = vpop.permute.xlu0 %862
        %864 = vrot.lane.b32.xlu0 %v784, 4
        %v865 = vpop.permute.xlu0 %864
        %866 = vrot.lane.b32.xlu0 %v785, 4
        %v867 = vpop.permute.xlu0 %866
        %868 = vrot.lane.b32.xlu0 %v786, 4
        %v869 = vpop.permute.xlu0 %868
        %870 = vrot.lane.b32.xlu0 %v787, 4
        %v871 = vpop.permute.xlu0 %870
        %872 = vrot.lane.b32.xlu0 %v788, 4
        %v873 = vpop.permute.xlu0 %872
        %874 = vrot.lane.b32.xlu0 %v789, 4
        %v875 = vpop.permute.xlu0 %874
        %876 = vrot.lane.b32.xlu0 %v790, 4
        %v877 = vpop.permute.xlu0 %876
        %878 = vrot.lane.b32.xlu0 %v791, 4
        %v879 = vpop.permute.xlu0 %878
        %880 = vrot.lane.b32.xlu0 %v792, 4
        %v881 = vpop.permute.xlu0 %880
        %882 = vrot.lane.b32.xlu0 %v793, 4
        %v883 = vpop.permute.xlu0 %882
        %884 = vrot.lane.b32.xlu0 %v794, 4
        %v885 = vpop.permute.xlu0 %884
        %886 = vrot.lane.b32.xlu0 %v795, 4
        %v887 = vpop.permute.xlu0 %886
        %888 = vrot.lane.b32.xlu0 %v796, 4
        %v889 = vpop.permute.xlu0 %888
        %890 = vrot.lane.b32.xlu0 %v797, 4
        %v891 = vpop.permute.xlu0 %890
        %892 = vrot.lane.b32.xlu0 %v798, 4
        %v893 = vpop.permute.xlu0 %892
        %894 = vrot.lane.b32.xlu0 %v799, 4
        %v895 = vpop.permute.xlu0 %894
        %vm928 = vcmask 64544
        %929 = vst.msk [vmem:[#allocation3] sm:$0xff] %vm928, %v833
        %930 = vst.msk [vmem:[#allocation3 + $0x8] sm:$0xff] %vm928, %v835
        %931 = vst.msk [vmem:[#allocation3 + $0x10] sm:$0xff] %vm928, %v837
        %932 = vst.msk [vmem:[#allocation3 + $0x18] sm:$0xff] %vm928, %v839
        %933 = vst.msk [vmem:[#allocation3 + $0x20] sm:$0xff] %vm928, %v841
        %934 = vst.msk [vmem:[#allocation3 + $0x28] sm:$0xff] %vm928, %v843
        %935 = vst.msk [vmem:[#allocation3 + $0x30] sm:$0xff] %vm928, %v845
        %936 = vst.msk [vmem:[#allocation3 + $0x38] sm:$0xff] %vm928, %v847
        %937 = vst.msk [vmem:[#allocation3 + $0x40] sm:$0xff] %vm928, %v849
        %938 = vst.msk [vmem:[#allocation3 + $0x48] sm:$0xff] %vm928, %v851
        %939 = vst.msk [vmem:[#allocation3 + $0x50] sm:$0xff] %vm928, %v853
        %940 = vst.msk [vmem:[#allocation3 + $0x58] sm:$0xff] %vm928, %v855
        %941 = vst.msk [vmem:[#allocation3 + $0x60] sm:$0xff] %vm928, %v857
        %942 = vst.msk [vmem:[#allocation3 + $0x68] sm:$0xff] %vm928, %v859
        %943 = vst.msk [vmem:[#allocation3 + $0x70] sm:$0xff] %vm928, %v861
        %944 = vst.msk [vmem:[#allocation3 + $0x78] sm:$0xff] %vm928, %v863
        %945 = vst.msk [vmem:[#allocation3 + $0x80] sm:$0xff] %vm928, %v865
        %946 = vst.msk [vmem:[#allocation3 + $0x88] sm:$0xff] %vm928, %v867
        %947 = vst.msk [vmem:[#allocation3 + $0x90] sm:$0xff] %vm928, %v869
        %948 = vst.msk [vmem:[#allocation3 + $0x98] sm:$0xff] %vm928, %v871
        %949 = vst.msk [vmem:[#allocation3 + $0xa0] sm:$0xff] %vm928, %v873
        %950 = vst.msk [vmem:[#allocation3 + $0xa8] sm:$0xff] %vm928, %v875
        %951 = vst.msk [vmem:[#allocation3 + $0xb0] sm:$0xff] %vm928, %v877
        %952 = vst.msk [vmem:[#allocation3 + $0xb8] sm:$0xff] %vm928, %v879
        %953 = vst.msk [vmem:[#allocation3 + $0xc0] sm:$0xff] %vm928, %v881
        %954 = vst.msk [vmem:[#allocation3 + $0xc8] sm:$0xff] %vm928, %v883
        %955 = vst.msk [vmem:[#allocation3 + $0xd0] sm:$0xff] %vm928, %v885
        %956 = vst.msk [vmem:[#allocation3 + $0xd8] sm:$0xff] %vm928, %v887
        %957 = vst.msk [vmem:[#allocation3 + $0xe0] sm:$0xff] %vm928, %v889
        %958 = vst.msk [vmem:[#allocation3 + $0xe8] sm:$0xff] %vm928, %v891
        %959 = vst.msk [vmem:[#allocation3 + $0xf0] sm:$0xff] %vm928, %v893
        %960 = vst.msk [vmem:[#allocation3 + $0xf8] sm:$0xff] %vm928, %v895
        %v961 = vld [vmem:[#allocation2 + $0x2] sm:$0xff]
        %v962 = vld [vmem:[#allocation2 + $0xa] sm:$0xff]
        %v963 = vld [vmem:[#allocation2 + $0x1a] sm:$0xff]
        %v964 = vld [vmem:[#allocation2 + $0x22] sm:$0xff]
        %v965 = vld [vmem:[#allocation2 + $0x32] sm:$0xff]
        %v966 = vld [vmem:[#allocation2 + $0x3a] sm:$0xff]
        %v967 = vld [vmem:[#allocation2 + $0x4a] sm:$0xff]
        %v968 = vld [vmem:[#allocation2 + $0x52] sm:$0xff]
        %v969 = vld [vmem:[#allocation2 + $0x62] sm:$0xff]
        %v970 = vld [vmem:[#allocation2 + $0x6a] sm:$0xff]
        %v971 = vld [vmem:[#allocation2 + $0x7a] sm:$0xff]
        %v972 = vld [vmem:[#allocation2 + $0x82] sm:$0xff]
        %v973 = vld [vmem:[#allocation2 + $0x92] sm:$0xff]
        %v974 = vld [vmem:[#allocation2 + $0x9a] sm:$0xff]
        %v975 = vld [vmem:[#allocation2 + $0xaa] sm:$0xff]
        %v976 = vld [vmem:[#allocation2 + $0xb2] sm:$0xff]
        %v977 = vld [vmem:[#allocation2 + $0xc2] sm:$0xff]
        %v978 = vld [vmem:[#allocation2 + $0xca] sm:$0xff]
        %v979 = vld [vmem:[#allocation2 + $0xda] sm:$0xff]
        %v980 = vld [vmem:[#allocation2 + $0xe2] sm:$0xff]
        %v981 = vld [vmem:[#allocation2 + $0xf2] sm:$0xff]
        %v982 = vld [vmem:[#allocation2 + $0xfa] sm:$0xff]
        %v983 = vld [vmem:[#allocation2 + $0x10a] sm:$0xff]
        %v984 = vld [vmem:[#allocation2 + $0x112] sm:$0xff]
        %v985 = vld [vmem:[#allocation2 + $0x122] sm:$0xff]
        %v986 = vld [vmem:[#allocation2 + $0x12a] sm:$0xff]
        %v987 = vld [vmem:[#allocation2 + $0x13a] sm:$0xff]
        %v988 = vld [vmem:[#allocation2 + $0x142] sm:$0xff]
        %v989 = vld [vmem:[#allocation2 + $0x152] sm:$0xff]
        %v990 = vld [vmem:[#allocation2 + $0x15a] sm:$0xff]
        %v991 = vld [vmem:[#allocation2 + $0x16a] sm:$0xff]
        %v992 = vld [vmem:[#allocation2 + $0x172] sm:$0xff]
        %1025 = vrot.lane.b32.xlu0 %v961, 8
        %v1026 = vpop.permute.xlu0 %1025
        %1027 = vrot.lane.b32.xlu0 %v962, 8
        %v1028 = vpop.permute.xlu0 %1027
        %1029 = vrot.lane.b32.xlu0 %v963, 8
        %v1030 = vpop.permute.xlu0 %1029
        %1031 = vrot.lane.b32.xlu0 %v964, 8
        %v1032 = vpop.permute.xlu0 %1031
        %1033 = vrot.lane.b32.xlu0 %v965, 8
        %v1034 = vpop.permute.xlu0 %1033
        %1035 = vrot.lane.b32.xlu0 %v966, 8
        %v1036 = vpop.permute.xlu0 %1035
        %1037 = vrot.lane.b32.xlu0 %v967, 8
        %v1038 = vpop.permute.xlu0 %1037
        %1039 = vrot.lane.b32.xlu0 %v968, 8
        %v1040 = vpop.permute.xlu0 %1039
        %1041 = vrot.lane.b32.xlu0 %v969, 8
        %v1042 = vpop.permute.xlu0 %1041
        %1043 = vrot.lane.b32.xlu0 %v970, 8
        %v1044 = vpop.permute.xlu0 %1043
        %1045 = vrot.lane.b32.xlu0 %v971, 8
        %v1046 = vpop.permute.xlu0 %1045
        %1047 = vrot.lane.b32.xlu0 %v972, 8
        %v1048 = vpop.permute.xlu0 %1047
        %1049 = vrot.lane.b32.xlu0 %v973, 8
        %v1050 = vpop.permute.xlu0 %1049
        %1051 = vrot.lane.b32.xlu0 %v974, 8
        %v1052 = vpop.permute.xlu0 %1051
        %1053 = vrot.lane.b32.xlu0 %v975, 8
        %v1054 = vpop.permute.xlu0 %1053
        %1055 = vrot.lane.b32.xlu0 %v976, 8
        %v1056 = vpop.permute.xlu0 %1055
        %1057 = vrot.lane.b32.xlu0 %v977, 8
        %v1058 = vpop.permute.xlu0 %1057
        %1059 = vrot.lane.b32.xlu0 %v978, 8
        %v1060 = vpop.permute.xlu0 %1059
        %1061 = vrot.lane.b32.xlu0 %v979, 8
        %v1062 = vpop.permute.xlu0 %1061
        %1063 = vrot.lane.b32.xlu0 %v980, 8
        %v1064 = vpop.permute.xlu0 %1063
        %1065 = vrot.lane.b32.xlu0 %v981, 8
        %v1066 = vpop.permute.xlu0 %1065
        %1067 = vrot.lane.b32.xlu0 %v982, 8
        %v1068 = vpop.permute.xlu0 %1067
        %1069 = vrot.lane.b32.xlu0 %v983, 8
        %v1070 = vpop.permute.xlu0 %1069
        %1071 = vrot.lane.b32.xlu0 %v984, 8
        %v1072 = vpop.permute.xlu0 %1071
        %1073 = vrot.lane.b32.xlu0 %v985, 8
        %v1074 = vpop.permute.xlu0 %1073
        %1075 = vrot.lane.b32.xlu0 %v986, 8
        %v1076 = vpop.permute.xlu0 %1075
        %1077 = vrot.lane.b32.xlu0 %v987, 8
        %v1078 = vpop.permute.xlu0 %1077
        %1079 = vrot.lane.b32.xlu0 %v988, 8
        %v1080 = vpop.permute.xlu0 %1079
        %1081 = vrot.lane.b32.xlu0 %v989, 8
        %v1082 = vpop.permute.xlu0 %1081
        %1083 = vrot.lane.b32.xlu0 %v990, 8
        %v1084 = vpop.permute.xlu0 %1083
        %1085 = vrot.lane.b32.xlu0 %v991, 8
        %v1086 = vpop.permute.xlu0 %1085
        %1087 = vrot.lane.b32.xlu0 %v992, 8
        %v1088 = vpop.permute.xlu0 %1087
        %vm1121 = vcmask 97344
        %1122 = vst.msk [vmem:[#allocation3] sm:$0xff] %vm1121, %v1026
        %1123 = vst.msk [vmem:[#allocation3 + $0x8] sm:$0xff] %vm1121, %v1028
        %1124 = vst.msk [vmem:[#allocation3 + $0x10] sm:$0xff] %vm1121, %v1030
        %1125 = vst.msk [vmem:[#allocation3 + $0x18] sm:$0xff] %vm1121, %v1032
        %1126 = vst.msk [vmem:[#allocation3 + $0x20] sm:$0xff] %vm1121, %v1034
        %1127 = vst.msk [vmem:[#allocation3 + $0x28] sm:$0xff] %vm1121, %v1036
        %1128 = vst.msk [vmem:[#allocation3 + $0x30] sm:$0xff] %vm1121, %v1038
        %1129 = vst.msk [vmem:[#allocation3 + $0x38] sm:$0xff] %vm1121, %v1040
        %1130 = vst.msk [vmem:[#allocation3 + $0x40] sm:$0xff] %vm1121, %v1042
        %1131 = vst.msk [vmem:[#allocation3 + $0x48] sm:$0xff] %vm1121, %v1044
        %1132 = vst.msk [vmem:[#allocation3 + $0x50] sm:$0xff] %vm1121, %v1046
        %1133 = vst.msk [vmem:[#allocation3 + $0x58] sm:$0xff] %vm1121, %v1048
        %1134 = vst.msk [vmem:[#allocation3 + $0x60] sm:$0xff] %vm1121, %v1050
        %1135 = vst.msk [vmem:[#allocation3 + $0x68] sm:$0xff] %vm1121, %v1052
        %1136 = vst.msk [vmem:[#allocation3 + $0x70] sm:$0xff] %vm1121, %v1054
        %1137 = vst.msk [vmem:[#allocation3 + $0x78] sm:$0xff] %vm1121, %v1056
        %1138 = vst.msk [vmem:[#allocation3 + $0x80] sm:$0xff] %vm1121, %v1058
        %1139 = vst.msk [vmem:[#allocation3 + $0x88] sm:$0xff] %vm1121, %v1060
        %1140 = vst.msk [vmem:[#allocation3 + $0x90] sm:$0xff] %vm1121, %v1062
        %1141 = vst.msk [vmem:[#allocation3 + $0x98] sm:$0xff] %vm1121, %v1064
        %1142 = vst.msk [vmem:[#allocation3 + $0xa0] sm:$0xff] %vm1121, %v1066
        %1143 = vst.msk [vmem:[#allocation3 + $0xa8] sm:$0xff] %vm1121, %v1068
        %1144 = vst.msk [vmem:[#allocation3 + $0xb0] sm:$0xff] %vm1121, %v1070
        %1145 = vst.msk [vmem:[#allocation3 + $0xb8] sm:$0xff] %vm1121, %v1072
        %1146 = vst.msk [vmem:[#allocation3 + $0xc0] sm:$0xff] %vm1121, %v1074
        %1147 = vst.msk [vmem:[#allocation3 + $0xc8] sm:$0xff] %vm1121, %v1076
        %1148 = vst.msk [vmem:[#allocation3 + $0xd0] sm:$0xff] %vm1121, %v1078
        %1149 = vst.msk [vmem:[#allocation3 + $0xd8] sm:$0xff] %vm1121, %v1080
        %1150 = vst.msk [vmem:[#allocation3 + $0xe0] sm:$0xff] %vm1121, %v1082
        %1151 = vst.msk [vmem:[#allocation3 + $0xe8] sm:$0xff] %vm1121, %v1084
        %1152 = vst.msk [vmem:[#allocation3 + $0xf0] sm:$0xff] %vm1121, %v1086
        %1153 = vst.msk [vmem:[#allocation3 + $0xf8] sm:$0xff] %vm1121, %v1088
        %v1154 = vld [vmem:[%s671] sm:$0xff]
        %v1155 = vld [vmem:[%s671 + $0x8] sm:$0xff]
        %v1156 = vld [vmem:[%s671 + $0x18] sm:$0xff]
        %v1157 = vld [vmem:[%s671 + $0x20] sm:$0xff]
        %v1158 = vld [vmem:[%s671 + $0x30] sm:$0xff]
        %v1159 = vld [vmem:[%s671 + $0x38] sm:$0xff]
        %v1160 = vld [vmem:[%s671 + $0x48] sm:$0xff]
        %v1161 = vld [vmem:[%s671 + $0x50] sm:$0xff]
        %v1162 = vld [vmem:[%s671 + $0x60] sm:$0xff]
        %v1163 = vld [vmem:[%s671 + $0x68] sm:$0xff]
        %v1164 = vld [vmem:[%s671 + $0x78] sm:$0xff]
        %v1165 = vld [vmem:[%s671 + $0x80] sm:$0xff]
        %v1166 = vld [vmem:[%s671 + $0x90] sm:$0xff]
        %v1167 = vld [vmem:[%s671 + $0x98] sm:$0xff]
        %v1168 = vld [vmem:[%s671 + $0xa8] sm:$0xff]
        %v1169 = vld [vmem:[%s671 + $0xb0] sm:$0xff]
        %v1170 = vld [vmem:[%s671 + $0xc0] sm:$0xff]
        %v1171 = vld [vmem:[%s671 + $0xc8] sm:$0xff]
        %v1172 = vld [vmem:[%s671 + $0xd8] sm:$0xff]
        %v1173 = vld [vmem:[%s671 + $0xe0] sm:$0xff]
        %v1174 = vld [vmem:[%s671 + $0xf0] sm:$0xff]
        %v1175 = vld [vmem:[%s671 + $0xf8] sm:$0xff]
        %v1176 = vld [vmem:[%s671 + $0x108] sm:$0xff]
        %v1177 = vld [vmem:[%s671 + $0x110] sm:$0xff]
        %v1178 = vld [vmem:[%s671 + $0x120] sm:$0xff]
        %v1179 = vld [vmem:[%s671 + $0x128] sm:$0xff]
        %v1180 = vld [vmem:[%s671 + $0x138] sm:$0xff]
        %v1181 = vld [vmem:[%s671 + $0x140] sm:$0xff]
        %v1182 = vld [vmem:[%s671 + $0x150] sm:$0xff]
        %v1183 = vld [vmem:[%s671 + $0x158] sm:$0xff]
        %v1184 = vld [vmem:[%s671 + $0x168] sm:$0xff]
        %v1185 = vld [vmem:[%s671 + $0x170] sm:$0xff]
        %1218 = vrot.lane.b32.xlu0 %v1154, 12
        %v1219 = vpop.permute.xlu0 %1218
        %1220 = vrot.lane.b32.xlu0 %v1155, 12
        %v1221 = vpop.permute.xlu0 %1220
        %1222 = vrot.lane.b32.xlu0 %v1156, 12
        %v1223 = vpop.permute.xlu0 %1222
        %1224 = vrot.lane.b32.xlu0 %v1157, 12
        %v1225 = vpop.permute.xlu0 %1224
        %1226 = vrot.lane.b32.xlu0 %v1158, 12
        %v1227 = vpop.permute.xlu0 %1226
        %1228 = vrot.lane.b32.xlu0 %v1159, 12
        %v1229 = vpop.permute.xlu0 %1228
        %1230 = vrot.lane.b32.xlu0 %v1160, 12
        %v1231 = vpop.permute.xlu0 %1230
        %1232 = vrot.lane.b32.xlu0 %v1161, 12
        %v1233 = vpop.permute.xlu0 %1232
        %1234 = vrot.lane.b32.xlu0 %v1162, 12
        %v1235 = vpop.permute.xlu0 %1234
        %1236 = vrot.lane.b32.xlu0 %v1163, 12
        %v1237 = vpop.permute.xlu0 %1236
        %1238 = vrot.lane.b32.xlu0 %v1164, 12
        %v1239 = vpop.permute.xlu0 %1238
        %1240 = vrot.lane.b32.xlu0 %v1165, 12
        %v1241 = vpop.permute.xlu0 %1240
        %1242 = vrot.lane.b32.xlu0 %v1166, 12
        %v1243 = vpop.permute.xlu0 %1242
        %1244 = vrot.lane.b32.xlu0 %v1167, 12
        %v1245 = vpop.permute.xlu0 %1244
        %1246 = vrot.lane.b32.xlu0 %v1168, 12
        %v1247 = vpop.permute.xlu0 %1246
        %1248 = vrot.lane.b32.xlu0 %v1169, 12
        %v1249 = vpop.permute.xlu0 %1248
        %1250 = vrot.lane.b32.xlu0 %v1170, 12
        %v1251 = vpop.permute.xlu0 %1250
        %1252 = vrot.lane.b32.xlu0 %v1171, 12
        %v1253 = vpop.permute.xlu0 %1252
        %1254 = vrot.lane.b32.xlu0 %v1172, 12
        %v1255 = vpop.permute.xlu0 %1254
        %1256 = vrot.lane.b32.xlu0 %v1173, 12
        %v1257 = vpop.permute.xlu0 %1256
        %1258 = vrot.lane.b32.xlu0 %v1174, 12
        %v1259 = vpop.permute.xlu0 %1258
        %1260 = vrot.lane.b32.xlu0 %v1175, 12
        %v1261 = vpop.permute.xlu0 %1260
        %1262 = vrot.lane.b32.xlu0 %v1176, 12
        %v1263 = vpop.permute.xlu0 %1262
        %1264 = vrot.lane.b32.xlu0 %v1177, 12
        %v1265 = vpop.permute.xlu0 %1264
        %1266 = vrot.lane.b32.xlu0 %v1178, 12
        %v1267 = vpop.permute.xlu0 %1266
        %1268 = vrot.lane.b32.xlu0 %v1179, 12
        %v1269 = vpop.permute.xlu0 %1268
        %1270 = vrot.lane.b32.xlu0 %v1180, 12
        %v1271 = vpop.permute.xlu0 %1270
        %1272 = vrot.lane.b32.xlu0 %v1181, 12
        %v1273 = vpop.permute.xlu0 %1272
        %1274 = vrot.lane.b32.xlu0 %v1182, 12
        %v1275 = vpop.permute.xlu0 %1274
        %1276 = vrot.lane.b32.xlu0 %v1183, 12
        %v1277 = vpop.permute.xlu0 %1276
        %1278 = vrot.lane.b32.xlu0 %v1184, 12
        %v1279 = vpop.permute.xlu0 %1278
        %1280 = vrot.lane.b32.xlu0 %v1185, 12
        %v1281 = vpop.permute.xlu0 %1280
        %vm1314 = vcmask 130144
        %1315 = vst.msk [vmem:[#allocation3] sm:$0xff] %vm1314, %v1219
        %1316 = vst.msk [vmem:[#allocation3 + $0x8] sm:$0xff] %vm1314, %v1221
        %1317 = vst.msk [vmem:[#allocation3 + $0x10] sm:$0xff] %vm1314, %v1223
        %1318 = vst.msk [vmem:[#allocation3 + $0x18] sm:$0xff] %vm1314, %v1225
        %1319 = vst.msk [vmem:[#allocation3 + $0x20] sm:$0xff] %vm1314, %v1227
        %1320 = vst.msk [vmem:[#allocation3 + $0x28] sm:$0xff] %vm1314, %v1229
        %1321 = vst.msk [vmem:[#allocation3 + $0x30] sm:$0xff] %vm1314, %v1231
        %1322 = vst.msk [vmem:[#allocation3 + $0x38] sm:$0xff] %vm1314, %v1233
        %1323 = vst.msk [vmem:[#allocation3 + $0x40] sm:$0xff] %vm1314, %v1235
        %1324 = vst.msk [vmem:[#allocation3 + $0x48] sm:$0xff] %vm1314, %v1237
        %1325 = vst.msk [vmem:[#allocation3 + $0x50] sm:$0xff] %vm1314, %v1239
        %1326 = vst.msk [vmem:[#allocation3 + $0x58] sm:$0xff] %vm1314, %v1241
        %1327 = vst.msk [vmem:[#allocation3 + $0x60] sm:$0xff] %vm1314, %v1243
        %1328 = vst.msk [vmem:[#allocation3 + $0x68] sm:$0xff] %vm1314, %v1245
        %1329 = vst.msk [vmem:[#allocation3 + $0x70] sm:$0xff] %vm1314, %v1247
        %1330 = vst.msk [vmem:[#allocation3 + $0x78] sm:$0xff] %vm1314, %v1249
        %1331 = vst.msk [vmem:[#allocation3 + $0x80] sm:$0xff] %vm1314, %v1251
        %1332 = vst.msk [vmem:[#allocation3 + $0x88] sm:$0xff] %vm1314, %v1253
        %1333 = vst.msk [vmem:[#allocation3 + $0x90] sm:$0xff] %vm1314, %v1255
        %1334 = vst.msk [vmem:[#allocation3 + $0x98] sm:$0xff] %vm1314, %v1257
        %1335 = vst.msk [vmem:[#allocation3 + $0xa0] sm:$0xff] %vm1314, %v1259
        %1336 = vst.msk [vmem:[#allocation3 + $0xa8] sm:$0xff] %vm1314, %v1261
        %1337 = vst.msk [vmem:[#allocation3 + $0xb0] sm:$0xff] %vm1314, %v1263
        %1338 = vst.msk [vmem:[#allocation3 + $0xb8] sm:$0xff] %vm1314, %v1265
        %1339 = vst.msk [vmem:[#allocation3 + $0xc0] sm:$0xff] %vm1314, %v1267
        %1340 = vst.msk [vmem:[#allocation3 + $0xc8] sm:$0xff] %vm1314, %v1269
        %1341 = vst.msk [vmem:[#allocation3 + $0xd0] sm:$0xff] %vm1314, %v1271
        %1342 = vst.msk [vmem:[#allocation3 + $0xd8] sm:$0xff] %vm1314, %v1273
        %1343 = vst.msk [vmem:[#allocation3 + $0xe0] sm:$0xff] %vm1314, %v1275
        %1344 = vst.msk [vmem:[#allocation3 + $0xe8] sm:$0xff] %vm1314, %v1277
        %1345 = vst.msk [vmem:[#allocation3 + $0xf0] sm:$0xff] %vm1314, %v1279
        %1346 = vst.msk [vmem:[#allocation3 + $0xf8] sm:$0xff] %vm1314, %v1281
        %v1347 = vld [vmem:[%s671 + $0x1] sm:$0xff]
        %v1348 = vld [vmem:[%s671 + $0x9] sm:$0xff]
        %v1349 = vld [vmem:[%s671 + $0x19] sm:$0xff]
        %v1350 = vld [vmem:[%s671 + $0x21] sm:$0xff]
        %v1351 = vld [vmem:[%s671 + $0x31] sm:$0xff]
        %v1352 = vld [vmem:[%s671 + $0x39] sm:$0xff]
        %v1353 = vld [vmem:[%s671 + $0x49] sm:$0xff]
        %v1354 = vld [vmem:[%s671 + $0x51] sm:$0xff]
        %v1355 = vld [vmem:[%s671 + $0x61] sm:$0xff]
        %v1356 = vld [vmem:[%s671 + $0x69] sm:$0xff]
        %v1357 = vld [vmem:[%s671 + $0x79] sm:$0xff]
        %v1358 = vld [vmem:[%s671 + $0x81] sm:$0xff]
        %v1359 = vld [vmem:[%s671 + $0x91] sm:$0xff]
        %v1360 = vld [vmem:[%s671 + $0x99] sm:$0xff]
        %v1361 = vld [vmem:[%s671 + $0xa9] sm:$0xff]
        %v1362 = vld [vmem:[%s671 + $0xb1] sm:$0xff]
        %v1363 = vld [vmem:[%s671 + $0xc1] sm:$0xff]
        %v1364 = vld [vmem:[%s671 + $0xc9] sm:$0xff]
        %v1365 = vld [vmem:[%s671 + $0xd9] sm:$0xff]
        %v1366 = vld [vmem:[%s671 + $0xe1] sm:$0xff]
        %v1367 = vld [vmem:[%s671 + $0xf1] sm:$0xff]
        %v1368 = vld [vmem:[%s671 + $0xf9] sm:$0xff]
        %v1369 = vld [vmem:[%s671 + $0x109] sm:$0xff]
        %v1370 = vld [vmem:[%s671 + $0x111] sm:$0xff]
        %v1371 = vld [vmem:[%s671 + $0x121] sm:$0xff]
        %v1372 = vld [vmem:[%s671 + $0x129] sm:$0xff]
        %v1373 = vld [vmem:[%s671 + $0x139] sm:$0xff]
        %v1374 = vld [vmem:[%s671 + $0x141] sm:$0xff]
        %v1375 = vld [vmem:[%s671 + $0x151] sm:$0xff]
        %v1376 = vld [vmem:[%s671 + $0x159] sm:$0xff]
        %v1377 = vld [vmem:[%s671 + $0x169] sm:$0xff]
        %v1378 = vld [vmem:[%s671 + $0x171] sm:$0xff]
        %1411 = vrot.lane.b32.xlu0 %v1347, 16
        %v1412 = vpop.permute.xlu0 %1411
        %1413 = vrot.lane.b32.xlu0 %v1348, 16
        %v1414 = vpop.permute.xlu0 %1413
        %1415 = vrot.lane.b32.xlu0 %v1349, 16
        %v1416 = vpop.permute.xlu0 %1415
        %1417 = vrot.lane.b32.xlu0 %v1350, 16
        %v1418 = vpop.permute.xlu0 %1417
        %1419 = vrot.lane.b32.xlu0 %v1351, 16
        %v1420 = vpop.permute.xlu0 %1419
        %1421 = vrot.lane.b32.xlu0 %v1352, 16
        %v1422 = vpop.permute.xlu0 %1421
        %1423 = vrot.lane.b32.xlu0 %v1353, 16
        %v1424 = vpop.permute.xlu0 %1423
        %1425 = vrot.lane.b32.xlu0 %v1354, 16
        %v1426 = vpop.permute.xlu0 %1425
        %1427 = vrot.lane.b32.xlu0 %v1355, 16
        %v1428 = vpop.permute.xlu0 %1427
        %1429 = vrot.lane.b32.xlu0 %v1356, 16
        %v1430 = vpop.permute.xlu0 %1429
        %1431 = vrot.lane.b32.xlu0 %v1357, 16
        %v1432 = vpop.permute.xlu0 %1431
        %1433 = vrot.lane.b32.xlu0 %v1358, 16
        %v1434 = vpop.permute.xlu0 %1433
        %1435 = vrot.lane.b32.xlu0 %v1359, 16
        %v1436 = vpop.permute.xlu0 %1435
        %1437 = vrot.lane.b32.xlu0 %v1360, 16
        %v1438 = vpop.permute.xlu0 %1437
        %1439 = vrot.lane.b32.xlu0 %v1361, 16
        %v1440 = vpop.permute.xlu0 %1439
        %1441 = vrot.lane.b32.xlu0 %v1362, 16
        %v1442 = vpop.permute.xlu0 %1441
        %1443 = vrot.lane.b32.xlu0 %v1363, 16
        %v1444 = vpop.permute.xlu0 %1443
        %1445 = vrot.lane.b32.xlu0 %v1364, 16
        %v1446 = vpop.permute.xlu0 %1445
        %1447 = vrot.lane.b32.xlu0 %v1365, 16
        %v1448 = vpop.permute.xlu0 %1447
        %1449 = vrot.lane.b32.xlu0 %v1366, 16
        %v1450 = vpop.permute.xlu0 %1449
        %1451 = vrot.lane.b32.xlu0 %v1367, 16
        %v1452 = vpop.permute.xlu0 %1451
        %1453 = vrot.lane.b32.xlu0 %v1368, 16
        %v1454 = vpop.permute.xlu0 %1453
        %1455 = vrot.lane.b32.xlu0 %v1369, 16
        %v1456 = vpop.permute.xlu0 %1455
        %1457 = vrot.lane.b32.xlu0 %v1370, 16
        %v1458 = vpop.permute.xlu0 %1457
        %1459 = vrot.lane.b32.xlu0 %v1371, 16
        %v1460 = vpop.permute.xlu0 %1459
        %1461 = vrot.lane.b32.xlu0 %v1372, 16
        %v1462 = vpop.permute.xlu0 %1461
        %1463 = vrot.lane.b32.xlu0 %v1373, 16
        %v1464 = vpop.permute.xlu0 %1463
        %1465 = vrot.lane.b32.xlu0 %v1374, 16
        %v1466 = vpop.permute.xlu0 %1465
        %1467 = vrot.lane.b32.xlu0 %v1375, 16
        %v1468 = vpop.permute.xlu0 %1467
        %1469 = vrot.lane.b32.xlu0 %v1376, 16
        %v1470 = vpop.permute.xlu0 %1469
        %1471 = vrot.lane.b32.xlu0 %v1377, 16
        %v1472 = vpop.permute.xlu0 %1471
        %1473 = vrot.lane.b32.xlu0 %v1378, 16
        %v1474 = vpop.permute.xlu0 %1473
        %vm1507 = vcmask 162944
        %1508 = vst.msk [vmem:[#allocation3] sm:$0xff] %vm1507, %v1412
        %1509 = vst.msk [vmem:[#allocation3 + $0x8] sm:$0xff] %vm1507, %v1414
        %1510 = vst.msk [vmem:[#allocation3 + $0x10] sm:$0xff] %vm1507, %v1416
        %1511 = vst.msk [vmem:[#allocation3 + $0x18] sm:$0xff] %vm1507, %v1418
        %1512 = vst.msk [vmem:[#allocation3 + $0x20] sm:$0xff] %vm1507, %v1420
        %1513 = vst.msk [vmem:[#allocation3 + $0x28] sm:$0xff] %vm1507, %v1422
        %1514 = vst.msk [vmem:[#allocation3 + $0x30] sm:$0xff] %vm1507, %v1424
        %1515 = vst.msk [vmem:[#allocation3 + $0x38] sm:$0xff] %vm1507, %v1426
        %1516 = vst.msk [vmem:[#allocation3 + $0x40] sm:$0xff] %vm1507, %v1428
        %1517 = vst.msk [vmem:[#allocation3 + $0x48] sm:$0xff] %vm1507, %v1430
        %1518 = vst.msk [vmem:[#allocation3 + $0x50] sm:$0xff] %vm1507, %v1432
        %1519 = vst.msk [vmem:[#allocation3 + $0x58] sm:$0xff] %vm1507, %v1434
        %1520 = vst.msk [vmem:[#allocation3 + $0x60] sm:$0xff] %vm1507, %v1436
        %1521 = vst.msk [vmem:[#allocation3 + $0x68] sm:$0xff] %vm1507, %v1438
        %1522 = vst.msk [vmem:[#allocation3 + $0x70] sm:$0xff] %vm1507, %v1440
        %1523 = vst.msk [vmem:[#allocation3 + $0x78] sm:$0xff] %vm1507, %v1442
        %1524 = vst.msk [vmem:[#allocation3 + $0x80] sm:$0xff] %vm1507, %v1444
        %1525 = vst.msk [vmem:[#allocation3 + $0x88] sm:$0xff] %vm1507, %v1446
        %1526 = vst.msk [vmem:[#allocation3 + $0x90] sm:$0xff] %vm1507, %v1448
        %1527 = vst.msk [vmem:[#allocation3 + $0x98] sm:$0xff] %vm1507, %v1450
        %1528 = vst.msk [vmem:[#allocation3 + $0xa0] sm:$0xff] %vm1507, %v1452
        %1529 = vst.msk [vmem:[#allocation3 + $0xa8] sm:$0xff] %vm1507, %v1454
        %1530 = vst.msk [vmem:[#allocation3 + $0xb0] sm:$0xff] %vm1507, %v1456
        %1531 = vst.msk [vmem:[#allocation3 + $0xb8] sm:$0xff] %vm1507, %v1458
        %1532 = vst.msk [vmem:[#allocation3 + $0xc0] sm:$0xff] %vm1507, %v1460
        %1533 = vst.msk [vmem:[#allocation3 + $0xc8] sm:$0xff] %vm1507, %v1462
        %1534 = vst.msk [vmem:[#allocation3 + $0xd0] sm:$0xff] %vm1507, %v1464
        %1535 = vst.msk [vmem:[#allocation3 + $0xd8] sm:$0xff] %vm1507, %v1466
        %1536 = vst.msk [vmem:[#allocation3 + $0xe0] sm:$0xff] %vm1507, %v1468
        %1537 = vst.msk [vmem:[#allocation3 + $0xe8] sm:$0xff] %vm1507, %v1470
        %1538 = vst.msk [vmem:[#allocation3 + $0xf0] sm:$0xff] %vm1507, %v1472
        %1539 = vst.msk [vmem:[#allocation3 + $0xf8] sm:$0xff] %vm1507, %v1474
        %v1540 = vld [vmem:[%s671 + $0x2] sm:$0xff]
        %v1541 = vld [vmem:[%s671 + $0xa] sm:$0xff]
        %v1542 = vld [vmem:[%s671 + $0x1a] sm:$0xff]
        %v1543 = vld [vmem:[%s671 + $0x22] sm:$0xff]
        %v1544 = vld [vmem:[%s671 + $0x32] sm:$0xff]
        %v1545 = vld [vmem:[%s671 + $0x3a] sm:$0xff]
        %v1546 = vld [vmem:[%s671 + $0x4a] sm:$0xff]
        %v1547 = vld [vmem:[%s671 + $0x52] sm:$0xff]
        %v1548 = vld [vmem:[%s671 + $0x62] sm:$0xff]
        %v1549 = vld [vmem:[%s671 + $0x6a] sm:$0xff]
        %v1550 = vld [vmem:[%s671 + $0x7a] sm:$0xff]
        %v1551 = vld [vmem:[%s671 + $0x82] sm:$0xff]
        %v1552 = vld [vmem:[%s671 + $0x92] sm:$0xff]
        %v1553 = vld [vmem:[%s671 + $0x9a] sm:$0xff]
        %v1554 = vld [vmem:[%s671 + $0xaa] sm:$0xff]
        %v1555 = vld [vmem:[%s671 + $0xb2] sm:$0xff]
        %v1556 = vld [vmem:[%s671 + $0xc2] sm:$0xff]
        %v1557 = vld [vmem:[%s671 + $0xca] sm:$0xff]
        %v1558 = vld [vmem:[%s671 + $0xda] sm:$0xff]
        %v1559 = vld [vmem:[%s671 + $0xe2] sm:$0xff]
        %v1560 = vld [vmem:[%s671 + $0xf2] sm:$0xff]
        %v1561 = vld [vmem:[%s671 + $0xfa] sm:$0xff]
        %v1562 = vld [vmem:[%s671 + $0x10a] sm:$0xff]
        %v1563 = vld [vmem:[%s671 + $0x112] sm:$0xff]
        %v1564 = vld [vmem:[%s671 + $0x122] sm:$0xff]
        %v1565 = vld [vmem:[%s671 + $0x12a] sm:$0xff]
        %v1566 = vld [vmem:[%s671 + $0x13a] sm:$0xff]
        %v1567 = vld [vmem:[%s671 + $0x142] sm:$0xff]
        %v1568 = vld [vmem:[%s671 + $0x152] sm:$0xff]
        %v1569 = vld [vmem:[%s671 + $0x15a] sm:$0xff]
        %v1570 = vld [vmem:[%s671 + $0x16a] sm:$0xff]
        %v1571 = vld [vmem:[%s671 + $0x172] sm:$0xff]
        %1604 = vrot.lane.b32.xlu0 %v1540, 20
        %v1605 = vpop.permute.xlu0 %1604
        %1606 = vrot.lane.b32.xlu0 %v1541, 20
        %v1607 = vpop.permute.xlu0 %1606
        %1608 = vrot.lane.b32.xlu0 %v1542, 20
        %v1609 = vpop.permute.xlu0 %1608
        %1610 = vrot.lane.b32.xlu0 %v1543, 20
        %v1611 = vpop.permute.xlu0 %1610
        %1612 = vrot.lane.b32.xlu0 %v1544, 20
        %v1613 = vpop.permute.xlu0 %1612
        %1614 = vrot.lane.b32.xlu0 %v1545, 20
        %v1615 = vpop.permute.xlu0 %1614
        %1616 = vrot.lane.b32.xlu0 %v1546, 20
        %v1617 = vpop.permute.xlu0 %1616
        %1618 = vrot.lane.b32.xlu0 %v1547, 20
        %v1619 = vpop.permute.xlu0 %1618
        %1620 = vrot.lane.b32.xlu0 %v1548, 20
        %v1621 = vpop.permute.xlu0 %1620
        %1622 = vrot.lane.b32.xlu0 %v1549, 20
        %v1623 = vpop.permute.xlu0 %1622
        %1624 = vrot.lane.b32.xlu0 %v1550, 20
        %v1625 = vpop.permute.xlu0 %1624
        %1626 = vrot.lane.b32.xlu0 %v1551, 20
        %v1627 = vpop.permute.xlu0 %1626
        %1628 = vrot.lane.b32.xlu0 %v1552, 20
        %v1629 = vpop.permute.xlu0 %1628
        %1630 = vrot.lane.b32.xlu0 %v1553, 20
        %v1631 = vpop.permute.xlu0 %1630
        %1632 = vrot.lane.b32.xlu0 %v1554, 20
        %v1633 = vpop.permute.xlu0 %1632
        %1634 = vrot.lane.b32.xlu0 %v1555, 20
        %v1635 = vpop.permute.xlu0 %1634
        %1636 = vrot.lane.b32.xlu0 %v1556, 20
        %v1637 = vpop.permute.xlu0 %1636
        %1638 = vrot.lane.b32.xlu0 %v1557, 20
        %v1639 = vpop.permute.xlu0 %1638
        %1640 = vrot.lane.b32.xlu0 %v1558, 20
        %v1641 = vpop.permute.xlu0 %1640
        %1642 = vrot.lane.b32.xlu0 %v1559, 20
        %v1643 = vpop.permute.xlu0 %1642
        %1644 = vrot.lane.b32.xlu0 %v1560, 20
        %v1645 = vpop.permute.xlu0 %1644
        %1646 = vrot.lane.b32.xlu0 %v1561, 20
        %v1647 = vpop.permute.xlu0 %1646
        %1648 = vrot.lane.b32.xlu0 %v1562, 20
        %v1649 = vpop.permute.xlu0 %1648
        %1650 = vrot.lane.b32.xlu0 %v1563, 20
        %v1651 = vpop.permute.xlu0 %1650
        %1652 = vrot.lane.b32.xlu0 %v1564, 20
        %v1653 = vpop.permute.xlu0 %1652
        %1654 = vrot.lane.b32.xlu0 %v1565, 20
        %v1655 = vpop.permute.xlu0 %1654
        %1656 = vrot.lane.b32.xlu0 %v1566, 20
        %v1657 = vpop.permute.xlu0 %1656
        %1658 = vrot.lane.b32.xlu0 %v1567, 20
        %v1659 = vpop.permute.xlu0 %1658
        %1660 = vrot.lane.b32.xlu0 %v1568, 20
        %v1661 = vpop.permute.xlu0 %1660
        %1662 = vrot.lane.b32.xlu0 %v1569, 20
        %v1663 = vpop.permute.xlu0 %1662
        %1664 = vrot.lane.b32.xlu0 %v1570, 20
        %v1665 = vpop.permute.xlu0 %1664
        %1666 = vrot.lane.b32.xlu0 %v1571, 20
        %v1667 = vpop.permute.xlu0 %1666
        %vm1700 = vcmask 195744
        %1701 = vst.msk [vmem:[#allocation3] sm:$0xff] %vm1700, %v1605
        %1702 = vst.msk [vmem:[#allocation3 + $0x8] sm:$0xff] %vm1700, %v1607
        %1703 = vst.msk [vmem:[#allocation3 + $0x10] sm:$0xff] %vm1700, %v1609
        %1704 = vst.msk [vmem:[#allocation3 + $0x18] sm:$0xff] %vm1700, %v1611
        %1705 = vst.msk [vmem:[#allocation3 + $0x20] sm:$0xff] %vm1700, %v1613
        %1706 = vst.msk [vmem:[#allocation3 + $0x28] sm:$0xff] %vm1700, %v1615
        %1707 = vst.msk [vmem:[#allocation3 + $0x30] sm:$0xff] %vm1700, %v1617
        %1708 = vst.msk [vmem:[#allocation3 + $0x38] sm:$0xff] %vm1700, %v1619
        %1709 = vst.msk [vmem:[#allocation3 + $0x40] sm:$0xff] %vm1700, %v1621
        %1710 = vst.msk [vmem:[#allocation3 + $0x48] sm:$0xff] %vm1700, %v1623
        %1711 = vst.msk [vmem:[#allocation3 + $0x50] sm:$0xff] %vm1700, %v1625
        %1712 = vst.msk [vmem:[#allocation3 + $0x58] sm:$0xff] %vm1700, %v1627
        %1713 = vst.msk [vmem:[#allocation3 + $0x60] sm:$0xff] %vm1700, %v1629
        %1714 = vst.msk [vmem:[#allocation3 + $0x68] sm:$0xff] %vm1700, %v1631
        %1715 = vst.msk [vmem:[#allocation3 + $0x70] sm:$0xff] %vm1700, %v1633
        %1716 = vst.msk [vmem:[#allocation3 + $0x78] sm:$0xff] %vm1700, %v1635
        %1717 = vst.msk [vmem:[#allocation3 + $0x80] sm:$0xff] %vm1700, %v1637
        %1718 = vst.msk [vmem:[#allocation3 + $0x88] sm:$0xff] %vm1700, %v1639
        %1719 = vst.msk [vmem:[#allocation3 + $0x90] sm:$0xff] %vm1700, %v1641
        %1720 = vst.msk [vmem:[#allocation3 + $0x98] sm:$0xff] %vm1700, %v1643
        %1721 = vst.msk [vmem:[#allocation3 + $0xa0] sm:$0xff] %vm1700, %v1645
        %1722 = vst.msk [vmem:[#allocation3 + $0xa8] sm:$0xff] %vm1700, %v1647
        %1723 = vst.msk [vmem:[#allocation3 + $0xb0] sm:$0xff] %vm1700, %v1649
        %1724 = vst.msk [vmem:[#allocation3 + $0xb8] sm:$0xff] %vm1700, %v1651
        %1725 = vst.msk [vmem:[#allocation3 + $0xc0] sm:$0xff] %vm1700, %v1653
        %1726 = vst.msk [vmem:[#allocation3 + $0xc8] sm:$0xff] %vm1700, %v1655
        %1727 = vst.msk [vmem:[#allocation3 + $0xd0] sm:$0xff] %vm1700, %v1657
        %1728 = vst.msk [vmem:[#allocation3 + $0xd8] sm:$0xff] %vm1700, %v1659
        %1729 = vst.msk [vmem:[#allocation3 + $0xe0] sm:$0xff] %vm1700, %v1661
        %1730 = vst.msk [vmem:[#allocation3 + $0xe8] sm:$0xff] %vm1700, %v1663
        %1731 = vst.msk [vmem:[#allocation3 + $0xf0] sm:$0xff] %vm1700, %v1665
        %1732 = vst.msk [vmem:[#allocation3 + $0xf8] sm:$0xff] %vm1700, %v1667
        %s1733 = scalar_lea.vmem [#allocation2], 48
        %v1734 = vld [vmem:[%s1733] sm:$0xff]
        %v1735 = vld [vmem:[%s1733 + $0x8] sm:$0xff]
        %v1736 = vld [vmem:[%s1733 + $0x18] sm:$0xff]
        %v1737 = vld [vmem:[%s1733 + $0x20] sm:$0xff]
        %v1738 = vld [vmem:[%s1733 + $0x30] sm:$0xff]
        %v1739 = vld [vmem:[%s1733 + $0x38] sm:$0xff]
        %v1740 = vld [vmem:[%s1733 + $0x48] sm:$0xff]
        %v1741 = vld [vmem:[%s1733 + $0x50] sm:$0xff]
        %v1742 = vld [vmem:[%s1733 + $0x60] sm:$0xff]
        %v1743 = vld [vmem:[%s1733 + $0x68] sm:$0xff]
        %v1744 = vld [vmem:[%s1733 + $0x78] sm:$0xff]
        %v1745 = vld [vmem:[%s1733 + $0x80] sm:$0xff]
        %v1746 = vld [vmem:[%s1733 + $0x90] sm:$0xff]
        %v1747 = vld [vmem:[%s1733 + $0x98] sm:$0xff]
        %v1748 = vld [vmem:[%s1733 + $0xa8] sm:$0xff]
        %v1749 = vld [vmem:[%s1733 + $0xb0] sm:$0xff]
        %v1750 = vld [vmem:[%s1733 + $0xc0] sm:$0xff]
        %v1751 = vld [vmem:[%s1733 + $0xc8] sm:$0xff]
        %v1752 = vld [vmem:[%s1733 + $0xd8] sm:$0xff]
        %v1753 = vld [vmem:[%s1733 + $0xe0] sm:$0xff]
        %v1754 = vld [vmem:[%s1733 + $0xf0] sm:$0xff]
        %v1755 = vld [vmem:[%s1733 + $0xf8] sm:$0xff]
        %v1756 = vld [vmem:[%s1733 + $0x108] sm:$0xff]
        %v1757 = vld [vmem:[%s1733 + $0x110] sm:$0xff]
        %v1758 = vld [vmem:[%s1733 + $0x120] sm:$0xff]
        %v1759 = vld [vmem:[%s1733 + $0x128] sm:$0xff]
        %v1760 = vld [vmem:[%s1733 + $0x138] sm:$0xff]
        %v1761 = vld [vmem:[%s1733 + $0x140] sm:$0xff]
        %v1762 = vld [vmem:[%s1733 + $0x150] sm:$0xff]
        %v1763 = vld [vmem:[%s1733 + $0x158] sm:$0xff]
        %v1764 = vld [vmem:[%s1733 + $0x168] sm:$0xff]
        %v1765 = vld [vmem:[%s1733 + $0x170] sm:$0xff]
        %1798 = vrot.lane.b32.xlu0 %v1734, 24
        %v1799 = vpop.permute.xlu0 %1798
        %1800 = vrot.lane.b32.xlu0 %v1735, 24
        %v1801 = vpop.permute.xlu0 %1800
        %1802 = vrot.lane.b32.xlu0 %v1736, 24
        %v1803 = vpop.permute.xlu0 %1802
        %1804 = vrot.lane.b32.xlu0 %v1737, 24
        %v1805 = vpop.permute.xlu0 %1804
        %1806 = vrot.lane.b32.xlu0 %v1738, 24
        %v1807 = vpop.permute.xlu0 %1806
        %1808 = vrot.lane.b32.xlu0 %v1739, 24
        %v1809 = vpop.permute.xlu0 %1808
        %1810 = vrot.lane.b32.xlu0 %v1740, 24
        %v1811 = vpop.permute.xlu0 %1810
        %1812 = vrot.lane.b32.xlu0 %v1741, 24
        %v1813 = vpop.permute.xlu0 %1812
        %1814 = vrot.lane.b32.xlu0 %v1742, 24
        %v1815 = vpop.permute.xlu0 %1814
        %1816 = vrot.lane.b32.xlu0 %v1743, 24
        %v1817 = vpop.permute.xlu0 %1816
        %1818 = vrot.lane.b32.xlu0 %v1744, 24
        %v1819 = vpop.permute.xlu0 %1818
        %1820 = vrot.lane.b32.xlu0 %v1745, 24
        %v1821 = vpop.permute.xlu0 %1820
        %1822 = vrot.lane.b32.xlu0 %v1746, 24
        %v1823 = vpop.permute.xlu0 %1822
        %1824 = vrot.lane.b32.xlu0 %v1747, 24
        %v1825 = vpop.permute.xlu0 %1824
        %1826 = vrot.lane.b32.xlu0 %v1748, 24
        %v1827 = vpop.permute.xlu0 %1826
        %1828 = vrot.lane.b32.xlu0 %v1749, 24
        %v1829 = vpop.permute.xlu0 %1828
        %1830 = vrot.lane.b32.xlu0 %v1750, 24
        %v1831 = vpop.permute.xlu0 %1830
        %1832 = vrot.lane.b32.xlu0 %v1751, 24
        %v1833 = vpop.permute.xlu0 %1832
        %1834 = vrot.lane.b32.xlu0 %v1752, 24
        %v1835 = vpop.permute.xlu0 %1834
        %1836 = vrot.lane.b32.xlu0 %v1753, 24
        %v1837 = vpop.permute.xlu0 %1836
        %1838 = vrot.lane.b32.xlu0 %v1754, 24
        %v1839 = vpop.permute.xlu0 %1838
        %1840 = vrot.lane.b32.xlu0 %v1755, 24
        %v1841 = vpop.permute.xlu0 %1840
        %1842 = vrot.lane.b32.xlu0 %v1756, 24
        %v1843 = vpop.permute.xlu0 %1842
        %1844 = vrot.lane.b32.xlu0 %v1757, 24
        %v1845 = vpop.permute.xlu0 %1844
        %1846 = vrot.lane.b32.xlu0 %v1758, 24
        %v1847 = vpop.permute.xlu0 %1846
        %1848 = vrot.lane.b32.xlu0 %v1759, 24
        %v1849 = vpop.permute.xlu0 %1848
        %1850 = vrot.lane.b32.xlu0 %v1760, 24
        %v1851 = vpop.permute.xlu0 %1850
        %1852 = vrot.lane.b32.xlu0 %v1761, 24
        %v1853 = vpop.permute.xlu0 %1852
        %1854 = vrot.lane.b32.xlu0 %v1762, 24
        %v1855 = vpop.permute.xlu0 %1854
        %1856 = vrot.lane.b32.xlu0 %v1763, 24
        %v1857 = vpop.permute.xlu0 %1856
        %1858 = vrot.lane.b32.xlu0 %v1764, 24
        %v1859 = vpop.permute.xlu0 %1858
        %1860 = vrot.lane.b32.xlu0 %v1765, 24
        %v1861 = vpop.permute.xlu0 %1860
        %vm1894 = vcmask 228544
        %1895 = vst.msk [vmem:[#allocation3] sm:$0xff] %vm1894, %v1799
        %1896 = vst.msk [vmem:[#allocation3 + $0x8] sm:$0xff] %vm1894, %v1801
        %1897 = vst.msk [vmem:[#allocation3 + $0x10] sm:$0xff] %vm1894, %v1803
        %1898 = vst.msk [vmem:[#allocation3 + $0x18] sm:$0xff] %vm1894, %v1805
        %1899 = vst.msk [vmem:[#allocation3 + $0x20] sm:$0xff] %vm1894, %v1807
        %1900 = vst.msk [vmem:[#allocation3 + $0x28] sm:$0xff] %vm1894, %v1809
        %1901 = vst.msk [vmem:[#allocation3 + $0x30] sm:$0xff] %vm1894, %v1811
        %1902 = vst.msk [vmem:[#allocation3 + $0x38] sm:$0xff] %vm1894, %v1813
        %1903 = vst.msk [vmem:[#allocation3 + $0x40] sm:$0xff] %vm1894, %v1815
        %1904 = vst.msk [vmem:[#allocation3 + $0x48] sm:$0xff] %vm1894, %v1817
        %1905 = vst.msk [vmem:[#allocation3 + $0x50] sm:$0xff] %vm1894, %v1819
        %1906 = vst.msk [vmem:[#allocation3 + $0x58] sm:$0xff] %vm1894, %v1821
        %1907 = vst.msk [vmem:[#allocation3 + $0x60] sm:$0xff] %vm1894, %v1823
        %1908 = vst.msk [vmem:[#allocation3 + $0x68] sm:$0xff] %vm1894, %v1825
        %1909 = vst.msk [vmem:[#allocation3 + $0x70] sm:$0xff] %vm1894, %v1827
        %1910 = vst.msk [vmem:[#allocation3 + $0x78] sm:$0xff] %vm1894, %v1829
        %1911 = vst.msk [vmem:[#allocation3 + $0x80] sm:$0xff] %vm1894, %v1831
        %1912 = vst.msk [vmem:[#allocation3 + $0x88] sm:$0xff] %vm1894, %v1833
        %1913 = vst.msk [vmem:[#allocation3 + $0x90] sm:$0xff] %vm1894, %v1835
        %1914 = vst.msk [vmem:[#allocation3 + $0x98] sm:$0xff] %vm1894, %v1837
        %1915 = vst.msk [vmem:[#allocation3 + $0xa0] sm:$0xff] %vm1894, %v1839
        %1916 = vst.msk [vmem:[#allocation3 + $0xa8] sm:$0xff] %vm1894, %v1841
        %1917 = vst.msk [vmem:[#allocation3 + $0xb0] sm:$0xff] %vm1894, %v1843
        %1918 = vst.msk [vmem:[#allocation3 + $0xb8] sm:$0xff] %vm1894, %v1845
        %1919 = vst.msk [vmem:[#allocation3 + $0xc0] sm:$0xff] %vm1894, %v1847
        %1920 = vst.msk [vmem:[#allocation3 + $0xc8] sm:$0xff] %vm1894, %v1849
        %1921 = vst.msk [vmem:[#allocation3 + $0xd0] sm:$0xff] %vm1894, %v1851
        %1922 = vst.msk [vmem:[#allocation3 + $0xd8] sm:$0xff] %vm1894, %v1853
        %1923 = vst.msk [vmem:[#allocation3 + $0xe0] sm:$0xff] %vm1894, %v1855
        %1924 = vst.msk [vmem:[#allocation3 + $0xe8] sm:$0xff] %vm1894, %v1857
        %1925 = vst.msk [vmem:[#allocation3 + $0xf0] sm:$0xff] %vm1894, %v1859
        %1926 = vst.msk [vmem:[#allocation3 + $0xf8] sm:$0xff] %vm1894, %v1861
        %v1927 = vld [vmem:[%s1733 + $0x1] sm:$0xff]
        %v1928 = vld [vmem:[%s1733 + $0x9] sm:$0xff]
        %v1929 = vld [vmem:[%s1733 + $0x19] sm:$0xff]
        %v1930 = vld [vmem:[%s1733 + $0x21] sm:$0xff]
        %v1931 = vld [vmem:[%s1733 + $0x31] sm:$0xff]
        %v1932 = vld [vmem:[%s1733 + $0x39] sm:$0xff]
        %v1933 = vld [vmem:[%s1733 + $0x49] sm:$0xff]
        %v1934 = vld [vmem:[%s1733 + $0x51] sm:$0xff]
        %v1935 = vld [vmem:[%s1733 + $0x61] sm:$0xff]
        %v1936 = vld [vmem:[%s1733 + $0x69] sm:$0xff]
        %v1937 = vld [vmem:[%s1733 + $0x79] sm:$0xff]
        %v1938 = vld [vmem:[%s1733 + $0x81] sm:$0xff]
        %v1939 = vld [vmem:[%s1733 + $0x91] sm:$0xff]
        %v1940 = vld [vmem:[%s1733 + $0x99] sm:$0xff]
        %v1941 = vld [vmem:[%s1733 + $0xa9] sm:$0xff]
        %v1942 = vld [vmem:[%s1733 + $0xb1] sm:$0xff]
        %v1943 = vld [vmem:[%s1733 + $0xc1] sm:$0xff]
        %v1944 = vld [vmem:[%s1733 + $0xc9] sm:$0xff]
        %v1945 = vld [vmem:[%s1733 + $0xd9] sm:$0xff]
        %v1946 = vld [vmem:[%s1733 + $0xe1] sm:$0xff]
        %v1947 = vld [vmem:[%s1733 + $0xf1] sm:$0xff]
        %v1948 = vld [vmem:[%s1733 + $0xf9] sm:$0xff]
        %v1949 = vld [vmem:[%s1733 + $0x109] sm:$0xff]
        %v1950 = vld [vmem:[%s1733 + $0x111] sm:$0xff]
        %v1951 = vld [vmem:[%s1733 + $0x121] sm:$0xff]
        %v1952 = vld [vmem:[%s1733 + $0x129] sm:$0xff]
        %v1953 = vld [vmem:[%s1733 + $0x139] sm:$0xff]
        %v1954 = vld [vmem:[%s1733 + $0x141] sm:$0xff]
        %v1955 = vld [vmem:[%s1733 + $0x151] sm:$0xff]
        %v1956 = vld [vmem:[%s1733 + $0x159] sm:$0xff]
        %v1957 = vld [vmem:[%s1733 + $0x169] sm:$0xff]
        %v1958 = vld [vmem:[%s1733 + $0x171] sm:$0xff]
        %1991 = vrot.lane.b32.xlu0 %v1927, 28
        %v1992 = vpop.permute.xlu0 %1991
        %1993 = vrot.lane.b32.xlu0 %v1928, 28
        %v1994 = vpop.permute.xlu0 %1993
        %1995 = vrot.lane.b32.xlu0 %v1929, 28
        %v1996 = vpop.permute.xlu0 %1995
        %1997 = vrot.lane.b32.xlu0 %v1930, 28
        %v1998 = vpop.permute.xlu0 %1997
        %1999 = vrot.lane.b32.xlu0 %v1931, 28
        %v2000 = vpop.permute.xlu0 %1999
        %2001 = vrot.lane.b32.xlu0 %v1932, 28
        %v2002 = vpop.permute.xlu0 %2001
        %2003 = vrot.lane.b32.xlu0 %v1933, 28
        %v2004 = vpop.permute.xlu0 %2003
        %2005 = vrot.lane.b32.xlu0 %v1934, 28
        %v2006 = vpop.permute.xlu0 %2005
        %2007 = vrot.lane.b32.xlu0 %v1935, 28
        %v2008 = vpop.permute.xlu0 %2007
        %2009 = vrot.lane.b32.xlu0 %v1936, 28
        %v2010 = vpop.permute.xlu0 %2009
        %2011 = vrot.lane.b32.xlu0 %v1937, 28
        %v2012 = vpop.permute.xlu0 %2011
        %2013 = vrot.lane.b32.xlu0 %v1938, 28
        %v2014 = vpop.permute.xlu0 %2013
        %2015 = vrot.lane.b32.xlu0 %v1939, 28
        %v2016 = vpop.permute.xlu0 %2015
        %2017 = vrot.lane.b32.xlu0 %v1940, 28
        %v2018 = vpop.permute.xlu0 %2017
        %2019 = vrot.lane.b32.xlu0 %v1941, 28
        %v2020 = vpop.permute.xlu0 %2019
        %2021 = vrot.lane.b32.xlu0 %v1942, 28
        %v2022 = vpop.permute.xlu0 %2021
        %2023 = vrot.lane.b32.xlu0 %v1943, 28
        %v2024 = vpop.permute.xlu0 %2023
        %2025 = vrot.lane.b32.xlu0 %v1944, 28
        %v2026 = vpop.permute.xlu0 %2025
        %2027 = vrot.lane.b32.xlu0 %v1945, 28
        %v2028 = vpop.permute.xlu0 %2027
        %2029 = vrot.lane.b32.xlu0 %v1946, 28
        %v2030 = vpop.permute.xlu0 %2029
        %2031 = vrot.lane.b32.xlu0 %v1947, 28
        %v2032 = vpop.permute.xlu0 %2031
        %2033 = vrot.lane.b32.xlu0 %v1948, 28
        %v2034 = vpop.permute.xlu0 %2033
        %2035 = vrot.lane.b32.xlu0 %v1949, 28
        %v2036 = vpop.permute.xlu0 %2035
        %2037 = vrot.lane.b32.xlu0 %v1950, 28
        %v2038 = vpop.permute.xlu0 %2037
        %2039 = vrot.lane.b32.xlu0 %v1951, 28
        %v2040 = vpop.permute.xlu0 %2039
        %2041 = vrot.lane.b32.xlu0 %v1952, 28
        %v2042 = vpop.permute.xlu0 %2041
        %2043 = vrot.lane.b32.xlu0 %v1953, 28
        %v2044 = vpop.permute.xlu0 %2043
        %2045 = vrot.lane.b32.xlu0 %v1954, 28
        %v2046 = vpop.permute.xlu0 %2045
        %2047 = vrot.lane.b32.xlu0 %v1955, 28
        %v2048 = vpop.permute.xlu0 %2047
        %2049 = vrot.lane.b32.xlu0 %v1956, 28
        %v2050 = vpop.permute.xlu0 %2049
        %2051 = vrot.lane.b32.xlu0 %v1957, 28
        %v2052 = vpop.permute.xlu0 %2051
        %2053 = vrot.lane.b32.xlu0 %v1958, 28
        %v2054 = vpop.permute.xlu0 %2053
        %vm2087 = vcmask 261344
        %2088 = vst.msk [vmem:[#allocation3] sm:$0xff] %vm2087, %v1992
        %2089 = vst.msk [vmem:[#allocation3 + $0x8] sm:$0xff] %vm2087, %v1994
        %2090 = vst.msk [vmem:[#allocation3 + $0x10] sm:$0xff] %vm2087, %v1996
        %2091 = vst.msk [vmem:[#allocation3 + $0x18] sm:$0xff] %vm2087, %v1998
        %2092 = vst.msk [vmem:[#allocation3 + $0x20] sm:$0xff] %vm2087, %v2000
        %2093 = vst.msk [vmem:[#allocation3 + $0x28] sm:$0xff] %vm2087, %v2002
        %2094 = vst.msk [vmem:[#allocation3 + $0x30] sm:$0xff] %vm2087, %v2004
        %2095 = vst.msk [vmem:[#allocation3 + $0x38] sm:$0xff] %vm2087, %v2006
        %2096 = vst.msk [vmem:[#allocation3 + $0x40] sm:$0xff] %vm2087, %v2008
        %2097 = vst.msk [vmem:[#allocation3 + $0x48] sm:$0xff] %vm2087, %v2010
        %2098 = vst.msk [vmem:[#allocation3 + $0x50] sm:$0xff] %vm2087, %v2012
        %2099 = vst.msk [vmem:[#allocation3 + $0x58] sm:$0xff] %vm2087, %v2014
        %2100 = vst.msk [vmem:[#allocation3 + $0x60] sm:$0xff] %vm2087, %v2016
        %2101 = vst.msk [vmem:[#allocation3 + $0x68] sm:$0xff] %vm2087, %v2018
        %2102 = vst.msk [vmem:[#allocation3 + $0x70] sm:$0xff] %vm2087, %v2020
        %2103 = vst.msk [vmem:[#allocation3 + $0x78] sm:$0xff] %vm2087, %v2022
        %2104 = vst.msk [vmem:[#allocation3 + $0x80] sm:$0xff] %vm2087, %v2024
        %2105 = vst.msk [vmem:[#allocation3 + $0x88] sm:$0xff] %vm2087, %v2026
        %2106 = vst.msk [vmem:[#allocation3 + $0x90] sm:$0xff] %vm2087, %v2028
        %2107 = vst.msk [vmem:[#allocation3 + $0x98] sm:$0xff] %vm2087, %v2030
        %2108 = vst.msk [vmem:[#allocation3 + $0xa0] sm:$0xff] %vm2087, %v2032
        %2109 = vst.msk [vmem:[#allocation3 + $0xa8] sm:$0xff] %vm2087, %v2034
        %2110 = vst.msk [vmem:[#allocation3 + $0xb0] sm:$0xff] %vm2087, %v2036
        %2111 = vst.msk [vmem:[#allocation3 + $0xb8] sm:$0xff] %vm2087, %v2038
        %2112 = vst.msk [vmem:[#allocation3 + $0xc0] sm:$0xff] %vm2087, %v2040
        %2113 = vst.msk [vmem:[#allocation3 + $0xc8] sm:$0xff] %vm2087, %v2042
        %2114 = vst.msk [vmem:[#allocation3 + $0xd0] sm:$0xff] %vm2087, %v2044
        %2115 = vst.msk [vmem:[#allocation3 + $0xd8] sm:$0xff] %vm2087, %v2046
        %2116 = vst.msk [vmem:[#allocation3 + $0xe0] sm:$0xff] %vm2087, %v2048
        %2117 = vst.msk [vmem:[#allocation3 + $0xe8] sm:$0xff] %vm2087, %v2050
        %2118 = vst.msk [vmem:[#allocation3 + $0xf0] sm:$0xff] %vm2087, %v2052
        %2119 = vst.msk [vmem:[#allocation3 + $0xf8] sm:$0xff] %vm2087, %v2054
        %v2120 = vld [vmem:[%s1733 + $0x2] sm:$0xff]
        %v2121 = vld [vmem:[%s1733 + $0xa] sm:$0xff]
        %v2122 = vld [vmem:[%s1733 + $0x1a] sm:$0xff]
        %v2123 = vld [vmem:[%s1733 + $0x22] sm:$0xff]
        %v2124 = vld [vmem:[%s1733 + $0x32] sm:$0xff]
        %v2125 = vld [vmem:[%s1733 + $0x3a] sm:$0xff]
        %v2126 = vld [vmem:[%s1733 + $0x4a] sm:$0xff]
        %v2127 = vld [vmem:[%s1733 + $0x52] sm:$0xff]
        %v2128 = vld [vmem:[%s1733 + $0x62] sm:$0xff]
        %v2129 = vld [vmem:[%s1733 + $0x6a] sm:$0xff]
        %v2130 = vld [vmem:[%s1733 + $0x7a] sm:$0xff]
        %v2131 = vld [vmem:[%s1733 + $0x82] sm:$0xff]
        %v2132 = vld [vmem:[%s1733 + $0x92] sm:$0xff]
        %v2133 = vld [vmem:[%s1733 + $0x9a] sm:$0xff]
        %v2134 = vld [vmem:[%s1733 + $0xaa] sm:$0xff]
        %v2135 = vld [vmem:[%s1733 + $0xb2] sm:$0xff]
        %v2136 = vld [vmem:[%s1733 + $0xc2] sm:$0xff]
        %v2137 = vld [vmem:[%s1733 + $0xca] sm:$0xff]
        %v2138 = vld [vmem:[%s1733 + $0xda] sm:$0xff]
        %v2139 = vld [vmem:[%s1733 + $0xe2] sm:$0xff]
        %v2140 = vld [vmem:[%s1733 + $0xf2] sm:$0xff]
        %v2141 = vld [vmem:[%s1733 + $0xfa] sm:$0xff]
        %v2142 = vld [vmem:[%s1733 + $0x10a] sm:$0xff]
        %v2143 = vld [vmem:[%s1733 + $0x112] sm:$0xff]
        %v2144 = vld [vmem:[%s1733 + $0x122] sm:$0xff]
        %v2145 = vld [vmem:[%s1733 + $0x12a] sm:$0xff]
        %v2146 = vld [vmem:[%s1733 + $0x13a] sm:$0xff]
        %v2147 = vld [vmem:[%s1733 + $0x142] sm:$0xff]
        %v2148 = vld [vmem:[%s1733 + $0x152] sm:$0xff]
        %v2149 = vld [vmem:[%s1733 + $0x15a] sm:$0xff]
        %v2150 = vld [vmem:[%s1733 + $0x16a] sm:$0xff]
        %v2151 = vld [vmem:[%s1733 + $0x172] sm:$0xff]
        %2184 = vrot.lane.b32.xlu0 %v2120, 32
        %v2185 = vpop.permute.xlu0 %2184
        %2186 = vrot.lane.b32.xlu0 %v2121, 32
        %v2187 = vpop.permute.xlu0 %2186
        %2188 = vrot.lane.b32.xlu0 %v2122, 32
        %v2189 = vpop.permute.xlu0 %2188
        %2190 = vrot.lane.b32.xlu0 %v2123, 32
        %v2191 = vpop.permute.xlu0 %2190
        %2192 = vrot.lane.b32.xlu0 %v2124, 32
        %v2193 = vpop.permute.xlu0 %2192
        %2194 = vrot.lane.b32.xlu0 %v2125, 32
        %v2195 = vpop.permute.xlu0 %2194
        %2196 = vrot.lane.b32.xlu0 %v2126, 32
        %v2197 = vpop.permute.xlu0 %2196
        %2198 = vrot.lane.b32.xlu0 %v2127, 32
        %v2199 = vpop.permute.xlu0 %2198
        %2200 = vrot.lane.b32.xlu0 %v2128, 32
        %v2201 = vpop.permute.xlu0 %2200
        %2202 = vrot.lane.b32.xlu0 %v2129, 32
        %v2203 = vpop.permute.xlu0 %2202
        %2204 = vrot.lane.b32.xlu0 %v2130, 32
        %v2205 = vpop.permute.xlu0 %2204
        %2206 = vrot.lane.b32.xlu0 %v2131, 32
        %v2207 = vpop.permute.xlu0 %2206
        %2208 = vrot.lane.b32.xlu0 %v2132, 32
        %v2209 = vpop.permute.xlu0 %2208
        %2210 = vrot.lane.b32.xlu0 %v2133, 32
        %v2211 = vpop.permute.xlu0 %2210
        %2212 = vrot.lane.b32.xlu0 %v2134, 32
        %v2213 = vpop.permute.xlu0 %2212
        %2214 = vrot.lane.b32.xlu0 %v2135, 32
        %v2215 = vpop.permute.xlu0 %2214
        %2216 = vrot.lane.b32.xlu0 %v2136, 32
        %v2217 = vpop.permute.xlu0 %2216
        %2218 = vrot.lane.b32.xlu0 %v2137, 32
        %v2219 = vpop.permute.xlu0 %2218
        %2220 = vrot.lane.b32.xlu0 %v2138, 32
        %v2221 = vpop.permute.xlu0 %2220
        %2222 = vrot.lane.b32.xlu0 %v2139, 32
        %v2223 = vpop.permute.xlu0 %2222
        %2224 = vrot.lane.b32.xlu0 %v2140, 32
        %v2225 = vpop.permute.xlu0 %2224
        %2226 = vrot.lane.b32.xlu0 %v2141, 32
        %v2227 = vpop.permute.xlu0 %2226
        %2228 = vrot.lane.b32.xlu0 %v2142, 32
        %v2229 = vpop.permute.xlu0 %2228
        %2230 = vrot.lane.b32.xlu0 %v2143, 32
        %v2231 = vpop.permute.xlu0 %2230
        %2232 = vrot.lane.b32.xlu0 %v2144, 32
        %v2233 = vpop.permute.xlu0 %2232
        %2234 = vrot.lane.b32.xlu0 %v2145, 32
        %v2235 = vpop.permute.xlu0 %2234
        %2236 = vrot.lane.b32.xlu0 %v2146, 32
        %v2237 = vpop.permute.xlu0 %2236
        %2238 = vrot.lane.b32.xlu0 %v2147, 32
        %v2239 = vpop.permute.xlu0 %2238
        %2240 = vrot.lane.b32.xlu0 %v2148, 32
        %v2241 = vpop.permute.xlu0 %2240
        %2242 = vrot.lane.b32.xlu0 %v2149, 32
        %v2243 = vpop.permute.xlu0 %2242
        %2244 = vrot.lane.b32.xlu0 %v2150, 32
        %v2245 = vpop.permute.xlu0 %2244
        %2246 = vrot.lane.b32.xlu0 %v2151, 32
        %v2247 = vpop.permute.xlu0 %2246
        %vm2280 = vcmask 294144
        %2281 = vst.msk [vmem:[#allocation3] sm:$0xff] %vm2280, %v2185
        %2282 = vst.msk [vmem:[#allocation3 + $0x8] sm:$0xff] %vm2280, %v2187
        %2283 = vst.msk [vmem:[#allocation3 + $0x10] sm:$0xff] %vm2280, %v2189
        %2284 = vst.msk [vmem:[#allocation3 + $0x18] sm:$0xff] %vm2280, %v2191
        %2285 = vst.msk [vmem:[#allocation3 + $0x20] sm:$0xff] %vm2280, %v2193
        %2286 = vst.msk [vmem:[#allocation3 + $0x28] sm:$0xff] %vm2280, %v2195
        %2287 = vst.msk [vmem:[#allocation3 + $0x30] sm:$0xff] %vm2280, %v2197
        %2288 = vst.msk [vmem:[#allocation3 + $0x38] sm:$0xff] %vm2280, %v2199
        %2289 = vst.msk [vmem:[#allocation3 + $0x40] sm:$0xff] %vm2280, %v2201
        %2290 = vst.msk [vmem:[#allocation3 + $0x48] sm:$0xff] %vm2280, %v2203
        %2291 = vst.msk [vmem:[#allocation3 + $0x50] sm:$0xff] %vm2280, %v2205
        %2292 = vst.msk [vmem:[#allocation3 + $0x58] sm:$0xff] %vm2280, %v2207
        %2293 = vst.msk [vmem:[#allocation3 + $0x60] sm:$0xff] %vm2280, %v2209
        %2294 = vst.msk [vmem:[#allocation3 + $0x68] sm:$0xff] %vm2280, %v2211
        %2295 = vst.msk [vmem:[#allocation3 + $0x70] sm:$0xff] %vm2280, %v2213
        %2296 = vst.msk [vmem:[#allocation3 + $0x78] sm:$0xff] %vm2280, %v2215
        %2297 = vst.msk [vmem:[#allocation3 + $0x80] sm:$0xff] %vm2280, %v2217
        %2298 = vst.msk [vmem:[#allocation3 + $0x88] sm:$0xff] %vm2280, %v2219
        %2299 = vst.msk [vmem:[#allocation3 + $0x90] sm:$0xff] %vm2280, %v2221
        %2300 = vst.msk [vmem:[#allocation3 + $0x98] sm:$0xff] %vm2280, %v2223
        %2301 = vst.msk [vmem:[#allocation3 + $0xa0] sm:$0xff] %vm2280, %v2225
        %2302 = vst.msk [vmem:[#allocation3 + $0xa8] sm:$0xff] %vm2280, %v2227
        %2303 = vst.msk [vmem:[#allocation3 + $0xb0] sm:$0xff] %vm2280, %v2229
        %2304 = vst.msk [vmem:[#allocation3 + $0xb8] sm:$0xff] %vm2280, %v2231
        %2305 = vst.msk [vmem:[#allocation3 + $0xc0] sm:$0xff] %vm2280, %v2233
        %2306 = vst.msk [vmem:[#allocation3 + $0xc8] sm:$0xff] %vm2280, %v2235
        %2307 = vst.msk [vmem:[#allocation3 + $0xd0] sm:$0xff] %vm2280, %v2237
        %2308 = vst.msk [vmem:[#allocation3 + $0xd8] sm:$0xff] %vm2280, %v2239
        %2309 = vst.msk [vmem:[#allocation3 + $0xe0] sm:$0xff] %vm2280, %v2241
        %2310 = vst.msk [vmem:[#allocation3 + $0xe8] sm:$0xff] %vm2280, %v2243
        %2311 = vst.msk [vmem:[#allocation3 + $0xf0] sm:$0xff] %vm2280, %v2245
        %2312 = vst.msk [vmem:[#allocation3 + $0xf8] sm:$0xff] %vm2280, %v2247
        %v2313 = vld [vmem:[#allocation3] sm:$0xff]
        %v2314 = vld [vmem:[#allocation3 + $0x8] sm:$0xff]
        %v2315 = vld [vmem:[#allocation3 + $0x10] sm:$0xff]
        %v2316 = vld [vmem:[#allocation3 + $0x18] sm:$0xff]
        %v2317 = vld [vmem:[#allocation3 + $0x20] sm:$0xff]
        %v2318 = vld [vmem:[#allocation3 + $0x28] sm:$0xff]
        %v2319 = vld [vmem:[#allocation3 + $0x30] sm:$0xff]
        %v2320 = vld [vmem:[#allocation3 + $0x38] sm:$0xff]
        %v2321 = vld [vmem:[#allocation3 + $0x40] sm:$0xff]
        %v2322 = vld [vmem:[#allocation3 + $0x48] sm:$0xff]
        %v2323 = vld [vmem:[#allocation3 + $0x50] sm:$0xff]
        %v2324 = vld [vmem:[#allocation3 + $0x58] sm:$0xff]
        %v2325 = vld [vmem:[#allocation3 + $0x60] sm:$0xff]
        %v2326 = vld [vmem:[#allocation3 + $0x68] sm:$0xff]
        %v2327 = vld [vmem:[#allocation3 + $0x70] sm:$0xff]
        %v2328 = vld [vmem:[#allocation3 + $0x78] sm:$0xff]
        %v2329 = vld [vmem:[#allocation3 + $0x80] sm:$0xff]
        %v2330 = vld [vmem:[#allocation3 + $0x88] sm:$0xff]
        %v2331 = vld [vmem:[#allocation3 + $0x90] sm:$0xff]
        %v2332 = vld [vmem:[#allocation3 + $0x98] sm:$0xff]
        %v2333 = vld [vmem:[#allocation3 + $0xa0] sm:$0xff]
        %v2334 = vld [vmem:[#allocation3 + $0xa8] sm:$0xff]
        %v2335 = vld [vmem:[#allocation3 + $0xb0] sm:$0xff]
        %v2336 = vld [vmem:[#allocation3 + $0xb8] sm:$0xff]
        %v2337 = vld [vmem:[#allocation3 + $0xc0] sm:$0xff]
        %v2338 = vld [vmem:[#allocation3 + $0xc8] sm:$0xff]
        %v2339 = vld [vmem:[#allocation3 + $0xd0] sm:$0xff]
        %v2340 = vld [vmem:[#allocation3 + $0xd8] sm:$0xff]
        %v2341 = vld [vmem:[#allocation3 + $0xe0] sm:$0xff]
        %v2342 = vld [vmem:[#allocation3 + $0xe8] sm:$0xff]
        %v2343 = vld [vmem:[#allocation3 + $0xf0] sm:$0xff]
        %v2344 = vld [vmem:[#allocation3 + $0xf8] sm:$0xff]
        %v2345 = vld [vmem:[%s1] sm:$0xff]
        %v2346 = vld [vmem:[%s1 + $0x8] sm:$0xff]
        %v2347 = vld [vmem:[%s1 + $0x10] sm:$0xff]
        %v2348 = vld [vmem:[%s1 + $0x18] sm:$0xff]
        %v2349 = vld [vmem:[%s1 + $0x20] sm:$0xf]
        %vm2350 = vcmask 293888
        %v2352 = vsel %vm2350, %v2313, 0
        %v2355 = vsel %vm2350, %v2314, 0
        %v2358 = vsel %vm2350, %v2315, 0
        %v2361 = vsel %vm2350, %v2316, 0
        %v2364 = vsel %vm2350, %v2317, 0
        %v2367 = vsel %vm2350, %v2318, 0
        %v2370 = vsel %vm2350, %v2319, 0
        %v2373 = vsel %vm2350, %v2320, 0
        %v2376 = vsel %vm2350, %v2321, 0
        %v2379 = vsel %vm2350, %v2322, 0
        %v2382 = vsel %vm2350, %v2323, 0
        %v2385 = vsel %vm2350, %v2324, 0
        %v2388 = vsel %vm2350, %v2325, 0
        %v2391 = vsel %vm2350, %v2326, 0
        %v2394 = vsel %vm2350, %v2327, 0
        %v2397 = vsel %vm2350, %v2328, 0
        %v2400 = vsel %vm2350, %v2329, 0
        %v2403 = vsel %vm2350, %v2330, 0
        %v2406 = vsel %vm2350, %v2331, 0
        %v2409 = vsel %vm2350, %v2332, 0
        %v2412 = vsel %vm2350, %v2333, 0
        %v2415 = vsel %vm2350, %v2334, 0
        %v2418 = vsel %vm2350, %v2335, 0
        %v2421 = vsel %vm2350, %v2336, 0
        %v2424 = vsel %vm2350, %v2337, 0
        %v2427 = vsel %vm2350, %v2338, 0
        %v2430 = vsel %vm2350, %v2339, 0
        %v2433 = vsel %vm2350, %v2340, 0
        %v2436 = vsel %vm2350, %v2341, 0
        %v2439 = vsel %vm2350, %v2342, 0
        %v2442 = vsel %vm2350, %v2343, 0
        %v2445 = vsel %vm2350, %v2344, 0
        %vm2447 = vcmask 1043456
        %v2449 = vsel %vm2447, %v2349, 0
        %2451 = vmatprep.subr.mxu0 0.0
        %2452 = vmatpush1.msra.mxu0 %v2345
        %2453 = vmatprep.subr.mxu0 0.0
        %2454 = vmatpush1.msra.mxu0 %v2346
        %2455 = vmatprep.subr.mxu0 0.0
        %2456 = vmatpush1.msra.mxu0 %v2347
        %2457 = vmatprep.subr.mxu0 0.0
        %2458 = vmatpush1.msra.mxu0 %v2348
        %2459 = vmatprep.subr.mxu0 0.0
        %2460 = vmatpush1.msra.mxu0 %v2449
        %2461 = vmatprep.subr.mxu0 0.0
        %2462 = vmatpush1.msra.mxu0 0.0
        %2463 = vmatprep.subr.mxu0 0.0
        %2464 = vmatpush1.msra.mxu0 0.0
        %2465 = vmatprep.subr.mxu0 0.0
        %2466 = vmatpush1.msra.mxu0 0.0
        %2467 = vmatprep.subr.mxu0 0.0
        %2468 = vmatpush1.msra.mxu0 0.0
        %2469 = vmatprep.subr.mxu0 0.0
        %2470 = vmatpush1.msra.mxu0 0.0
        %2471 = vmatprep.subr.mxu0 0.0
        %2472 = vmatpush1.msra.mxu0 0.0
        %2473 = vmatprep.subr.mxu0 0.0
        %2474 = vmatpush1.msra.mxu0 0.0
        %2475 = vmatprep.subr.mxu0 0.0
        %2476 = vmatpush1.msra.mxu0 0.0
        %2477 = vmatprep.subr.mxu0 0.0
        %2478 = vmatpush1.msra.mxu0 0.0
        %2479 = vmatprep.subr.mxu0 0.0
        %2480 = vmatpush1.msra.mxu0 0.0
        %2481 = vmatprep.subr.mxu0 0.0
        %2482 = vmatpush1.msra.mxu0 0.0
        %2483 = vmatprep.subr.mxu0 0.0
        %2484 = vmatpush1.msra.mxu0 0.0
        %2485 = vmatprep.subr.mxu0 0.0
        %2486 = vmatpush1.msra.mxu0 0.0
        %2487 = vmatprep.subr.mxu0 0.0
        %2488 = vmatpush1.msra.mxu0 0.0
        %2489 = vmatprep.subr.mxu0 0.0
        %2490 = vmatpush1.msra.mxu0 0.0
        %2491 = vmatprep.subr.mxu0 0.0
        %2492 = vmatpush1.msra.mxu0 0.0
        %2493 = vmatprep.subr.mxu0 0.0
        %2494 = vmatpush1.msra.mxu0 0.0
        %2495 = vmatprep.subr.mxu0 0.0
        %2496 = vmatpush1.msra.mxu0 0.0
        %2497 = vmatprep.subr.mxu0 0.0
        %2498 = vmatpush1.msra.mxu0 0.0
        %2499 = vmatprep.subr.mxu0 0.0
        %2500 = vmatpush1.msra.mxu0 0.0
        %2501 = vmatprep.subr.mxu0 0.0
        %2502 = vmatpush1.msra.mxu0 0.0
        %2503 = vmatprep.subr.mxu0 0.0
        %2504 = vmatpush1.msra.mxu0 0.0
        %2505 = vmatprep.subr.mxu0 0.0
        %2506 = vmatpush1.msra.mxu0 0.0
        %2507 = vmatprep.subr.mxu0 0.0
        %2508 = vmatpush1.msra.mxu0 0.0
        %2509 = vmatprep.subr.mxu0 0.0
        %2510 = vmatpush1.msra.mxu0 0.0
        %2511 = vmatprep.subr.mxu0 0.0
        %2512 = vmatpush1.msra.mxu0 0.0
        %2513 = vmatprep.subr.mxu0 0.0
        %2514 = vmatpush1.msra.mxu0 0.0
        %2515 = vmatprep.mubr.f32.mxu0 0.0
        %2516 = vmatmul.mubr.f32.gmra.mrb[0].mxu0 %v2352
        %v2517 = vpop.f32.mrb[0].mxu0
        %v2518 = vadd.f32 0.0, %v2517
        %v2519 = vpop.f32.mrb[0].mxu0
        %2520 = vmatprep.mubr.f32.mxu0 0.0
        %2521 = vmatmul.mubr.f32.gmra.mrb[0].mxu0 %v2355
        %v2522 = vpop.f32.mrb[0].mxu0
        %v2523 = vadd.f32 0.0, %v2522
        %v2524 = vpop.f32.mrb[0].mxu0
        %2525 = vmatprep.mubr.f32.mxu0 0.0
        %2526 = vmatmul.mubr.f32.gmra.mrb[0].mxu0 %v2358
        %v2527 = vpop.f32.mrb[0].mxu0
        %v2528 = vadd.f32 0.0, %v2527
        %v2529 = vpop.f32.mrb[0].mxu0
        %2530 = vmatprep.mubr.f32.mxu0 0.0
        %2531 = vmatmul.mubr.f32.gmra.mrb[0].mxu0 %v2361
        %v2532 = vpop.f32.mrb[0].mxu0
        %v2533 = vadd.f32 0.0, %v2532
        %v2534 = vpop.f32.mrb[0].mxu0
        %2535 = vmatprep.mubr.f32.mxu0 0.0
        %2536 = vmatmul.mubr.f32.gmra.mrb[0].mxu0 %v2364
        %v2537 = vpop.f32.mrb[0].mxu0
        %v2538 = vadd.f32 0.0, %v2537
        %v2539 = vpop.f32.mrb[0].mxu0
        %2540 = vmatprep.mubr.f32.mxu0 0.0
        %2541 = vmatmul.mubr.f32.gmra.mrb[0].mxu0 %v2367
        %v2542 = vpop.f32.mrb[0].mxu0
        %v2543 = vadd.f32 0.0, %v2542
        %v2544 = vpop.f32.mrb[0].mxu0
        %2545 = vmatprep.mubr.f32.mxu0 0.0
        %2546 = vmatmul.mubr.f32.gmra.mrb[0].mxu0 %v2370
        %v2547 = vpop.f32.mrb[0].mxu0
        %v2548 = vadd.f32 0.0, %v2547
        %v2549 = vpop.f32.mrb[0].mxu0
        %2550 = vmatprep.mubr.f32.mxu0 0.0
        %2551 = vmatmul.mubr.f32.gmra.mrb[0].mxu0 %v2373
        %v2552 = vpop.f32.mrb[0].mxu0
        %v2553 = vadd.f32 0.0, %v2552
        %v2554 = vpop.f32.mrb[0].mxu0
        %2555 = vmatprep.mubr.f32.mxu0 0.0
        %2556 = vmatmul.mubr.f32.gmra.mrb[0].mxu0 %v2376
        %v2557 = vpop.f32.mrb[0].mxu0
        %v2558 = vadd.f32 0.0, %v2557
        %v2559 = vpop.f32.mrb[0].mxu0
        %2560 = vmatprep.mubr.f32.mxu0 0.0
        %2561 = vmatmul.mubr.f32.gmra.mrb[0].mxu0 %v2379
        %v2562 = vpop.f32.mrb[0].mxu0
        %v2563 = vadd.f32 0.0, %v2562
        %v2564 = vpop.f32.mrb[0].mxu0
        %2565 = vmatprep.mubr.f32.mxu0 0.0
        %2566 = vmatmul.mubr.f32.gmra.mrb[0].mxu0 %v2382
        %v2567 = vpop.f32.mrb[0].mxu0
        %v2568 = vadd.f32 0.0, %v2567
        %v2569 = vpop.f32.mrb[0].mxu0
        %2570 = vmatprep.mubr.f32.mxu0 0.0
        %2571 = vmatmul.mubr.f32.gmra.mrb[0].mxu0 %v2385
        %v2572 = vpop.f32.mrb[0].mxu0
        %v2573 = vadd.f32 0.0, %v2572
        %v2574 = vpop.f32.mrb[0].mxu0
        %2575 = vmatprep.mubr.f32.mxu0 0.0
        %2576 = vmatmul.mubr.f32.gmra.mrb[0].mxu0 %v2388
        %v2577 = vpop.f32.mrb[0].mxu0
        %v2578 = vadd.f32 0.0, %v2577
        %v2579 = vpop.f32.mrb[0].mxu0
        %2580 = vmatprep.mubr.f32.mxu0 0.0
        %2581 = vmatmul.mubr.f32.gmra.mrb[0].mxu0 %v2391
        %v2582 = vpop.f32.mrb[0].mxu0
        %v2583 = vadd.f32 0.0, %v2582
        %v2584 = vpop.f32.mrb[0].mxu0
        %2585 = vmatprep.mubr.f32.mxu0 0.0
        %2586 = vmatmul.mubr.f32.gmra.mrb[0].mxu0 %v2394
        %v2587 = vpop.f32.mrb[0].mxu0
        %v2588 = vadd.f32 0.0, %v2587
        %v2589 = vpop.f32.mrb[0].mxu0
        %2590 = vmatprep.mubr.f32.mxu0 0.0
        %2591 = vmatmul.mubr.f32.gmra.mrb[0].mxu0 %v2397
        %v2592 = vpop.f32.mrb[0].mxu0
        %v2593 = vadd.f32 0.0, %v2592
        %v2594 = vpop.f32.mrb[0].mxu0
        %2595 = vmatprep.mubr.f32.mxu0 0.0
        %2596 = vmatmul.mubr.f32.gmra.mrb[0].mxu0 %v2400
        %v2597 = vpop.f32.mrb[0].mxu0
        %v2598 = vadd.f32 0.0, %v2597
        %v2599 = vpop.f32.mrb[0].mxu0
        %2600 = vmatprep.mubr.f32.mxu0 0.0
        %2601 = vmatmul.mubr.f32.gmra.mrb[0].mxu0 %v2403
        %v2602 = vpop.f32.mrb[0].mxu0
        %v2603 = vadd.f32 0.0, %v2602
        %v2604 = vpop.f32.mrb[0].mxu0
        %2605 = vmatprep.mubr.f32.mxu0 0.0
        %2606 = vmatmul.mubr.f32.gmra.mrb[0].mxu0 %v2406
        %v2607 = vpop.f32.mrb[0].mxu0
        %v2608 = vadd.f32 0.0, %v2607
        %v2609 = vpop.f32.mrb[0].mxu0
        %2610 = vmatprep.mubr.f32.mxu0 0.0
        %2611 = vmatmul.mubr.f32.gmra.mrb[0].mxu0 %v2409
        %v2612 = vpop.f32.mrb[0].mxu0
        %v2613 = vadd.f32 0.0, %v2612
        %v2614 = vpop.f32.mrb[0].mxu0
        %2615 = vmatprep.mubr.f32.mxu0 0.0
        %2616 = vmatmul.mubr.f32.gmra.mrb[0].mxu0 %v2412
        %v2617 = vpop.f32.mrb[0].mxu0
        %v2618 = vadd.f32 0.0, %v2617
        %v2619 = vpop.f32.mrb[0].mxu0
        %2620 = vmatprep.mubr.f32.mxu0 0.0
        %2621 = vmatmul.mubr.f32.gmra.mrb[0].mxu0 %v2415
        %v2622 = vpop.f32.mrb[0].mxu0
        %v2623 = vadd.f32 0.0, %v2622
        %v2624 = vpop.f32.mrb[0].mxu0
        %2625 = vmatprep.mubr.f32.mxu0 0.0
        %2626 = vmatmul.mubr.f32.gmra.mrb[0].mxu0 %v2418
        %v2627 = vpop.f32.mrb[0].mxu0
        %v2628 = vadd.f32 0.0, %v2627
        %v2629 = vpop.f32.mrb[0].mxu0
        %2630 = vmatprep.mubr.f32.mxu0 0.0
        %2631 = vmatmul.mubr.f32.gmra.mrb[0].mxu0 %v2421
        %v2632 = vpop.f32.mrb[0].mxu0
        %v2633 = vadd.f32 0.0, %v2632
        %v2634 = vpop.f32.mrb[0].mxu0
        %2635 = vmatprep.mubr.f32.mxu0 0.0
        %2636 = vmatmul.mubr.f32.gmra.mrb[0].mxu0 %v2424
        %v2637 = vpop.f32.mrb[0].mxu0
        %v2638 = vadd.f32 0.0, %v2637
        %v2639 = vpop.f32.mrb[0].mxu0
        %2640 = vmatprep.mubr.f32.mxu0 0.0
        %2641 = vmatmul.mubr.f32.gmra.mrb[0].mxu0 %v2427
        %v2642 = vpop.f32.mrb[0].mxu0
        %v2643 = vadd.f32 0.0, %v2642
        %v2644 = vpop.f32.mrb[0].mxu0
        %2645 = vmatprep.mubr.f32.mxu0 0.0
        %2646 = vmatmul.mubr.f32.gmra.mrb[0].mxu0 %v2430
        %v2647 = vpop.f32.mrb[0].mxu0
        %v2648 = vadd.f32 0.0, %v2647
        %v2649 = vpop.f32.mrb[0].mxu0
        %2650 = vmatprep.mubr.f32.mxu0 0.0
        %2651 = vmatmul.mubr.f32.gmra.mrb[0].mxu0 %v2433
        %v2652 = vpop.f32.mrb[0].mxu0
        %v2653 = vadd.f32 0.0, %v2652
        %v2654 = vpop.f32.mrb[0].mxu0
        %2655 = vmatprep.mubr.f32.mxu0 0.0
        %2656 = vmatmul.mubr.f32.gmra.mrb[0].mxu0 %v2436
        %v2657 = vpop.f32.mrb[0].mxu0
        %v2658 = vadd.f32 0.0, %v2657
        %v2659 = vpop.f32.mrb[0].mxu0
        %2660 = vmatprep.mubr.f32.mxu0 0.0
        %2661 = vmatmul.mubr.f32.gmra.mrb[0].mxu0 %v2439
        %v2662 = vpop.f32.mrb[0].mxu0
        %v2663 = vadd.f32 0.0, %v2662
        %v2664 = vpop.f32.mrb[0].mxu0
        %2665 = vmatprep.mubr.f32.mxu0 0.0
        %2666 = vmatmul.mubr.f32.gmra.mrb[0].mxu0 %v2442
        %v2667 = vpop.f32.mrb[0].mxu0
        %v2668 = vadd.f32 0.0, %v2667
        %v2669 = vpop.f32.mrb[0].mxu0
        %2670 = vmatprep.mubr.f32.mxu0 0.0
        %2671 = vmatmul.mubr.f32.gmra.mrb[0].mxu0 %v2445
        %v2672 = vpop.f32.mrb[0].mxu0
        %v2673 = vadd.f32 0.0, %v2672
        %v2674 = vpop.f32.mrb[0].mxu0
        %2675 = vdwg.mxu0
        %v2676 = vld [vmem:[%s2] sm:$0x1]
        %v2678 = vlaneseq
        %v2679 = vshrl.u32 %v2678, 7
        %v2680 = vsub.s32 0, %v2679
        %v2681 = vrot.slane %v2676, %v2680
        %v2683 = vmul.f32 %v2518, %v2681
        %v2684 = vmul.f32 %v2523, %v2681
        %v2685 = vmul.f32 %v2528, %v2681
        %v2686 = vmul.f32 %v2533, %v2681
        %v2687 = vmul.f32 %v2538, %v2681
        %v2688 = vmul.f32 %v2543, %v2681
        %v2689 = vmul.f32 %v2548, %v2681
        %v2690 = vmul.f32 %v2553, %v2681
        %v2691 = vmul.f32 %v2558, %v2681
        %v2692 = vmul.f32 %v2563, %v2681
        %v2693 = vmul.f32 %v2568, %v2681
        %v2694 = vmul.f32 %v2573, %v2681
        %v2695 = vmul.f32 %v2578, %v2681
        %v2696 = vmul.f32 %v2583, %v2681
        %v2697 = vmul.f32 %v2588, %v2681
        %v2698 = vmul.f32 %v2593, %v2681
        %v2699 = vmul.f32 %v2598, %v2681
        %v2700 = vmul.f32 %v2603, %v2681
        %v2701 = vmul.f32 %v2608, %v2681
        %v2702 = vmul.f32 %v2613, %v2681
        %v2703 = vmul.f32 %v2618, %v2681
        %v2704 = vmul.f32 %v2623, %v2681
        %v2705 = vmul.f32 %v2628, %v2681
        %v2706 = vmul.f32 %v2633, %v2681
        %v2707 = vmul.f32 %v2638, %v2681
        %v2708 = vmul.f32 %v2643, %v2681
        %v2709 = vmul.f32 %v2648, %v2681
        %v2710 = vmul.f32 %v2653, %v2681
        %v2711 = vmul.f32 %v2658, %v2681
        %v2712 = vmul.f32 %v2663, %v2681
        %v2713 = vmul.f32 %v2668, %v2681
        %v2714 = vmul.f32 %v2673, %v2681
        %v2715 = vld [vmem:[%s3] sm:$0x1]
        %v2717 = vlaneseq
        %v2718 = vshrl.u32 %v2717, 7
        %v2719 = vsub.s32 0, %v2718
        %v2720 = vrot.slane %v2715, %v2719
        %v2722 = vadd.f32 %v2683, %v2720
        %v2723 = vadd.f32 %v2684, %v2720
        %v2724 = vadd.f32 %v2685, %v2720
        %v2725 = vadd.f32 %v2686, %v2720
        %v2726 = vadd.f32 %v2687, %v2720
        %v2727 = vadd.f32 %v2688, %v2720
        %v2728 = vadd.f32 %v2689, %v2720
        %v2729 = vadd.f32 %v2690, %v2720
        %v2730 = vadd.f32 %v2691, %v2720
        %v2731 = vadd.f32 %v2692, %v2720
        %v2732 = vadd.f32 %v2693, %v2720
        %v2733 = vadd.f32 %v2694, %v2720
        %v2734 = vadd.f32 %v2695, %v2720
        %v2735 = vadd.f32 %v2696, %v2720
        %v2736 = vadd.f32 %v2697, %v2720
        %v2737 = vadd.f32 %v2698, %v2720
        %v2738 = vadd.f32 %v2699, %v2720
        %v2739 = vadd.f32 %v2700, %v2720
        %v2740 = vadd.f32 %v2701, %v2720
        %v2741 = vadd.f32 %v2702, %v2720
        %v2742 = vadd.f32 %v2703, %v2720
        %v2743 = vadd.f32 %v2704, %v2720
        %v2744 = vadd.f32 %v2705, %v2720
        %v2745 = vadd.f32 %v2706, %v2720
        %v2746 = vadd.f32 %v2707, %v2720
        %v2747 = vadd.f32 %v2708, %v2720
        %v2748 = vadd.f32 %v2709, %v2720
        %v2749 = vadd.f32 %v2710, %v2720
        %v2750 = vadd.f32 %v2711, %v2720
        %v2751 = vadd.f32 %v2712, %v2720
        %v2752 = vadd.f32 %v2713, %v2720
        %v2753 = vadd.f32 %v2714, %v2720
        %v2754 = vmax.f32 %v2722, 0.0
        %v2755 = vmax.f32 %v2723, 0.0
        %v2756 = vmax.f32 %v2724, 0.0
        %v2757 = vmax.f32 %v2725, 0.0
        %v2758 = vmax.f32 %v2726, 0.0
        %v2759 = vmax.f32 %v2727, 0.0
        %v2760 = vmax.f32 %v2728, 0.0
        %v2761 = vmax.f32 %v2729, 0.0
        %v2762 = vmax.f32 %v2730, 0.0
        %v2763 = vmax.f32 %v2731, 0.0
        %v2764 = vmax.f32 %v2732, 0.0
        %v2765 = vmax.f32 %v2733, 0.0
        %v2766 = vmax.f32 %v2734, 0.0
        %v2767 = vmax.f32 %v2735, 0.0
        %v2768 = vmax.f32 %v2736, 0.0
        %v2769 = vmax.f32 %v2737, 0.0
        %v2770 = vmax.f32 %v2738, 0.0
        %v2771 = vmax.f32 %v2739, 0.0
        %v2772 = vmax.f32 %v2740, 0.0
        %v2773 = vmax.f32 %v2741, 0.0
        %v2774 = vmax.f32 %v2742, 0.0
        %v2775 = vmax.f32 %v2743, 0.0
        %v2776 = vmax.f32 %v2744, 0.0
        %v2777 = vmax.f32 %v2745, 0.0
        %v2778 = vmax.f32 %v2746, 0.0
        %v2779 = vmax.f32 %v2747, 0.0
        %v2780 = vmax.f32 %v2748, 0.0
        %v2781 = vmax.f32 %v2749, 0.0
        %v2782 = vmax.f32 %v2750, 0.0
        %v2783 = vmax.f32 %v2751, 0.0
        %v2784 = vmax.f32 %v2752, 0.0
        %v2785 = vmax.f32 %v2753, 0.0
        %v2818 = vcombine.high %v2754, %v2754
        %v2820 = vunpack.c.l.s4 1983009808
        %v2821 = vunpack.c.0.s8 %v2820
        %v2822 = vlaneseq
        %v2823 = vshrl.u32 %v2822, 7
        %v2824 = vsub.s32 %v2821, %v2823
        %v2825 = vrot.slane %v2754, %v2824
        %v2827 = vunpack.c.l.s4 1983009808
        %v2828 = vunpack.c.0.s8 %v2827
        %v2829 = vlaneseq
        %v2830 = vshrl.u32 %v2829, 7
        %v2831 = vsub.s32 %v2828, %v2830
        %v2832 = vrot.slane %v2818, %v2831
        %v2833 = vcombine.high %v2825, %v2825
        %v2834 = vcombine.high %v2832, %v2832
        %v2835 = vcombine.high %v2755, %v2755
        %v2837 = vunpack.c.l.s4 1983009808
        %v2838 = vunpack.c.0.s8 %v2837
        %v2839 = vlaneseq
        %v2840 = vshrl.u32 %v2839, 7
        %v2841 = vsub.s32 %v2838, %v2840
        %v2842 = vrot.slane %v2755, %v2841
        %v2844 = vunpack.c.l.s4 1983009808
        %v2845 = vunpack.c.0.s8 %v2844
        %v2846 = vlaneseq
        %v2847 = vshrl.u32 %v2846, 7
        %v2848 = vsub.s32 %v2845, %v2847
        %v2849 = vrot.slane %v2835, %v2848
        %v2850 = vcombine.high %v2842, %v2842
        %v2851 = vcombine.high %v2849, %v2849
        %v2852 = vcombine.high %v2756, %v2756
        %v2854 = vunpack.c.l.s4 1983009808
        %v2855 = vunpack.c.0.s8 %v2854
        %v2856 = vlaneseq
        %v2857 = vshrl.u32 %v2856, 7
        %v2858 = vsub.s32 %v2855, %v2857
        %v2859 = vrot.slane %v2756, %v2858
        %v2861 = vunpack.c.l.s4 1983009808
        %v2862 = vunpack.c.0.s8 %v2861
        %v2863 = vlaneseq
        %v2864 = vshrl.u32 %v2863, 7
        %v2865 = vsub.s32 %v2862, %v2864
        %v2866 = vrot.slane %v2852, %v2865
        %v2867 = vcombine.high %v2859, %v2859
        %v2868 = vcombine.high %v2866, %v2866
        %v2869 = vcombine.high %v2757, %v2757
        %v2871 = vunpack.c.l.s4 1983009808
        %v2872 = vunpack.c.0.s8 %v2871
        %v2873 = vlaneseq
        %v2874 = vshrl.u32 %v2873, 7
        %v2875 = vsub.s32 %v2872, %v2874
        %v2876 = vrot.slane %v2757, %v2875
        %v2878 = vunpack.c.l.s4 1983009808
        %v2879 = vunpack.c.0.s8 %v2878
        %v2880 = vlaneseq
        %v2881 = vshrl.u32 %v2880, 7
        %v2882 = vsub.s32 %v2879, %v2881
        %v2883 = vrot.slane %v2869, %v2882
        %v2884 = vcombine.high %v2876, %v2876
        %v2885 = vcombine.high %v2883, %v2883
        %v2886 = vcombine.high %v2758, %v2758
        %v2888 = vunpack.c.l.s4 1983009808
        %v2889 = vunpack.c.0.s8 %v2888
        %v2890 = vlaneseq
        %v2891 = vshrl.u32 %v2890, 7
        %v2892 = vsub.s32 %v2889, %v2891
        %v2893 = vrot.slane %v2758, %v2892
        %v2895 = vunpack.c.l.s4 1983009808
        %v2896 = vunpack.c.0.s8 %v2895
        %v2897 = vlaneseq
        %v2898 = vshrl.u32 %v2897, 7
        %v2899 = vsub.s32 %v2896, %v2898
        %v2900 = vrot.slane %v2886, %v2899
        %v2901 = vcombine.high %v2893, %v2893
        %v2902 = vcombine.high %v2900, %v2900
        %v2903 = vcombine.high %v2759, %v2759
        %v2905 = vunpack.c.l.s4 1983009808
        %v2906 = vunpack.c.0.s8 %v2905
        %v2907 = vlaneseq
        %v2908 = vshrl.u32 %v2907, 7
        %v2909 = vsub.s32 %v2906, %v2908
        %v2910 = vrot.slane %v2759, %v2909
        %v2912 = vunpack.c.l.s4 1983009808
        %v2913 = vunpack.c.0.s8 %v2912
        %v2914 = vlaneseq
        %v2915 = vshrl.u32 %v2914, 7
        %v2916 = vsub.s32 %v2913, %v2915
        %v2917 = vrot.slane %v2903, %v2916
        %v2918 = vcombine.high %v2910, %v2910
        %v2919 = vcombine.high %v2917, %v2917
        %v2920 = vcombine.high %v2760, %v2760
        %v2922 = vunpack.c.l.s4 1983009808
        %v2923 = vunpack.c.0.s8 %v2922
        %v2924 = vlaneseq
        %v2925 = vshrl.u32 %v2924, 7
        %v2926 = vsub.s32 %v2923, %v2925
        %v2927 = vrot.slane %v2760, %v2926
        %v2929 = vunpack.c.l.s4 1983009808
        %v2930 = vunpack.c.0.s8 %v2929
        %v2931 = vlaneseq
        %v2932 = vshrl.u32 %v2931, 7
        %v2933 = vsub.s32 %v2930, %v2932
        %v2934 = vrot.slane %v2920, %v2933
        %v2935 = vcombine.high %v2927, %v2927
        %v2936 = vcombine.high %v2934, %v2934
        %v2937 = vcombine.high %v2761, %v2761
        %v2939 = vunpack.c.l.s4 1983009808
        %v2940 = vunpack.c.0.s8 %v2939
        %v2941 = vlaneseq
        %v2942 = vshrl.u32 %v2941, 7
        %v2943 = vsub.s32 %v2940, %v2942
        %v2944 = vrot.slane %v2761, %v2943
        %v2946 = vunpack.c.l.s4 1983009808
        %v2947 = vunpack.c.0.s8 %v2946
        %v2948 = vlaneseq
        %v2949 = vshrl.u32 %v2948, 7
        %v2950 = vsub.s32 %v2947, %v2949
        %v2951 = vrot.slane %v2937, %v2950
        %v2952 = vcombine.high %v2944, %v2944
        %v2953 = vcombine.high %v2951, %v2951
        %v2954 = vcombine.high %v2762, %v2762
        %v2956 = vunpack.c.l.s4 1983009808
        %v2957 = vunpack.c.0.s8 %v2956
        %v2958 = vlaneseq
        %v2959 = vshrl.u32 %v2958, 7
        %v2960 = vsub.s32 %v2957, %v2959
        %v2961 = vrot.slane %v2762, %v2960
        %v2963 = vunpack.c.l.s4 1983009808
        %v2964 = vunpack.c.0.s8 %v2963
        %v2965 = vlaneseq
        %v2966 = vshrl.u32 %v2965, 7
        %v2967 = vsub.s32 %v2964, %v2966
        %v2968 = vrot.slane %v2954, %v2967
        %v2969 = vcombine.high %v2961, %v2961
        %v2970 = vcombine.high %v2968, %v2968
        %v2971 = vcombine.high %v2763, %v2763
        %v2973 = vunpack.c.l.s4 1983009808
        %v2974 = vunpack.c.0.s8 %v2973
        %v2975 = vlaneseq
        %v2976 = vshrl.u32 %v2975, 7
        %v2977 = vsub.s32 %v2974, %v2976
        %v2978 = vrot.slane %v2763, %v2977
        %v2980 = vunpack.c.l.s4 1983009808
        %v2981 = vunpack.c.0.s8 %v2980
        %v2982 = vlaneseq
        %v2983 = vshrl.u32 %v2982, 7
        %v2984 = vsub.s32 %v2981, %v2983
        %v2985 = vrot.slane %v2971, %v2984
        %v2986 = vcombine.high %v2978, %v2978
        %v2987 = vcombine.high %v2985, %v2985
        %v2988 = vcombine.high %v2764, %v2764
        %v2990 = vunpack.c.l.s4 1983009808
        %v2991 = vunpack.c.0.s8 %v2990
        %v2992 = vlaneseq
        %v2993 = vshrl.u32 %v2992, 7
        %v2994 = vsub.s32 %v2991, %v2993
        %v2995 = vrot.slane %v2764, %v2994
        %v2997 = vunpack.c.l.s4 1983009808
        %v2998 = vunpack.c.0.s8 %v2997
        %v2999 = vlaneseq
        %v3000 = vshrl.u32 %v2999, 7
        %v3001 = vsub.s32 %v2998, %v3000
        %v3002 = vrot.slane %v2988, %v3001
        %v3003 = vcombine.high %v2995, %v2995
        %v3004 = vcombine.high %v3002, %v3002
        %v3005 = vcombine.high %v2765, %v2765
        %v3007 = vunpack.c.l.s4 1983009808
        %v3008 = vunpack.c.0.s8 %v3007
        %v3009 = vlaneseq
        %v3010 = vshrl.u32 %v3009, 7
        %v3011 = vsub.s32 %v3008, %v3010
        %v3012 = vrot.slane %v2765, %v3011
        %v3014 = vunpack.c.l.s4 1983009808
        %v3015 = vunpack.c.0.s8 %v3014
        %v3016 = vlaneseq
        %v3017 = vshrl.u32 %v3016, 7
        %v3018 = vsub.s32 %v3015, %v3017
        %v3019 = vrot.slane %v3005, %v3018
        %v3020 = vcombine.high %v3012, %v3012
        %v3021 = vcombine.high %v3019, %v3019
        %v3022 = vcombine.high %v2766, %v2766
        %v3024 = vunpack.c.l.s4 1983009808
        %v3025 = vunpack.c.0.s8 %v3024
        %v3026 = vlaneseq
        %v3027 = vshrl.u32 %v3026, 7
        %v3028 = vsub.s32 %v3025, %v3027
        %v3029 = vrot.slane %v2766, %v3028
        %v3031 = vunpack.c.l.s4 1983009808
        %v3032 = vunpack.c.0.s8 %v3031
        %v3033 = vlaneseq
        %v3034 = vshrl.u32 %v3033, 7
        %v3035 = vsub.s32 %v3032, %v3034
        %v3036 = vrot.slane %v3022, %v3035
        %v3037 = vcombine.high %v3029, %v3029
        %v3038 = vcombine.high %v3036, %v3036
        %v3039 = vcombine.high %v2767, %v2767
        %v3041 = vunpack.c.l.s4 1983009808
        %v3042 = vunpack.c.0.s8 %v3041
        %v3043 = vlaneseq
        %v3044 = vshrl.u32 %v3043, 7
        %v3045 = vsub.s32 %v3042, %v3044
        %v3046 = vrot.slane %v2767, %v3045
        %v3048 = vunpack.c.l.s4 1983009808
        %v3049 = vunpack.c.0.s8 %v3048
        %v3050 = vlaneseq
        %v3051 = vshrl.u32 %v3050, 7
        %v3052 = vsub.s32 %v3049, %v3051
        %v3053 = vrot.slane %v3039, %v3052
        %v3054 = vcombine.high %v3046, %v3046
        %v3055 = vcombine.high %v3053, %v3053
        %v3056 = vcombine.high %v2768, %v2768
        %v3058 = vunpack.c.l.s4 1983009808
        %v3059 = vunpack.c.0.s8 %v3058
        %v3060 = vlaneseq
        %v3061 = vshrl.u32 %v3060, 7
        %v3062 = vsub.s32 %v3059, %v3061
        %v3063 = vrot.slane %v2768, %v3062
        %v3065 = vunpack.c.l.s4 1983009808
        %v3066 = vunpack.c.0.s8 %v3065
        %v3067 = vlaneseq
        %v3068 = vshrl.u32 %v3067, 7
        %v3069 = vsub.s32 %v3066, %v3068
        %v3070 = vrot.slane %v3056, %v3069
        %v3071 = vcombine.high %v3063, %v3063
        %v3072 = vcombine.high %v3070, %v3070
        %v3073 = vcombine.high %v2769, %v2769
        %v3075 = vunpack.c.l.s4 1983009808
        %v3076 = vunpack.c.0.s8 %v3075
        %v3077 = vlaneseq
        %v3078 = vshrl.u32 %v3077, 7
        %v3079 = vsub.s32 %v3076, %v3078
        %v3080 = vrot.slane %v2769, %v3079
        %v3082 = vunpack.c.l.s4 1983009808
        %v3083 = vunpack.c.0.s8 %v3082
        %v3084 = vlaneseq
        %v3085 = vshrl.u32 %v3084, 7
        %v3086 = vsub.s32 %v3083, %v3085
        %v3087 = vrot.slane %v3073, %v3086
        %v3088 = vcombine.high %v3080, %v3080
        %v3089 = vcombine.high %v3087, %v3087
        %v3090 = vcombine.high %v2770, %v2770
        %v3092 = vunpack.c.l.s4 1983009808
        %v3093 = vunpack.c.0.s8 %v3092
        %v3094 = vlaneseq
        %v3095 = vshrl.u32 %v3094, 7
        %v3096 = vsub.s32 %v3093, %v3095
        %v3097 = vrot.slane %v2770, %v3096
        %v3099 = vunpack.c.l.s4 1983009808
        %v3100 = vunpack.c.0.s8 %v3099
        %v3101 = vlaneseq
        %v3102 = vshrl.u32 %v3101, 7
        %v3103 = vsub.s32 %v3100, %v3102
        %v3104 = vrot.slane %v3090, %v3103
        %v3105 = vcombine.high %v3097, %v3097
        %v3106 = vcombine.high %v3104, %v3104
        %v3107 = vcombine.high %v2771, %v2771
        %v3109 = vunpack.c.l.s4 1983009808
        %v3110 = vunpack.c.0.s8 %v3109
        %v3111 = vlaneseq
        %v3112 = vshrl.u32 %v3111, 7
        %v3113 = vsub.s32 %v3110, %v3112
        %v3114 = vrot.slane %v2771, %v3113
        %v3116 = vunpack.c.l.s4 1983009808
        %v3117 = vunpack.c.0.s8 %v3116
        %v3118 = vlaneseq
        %v3119 = vshrl.u32 %v3118, 7
        %v3120 = vsub.s32 %v3117, %v3119
        %v3121 = vrot.slane %v3107, %v3120
        %v3122 = vcombine.high %v3114, %v3114
        %v3123 = vcombine.high %v3121, %v3121
        %v3124 = vcombine.high %v2772, %v2772
        %v3126 = vunpack.c.l.s4 1983009808
        %v3127 = vunpack.c.0.s8 %v3126
        %v3128 = vlaneseq
        %v3129 = vshrl.u32 %v3128, 7
        %v3130 = vsub.s32 %v3127, %v3129
        %v3131 = vrot.slane %v2772, %v3130
        %v3133 = vunpack.c.l.s4 1983009808
        %v3134 = vunpack.c.0.s8 %v3133
        %v3135 = vlaneseq
        %v3136 = vshrl.u32 %v3135, 7
        %v3137 = vsub.s32 %v3134, %v3136
        %v3138 = vrot.slane %v3124, %v3137
        %v3139 = vcombine.high %v3131, %v3131
        %v3140 = vcombine.high %v3138, %v3138
        %v3141 = vcombine.high %v2773, %v2773
        %v3143 = vunpack.c.l.s4 1983009808
        %v3144 = vunpack.c.0.s8 %v3143
        %v3145 = vlaneseq
        %v3146 = vshrl.u32 %v3145, 7
        %v3147 = vsub.s32 %v3144, %v3146
        %v3148 = vrot.slane %v2773, %v3147
        %v3150 = vunpack.c.l.s4 1983009808
        %v3151 = vunpack.c.0.s8 %v3150
        %v3152 = vlaneseq
        %v3153 = vshrl.u32 %v3152, 7
        %v3154 = vsub.s32 %v3151, %v3153
        %v3155 = vrot.slane %v3141, %v3154
        %v3156 = vcombine.high %v3148, %v3148
        %v3157 = vcombine.high %v3155, %v3155
        %v3158 = vcombine.high %v2774, %v2774
        %v3160 = vunpack.c.l.s4 1983009808
        %v3161 = vunpack.c.0.s8 %v3160
        %v3162 = vlaneseq
        %v3163 = vshrl.u32 %v3162, 7
        %v3164 = vsub.s32 %v3161, %v3163
        %v3165 = vrot.slane %v2774, %v3164
        %v3167 = vunpack.c.l.s4 1983009808
        %v3168 = vunpack.c.0.s8 %v3167
        %v3169 = vlaneseq
        %v3170 = vshrl.u32 %v3169, 7
        %v3171 = vsub.s32 %v3168, %v3170
        %v3172 = vrot.slane %v3158, %v3171
        %v3173 = vcombine.high %v3165, %v3165
        %v3174 = vcombine.high %v3172, %v3172
        %v3175 = vcombine.high %v2775, %v2775
        %v3177 = vunpack.c.l.s4 1983009808
        %v3178 = vunpack.c.0.s8 %v3177
        %v3179 = vlaneseq
        %v3180 = vshrl.u32 %v3179, 7
        %v3181 = vsub.s32 %v3178, %v3180
        %v3182 = vrot.slane %v2775, %v3181
        %v3184 = vunpack.c.l.s4 1983009808
        %v3185 = vunpack.c.0.s8 %v3184
        %v3186 = vlaneseq
        %v3187 = vshrl.u32 %v3186, 7
        %v3188 = vsub.s32 %v3185, %v3187
        %v3189 = vrot.slane %v3175, %v3188
        %v3190 = vcombine.high %v3182, %v3182
        %v3191 = vcombine.high %v3189, %v3189
        %v3192 = vcombine.high %v2776, %v2776
        %v3194 = vunpack.c.l.s4 1983009808
        %v3195 = vunpack.c.0.s8 %v3194
        %v3196 = vlaneseq
        %v3197 = vshrl.u32 %v3196, 7
        %v3198 = vsub.s32 %v3195, %v3197
        %v3199 = vrot.slane %v2776, %v3198
        %v3201 = vunpack.c.l.s4 1983009808
        %v3202 = vunpack.c.0.s8 %v3201
        %v3203 = vlaneseq
        %v3204 = vshrl.u32 %v3203, 7
        %v3205 = vsub.s32 %v3202, %v3204
        %v3206 = vrot.slane %v3192, %v3205
        %v3207 = vcombine.high %v3199, %v3199
        %v3208 = vcombine.high %v3206, %v3206
        %v3209 = vcombine.high %v2777, %v2777
        %v3211 = vunpack.c.l.s4 1983009808
        %v3212 = vunpack.c.0.s8 %v3211
        %v3213 = vlaneseq
        %v3214 = vshrl.u32 %v3213, 7
        %v3215 = vsub.s32 %v3212, %v3214
        %v3216 = vrot.slane %v2777, %v3215
        %v3218 = vunpack.c.l.s4 1983009808
        %v3219 = vunpack.c.0.s8 %v3218
        %v3220 = vlaneseq
        %v3221 = vshrl.u32 %v3220, 7
        %v3222 = vsub.s32 %v3219, %v3221
        %v3223 = vrot.slane %v3209, %v3222
        %v3224 = vcombine.high %v3216, %v3216
        %v3225 = vcombine.high %v3223, %v3223
        %v3226 = vcombine.high %v2778, %v2778
        %v3228 = vunpack.c.l.s4 1983009808
        %v3229 = vunpack.c.0.s8 %v3228
        %v3230 = vlaneseq
        %v3231 = vshrl.u32 %v3230, 7
        %v3232 = vsub.s32 %v3229, %v3231
        %v3233 = vrot.slane %v2778, %v3232
        %v3235 = vunpack.c.l.s4 1983009808
        %v3236 = vunpack.c.0.s8 %v3235
        %v3237 = vlaneseq
        %v3238 = vshrl.u32 %v3237, 7
        %v3239 = vsub.s32 %v3236, %v3238
        %v3240 = vrot.slane %v3226, %v3239
        %v3241 = vcombine.high %v3233, %v3233
        %v3242 = vcombine.high %v3240, %v3240
        %v3243 = vcombine.high %v2779, %v2779
        %v3245 = vunpack.c.l.s4 1983009808
        %v3246 = vunpack.c.0.s8 %v3245
        %v3247 = vlaneseq
        %v3248 = vshrl.u32 %v3247, 7
        %v3249 = vsub.s32 %v3246, %v3248
        %v3250 = vrot.slane %v2779, %v3249
        %v3252 = vunpack.c.l.s4 1983009808
        %v3253 = vunpack.c.0.s8 %v3252
        %v3254 = vlaneseq
        %v3255 = vshrl.u32 %v3254, 7
        %v3256 = vsub.s32 %v3253, %v3255
        %v3257 = vrot.slane %v3243, %v3256
        %v3258 = vcombine.high %v3250, %v3250
        %v3259 = vcombine.high %v3257, %v3257
        %v3260 = vcombine.high %v2780, %v2780
        %v3262 = vunpack.c.l.s4 1983009808
        %v3263 = vunpack.c.0.s8 %v3262
        %v3264 = vlaneseq
        %v3265 = vshrl.u32 %v3264, 7
        %v3266 = vsub.s32 %v3263, %v3265
        %v3267 = vrot.slane %v2780, %v3266
        %v3269 = vunpack.c.l.s4 1983009808
        %v3270 = vunpack.c.0.s8 %v3269
        %v3271 = vlaneseq
        %v3272 = vshrl.u32 %v3271, 7
        %v3273 = vsub.s32 %v3270, %v3272
        %v3274 = vrot.slane %v3260, %v3273
        %v3275 = vcombine.high %v3267, %v3267
        %v3276 = vcombine.high %v3274, %v3274
        %v3277 = vcombine.high %v2781, %v2781
        %v3279 = vunpack.c.l.s4 1983009808
        %v3280 = vunpack.c.0.s8 %v3279
        %v3281 = vlaneseq
        %v3282 = vshrl.u32 %v3281, 7
        %v3283 = vsub.s32 %v3280, %v3282
        %v3284 = vrot.slane %v2781, %v3283
        %v3286 = vunpack.c.l.s4 1983009808
        %v3287 = vunpack.c.0.s8 %v3286
        %v3288 = vlaneseq
        %v3289 = vshrl.u32 %v3288, 7
        %v3290 = vsub.s32 %v3287, %v3289
        %v3291 = vrot.slane %v3277, %v3290
        %v3292 = vcombine.high %v3284, %v3284
        %v3293 = vcombine.high %v3291, %v3291
        %v3294 = vcombine.high %v2782, %v2782
        %v3296 = vunpack.c.l.s4 1983009808
        %v3297 = vunpack.c.0.s8 %v3296
        %v3298 = vlaneseq
        %v3299 = vshrl.u32 %v3298, 7
        %v3300 = vsub.s32 %v3297, %v3299
        %v3301 = vrot.slane %v2782, %v3300
        %v3303 = vunpack.c.l.s4 1983009808
        %v3304 = vunpack.c.0.s8 %v3303
        %v3305 = vlaneseq
        %v3306 = vshrl.u32 %v3305, 7
        %v3307 = vsub.s32 %v3304, %v3306
        %v3308 = vrot.slane %v3294, %v3307
        %v3309 = vcombine.high %v3301, %v3301
        %v3310 = vcombine.high %v3308, %v3308
        %v3311 = vcombine.high %v2783, %v2783
        %v3313 = vunpack.c.l.s4 1983009808
        %v3314 = vunpack.c.0.s8 %v3313
        %v3315 = vlaneseq
        %v3316 = vshrl.u32 %v3315, 7
        %v3317 = vsub.s32 %v3314, %v3316
        %v3318 = vrot.slane %v2783, %v3317
        %v3320 = vunpack.c.l.s4 1983009808
        %v3321 = vunpack.c.0.s8 %v3320
        %v3322 = vlaneseq
        %v3323 = vshrl.u32 %v3322, 7
        %v3324 = vsub.s32 %v3321, %v3323
        %v3325 = vrot.slane %v3311, %v3324
        %v3326 = vcombine.high %v3318, %v3318
        %v3327 = vcombine.high %v3325, %v3325
        %v3328 = vcombine.high %v2784, %v2784
        %v3330 = vunpack.c.l.s4 1983009808
        %v3331 = vunpack.c.0.s8 %v3330
        %v3332 = vlaneseq
        %v3333 = vshrl.u32 %v3332, 7
        %v3334 = vsub.s32 %v3331, %v3333
        %v3335 = vrot.slane %v2784, %v3334
        %v3337 = vunpack.c.l.s4 1983009808
        %v3338 = vunpack.c.0.s8 %v3337
        %v3339 = vlaneseq
        %v3340 = vshrl.u32 %v3339, 7
        %v3341 = vsub.s32 %v3338, %v3340
        %v3342 = vrot.slane %v3328, %v3341
        %v3343 = vcombine.high %v3335, %v3335
        %v3344 = vcombine.high %v3342, %v3342
        %v3345 = vcombine.high %v2785, %v2785
        %v3347 = vunpack.c.l.s4 1983009808
        %v3348 = vunpack.c.0.s8 %v3347
        %v3349 = vlaneseq
        %v3350 = vshrl.u32 %v3349, 7
        %v3351 = vsub.s32 %v3348, %v3350
        %v3352 = vrot.slane %v2785, %v3351
        %v3354 = vunpack.c.l.s4 1983009808
        %v3355 = vunpack.c.0.s8 %v3354
        %v3356 = vlaneseq
        %v3357 = vshrl.u32 %v3356, 7
        %v3358 = vsub.s32 %v3355, %v3357
        %v3359 = vrot.slane %v3345, %v3358
        %v3360 = vcombine.high %v3352, %v3352
        %v3361 = vcombine.high %v3359, %v3359
        %vm3490 = vcmask 123904
        %v3491 = vsel %vm3490, %v2825, -inf
        %v3492 = vrot.slane %v3491, 4
        %v3493 = vmax.f32 %v3491, %v3492
        %v3494 = vrot.slane %v3493, 2
        %v3495 = vmax.f32 %v3493, %v3494
        %v3496 = vrot.slane %v3495, 1
        %v3497 = vmax.f32 %v3495, %v3496
        %v3498 = vsel %vm3490, %v2833, -inf
        %v3499 = vrot.slane %v3498, 4
        %v3500 = vmax.f32 %v3498, %v3499
        %v3501 = vrot.slane %v3500, 2
        %v3502 = vmax.f32 %v3500, %v3501
        %v3503 = vrot.slane %v3502, 1
        %v3504 = vmax.f32 %v3502, %v3503
        %v3505 = vsel %vm3490, %v2832, -inf
        %v3506 = vrot.slane %v3505, 4
        %v3507 = vmax.f32 %v3505, %v3506
        %v3508 = vrot.slane %v3507, 2
        %v3509 = vmax.f32 %v3507, %v3508
        %v3510 = vrot.slane %v3509, 1
        %v3511 = vmax.f32 %v3509, %v3510
        %v3512 = vsel %vm3490, %v2834, -inf
        %v3513 = vrot.slane %v3512, 4
        %v3514 = vmax.f32 %v3512, %v3513
        %v3515 = vrot.slane %v3514, 2
        %v3516 = vmax.f32 %v3514, %v3515
        %v3517 = vrot.slane %v3516, 1
        %v3518 = vmax.f32 %v3516, %v3517
        %v3519 = vsel %vm3490, %v2842, -inf
        %v3520 = vrot.slane %v3519, 4
        %v3521 = vmax.f32 %v3519, %v3520
        %v3522 = vrot.slane %v3521, 2
        %v3523 = vmax.f32 %v3521, %v3522
        %v3524 = vrot.slane %v3523, 1
        %v3525 = vmax.f32 %v3523, %v3524
        %v3526 = vsel %vm3490, %v2850, -inf
        %v3527 = vrot.slane %v3526, 4
        %v3528 = vmax.f32 %v3526, %v3527
        %v3529 = vrot.slane %v3528, 2
        %v3530 = vmax.f32 %v3528, %v3529
        %v3531 = vrot.slane %v3530, 1
        %v3532 = vmax.f32 %v3530, %v3531
        %v3533 = vsel %vm3490, %v2849, -inf
        %v3534 = vrot.slane %v3533, 4
        %v3535 = vmax.f32 %v3533, %v3534
        %v3536 = vrot.slane %v3535, 2
        %v3537 = vmax.f32 %v3535, %v3536
        %v3538 = vrot.slane %v3537, 1
        %v3539 = vmax.f32 %v3537, %v3538
        %v3540 = vsel %vm3490, %v2851, -inf
        %v3541 = vrot.slane %v3540, 4
        %v3542 = vmax.f32 %v3540, %v3541
        %v3543 = vrot.slane %v3542, 2
        %v3544 = vmax.f32 %v3542, %v3543
        %v3545 = vrot.slane %v3544, 1
        %v3546 = vmax.f32 %v3544, %v3545
        %v3547 = vsel %vm3490, %v2859, -inf
        %v3548 = vrot.slane %v3547, 4
        %v3549 = vmax.f32 %v3547, %v3548
        %v3550 = vrot.slane %v3549, 2
        %v3551 = vmax.f32 %v3549, %v3550
        %v3552 = vrot.slane %v3551, 1
        %v3553 = vmax.f32 %v3551, %v3552
        %v3554 = vsel %vm3490, %v2867, -inf
        %v3555 = vrot.slane %v3554, 4
        %v3556 = vmax.f32 %v3554, %v3555
        %v3557 = vrot.slane %v3556, 2
        %v3558 = vmax.f32 %v3556, %v3557
        %v3559 = vrot.slane %v3558, 1
        %v3560 = vmax.f32 %v3558, %v3559
        %v3561 = vsel %vm3490, %v2866, -inf
        %v3562 = vrot.slane %v3561, 4
        %v3563 = vmax.f32 %v3561, %v3562
        %v3564 = vrot.slane %v3563, 2
        %v3565 = vmax.f32 %v3563, %v3564
        %v3566 = vrot.slane %v3565, 1
        %v3567 = vmax.f32 %v3565, %v3566
        %v3568 = vsel %vm3490, %v2868, -inf
        %v3569 = vrot.slane %v3568, 4
        %v3570 = vmax.f32 %v3568, %v3569
        %v3571 = vrot.slane %v3570, 2
        %v3572 = vmax.f32 %v3570, %v3571
        %v3573 = vrot.slane %v3572, 1
        %v3574 = vmax.f32 %v3572, %v3573
        %v3575 = vsel %vm3490, %v2876, -inf
        %v3576 = vrot.slane %v3575, 4
        %v3577 = vmax.f32 %v3575, %v3576
        %v3578 = vrot.slane %v3577, 2
        %v3579 = vmax.f32 %v3577, %v3578
        %v3580 = vrot.slane %v3579, 1
        %v3581 = vmax.f32 %v3579, %v3580
        %v3582 = vsel %vm3490, %v2884, -inf
        %v3583 = vrot.slane %v3582, 4
        %v3584 = vmax.f32 %v3582, %v3583
        %v3585 = vrot.slane %v3584, 2
        %v3586 = vmax.f32 %v3584, %v3585
        %v3587 = vrot.slane %v3586, 1
        %v3588 = vmax.f32 %v3586, %v3587
        %v3589 = vsel %vm3490, %v2883, -inf
        %v3590 = vrot.slane %v3589, 4
        %v3591 = vmax.f32 %v3589, %v3590
        %v3592 = vrot.slane %v3591, 2
        %v3593 = vmax.f32 %v3591, %v3592
        %v3594 = vrot.slane %v3593, 1
        %v3595 = vmax.f32 %v3593, %v3594
        %v3596 = vsel %vm3490, %v2885, -inf
        %v3597 = vrot.slane %v3596, 4
        %v3598 = vmax.f32 %v3596, %v3597
        %v3599 = vrot.slane %v3598, 2
        %v3600 = vmax.f32 %v3598, %v3599
        %v3601 = vrot.slane %v3600, 1
        %v3602 = vmax.f32 %v3600, %v3601
        %v3603 = vsel %vm3490, %v2893, -inf
        %v3604 = vrot.slane %v3603, 4
        %v3605 = vmax.f32 %v3603, %v3604
        %v3606 = vrot.slane %v3605, 2
        %v3607 = vmax.f32 %v3605, %v3606
        %v3608 = vrot.slane %v3607, 1
        %v3609 = vmax.f32 %v3607, %v3608
        %v3610 = vsel %vm3490, %v2901, -inf
        %v3611 = vrot.slane %v3610, 4
        %v3612 = vmax.f32 %v3610, %v3611
        %v3613 = vrot.slane %v3612, 2
        %v3614 = vmax.f32 %v3612, %v3613
        %v3615 = vrot.slane %v3614, 1
        %v3616 = vmax.f32 %v3614, %v3615
        %v3617 = vsel %vm3490, %v2900, -inf
        %v3618 = vrot.slane %v3617, 4
        %v3619 = vmax.f32 %v3617, %v3618
        %v3620 = vrot.slane %v3619, 2
        %v3621 = vmax.f32 %v3619, %v3620
        %v3622 = vrot.slane %v3621, 1
        %v3623 = vmax.f32 %v3621, %v3622
        %v3624 = vsel %vm3490, %v2902, -inf
        %v3625 = vrot.slane %v3624, 4
        %v3626 = vmax.f32 %v3624, %v3625
        %v3627 = vrot.slane %v3626, 2
        %v3628 = vmax.f32 %v3626, %v3627
        %v3629 = vrot.slane %v3628, 1
        %v3630 = vmax.f32 %v3628, %v3629
        %v3631 = vsel %vm3490, %v2910, -inf
        %v3632 = vrot.slane %v3631, 4
        %v3633 = vmax.f32 %v3631, %v3632
        %v3634 = vrot.slane %v3633, 2
        %v3635 = vmax.f32 %v3633, %v3634
        %v3636 = vrot.slane %v3635, 1
        %v3637 = vmax.f32 %v3635, %v3636
        %v3638 = vsel %vm3490, %v2918, -inf
        %v3639 = vrot.slane %v3638, 4
        %v3640 = vmax.f32 %v3638, %v3639
        %v3641 = vrot.slane %v3640, 2
        %v3642 = vmax.f32 %v3640, %v3641
        %v3643 = vrot.slane %v3642, 1
        %v3644 = vmax.f32 %v3642, %v3643
        %v3645 = vsel %vm3490, %v2917, -inf
        %v3646 = vrot.slane %v3645, 4
        %v3647 = vmax.f32 %v3645, %v3646
        %v3648 = vrot.slane %v3647, 2
        %v3649 = vmax.f32 %v3647, %v3648
        %v3650 = vrot.slane %v3649, 1
        %v3651 = vmax.f32 %v3649, %v3650
        %v3652 = vsel %vm3490, %v2919, -inf
        %v3653 = vrot.slane %v3652, 4
        %v3654 = vmax.f32 %v3652, %v3653
        %v3655 = vrot.slane %v3654, 2
        %v3656 = vmax.f32 %v3654, %v3655
        %v3657 = vrot.slane %v3656, 1
        %v3658 = vmax.f32 %v3656, %v3657
        %v3659 = vsel %vm3490, %v2927, -inf
        %v3660 = vrot.slane %v3659, 4
        %v3661 = vmax.f32 %v3659, %v3660
        %v3662 = vrot.slane %v3661, 2
        %v3663 = vmax.f32 %v3661, %v3662
        %v3664 = vrot.slane %v3663, 1
        %v3665 = vmax.f32 %v3663, %v3664
        %v3666 = vsel %vm3490, %v2935, -inf
        %v3667 = vrot.slane %v3666, 4
        %v3668 = vmax.f32 %v3666, %v3667
        %v3669 = vrot.slane %v3668, 2
        %v3670 = vmax.f32 %v3668, %v3669
        %v3671 = vrot.slane %v3670, 1
        %v3672 = vmax.f32 %v3670, %v3671
        %v3673 = vsel %vm3490, %v2934, -inf
        %v3674 = vrot.slane %v3673, 4
        %v3675 = vmax.f32 %v3673, %v3674
        %v3676 = vrot.slane %v3675, 2
        %v3677 = vmax.f32 %v3675, %v3676
        %v3678 = vrot.slane %v3677, 1
        %v3679 = vmax.f32 %v3677, %v3678
        %v3680 = vsel %vm3490, %v2936, -inf
        %v3681 = vrot.slane %v3680, 4
        %v3682 = vmax.f32 %v3680, %v3681
        %v3683 = vrot.slane %v3682, 2
        %v3684 = vmax.f32 %v3682, %v3683
        %v3685 = vrot.slane %v3684, 1
        %v3686 = vmax.f32 %v3684, %v3685
        %v3687 = vsel %vm3490, %v2944, -inf
        %v3688 = vrot.slane %v3687, 4
        %v3689 = vmax.f32 %v3687, %v3688
        %v3690 = vrot.slane %v3689, 2
        %v3691 = vmax.f32 %v3689, %v3690
        %v3692 = vrot.slane %v3691, 1
        %v3693 = vmax.f32 %v3691, %v3692
        %v3694 = vsel %vm3490, %v2952, -inf
        %v3695 = vrot.slane %v3694, 4
        %v3696 = vmax.f32 %v3694, %v3695
        %v3697 = vrot.slane %v3696, 2
        %v3698 = vmax.f32 %v3696, %v3697
        %v3699 = vrot.slane %v3698, 1
        %v3700 = vmax.f32 %v3698, %v3699
        %v3701 = vsel %vm3490, %v2951, -inf
        %v3702 = vrot.slane %v3701, 4
        %v3703 = vmax.f32 %v3701, %v3702
        %v3704 = vrot.slane %v3703, 2
        %v3705 = vmax.f32 %v3703, %v3704
        %v3706 = vrot.slane %v3705, 1
        %v3707 = vmax.f32 %v3705, %v3706
        %v3708 = vsel %vm3490, %v2953, -inf
        %v3709 = vrot.slane %v3708, 4
        %v3710 = vmax.f32 %v3708, %v3709
        %v3711 = vrot.slane %v3710, 2
        %v3712 = vmax.f32 %v3710, %v3711
        %v3713 = vrot.slane %v3712, 1
        %v3714 = vmax.f32 %v3712, %v3713
        %v3715 = vsel %vm3490, %v2961, -inf
        %v3716 = vrot.slane %v3715, 4
        %v3717 = vmax.f32 %v3715, %v3716
        %v3718 = vrot.slane %v3717, 2
        %v3719 = vmax.f32 %v3717, %v3718
        %v3720 = vrot.slane %v3719, 1
        %v3721 = vmax.f32 %v3719, %v3720
        %v3722 = vsel %vm3490, %v2969, -inf
        %v3723 = vrot.slane %v3722, 4
        %v3724 = vmax.f32 %v3722, %v3723
        %v3725 = vrot.slane %v3724, 2
        %v3726 = vmax.f32 %v3724, %v3725
        %v3727 = vrot.slane %v3726, 1
        %v3728 = vmax.f32 %v3726, %v3727
        %v3729 = vsel %vm3490, %v2968, -inf
        %v3730 = vrot.slane %v3729, 4
        %v3731 = vmax.f32 %v3729, %v3730
        %v3732 = vrot.slane %v3731, 2
        %v3733 = vmax.f32 %v3731, %v3732
        %v3734 = vrot.slane %v3733, 1
        %v3735 = vmax.f32 %v3733, %v3734
        %v3736 = vsel %vm3490, %v2970, -inf
        %v3737 = vrot.slane %v3736, 4
        %v3738 = vmax.f32 %v3736, %v3737
        %v3739 = vrot.slane %v3738, 2
        %v3740 = vmax.f32 %v3738, %v3739
        %v3741 = vrot.slane %v3740, 1
        %v3742 = vmax.f32 %v3740, %v3741
        %v3743 = vsel %vm3490, %v2978, -inf
        %v3744 = vrot.slane %v3743, 4
        %v3745 = vmax.f32 %v3743, %v3744
        %v3746 = vrot.slane %v3745, 2
        %v3747 = vmax.f32 %v3745, %v3746
        %v3748 = vrot.slane %v3747, 1
        %v3749 = vmax.f32 %v3747, %v3748
        %v3750 = vsel %vm3490, %v2986, -inf
        %v3751 = vrot.slane %v3750, 4
        %v3752 = vmax.f32 %v3750, %v3751
        %v3753 = vrot.slane %v3752, 2
        %v3754 = vmax.f32 %v3752, %v3753
        %v3755 = vrot.slane %v3754, 1
        %v3756 = vmax.f32 %v3754, %v3755
        %v3757 = vsel %vm3490, %v2985, -inf
        %v3758 = vrot.slane %v3757, 4
        %v3759 = vmax.f32 %v3757, %v3758
        %v3760 = vrot.slane %v3759, 2
        %v3761 = vmax.f32 %v3759, %v3760
        %v3762 = vrot.slane %v3761, 1
        %v3763 = vmax.f32 %v3761, %v3762
        %v3764 = vsel %vm3490, %v2987, -inf
        %v3765 = vrot.slane %v3764, 4
        %v3766 = vmax.f32 %v3764, %v3765
        %v3767 = vrot.slane %v3766, 2
        %v3768 = vmax.f32 %v3766, %v3767
        %v3769 = vrot.slane %v3768, 1
        %v3770 = vmax.f32 %v3768, %v3769
        %v3771 = vsel %vm3490, %v2995, -inf
        %v3772 = vrot.slane %v3771, 4
        %v3773 = vmax.f32 %v3771, %v3772
        %v3774 = vrot.slane %v3773, 2
        %v3775 = vmax.f32 %v3773, %v3774
        %v3776 = vrot.slane %v3775, 1
        %v3777 = vmax.f32 %v3775, %v3776
        %v3778 = vsel %vm3490, %v3003, -inf
        %v3779 = vrot.slane %v3778, 4
        %v3780 = vmax.f32 %v3778, %v3779
        %v3781 = vrot.slane %v3780, 2
        %v3782 = vmax.f32 %v3780, %v3781
        %v3783 = vrot.slane %v3782, 1
        %v3784 = vmax.f32 %v3782, %v3783
        %v3785 = vsel %vm3490, %v3002, -inf
        %v3786 = vrot.slane %v3785, 4
        %v3787 = vmax.f32 %v3785, %v3786
        %v3788 = vrot.slane %v3787, 2
        %v3789 = vmax.f32 %v3787, %v3788
        %v3790 = vrot.slane %v3789, 1
        %v3791 = vmax.f32 %v3789, %v3790
        %v3792 = vsel %vm3490, %v3004, -inf
        %v3793 = vrot.slane %v3792, 4
        %v3794 = vmax.f32 %v3792, %v3793
        %v3795 = vrot.slane %v3794, 2
        %v3796 = vmax.f32 %v3794, %v3795
        %v3797 = vrot.slane %v3796, 1
        %v3798 = vmax.f32 %v3796, %v3797
        %v3799 = vsel %vm3490, %v3012, -inf
        %v3800 = vrot.slane %v3799, 4
        %v3801 = vmax.f32 %v3799, %v3800
        %v3802 = vrot.slane %v3801, 2
        %v3803 = vmax.f32 %v3801, %v3802
        %v3804 = vrot.slane %v3803, 1
        %v3805 = vmax.f32 %v3803, %v3804
        %v3806 = vsel %vm3490, %v3020, -inf
        %v3807 = vrot.slane %v3806, 4
        %v3808 = vmax.f32 %v3806, %v3807
        %v3809 = vrot.slane %v3808, 2
        %v3810 = vmax.f32 %v3808, %v3809
        %v3811 = vrot.slane %v3810, 1
        %v3812 = vmax.f32 %v3810, %v3811
        %v3813 = vsel %vm3490, %v3019, -inf
        %v3814 = vrot.slane %v3813, 4
        %v3815 = vmax.f32 %v3813, %v3814
        %v3816 = vrot.slane %v3815, 2
        %v3817 = vmax.f32 %v3815, %v3816
        %v3818 = vrot.slane %v3817, 1
        %v3819 = vmax.f32 %v3817, %v3818
        %v3820 = vsel %vm3490, %v3021, -inf
        %v3821 = vrot.slane %v3820, 4
        %v3822 = vmax.f32 %v3820, %v3821
        %v3823 = vrot.slane %v3822, 2
        %v3824 = vmax.f32 %v3822, %v3823
        %v3825 = vrot.slane %v3824, 1
        %v3826 = vmax.f32 %v3824, %v3825
        %v3827 = vsel %vm3490, %v3029, -inf
        %v3828 = vrot.slane %v3827, 4
        %v3829 = vmax.f32 %v3827, %v3828
        %v3830 = vrot.slane %v3829, 2
        %v3831 = vmax.f32 %v3829, %v3830
        %v3832 = vrot.slane %v3831, 1
        %v3833 = vmax.f32 %v3831, %v3832
        %v3834 = vsel %vm3490, %v3037, -inf
        %v3835 = vrot.slane %v3834, 4
        %v3836 = vmax.f32 %v3834, %v3835
        %v3837 = vrot.slane %v3836, 2
        %v3838 = vmax.f32 %v3836, %v3837
        %v3839 = vrot.slane %v3838, 1
        %v3840 = vmax.f32 %v3838, %v3839
        %v3841 = vsel %vm3490, %v3036, -inf
        %v3842 = vrot.slane %v3841, 4
        %v3843 = vmax.f32 %v3841, %v3842
        %v3844 = vrot.slane %v3843, 2
        %v3845 = vmax.f32 %v3843, %v3844
        %v3846 = vrot.slane %v3845, 1
        %v3847 = vmax.f32 %v3845, %v3846
        %v3848 = vsel %vm3490, %v3038, -inf
        %v3849 = vrot.slane %v3848, 4
        %v3850 = vmax.f32 %v3848, %v3849
        %v3851 = vrot.slane %v3850, 2
        %v3852 = vmax.f32 %v3850, %v3851
        %v3853 = vrot.slane %v3852, 1
        %v3854 = vmax.f32 %v3852, %v3853
        %v3855 = vsel %vm3490, %v3046, -inf
        %v3856 = vrot.slane %v3855, 4
        %v3857 = vmax.f32 %v3855, %v3856
        %v3858 = vrot.slane %v3857, 2
        %v3859 = vmax.f32 %v3857, %v3858
        %v3860 = vrot.slane %v3859, 1
        %v3861 = vmax.f32 %v3859, %v3860
        %v3862 = vsel %vm3490, %v3054, -inf
        %v3863 = vrot.slane %v3862, 4
        %v3864 = vmax.f32 %v3862, %v3863
        %v3865 = vrot.slane %v3864, 2
        %v3866 = vmax.f32 %v3864, %v3865
        %v3867 = vrot.slane %v3866, 1
        %v3868 = vmax.f32 %v3866, %v3867
        %v3869 = vsel %vm3490, %v3053, -inf
        %v3870 = vrot.slane %v3869, 4
        %v3871 = vmax.f32 %v3869, %v3870
        %v3872 = vrot.slane %v3871, 2
        %v3873 = vmax.f32 %v3871, %v3872
        %v3874 = vrot.slane %v3873, 1
        %v3875 = vmax.f32 %v3873, %v3874
        %v3876 = vsel %vm3490, %v3055, -inf
        %v3877 = vrot.slane %v3876, 4
        %v3878 = vmax.f32 %v3876, %v3877
        %v3879 = vrot.slane %v3878, 2
        %v3880 = vmax.f32 %v3878, %v3879
        %v3881 = vrot.slane %v3880, 1
        %v3882 = vmax.f32 %v3880, %v3881
        %v3883 = vsel %vm3490, %v3063, -inf
        %v3884 = vrot.slane %v3883, 4
        %v3885 = vmax.f32 %v3883, %v3884
        %v3886 = vrot.slane %v3885, 2
        %v3887 = vmax.f32 %v3885, %v3886
        %v3888 = vrot.slane %v3887, 1
        %v3889 = vmax.f32 %v3887, %v3888
        %v3890 = vsel %vm3490, %v3071, -inf
        %v3891 = vrot.slane %v3890, 4
        %v3892 = vmax.f32 %v3890, %v3891
        %v3893 = vrot.slane %v3892, 2
        %v3894 = vmax.f32 %v3892, %v3893
        %v3895 = vrot.slane %v3894, 1
        %v3896 = vmax.f32 %v3894, %v3895
        %v3897 = vsel %vm3490, %v3070, -inf
        %v3898 = vrot.slane %v3897, 4
        %v3899 = vmax.f32 %v3897, %v3898
        %v3900 = vrot.slane %v3899, 2
        %v3901 = vmax.f32 %v3899, %v3900
        %v3902 = vrot.slane %v3901, 1
        %v3903 = vmax.f32 %v3901, %v3902
        %v3904 = vsel %vm3490, %v3072, -inf
        %v3905 = vrot.slane %v3904, 4
        %v3906 = vmax.f32 %v3904, %v3905
        %v3907 = vrot.slane %v3906, 2
        %v3908 = vmax.f32 %v3906, %v3907
        %v3909 = vrot.slane %v3908, 1
        %v3910 = vmax.f32 %v3908, %v3909
        %v3911 = vsel %vm3490, %v3080, -inf
        %v3912 = vrot.slane %v3911, 4
        %v3913 = vmax.f32 %v3911, %v3912
        %v3914 = vrot.slane %v3913, 2
        %v3915 = vmax.f32 %v3913, %v3914
        %v3916 = vrot.slane %v3915, 1
        %v3917 = vmax.f32 %v3915, %v3916
        %v3918 = vsel %vm3490, %v3088, -inf
        %v3919 = vrot.slane %v3918, 4
        %v3920 = vmax.f32 %v3918, %v3919
        %v3921 = vrot.slane %v3920, 2
        %v3922 = vmax.f32 %v3920, %v3921
        %v3923 = vrot.slane %v3922, 1
        %v3924 = vmax.f32 %v3922, %v3923
        %v3925 = vsel %vm3490, %v3087, -inf
        %v3926 = vrot.slane %v3925, 4
        %v3927 = vmax.f32 %v3925, %v3926
        %v3928 = vrot.slane %v3927, 2
        %v3929 = vmax.f32 %v3927, %v3928
        %v3930 = vrot.slane %v3929, 1
        %v3931 = vmax.f32 %v3929, %v3930
        %v3932 = vsel %vm3490, %v3089, -inf
        %v3933 = vrot.slane %v3932, 4
        %v3934 = vmax.f32 %v3932, %v3933
        %v3935 = vrot.slane %v3934, 2
        %v3936 = vmax.f32 %v3934, %v3935
        %v3937 = vrot.slane %v3936, 1
        %v3938 = vmax.f32 %v3936, %v3937
        %v3939 = vsel %vm3490, %v3097, -inf
        %v3940 = vrot.slane %v3939, 4
        %v3941 = vmax.f32 %v3939, %v3940
        %v3942 = vrot.slane %v3941, 2
        %v3943 = vmax.f32 %v3941, %v3942
        %v3944 = vrot.slane %v3943, 1
        %v3945 = vmax.f32 %v3943, %v3944
        %v3946 = vsel %vm3490, %v3105, -inf
        %v3947 = vrot.slane %v3946, 4
        %v3948 = vmax.f32 %v3946, %v3947
        %v3949 = vrot.slane %v3948, 2
        %v3950 = vmax.f32 %v3948, %v3949
        %v3951 = vrot.slane %v3950, 1
        %v3952 = vmax.f32 %v3950, %v3951
        %v3953 = vsel %vm3490, %v3104, -inf
        %v3954 = vrot.slane %v3953, 4
        %v3955 = vmax.f32 %v3953, %v3954
        %v3956 = vrot.slane %v3955, 2
        %v3957 = vmax.f32 %v3955, %v3956
        %v3958 = vrot.slane %v3957, 1
        %v3959 = vmax.f32 %v3957, %v3958
        %v3960 = vsel %vm3490, %v3106, -inf
        %v3961 = vrot.slane %v3960, 4
        %v3962 = vmax.f32 %v3960, %v3961
        %v3963 = vrot.slane %v3962, 2
        %v3964 = vmax.f32 %v3962, %v3963
        %v3965 = vrot.slane %v3964, 1
        %v3966 = vmax.f32 %v3964, %v3965
        %v3967 = vsel %vm3490, %v3114, -inf
        %v3968 = vrot.slane %v3967, 4
        %v3969 = vmax.f32 %v3967, %v3968
        %v3970 = vrot.slane %v3969, 2
        %v3971 = vmax.f32 %v3969, %v3970
        %v3972 = vrot.slane %v3971, 1
        %v3973 = vmax.f32 %v3971, %v3972
        %v3974 = vsel %vm3490, %v3122, -inf
        %v3975 = vrot.slane %v3974, 4
        %v3976 = vmax.f32 %v3974, %v3975
        %v3977 = vrot.slane %v3976, 2
        %v3978 = vmax.f32 %v3976, %v3977
        %v3979 = vrot.slane %v3978, 1
        %v3980 = vmax.f32 %v3978, %v3979
        %v3981 = vsel %vm3490, %v3121, -inf
        %v3982 = vrot.slane %v3981, 4
        %v3983 = vmax.f32 %v3981, %v3982
        %v3984 = vrot.slane %v3983, 2
        %v3985 = vmax.f32 %v3983, %v3984
        %v3986 = vrot.slane %v3985, 1
        %v3987 = vmax.f32 %v3985, %v3986
        %v3988 = vsel %vm3490, %v3123, -inf
        %v3989 = vrot.slane %v3988, 4
        %v3990 = vmax.f32 %v3988, %v3989
        %v3991 = vrot.slane %v3990, 2
        %v3992 = vmax.f32 %v3990, %v3991
        %v3993 = vrot.slane %v3992, 1
        %v3994 = vmax.f32 %v3992, %v3993
        %v3995 = vsel %vm3490, %v3131, -inf
        %v3996 = vrot.slane %v3995, 4
        %v3997 = vmax.f32 %v3995, %v3996
        %v3998 = vrot.slane %v3997, 2
        %v3999 = vmax.f32 %v3997, %v3998
        %v4000 = vrot.slane %v3999, 1
        %v4001 = vmax.f32 %v3999, %v4000
        %v4002 = vsel %vm3490, %v3139, -inf
        %v4003 = vrot.slane %v4002, 4
        %v4004 = vmax.f32 %v4002, %v4003
        %v4005 = vrot.slane %v4004, 2
        %v4006 = vmax.f32 %v4004, %v4005
        %v4007 = vrot.slane %v4006, 1
        %v4008 = vmax.f32 %v4006, %v4007
        %v4009 = vsel %vm3490, %v3138, -inf
        %v4010 = vrot.slane %v4009, 4
        %v4011 = vmax.f32 %v4009, %v4010
        %v4012 = vrot.slane %v4011, 2
        %v4013 = vmax.f32 %v4011, %v4012
        %v4014 = vrot.slane %v4013, 1
        %v4015 = vmax.f32 %v4013, %v4014
        %v4016 = vsel %vm3490, %v3140, -inf
        %v4017 = vrot.slane %v4016, 4
        %v4018 = vmax.f32 %v4016, %v4017
        %v4019 = vrot.slane %v4018, 2
        %v4020 = vmax.f32 %v4018, %v4019
        %v4021 = vrot.slane %v4020, 1
        %v4022 = vmax.f32 %v4020, %v4021
        %v4023 = vsel %vm3490, %v3148, -inf
        %v4024 = vrot.slane %v4023, 4
        %v4025 = vmax.f32 %v4023, %v4024
        %v4026 = vrot.slane %v4025, 2
        %v4027 = vmax.f32 %v4025, %v4026
        %v4028 = vrot.slane %v4027, 1
        %v4029 = vmax.f32 %v4027, %v4028
        %v4030 = vsel %vm3490, %v3156, -inf
        %v4031 = vrot.slane %v4030, 4
        %v4032 = vmax.f32 %v4030, %v4031
        %v4033 = vrot.slane %v4032, 2
        %v4034 = vmax.f32 %v4032, %v4033
        %v4035 = vrot.slane %v4034, 1
        %v4036 = vmax.f32 %v4034, %v4035
        %v4037 = vsel %vm3490, %v3155, -inf
        %v4038 = vrot.slane %v4037, 4
        %v4039 = vmax.f32 %v4037, %v4038
        %v4040 = vrot.slane %v4039, 2
        %v4041 = vmax.f32 %v4039, %v4040
        %v4042 = vrot.slane %v4041, 1
        %v4043 = vmax.f32 %v4041, %v4042
        %v4044 = vsel %vm3490, %v3157, -inf
        %v4045 = vrot.slane %v4044, 4
        %v4046 = vmax.f32 %v4044, %v4045
        %v4047 = vrot.slane %v4046, 2
        %v4048 = vmax.f32 %v4046, %v4047
        %v4049 = vrot.slane %v4048, 1
        %v4050 = vmax.f32 %v4048, %v4049
        %v4051 = vsel %vm3490, %v3165, -inf
        %v4052 = vrot.slane %v4051, 4
        %v4053 = vmax.f32 %v4051, %v4052
        %v4054 = vrot.slane %v4053, 2
        %v4055 = vmax.f32 %v4053, %v4054
        %v4056 = vrot.slane %v4055, 1
        %v4057 = vmax.f32 %v4055, %v4056
        %v4058 = vsel %vm3490, %v3173, -inf
        %v4059 = vrot.slane %v4058, 4
        %v4060 = vmax.f32 %v4058, %v4059
        %v4061 = vrot.slane %v4060, 2
        %v4062 = vmax.f32 %v4060, %v4061
        %v4063 = vrot.slane %v4062, 1
        %v4064 = vmax.f32 %v4062, %v4063
        %v4065 = vsel %vm3490, %v3172, -inf
        %v4066 = vrot.slane %v4065, 4
        %v4067 = vmax.f32 %v4065, %v4066
        %v4068 = vrot.slane %v4067, 2
        %v4069 = vmax.f32 %v4067, %v4068
        %v4070 = vrot.slane %v4069, 1
        %v4071 = vmax.f32 %v4069, %v4070
        %v4072 = vsel %vm3490, %v3174, -inf
        %v4073 = vrot.slane %v4072, 4
        %v4074 = vmax.f32 %v4072, %v4073
        %v4075 = vrot.slane %v4074, 2
        %v4076 = vmax.f32 %v4074, %v4075
        %v4077 = vrot.slane %v4076, 1
        %v4078 = vmax.f32 %v4076, %v4077
        %v4079 = vsel %vm3490, %v3182, -inf
        %v4080 = vrot.slane %v4079, 4
        %v4081 = vmax.f32 %v4079, %v4080
        %v4082 = vrot.slane %v4081, 2
        %v4083 = vmax.f32 %v4081, %v4082
        %v4084 = vrot.slane %v4083, 1
        %v4085 = vmax.f32 %v4083, %v4084
        %v4086 = vsel %vm3490, %v3190, -inf
        %v4087 = vrot.slane %v4086, 4
        %v4088 = vmax.f32 %v4086, %v4087
        %v4089 = vrot.slane %v4088, 2
        %v4090 = vmax.f32 %v4088, %v4089
        %v4091 = vrot.slane %v4090, 1
        %v4092 = vmax.f32 %v4090, %v4091
        %v4093 = vsel %vm3490, %v3189, -inf
        %v4094 = vrot.slane %v4093, 4
        %v4095 = vmax.f32 %v4093, %v4094
        %v4096 = vrot.slane %v4095, 2
        %v4097 = vmax.f32 %v4095, %v4096
        %v4098 = vrot.slane %v4097, 1
        %v4099 = vmax.f32 %v4097, %v4098
        %v4100 = vsel %vm3490, %v3191, -inf
        %v4101 = vrot.slane %v4100, 4
        %v4102 = vmax.f32 %v4100, %v4101
        %v4103 = vrot.slane %v4102, 2
        %v4104 = vmax.f32 %v4102, %v4103
        %v4105 = vrot.slane %v4104, 1
        %v4106 = vmax.f32 %v4104, %v4105
        %v4107 = vsel %vm3490, %v3199, -inf
        %v4108 = vrot.slane %v4107, 4
        %v4109 = vmax.f32 %v4107, %v4108
        %v4110 = vrot.slane %v4109, 2
        %v4111 = vmax.f32 %v4109, %v4110
        %v4112 = vrot.slane %v4111, 1
        %v4113 = vmax.f32 %v4111, %v4112
        %v4114 = vsel %vm3490, %v3207, -inf
        %v4115 = vrot.slane %v4114, 4
        %v4116 = vmax.f32 %v4114, %v4115
        %v4117 = vrot.slane %v4116, 2
        %v4118 = vmax.f32 %v4116, %v4117
        %v4119 = vrot.slane %v4118, 1
        %v4120 = vmax.f32 %v4118, %v4119
        %v4121 = vsel %vm3490, %v3206, -inf
        %v4122 = vrot.slane %v4121, 4
        %v4123 = vmax.f32 %v4121, %v4122
        %v4124 = vrot.slane %v4123, 2
        %v4125 = vmax.f32 %v4123, %v4124
        %v4126 = vrot.slane %v4125, 1
        %v4127 = vmax.f32 %v4125, %v4126
        %v4128 = vsel %vm3490, %v3208, -inf
        %v4129 = vrot.slane %v4128, 4
        %v4130 = vmax.f32 %v4128, %v4129
        %v4131 = vrot.slane %v4130, 2
        %v4132 = vmax.f32 %v4130, %v4131
        %v4133 = vrot.slane %v4132, 1
        %v4134 = vmax.f32 %v4132, %v4133
        %v4135 = vsel %vm3490, %v3216, -inf
        %v4136 = vrot.slane %v4135, 4
        %v4137 = vmax.f32 %v4135, %v4136
        %v4138 = vrot.slane %v4137, 2
        %v4139 = vmax.f32 %v4137, %v4138
        %v4140 = vrot.slane %v4139, 1
        %v4141 = vmax.f32 %v4139, %v4140
        %v4142 = vsel %vm3490, %v3224, -inf
        %v4143 = vrot.slane %v4142, 4
        %v4144 = vmax.f32 %v4142, %v4143
        %v4145 = vrot.slane %v4144, 2
        %v4146 = vmax.f32 %v4144, %v4145
        %v4147 = vrot.slane %v4146, 1
        %v4148 = vmax.f32 %v4146, %v4147
        %v4149 = vsel %vm3490, %v3223, -inf
        %v4150 = vrot.slane %v4149, 4
        %v4151 = vmax.f32 %v4149, %v4150
        %v4152 = vrot.slane %v4151, 2
        %v4153 = vmax.f32 %v4151, %v4152
        %v4154 = vrot.slane %v4153, 1
        %v4155 = vmax.f32 %v4153, %v4154
        %v4156 = vsel %vm3490, %v3225, -inf
        %v4157 = vrot.slane %v4156, 4
        %v4158 = vmax.f32 %v4156, %v4157
        %v4159 = vrot.slane %v4158, 2
        %v4160 = vmax.f32 %v4158, %v4159
        %v4161 = vrot.slane %v4160, 1
        %v4162 = vmax.f32 %v4160, %v4161
        %v4163 = vsel %vm3490, %v3233, -inf
        %v4164 = vrot.slane %v4163, 4
        %v4165 = vmax.f32 %v4163, %v4164
        %v4166 = vrot.slane %v4165, 2
        %v4167 = vmax.f32 %v4165, %v4166
        %v4168 = vrot.slane %v4167, 1
        %v4169 = vmax.f32 %v4167, %v4168
        %v4170 = vsel %vm3490, %v3241, -inf
        %v4171 = vrot.slane %v4170, 4
        %v4172 = vmax.f32 %v4170, %v4171
        %v4173 = vrot.slane %v4172, 2
        %v4174 = vmax.f32 %v4172, %v4173
        %v4175 = vrot.slane %v4174, 1
        %v4176 = vmax.f32 %v4174, %v4175
        %v4177 = vsel %vm3490, %v3240, -inf
        %v4178 = vrot.slane %v4177, 4
        %v4179 = vmax.f32 %v4177, %v4178
        %v4180 = vrot.slane %v4179, 2
        %v4181 = vmax.f32 %v4179, %v4180
        %v4182 = vrot.slane %v4181, 1
        %v4183 = vmax.f32 %v4181, %v4182
        %v4184 = vsel %vm3490, %v3242, -inf
        %v4185 = vrot.slane %v4184, 4
        %v4186 = vmax.f32 %v4184, %v4185
        %v4187 = vrot.slane %v4186, 2
        %v4188 = vmax.f32 %v4186, %v4187
        %v4189 = vrot.slane %v4188, 1
        %v4190 = vmax.f32 %v4188, %v4189
        %v4191 = vsel %vm3490, %v3250, -inf
        %v4192 = vrot.slane %v4191, 4
        %v4193 = vmax.f32 %v4191, %v4192
        %v4194 = vrot.slane %v4193, 2
        %v4195 = vmax.f32 %v4193, %v4194
        %v4196 = vrot.slane %v4195, 1
        %v4197 = vmax.f32 %v4195, %v4196
        %v4198 = vsel %vm3490, %v3258, -inf
        %v4199 = vrot.slane %v4198, 4
        %v4200 = vmax.f32 %v4198, %v4199
        %v4201 = vrot.slane %v4200, 2
        %v4202 = vmax.f32 %v4200, %v4201
        %v4203 = vrot.slane %v4202, 1
        %v4204 = vmax.f32 %v4202, %v4203
        %v4205 = vsel %vm3490, %v3257, -inf
        %v4206 = vrot.slane %v4205, 4
        %v4207 = vmax.f32 %v4205, %v4206
        %v4208 = vrot.slane %v4207, 2
        %v4209 = vmax.f32 %v4207, %v4208
        %v4210 = vrot.slane %v4209, 1
        %v4211 = vmax.f32 %v4209, %v4210
        %v4212 = vsel %vm3490, %v3259, -inf
        %v4213 = vrot.slane %v4212, 4
        %v4214 = vmax.f32 %v4212, %v4213
        %v4215 = vrot.slane %v4214, 2
        %v4216 = vmax.f32 %v4214, %v4215
        %v4217 = vrot.slane %v4216, 1
        %v4218 = vmax.f32 %v4216, %v4217
        %v4219 = vsel %vm3490, %v3267, -inf
        %v4220 = vrot.slane %v4219, 4
        %v4221 = vmax.f32 %v4219, %v4220
        %v4222 = vrot.slane %v4221, 2
        %v4223 = vmax.f32 %v4221, %v4222
        %v4224 = vrot.slane %v4223, 1
        %v4225 = vmax.f32 %v4223, %v4224
        %v4226 = vsel %vm3490, %v3275, -inf
        %v4227 = vrot.slane %v4226, 4
        %v4228 = vmax.f32 %v4226, %v4227
        %v4229 = vrot.slane %v4228, 2
        %v4230 = vmax.f32 %v4228, %v4229
        %v4231 = vrot.slane %v4230, 1
        %v4232 = vmax.f32 %v4230, %v4231
        %v4233 = vsel %vm3490, %v3274, -inf
        %v4234 = vrot.slane %v4233, 4
        %v4235 = vmax.f32 %v4233, %v4234
        %v4236 = vrot.slane %v4235, 2
        %v4237 = vmax.f32 %v4235, %v4236
        %v4238 = vrot.slane %v4237, 1
        %v4239 = vmax.f32 %v4237, %v4238
        %v4240 = vsel %vm3490, %v3276, -inf
        %v4241 = vrot.slane %v4240, 4
        %v4242 = vmax.f32 %v4240, %v4241
        %v4243 = vrot.slane %v4242, 2
        %v4244 = vmax.f32 %v4242, %v4243
        %v4245 = vrot.slane %v4244, 1
        %v4246 = vmax.f32 %v4244, %v4245
        %v4247 = vsel %vm3490, %v3284, -inf
        %v4248 = vrot.slane %v4247, 4
        %v4249 = vmax.f32 %v4247, %v4248
        %v4250 = vrot.slane %v4249, 2
        %v4251 = vmax.f32 %v4249, %v4250
        %v4252 = vrot.slane %v4251, 1
        %v4253 = vmax.f32 %v4251, %v4252
        %v4254 = vsel %vm3490, %v3292, -inf
        %v4255 = vrot.slane %v4254, 4
        %v4256 = vmax.f32 %v4254, %v4255
        %v4257 = vrot.slane %v4256, 2
        %v4258 = vmax.f32 %v4256, %v4257
        %v4259 = vrot.slane %v4258, 1
        %v4260 = vmax.f32 %v4258, %v4259
        %v4261 = vsel %vm3490, %v3291, -inf
        %v4262 = vrot.slane %v4261, 4
        %v4263 = vmax.f32 %v4261, %v4262
        %v4264 = vrot.slane %v4263, 2
        %v4265 = vmax.f32 %v4263, %v4264
        %v4266 = vrot.slane %v4265, 1
        %v4267 = vmax.f32 %v4265, %v4266
        %v4268 = vsel %vm3490, %v3293, -inf
        %v4269 = vrot.slane %v4268, 4
        %v4270 = vmax.f32 %v4268, %v4269
        %v4271 = vrot.slane %v4270, 2
        %v4272 = vmax.f32 %v4270, %v4271
        %v4273 = vrot.slane %v4272, 1
        %v4274 = vmax.f32 %v4272, %v4273
        %v4275 = vsel %vm3490, %v3301, -inf
        %v4276 = vrot.slane %v4275, 4
        %v4277 = vmax.f32 %v4275, %v4276
        %v4278 = vrot.slane %v4277, 2
        %v4279 = vmax.f32 %v4277, %v4278
        %v4280 = vrot.slane %v4279, 1
        %v4281 = vmax.f32 %v4279, %v4280
        %v4282 = vsel %vm3490, %v3309, -inf
        %v4283 = vrot.slane %v4282, 4
        %v4284 = vmax.f32 %v4282, %v4283
        %v4285 = vrot.slane %v4284, 2
        %v4286 = vmax.f32 %v4284, %v4285
        %v4287 = vrot.slane %v4286, 1
        %v4288 = vmax.f32 %v4286, %v4287
        %v4289 = vsel %vm3490, %v3308, -inf
        %v4290 = vrot.slane %v4289, 4
        %v4291 = vmax.f32 %v4289, %v4290
        %v4292 = vrot.slane %v4291, 2
        %v4293 = vmax.f32 %v4291, %v4292
        %v4294 = vrot.slane %v4293, 1
        %v4295 = vmax.f32 %v4293, %v4294
        %v4296 = vsel %vm3490, %v3310, -inf
        %v4297 = vrot.slane %v4296, 4
        %v4298 = vmax.f32 %v4296, %v4297
        %v4299 = vrot.slane %v4298, 2
        %v4300 = vmax.f32 %v4298, %v4299
        %v4301 = vrot.slane %v4300, 1
        %v4302 = vmax.f32 %v4300, %v4301
        %v4303 = vsel %vm3490, %v3318, -inf
        %v4304 = vrot.slane %v4303, 4
        %v4305 = vmax.f32 %v4303, %v4304
        %v4306 = vrot.slane %v4305, 2
        %v4307 = vmax.f32 %v4305, %v4306
        %v4308 = vrot.slane %v4307, 1
        %v4309 = vmax.f32 %v4307, %v4308
        %v4310 = vsel %vm3490, %v3326, -inf
        %v4311 = vrot.slane %v4310, 4
        %v4312 = vmax.f32 %v4310, %v4311
        %v4313 = vrot.slane %v4312, 2
        %v4314 = vmax.f32 %v4312, %v4313
        %v4315 = vrot.slane %v4314, 1
        %v4316 = vmax.f32 %v4314, %v4315
        %v4317 = vsel %vm3490, %v3325, -inf
        %v4318 = vrot.slane %v4317, 4
        %v4319 = vmax.f32 %v4317, %v4318
        %v4320 = vrot.slane %v4319, 2
        %v4321 = vmax.f32 %v4319, %v4320
        %v4322 = vrot.slane %v4321, 1
        %v4323 = vmax.f32 %v4321, %v4322
        %v4324 = vsel %vm3490, %v3327, -inf
        %v4325 = vrot.slane %v4324, 4
        %v4326 = vmax.f32 %v4324, %v4325
        %v4327 = vrot.slane %v4326, 2
        %v4328 = vmax.f32 %v4326, %v4327
        %v4329 = vrot.slane %v4328, 1
        %v4330 = vmax.f32 %v4328, %v4329
        %v4331 = vsel %vm3490, %v3335, -inf
        %v4332 = vrot.slane %v4331, 4
        %v4333 = vmax.f32 %v4331, %v4332
        %v4334 = vrot.slane %v4333, 2
        %v4335 = vmax.f32 %v4333, %v4334
        %v4336 = vrot.slane %v4335, 1
        %v4337 = vmax.f32 %v4335, %v4336
        %v4338 = vsel %vm3490, %v3343, -inf
        %v4339 = vrot.slane %v4338, 4
        %v4340 = vmax.f32 %v4338, %v4339
        %v4341 = vrot.slane %v4340, 2
        %v4342 = vmax.f32 %v4340, %v4341
        %v4343 = vrot.slane %v4342, 1
        %v4344 = vmax.f32 %v4342, %v4343
        %v4345 = vsel %vm3490, %v3342, -inf
        %v4346 = vrot.slane %v4345, 4
        %v4347 = vmax.f32 %v4345, %v4346
        %v4348 = vrot.slane %v4347, 2
        %v4349 = vmax.f32 %v4347, %v4348
        %v4350 = vrot.slane %v4349, 1
        %v4351 = vmax.f32 %v4349, %v4350
        %v4352 = vsel %vm3490, %v3344, -inf
        %v4353 = vrot.slane %v4352, 4
        %v4354 = vmax.f32 %v4352, %v4353
        %v4355 = vrot.slane %v4354, 2
        %v4356 = vmax.f32 %v4354, %v4355
        %v4357 = vrot.slane %v4356, 1
        %v4358 = vmax.f32 %v4356, %v4357
        %v4359 = vsel %vm3490, %v3352, -inf
        %v4360 = vrot.slane %v4359, 4
        %v4361 = vmax.f32 %v4359, %v4360
        %v4362 = vrot.slane %v4361, 2
        %v4363 = vmax.f32 %v4361, %v4362
        %v4364 = vrot.slane %v4363, 1
        %v4365 = vmax.f32 %v4363, %v4364
        %v4366 = vsel %vm3490, %v3360, -inf
        %v4367 = vrot.slane %v4366, 4
        %v4368 = vmax.f32 %v4366, %v4367
        %v4369 = vrot.slane %v4368, 2
        %v4370 = vmax.f32 %v4368, %v4369
        %v4371 = vrot.slane %v4370, 1
        %v4372 = vmax.f32 %v4370, %v4371
        %v4373 = vsel %vm3490, %v3359, -inf
        %v4374 = vrot.slane %v4373, 4
        %v4375 = vmax.f32 %v4373, %v4374
        %v4376 = vrot.slane %v4375, 2
        %v4377 = vmax.f32 %v4375, %v4376
        %v4378 = vrot.slane %v4377, 1
        %v4379 = vmax.f32 %v4377, %v4378
        %v4380 = vsel %vm3490, %v3361, -inf
        %v4381 = vrot.slane %v4380, 4
        %v4382 = vmax.f32 %v4380, %v4381
        %v4383 = vrot.slane %v4382, 2
        %v4384 = vmax.f32 %v4382, %v4383
        %v4385 = vrot.slane %v4384, 1
        %v4386 = vmax.f32 %v4384, %v4385
        %vm4387 = vcmask 130048
        %v4388 = vsel %vm4387, %v3497, -inf
        %v4389 = vsel %vm4387, %v3553, -inf
        %v4390 = vmax.f32 %v4388, %v4389
        %v4391 = vsel %vm4387, %v3504, -inf
        %v4392 = vsel %vm4387, %v3560, -inf
        %v4393 = vmax.f32 %v4391, %v4392
        %v4394 = vsel %vm4387, %v3511, -inf
        %v4395 = vsel %vm4387, %v3567, -inf
        %v4396 = vmax.f32 %v4394, %v4395
        %v4397 = vsel %vm4387, %v3518, -inf
        %v4398 = vsel %vm4387, %v3574, -inf
        %v4399 = vmax.f32 %v4397, %v4398
        %v4400 = vsel %vm4387, %v3525, -inf
        %v4401 = vsel %vm4387, %v3581, -inf
        %v4402 = vmax.f32 %v4400, %v4401
        %v4403 = vsel %vm4387, %v3532, -inf
        %v4404 = vsel %vm4387, %v3588, -inf
        %v4405 = vmax.f32 %v4403, %v4404
        %v4406 = vsel %vm4387, %v3539, -inf
        %v4407 = vsel %vm4387, %v3595, -inf
        %v4408 = vmax.f32 %v4406, %v4407
        %v4409 = vsel %vm4387, %v3546, -inf
        %v4410 = vsel %vm4387, %v3602, -inf
        %v4411 = vmax.f32 %v4409, %v4410
        %v4412 = vsel %vm4387, %v3609, -inf
        %v4413 = vsel %vm4387, %v3665, -inf
        %v4414 = vmax.f32 %v4412, %v4413
        %v4415 = vsel %vm4387, %v3616, -inf
        %v4416 = vsel %vm4387, %v3672, -inf
        %v4417 = vmax.f32 %v4415, %v4416
        %v4418 = vsel %vm4387, %v3623, -inf
        %v4419 = vsel %vm4387, %v3679, -inf
        %v4420 = vmax.f32 %v4418, %v4419
        %v4421 = vsel %vm4387, %v3630, -inf
        %v4422 = vsel %vm4387, %v3686, -inf
        %v4423 = vmax.f32 %v4421, %v4422
        %v4424 = vsel %vm4387, %v3637, -inf
        %v4425 = vsel %vm4387, %v3693, -inf
        %v4426 = vmax.f32 %v4424, %v4425
        %v4427 = vsel %vm4387, %v3644, -inf
        %v4428 = vsel %vm4387, %v3700, -inf
        %v4429 = vmax.f32 %v4427, %v4428
        %v4430 = vsel %vm4387, %v3651, -inf
        %v4431 = vsel %vm4387, %v3707, -inf
        %v4432 = vmax.f32 %v4430, %v4431
        %v4433 = vsel %vm4387, %v3658, -inf
        %v4434 = vsel %vm4387, %v3714, -inf
        %v4435 = vmax.f32 %v4433, %v4434
        %v4436 = vsel %vm4387, %v3721, -inf
        %v4437 = vsel %vm4387, %v3777, -inf
        %v4438 = vmax.f32 %v4436, %v4437
        %v4439 = vsel %vm4387, %v3728, -inf
        %v4440 = vsel %vm4387, %v3784, -inf
        %v4441 = vmax.f32 %v4439, %v4440
        %v4442 = vsel %vm4387, %v3735, -inf
        %v4443 = vsel %vm4387, %v3791, -inf
        %v4444 = vmax.f32 %v4442, %v4443
        %v4445 = vsel %vm4387, %v3742, -inf
        %v4446 = vsel %vm4387, %v3798, -inf
        %v4447 = vmax.f32 %v4445, %v4446
        %v4448 = vsel %vm4387, %v3749, -inf
        %v4449 = vsel %vm4387, %v3805, -inf
        %v4450 = vmax.f32 %v4448, %v4449
        %v4451 = vsel %vm4387, %v3756, -inf
        %v4452 = vsel %vm4387, %v3812, -inf
        %v4453 = vmax.f32 %v4451, %v4452
        %v4454 = vsel %vm4387, %v3763, -inf
        %v4455 = vsel %vm4387, %v3819, -inf
        %v4456 = vmax.f32 %v4454, %v4455
        %v4457 = vsel %vm4387, %v3770, -inf
        %v4458 = vsel %vm4387, %v3826, -inf
        %v4459 = vmax.f32 %v4457, %v4458
        %v4460 = vsel %vm4387, %v3833, -inf
        %v4461 = vsel %vm4387, %v3889, -inf
        %v4462 = vmax.f32 %v4460, %v4461
        %v4463 = vsel %vm4387, %v3840, -inf
        %v4464 = vsel %vm4387, %v3896, -inf
        %v4465 = vmax.f32 %v4463, %v4464
        %v4466 = vsel %vm4387, %v3847, -inf
        %v4467 = vsel %vm4387, %v3903, -inf
        %v4468 = vmax.f32 %v4466, %v4467
        %v4469 = vsel %vm4387, %v3854, -inf
        %v4470 = vsel %vm4387, %v3910, -inf
        %v4471 = vmax.f32 %v4469, %v4470
        %v4472 = vsel %vm4387, %v3861, -inf
        %v4473 = vsel %vm4387, %v3917, -inf
        %v4474 = vmax.f32 %v4472, %v4473
        %v4475 = vsel %vm4387, %v3868, -inf
        %v4476 = vsel %vm4387, %v3924, -inf
        %v4477 = vmax.f32 %v4475, %v4476
        %v4478 = vsel %vm4387, %v3875, -inf
        %v4479 = vsel %vm4387, %v3931, -inf
        %v4480 = vmax.f32 %v4478, %v4479
        %v4481 = vsel %vm4387, %v3882, -inf
        %v4482 = vsel %vm4387, %v3938, -inf
        %v4483 = vmax.f32 %v4481, %v4482
        %v4484 = vsel %vm4387, %v3945, -inf
        %v4485 = vsel %vm4387, %v4001, -inf
        %v4486 = vmax.f32 %v4484, %v4485
        %v4487 = vsel %vm4387, %v3952, -inf
        %v4488 = vsel %vm4387, %v4008, -inf
        %v4489 = vmax.f32 %v4487, %v4488
        %v4490 = vsel %vm4387, %v3959, -inf
        %v4491 = vsel %vm4387, %v4015, -inf
        %v4492 = vmax.f32 %v4490, %v4491
        %v4493 = vsel %vm4387, %v3966, -inf
        %v4494 = vsel %vm4387, %v4022, -inf
        %v4495 = vmax.f32 %v4493, %v4494
        %v4496 = vsel %vm4387, %v3973, -inf
        %v4497 = vsel %vm4387, %v4029, -inf
        %v4498 = vmax.f32 %v4496, %v4497
        %v4499 = vsel %vm4387, %v3980, -inf
        %v4500 = vsel %vm4387, %v4036, -inf
        %v4501 = vmax.f32 %v4499, %v4500
        %v4502 = vsel %vm4387, %v3987, -inf
        %v4503 = vsel %vm4387, %v4043, -inf
        %v4504 = vmax.f32 %v4502, %v4503
        %v4505 = vsel %vm4387, %v3994, -inf
        %v4506 = vsel %vm4387, %v4050, -inf
        %v4507 = vmax.f32 %v4505, %v4506
        %v4508 = vsel %vm4387, %v4057, -inf
        %v4509 = vsel %vm4387, %v4113, -inf
        %v4510 = vmax.f32 %v4508, %v4509
        %v4511 = vsel %vm4387, %v4064, -inf
        %v4512 = vsel %vm4387, %v4120, -inf
        %v4513 = vmax.f32 %v4511, %v4512
        %v4514 = vsel %vm4387, %v4071, -inf
        %v4515 = vsel %vm4387, %v4127, -inf
        %v4516 = vmax.f32 %v4514, %v4515
        %v4517 = vsel %vm4387, %v4078, -inf
        %v4518 = vsel %vm4387, %v4134, -inf
        %v4519 = vmax.f32 %v4517, %v4518
        %v4520 = vsel %vm4387, %v4085, -inf
        %v4521 = vsel %vm4387, %v4141, -inf
        %v4522 = vmax.f32 %v4520, %v4521
        %v4523 = vsel %vm4387, %v4092, -inf
        %v4524 = vsel %vm4387, %v4148, -inf
        %v4525 = vmax.f32 %v4523, %v4524
        %v4526 = vsel %vm4387, %v4099, -inf
        %v4527 = vsel %vm4387, %v4155, -inf
        %v4528 = vmax.f32 %v4526, %v4527
        %v4529 = vsel %vm4387, %v4106, -inf
        %v4530 = vsel %vm4387, %v4162, -inf
        %v4531 = vmax.f32 %v4529, %v4530
        %v4532 = vsel %vm4387, %v4169, -inf
        %v4533 = vsel %vm4387, %v4225, -inf
        %v4534 = vmax.f32 %v4532, %v4533
        %v4535 = vsel %vm4387, %v4176, -inf
        %v4536 = vsel %vm4387, %v4232, -inf
        %v4537 = vmax.f32 %v4535, %v4536
        %v4538 = vsel %vm4387, %v4183, -inf
        %v4539 = vsel %vm4387, %v4239, -inf
        %v4540 = vmax.f32 %v4538, %v4539
        %v4541 = vsel %vm4387, %v4190, -inf
        %v4542 = vsel %vm4387, %v4246, -inf
        %v4543 = vmax.f32 %v4541, %v4542
        %v4544 = vsel %vm4387, %v4197, -inf
        %v4545 = vsel %vm4387, %v4253, -inf
        %v4546 = vmax.f32 %v4544, %v4545
        %v4547 = vsel %vm4387, %v4204, -inf
        %v4548 = vsel %vm4387, %v4260, -inf
        %v4549 = vmax.f32 %v4547, %v4548
        %v4550 = vsel %vm4387, %v4211, -inf
        %v4551 = vsel %vm4387, %v4267, -inf
        %v4552 = vmax.f32 %v4550, %v4551
        %v4553 = vsel %vm4387, %v4218, -inf
        %v4554 = vsel %vm4387, %v4274, -inf
        %v4555 = vmax.f32 %v4553, %v4554
        %v4556 = vsel %vm4387, %v4281, -inf
        %v4557 = vsel %vm4387, %v4337, -inf
        %v4558 = vmax.f32 %v4556, %v4557
        %v4559 = vsel %vm4387, %v4288, -inf
        %v4560 = vsel %vm4387, %v4344, -inf
        %v4561 = vmax.f32 %v4559, %v4560
        %v4562 = vsel %vm4387, %v4295, -inf
        %v4563 = vsel %vm4387, %v4351, -inf
        %v4564 = vmax.f32 %v4562, %v4563
        %v4565 = vsel %vm4387, %v4302, -inf
        %v4566 = vsel %vm4387, %v4358, -inf
        %v4567 = vmax.f32 %v4565, %v4566
        %v4568 = vsel %vm4387, %v4309, -inf
        %v4569 = vsel %vm4387, %v4365, -inf
        %v4570 = vmax.f32 %v4568, %v4569
        %v4571 = vsel %vm4387, %v4316, -inf
        %v4572 = vsel %vm4387, %v4372, -inf
        %v4573 = vmax.f32 %v4571, %v4572
        %v4574 = vsel %vm4387, %v4323, -inf
        %v4575 = vsel %vm4387, %v4379, -inf
        %v4576 = vmax.f32 %v4574, %v4575
        %v4577 = vsel %vm4387, %v4330, -inf
        %v4578 = vsel %vm4387, %v4386, -inf
        %v4579 = vmax.f32 %v4577, %v4578
        %4580 = vst.msk [vmem:[#allocation4] sm:$0xff] %vm4387, 0.0
        %4581 = vst.msk [vmem:[#allocation4 + $0x8] sm:$0x3] %vm3490, 0.0
        %4582 = vst.msk [vmem:[#allocation4 + $0x10] sm:$0xff] %vm4387, 0.0
        %4583 = vst.msk [vmem:[#allocation4 + $0x18] sm:$0x3] %vm3490, 0.0
        %4584 = vst.msk [vmem:[#allocation4 + $0x20] sm:$0xff] %vm4387, 0.0
        %4585 = vst.msk [vmem:[#allocation4 + $0x28] sm:$0x3] %vm3490, 0.0
        %4586 = vst.msk [vmem:[#allocation4 + $0x30] sm:$0xff] %vm4387, 0.0
        %4587 = vst.msk [vmem:[#allocation4 + $0x38] sm:$0x3] %vm3490, 0.0
        %4588 = vst.msk [vmem:[#allocation4 + $0x40] sm:$0xff] %vm4387, 0.0
        %4589 = vst.msk [vmem:[#allocation4 + $0x48] sm:$0x3] %vm3490, 0.0
        %4590 = vst.msk [vmem:[#allocation4 + $0x50] sm:$0xff] %vm4387, 0.0
        %4591 = vst.msk [vmem:[#allocation4 + $0x58] sm:$0x3] %vm3490, 0.0
        %4592 = vst.msk [vmem:[#allocation4 + $0x60] sm:$0xff] %vm4387, 0.0
        %4593 = vst.msk [vmem:[#allocation4 + $0x68] sm:$0x3] %vm3490, 0.0
        %4594 = vst.msk [vmem:[#allocation4 + $0x70] sm:$0xff] %vm4387, 0.0
        %4595 = vst.msk [vmem:[#allocation4 + $0x78] sm:$0x3] %vm3490, 0.0
        %4596 = vst.msk [vmem:[#allocation4 + $0x80] sm:$0xff] %vm4387, 0.0
        %4597 = vst.msk [vmem:[#allocation4 + $0x88] sm:$0x3] %vm3490, 0.0
        %4598 = vst.msk [vmem:[#allocation4 + $0x90] sm:$0xff] %vm4387, 0.0
        %4599 = vst.msk [vmem:[#allocation4 + $0x98] sm:$0x3] %vm3490, 0.0
        %vm4664 = vcmask 1041409
        %v4665 = vsel %vm4664, %v4393, %v4390
        %vm4666 = vcmask 1042434
        %v4667 = vsel %vm4666, %v4396, %v4665
        %vm4668 = vcmask 1043459
        %v4669 = vsel %vm4668, %v4399, %v4667
        %vm4670 = vcmask 1044484
        %v4671 = vsel %vm4670, %v4402, %v4669
        %vm4672 = vcmask 1045509
        %v4673 = vsel %vm4672, %v4405, %v4671
        %vm4674 = vcmask 1046534
        %v4675 = vsel %vm4674, %v4408, %v4673
        %vm4676 = vcmask 1047559
        %v4677 = vsel %vm4676, %v4411, %v4675
        %v4678 = vsel %vm4664, %v4417, %v4414
        %v4679 = vsel %vm4666, %v4420, %v4678
        %v4680 = vsel %vm4668, %v4423, %v4679
        %v4681 = vsel %vm4670, %v4426, %v4680
        %v4682 = vsel %vm4672, %v4429, %v4681
        %v4683 = vsel %vm4674, %v4432, %v4682
        %v4684 = vsel %vm4676, %v4435, %v4683
        %v4685 = vsel %vm4664, %v4441, %v4438
        %v4686 = vsel %vm4666, %v4444, %v4685
        %v4687 = vsel %vm4668, %v4447, %v4686
        %v4688 = vsel %vm4670, %v4450, %v4687
        %v4689 = vsel %vm4672, %v4453, %v4688
        %v4690 = vsel %vm4674, %v4456, %v4689
        %v4691 = vsel %vm4676, %v4459, %v4690
        %v4692 = vsel %vm4664, %v4465, %v4462
        %v4693 = vsel %vm4666, %v4468, %v4692
        %v4694 = vsel %vm4668, %v4471, %v4693
        %v4695 = vsel %vm4670, %v4474, %v4694
        %v4696 = vsel %vm4672, %v4477, %v4695
        %v4697 = vsel %vm4674, %v4480, %v4696
        %v4698 = vsel %vm4676, %v4483, %v4697
        %v4699 = vsel %vm4664, %v4489, %v4486
        %v4700 = vsel %vm4666, %v4492, %v4699
        %v4701 = vsel %vm4668, %v4495, %v4700
        %v4702 = vsel %vm4670, %v4498, %v4701
        %v4703 = vsel %vm4672, %v4501, %v4702
        %v4704 = vsel %vm4674, %v4504, %v4703
        %v4705 = vsel %vm4676, %v4507, %v4704
        %v4706 = vsel %vm4664, %v4513, %v4510
        %v4707 = vsel %vm4666, %v4516, %v4706
        %v4708 = vsel %vm4668, %v4519, %v4707
        %v4709 = vsel %vm4670, %v4522, %v4708
        %v4710 = vsel %vm4672, %v4525, %v4709
        %v4711 = vsel %vm4674, %v4528, %v4710
        %v4712 = vsel %vm4676, %v4531, %v4711
        %v4713 = vsel %vm4664, %v4537, %v4534
        %v4714 = vsel %vm4666, %v4540, %v4713
        %v4715 = vsel %vm4668, %v4543, %v4714
        %v4716 = vsel %vm4670, %v4546, %v4715
        %v4717 = vsel %vm4672, %v4549, %v4716
        %v4718 = vsel %vm4674, %v4552, %v4717
        %v4719 = vsel %vm4676, %v4555, %v4718
        %v4720 = vsel %vm4664, %v4561, %v4558
        %v4721 = vsel %vm4666, %v4564, %v4720
        %v4722 = vsel %vm4668, %v4567, %v4721
        %v4723 = vsel %vm4670, %v4570, %v4722
        %v4724 = vsel %vm4672, %v4573, %v4723
        %v4725 = vsel %vm4674, %v4576, %v4724
        %v4726 = vsel %vm4676, %v4579, %v4725
        %s4735 = scalar_lea.vmem [#allocation4], 16
        %4736 = vst.msk [vmem:[%s4735 + $0x1] sm:$0xff] %vm4387, %v4677
        %4737 = vst.msk [vmem:[%s4735 + $0x11] sm:$0xff] %vm4387, %v4684
        %4738 = vst.msk [vmem:[%s4735 + $0x21] sm:$0xff] %vm4387, %v4691
        %4739 = vst.msk [vmem:[%s4735 + $0x31] sm:$0xff] %vm4387, %v4698
        %4740 = vst.msk [vmem:[%s4735 + $0x41] sm:$0xff] %vm4387, %v4705
        %4741 = vst.msk [vmem:[%s4735 + $0x51] sm:$0xff] %vm4387, %v4712
        %4742 = vst.msk [vmem:[%s4735 + $0x61] sm:$0xff] %vm4387, %v4719
        %4743 = vst.msk [vmem:[%s4735 + $0x71] sm:$0xff] %vm4387, %v4726
        %v4744 = vld [vmem:[#allocation4] sm:$0xff]
        %v4745 = vld [vmem:[#allocation4 + $0x10] sm:$0xff]
        %v4746 = vld [vmem:[#allocation4 + $0x20] sm:$0xff]
        %v4747 = vld [vmem:[#allocation4 + $0x30] sm:$0xff]
        %v4748 = vld [vmem:[#allocation4 + $0x40] sm:$0xff]
        %v4749 = vld [vmem:[#allocation4 + $0x50] sm:$0xff]
        %v4750 = vld [vmem:[#allocation4 + $0x60] sm:$0xff]
        %v4751 = vld [vmem:[#allocation4 + $0x70] sm:$0xff]
        %4752 = vst.msk [vmem:[#allocation5] sm:$0xff] %vm4387, %v4744
        %4753 = vst.msk [vmem:[#allocation5 + $0x10] sm:$0xff] %vm4387, %v4745
        %4754 = vst.msk [vmem:[#allocation5 + $0x20] sm:$0xff] %vm4387, %v4746
        %4755 = vst.msk [vmem:[#allocation5 + $0x30] sm:$0xff] %vm4387, %v4747
        %4756 = vst.msk [vmem:[#allocation5 + $0x40] sm:$0xff] %vm4387, %v4748
        %4757 = vst.msk [vmem:[#allocation5 + $0x50] sm:$0xff] %vm4387, %v4749
        %4758 = vst.msk [vmem:[#allocation5 + $0x60] sm:$0xff] %vm4387, %v4750
        %4759 = vst.msk [vmem:[#allocation5 + $0x70] sm:$0xff] %vm4387, %v4751
        %v4760 = vld [vmem:[#allocation4 + $0x1] sm:$0xff]
        %v4761 = vld [vmem:[#allocation4 + $0x11] sm:$0xff]
        %v4762 = vld [vmem:[#allocation4 + $0x21] sm:$0xff]
        %v4763 = vld [vmem:[#allocation4 + $0x31] sm:$0xff]
        %v4764 = vld [vmem:[#allocation4 + $0x41] sm:$0xff]
        %v4765 = vld [vmem:[#allocation4 + $0x51] sm:$0xff]
        %v4766 = vld [vmem:[#allocation4 + $0x61] sm:$0xff]
        %v4767 = vld [vmem:[#allocation4 + $0x71] sm:$0xff]
        %4776 = vrot.lane.b32.xlu0 %v4760, 16
        %v4777 = vpop.permute.xlu0 %4776
        %4778 = vrot.lane.b32.xlu0 %v4761, 16
        %v4779 = vpop.permute.xlu0 %4778
        %4780 = vrot.lane.b32.xlu0 %v4762, 16
        %v4781 = vpop.permute.xlu0 %4780
        %4782 = vrot.lane.b32.xlu0 %v4763, 16
        %v4783 = vpop.permute.xlu0 %4782
        %4784 = vrot.lane.b32.xlu0 %v4764, 16
        %v4785 = vpop.permute.xlu0 %4784
        %4786 = vrot.lane.b32.xlu0 %v4765, 16
        %v4787 = vpop.permute.xlu0 %4786
        %4788 = vrot.lane.b32.xlu0 %v4766, 16
        %v4789 = vpop.permute.xlu0 %4788
        %4790 = vrot.lane.b32.xlu0 %v4767, 16
        %v4791 = vpop.permute.xlu0 %4790
        %vm4800 = vcmask 261248
        %4801 = vst.msk [vmem:[#allocation5] sm:$0xff] %vm4800, %v4777
        %4802 = vst.msk [vmem:[#allocation5 + $0x10] sm:$0xff] %vm4800, %v4779
        %4803 = vst.msk [vmem:[#allocation5 + $0x20] sm:$0xff] %vm4800, %v4781
        %4804 = vst.msk [vmem:[#allocation5 + $0x30] sm:$0xff] %vm4800, %v4783
        %4805 = vst.msk [vmem:[#allocation5 + $0x40] sm:$0xff] %vm4800, %v4785
        %4806 = vst.msk [vmem:[#allocation5 + $0x50] sm:$0xff] %vm4800, %v4787
        %4807 = vst.msk [vmem:[#allocation5 + $0x60] sm:$0xff] %vm4800, %v4789
        %4808 = vst.msk [vmem:[#allocation5 + $0x70] sm:$0xff] %vm4800, %v4791
        %v4809 = vld [vmem:[#allocation4 + $0x2] sm:$0xff]
        %v4810 = vld [vmem:[#allocation4 + $0x12] sm:$0xff]
        %v4811 = vld [vmem:[#allocation4 + $0x22] sm:$0xff]
        %v4812 = vld [vmem:[#allocation4 + $0x32] sm:$0xff]
        %v4813 = vld [vmem:[#allocation4 + $0x42] sm:$0xff]
        %v4814 = vld [vmem:[#allocation4 + $0x52] sm:$0xff]
        %v4815 = vld [vmem:[#allocation4 + $0x62] sm:$0xff]
        %v4816 = vld [vmem:[#allocation4 + $0x72] sm:$0xff]
        %4825 = vrot.lane.b32.xlu0 %v4809, 32
        %v4826 = vpop.permute.xlu0 %4825
        %4827 = vrot.lane.b32.xlu0 %v4810, 32
        %v4828 = vpop.permute.xlu0 %4827
        %4829 = vrot.lane.b32.xlu0 %v4811, 32
        %v4830 = vpop.permute.xlu0 %4829
        %4831 = vrot.lane.b32.xlu0 %v4812, 32
        %v4832 = vpop.permute.xlu0 %4831
        %4833 = vrot.lane.b32.xlu0 %v4813, 32
        %v4834 = vpop.permute.xlu0 %4833
        %4835 = vrot.lane.b32.xlu0 %v4814, 32
        %v4836 = vpop.permute.xlu0 %4835
        %4837 = vrot.lane.b32.xlu0 %v4815, 32
        %v4838 = vpop.permute.xlu0 %4837
        %4839 = vrot.lane.b32.xlu0 %v4816, 32
        %v4840 = vpop.permute.xlu0 %4839
        %vm4849 = vcmask 392448
        %4850 = vst.msk [vmem:[#allocation5] sm:$0xff] %vm4849, %v4826
        %4851 = vst.msk [vmem:[#allocation5 + $0x10] sm:$0xff] %vm4849, %v4828
        %4852 = vst.msk [vmem:[#allocation5 + $0x20] sm:$0xff] %vm4849, %v4830
        %4853 = vst.msk [vmem:[#allocation5 + $0x30] sm:$0xff] %vm4849, %v4832
        %4854 = vst.msk [vmem:[#allocation5 + $0x40] sm:$0xff] %vm4849, %v4834
        %4855 = vst.msk [vmem:[#allocation5 + $0x50] sm:$0xff] %vm4849, %v4836
        %4856 = vst.msk [vmem:[#allocation5 + $0x60] sm:$0xff] %vm4849, %v4838
        %4857 = vst.msk [vmem:[#allocation5 + $0x70] sm:$0xff] %vm4849, %v4840
        %v4858 = vld [vmem:[%s4735] sm:$0xff]
        %v4859 = vld [vmem:[%s4735 + $0x10] sm:$0xff]
        %v4860 = vld [vmem:[%s4735 + $0x20] sm:$0xff]
        %v4861 = vld [vmem:[%s4735 + $0x30] sm:$0xff]
        %v4862 = vld [vmem:[%s4735 + $0x40] sm:$0xff]
        %v4863 = vld [vmem:[%s4735 + $0x50] sm:$0xff]
        %v4864 = vld [vmem:[%s4735 + $0x60] sm:$0xff]
        %v4865 = vld [vmem:[%s4735 + $0x70] sm:$0xff]
        %4874 = vrot.lane.b32.xlu0 %v4858, 48
        %v4875 = vpop.permute.xlu0 %4874
        %4876 = vrot.lane.b32.xlu0 %v4859, 48
        %v4877 = vpop.permute.xlu0 %4876
        %4878 = vrot.lane.b32.xlu0 %v4860, 48
        %v4879 = vpop.permute.xlu0 %4878
        %4880 = vrot.lane.b32.xlu0 %v4861, 48
        %v4881 = vpop.permute.xlu0 %4880
        %4882 = vrot.lane.b32.xlu0 %v4862, 48
        %v4883 = vpop.permute.xlu0 %4882
        %4884 = vrot.lane.b32.xlu0 %v4863, 48
        %v4885 = vpop.permute.xlu0 %4884
        %4886 = vrot.lane.b32.xlu0 %v4864, 48
        %v4887 = vpop.permute.xlu0 %4886
        %4888 = vrot.lane.b32.xlu0 %v4865, 48
        %v4889 = vpop.permute.xlu0 %4888
        %vm4898 = vcmask 523648
        %4899 = vst.msk [vmem:[#allocation5] sm:$0xff] %vm4898, %v4875
        %4900 = vst.msk [vmem:[#allocation5 + $0x10] sm:$0xff] %vm4898, %v4877
        %4901 = vst.msk [vmem:[#allocation5 + $0x20] sm:$0xff] %vm4898, %v4879
        %4902 = vst.msk [vmem:[#allocation5 + $0x30] sm:$0xff] %vm4898, %v4881
        %4903 = vst.msk [vmem:[#allocation5 + $0x40] sm:$0xff] %vm4898, %v4883
        %4904 = vst.msk [vmem:[#allocation5 + $0x50] sm:$0xff] %vm4898, %v4885
        %4905 = vst.msk [vmem:[#allocation5 + $0x60] sm:$0xff] %vm4898, %v4887
        %4906 = vst.msk [vmem:[#allocation5 + $0x70] sm:$0xff] %vm4898, %v4889
        %v4907 = vld [vmem:[%s4735 + $0x1] sm:$0xff]
        %v4908 = vld [vmem:[%s4735 + $0x11] sm:$0xff]
        %v4909 = vld [vmem:[%s4735 + $0x21] sm:$0xff]
        %v4910 = vld [vmem:[%s4735 + $0x31] sm:$0xff]
        %v4911 = vld [vmem:[%s4735 + $0x41] sm:$0xff]
        %v4912 = vld [vmem:[%s4735 + $0x51] sm:$0xff]
        %v4913 = vld [vmem:[%s4735 + $0x61] sm:$0xff]
        %v4914 = vld [vmem:[%s4735 + $0x71] sm:$0xff]
        %4923 = vrot.lane.b32.xlu0 %v4907, 64
        %v4924 = vpop.permute.xlu0 %4923
        %4925 = vrot.lane.b32.xlu0 %v4908, 64
        %v4926 = vpop.permute.xlu0 %4925
        %4927 = vrot.lane.b32.xlu0 %v4909, 64
        %v4928 = vpop.permute.xlu0 %4927
        %4929 = vrot.lane.b32.xlu0 %v4910, 64
        %v4930 = vpop.permute.xlu0 %4929
        %4931 = vrot.lane.b32.xlu0 %v4911, 64
        %v4932 = vpop.permute.xlu0 %4931
        %4933 = vrot.lane.b32.xlu0 %v4912, 64
        %v4934 = vpop.permute.xlu0 %4933
        %4935 = vrot.lane.b32.xlu0 %v4913, 64
        %v4936 = vpop.permute.xlu0 %4935
        %4937 = vrot.lane.b32.xlu0 %v4914, 64
        %v4938 = vpop.permute.xlu0 %4937
        %vm4947 = vcmask 654848
        %4948 = vst.msk [vmem:[#allocation5] sm:$0xff] %vm4947, %v4924
        %4949 = vst.msk [vmem:[#allocation5 + $0x10] sm:$0xff] %vm4947, %v4926
        %4950 = vst.msk [vmem:[#allocation5 + $0x20] sm:$0xff] %vm4947, %v4928
        %4951 = vst.msk [vmem:[#allocation5 + $0x30] sm:$0xff] %vm4947, %v4930
        %4952 = vst.msk [vmem:[#allocation5 + $0x40] sm:$0xff] %vm4947, %v4932
        %4953 = vst.msk [vmem:[#allocation5 + $0x50] sm:$0xff] %vm4947, %v4934
        %4954 = vst.msk [vmem:[#allocation5 + $0x60] sm:$0xff] %vm4947, %v4936
        %4955 = vst.msk [vmem:[#allocation5 + $0x70] sm:$0xff] %vm4947, %v4938
        %v4956 = vld [vmem:[%s4735 + $0x2] sm:$0xff]
        %v4957 = vld [vmem:[%s4735 + $0x12] sm:$0xff]
        %v4958 = vld [vmem:[%s4735 + $0x22] sm:$0xff]
        %v4959 = vld [vmem:[%s4735 + $0x32] sm:$0xff]
        %v4960 = vld [vmem:[%s4735 + $0x42] sm:$0xff]
        %v4961 = vld [vmem:[%s4735 + $0x52] sm:$0xff]
        %v4962 = vld [vmem:[%s4735 + $0x62] sm:$0xff]
        %v4963 = vld [vmem:[%s4735 + $0x72] sm:$0xff]
        %4972 = vrot.lane.b32.xlu0 %v4956, 80
        %v4973 = vpop.permute.xlu0 %4972
        %4974 = vrot.lane.b32.xlu0 %v4957, 80
        %v4975 = vpop.permute.xlu0 %4974
        %4976 = vrot.lane.b32.xlu0 %v4958, 80
        %v4977 = vpop.permute.xlu0 %4976
        %4978 = vrot.lane.b32.xlu0 %v4959, 80
        %v4979 = vpop.permute.xlu0 %4978
        %4980 = vrot.lane.b32.xlu0 %v4960, 80
        %v4981 = vpop.permute.xlu0 %4980
        %4982 = vrot.lane.b32.xlu0 %v4961, 80
        %v4983 = vpop.permute.xlu0 %4982
        %4984 = vrot.lane.b32.xlu0 %v4962, 80
        %v4985 = vpop.permute.xlu0 %4984
        %4986 = vrot.lane.b32.xlu0 %v4963, 80
        %v4987 = vpop.permute.xlu0 %4986
        %vm4996 = vcmask 786048
        %4997 = vst.msk [vmem:[#allocation5] sm:$0xff] %vm4996, %v4973
        %4998 = vst.msk [vmem:[#allocation5 + $0x10] sm:$0xff] %vm4996, %v4975
        %4999 = vst.msk [vmem:[#allocation5 + $0x20] sm:$0xff] %vm4996, %v4977
        %5000 = vst.msk [vmem:[#allocation5 + $0x30] sm:$0xff] %vm4996, %v4979
        %5001 = vst.msk [vmem:[#allocation5 + $0x40] sm:$0xff] %vm4996, %v4981
        %5002 = vst.msk [vmem:[#allocation5 + $0x50] sm:$0xff] %vm4996, %v4983
        %5003 = vst.msk [vmem:[#allocation5 + $0x60] sm:$0xff] %vm4996, %v4985
        %5004 = vst.msk [vmem:[#allocation5 + $0x70] sm:$0xff] %vm4996, %v4987
        %s5005 = scalar_lea.vmem [#allocation4], 32
        %v5006 = vld [vmem:[%s5005] sm:$0xff]
        %v5007 = vld [vmem:[%s5005 + $0x10] sm:$0xff]
        %v5008 = vld [vmem:[%s5005 + $0x20] sm:$0xff]
        %v5009 = vld [vmem:[%s5005 + $0x30] sm:$0xff]
        %v5010 = vld [vmem:[%s5005 + $0x40] sm:$0xff]
        %v5011 = vld [vmem:[%s5005 + $0x50] sm:$0xff]
        %v5012 = vld [vmem:[%s5005 + $0x60] sm:$0xff]
        %v5013 = vld [vmem:[%s5005 + $0x70] sm:$0xff]
        %5022 = vrot.lane.b32.xlu0 %v5006, 96
        %v5023 = vpop.permute.xlu0 %5022
        %5024 = vrot.lane.b32.xlu0 %v5007, 96
        %v5025 = vpop.permute.xlu0 %5024
        %5026 = vrot.lane.b32.xlu0 %v5008, 96
        %v5027 = vpop.permute.xlu0 %5026
        %5028 = vrot.lane.b32.xlu0 %v5009, 96
        %v5029 = vpop.permute.xlu0 %5028
        %5030 = vrot.lane.b32.xlu0 %v5010, 96
        %v5031 = vpop.permute.xlu0 %5030
        %5032 = vrot.lane.b32.xlu0 %v5011, 96
        %v5033 = vpop.permute.xlu0 %5032
        %5034 = vrot.lane.b32.xlu0 %v5012, 96
        %v5035 = vpop.permute.xlu0 %5034
        %5036 = vrot.lane.b32.xlu0 %v5013, 96
        %v5037 = vpop.permute.xlu0 %5036
        %vm5046 = vcmask 917248
        %5047 = vst.msk [vmem:[#allocation5] sm:$0xff] %vm5046, %v5023
        %5048 = vst.msk [vmem:[#allocation5 + $0x10] sm:$0xff] %vm5046, %v5025
        %5049 = vst.msk [vmem:[#allocation5 + $0x20] sm:$0xff] %vm5046, %v5027
        %5050 = vst.msk [vmem:[#allocation5 + $0x30] sm:$0xff] %vm5046, %v5029
        %5051 = vst.msk [vmem:[#allocation5 + $0x40] sm:$0xff] %vm5046, %v5031
        %5052 = vst.msk [vmem:[#allocation5 + $0x50] sm:$0xff] %vm5046, %v5033
        %5053 = vst.msk [vmem:[#allocation5 + $0x60] sm:$0xff] %vm5046, %v5035
        %5054 = vst.msk [vmem:[#allocation5 + $0x70] sm:$0xff] %vm5046, %v5037
        %v5055 = vld [vmem:[%s5005 + $0x1] sm:$0xff]
        %v5056 = vld [vmem:[%s5005 + $0x11] sm:$0xff]
        %v5057 = vld [vmem:[%s5005 + $0x21] sm:$0xff]
        %v5058 = vld [vmem:[%s5005 + $0x31] sm:$0xff]
        %v5059 = vld [vmem:[%s5005 + $0x41] sm:$0xff]
        %v5060 = vld [vmem:[%s5005 + $0x51] sm:$0xff]
        %v5061 = vld [vmem:[%s5005 + $0x61] sm:$0xff]
        %v5062 = vld [vmem:[%s5005 + $0x71] sm:$0xff]
        %5071 = vrot.lane.b32.xlu0 %v5055, 112
        %v5072 = vpop.permute.xlu0 %5071
        %5073 = vrot.lane.b32.xlu0 %v5056, 112
        %v5074 = vpop.permute.xlu0 %5073
        %5075 = vrot.lane.b32.xlu0 %v5057, 112
        %v5076 = vpop.permute.xlu0 %5075
        %5077 = vrot.lane.b32.xlu0 %v5058, 112
        %v5078 = vpop.permute.xlu0 %5077
        %5079 = vrot.lane.b32.xlu0 %v5059, 112
        %v5080 = vpop.permute.xlu0 %5079
        %5081 = vrot.lane.b32.xlu0 %v5060, 112
        %v5082 = vpop.permute.xlu0 %5081
        %5083 = vrot.lane.b32.xlu0 %v5061, 112
        %v5084 = vpop.permute.xlu0 %5083
        %5085 = vrot.lane.b32.xlu0 %v5062, 112
        %v5086 = vpop.permute.xlu0 %5085
        %vm5095 = vcmask 1048448
        %5096 = vst.msk [vmem:[#allocation5] sm:$0xff] %vm5095, %v5072
        %5097 = vst.msk [vmem:[#allocation5 + $0x10] sm:$0xff] %vm5095, %v5074
        %5098 = vst.msk [vmem:[#allocation5 + $0x20] sm:$0xff] %vm5095, %v5076
        %5099 = vst.msk [vmem:[#allocation5 + $0x30] sm:$0xff] %vm5095, %v5078
        %5100 = vst.msk [vmem:[#allocation5 + $0x40] sm:$0xff] %vm5095, %v5080
        %5101 = vst.msk [vmem:[#allocation5 + $0x50] sm:$0xff] %vm5095, %v5082
        %5102 = vst.msk [vmem:[#allocation5 + $0x60] sm:$0xff] %vm5095, %v5084
        %5103 = vst.msk [vmem:[#allocation5 + $0x70] sm:$0xff] %vm5095, %v5086
        %v5104 = vld [vmem:[%s5005 + $0x2] sm:$0xff]
        %v5105 = vld [vmem:[%s5005 + $0x12] sm:$0xff]
        %v5106 = vld [vmem:[%s5005 + $0x22] sm:$0xff]
        %v5107 = vld [vmem:[%s5005 + $0x32] sm:$0xff]
        %v5108 = vld [vmem:[%s5005 + $0x42] sm:$0xff]
        %v5109 = vld [vmem:[%s5005 + $0x52] sm:$0xff]
        %v5110 = vld [vmem:[%s5005 + $0x62] sm:$0xff]
        %v5111 = vld [vmem:[%s5005 + $0x72] sm:$0xff]
        %5112 = vst.msk [vmem:[#allocation5 + $0x8] sm:$0xff] %vm4387, %v5104
        %5113 = vst.msk [vmem:[#allocation5 + $0x18] sm:$0xff] %vm4387, %v5105
        %5114 = vst.msk [vmem:[#allocation5 + $0x28] sm:$0xff] %vm4387, %v5106
        %5115 = vst.msk [vmem:[#allocation5 + $0x38] sm:$0xff] %vm4387, %v5107
        %5116 = vst.msk [vmem:[#allocation5 + $0x48] sm:$0xff] %vm4387, %v5108
        %5117 = vst.msk [vmem:[#allocation5 + $0x58] sm:$0xff] %vm4387, %v5109
        %5118 = vst.msk [vmem:[#allocation5 + $0x68] sm:$0xff] %vm4387, %v5110
        %5119 = vst.msk [vmem:[#allocation5 + $0x78] sm:$0xff] %vm4387, %v5111
        %v5120 = vld [vmem:[#allocation5] sm:$0xff]
        %v5121 = vld [vmem:[#allocation5 + $0x8] sm:$0xff]
        %v5122 = vld [vmem:[#allocation5 + $0x10] sm:$0xff]
        %v5123 = vld [vmem:[#allocation5 + $0x18] sm:$0xff]
        %v5124 = vld [vmem:[#allocation5 + $0x20] sm:$0xff]
        %v5125 = vld [vmem:[#allocation5 + $0x28] sm:$0xff]
        %v5126 = vld [vmem:[#allocation5 + $0x30] sm:$0xff]
        %v5127 = vld [vmem:[#allocation5 + $0x38] sm:$0xff]
        %v5128 = vld [vmem:[#allocation5 + $0x40] sm:$0xff]
        %v5129 = vld [vmem:[#allocation5 + $0x48] sm:$0xff]
        %v5130 = vld [vmem:[#allocation5 + $0x50] sm:$0xff]
        %v5131 = vld [vmem:[#allocation5 + $0x58] sm:$0xff]
        %v5132 = vld [vmem:[#allocation5 + $0x60] sm:$0xff]
        %v5133 = vld [vmem:[#allocation5 + $0x68] sm:$0xff]
        %v5134 = vld [vmem:[#allocation5 + $0x70] sm:$0xff]
        %v5135 = vld [vmem:[#allocation5 + $0x78] sm:$0xff]
        %v5136 = vld [vmem:[%s4] sm:$0xff]
        %v5137 = vld [vmem:[%s4 + $0x8] sm:$0xff]
        %v5138 = vld [vmem:[%s4 + $0x10] sm:$0xff]
        %v5139 = vld [vmem:[%s4 + $0x18] sm:$0xff]
        %v5140 = vld [vmem:[%s4 + $0x20] sm:$0xff]
        %v5141 = vld [vmem:[%s4 + $0x28] sm:$0xff]
        %v5142 = vld [vmem:[%s4 + $0x30] sm:$0xff]
        %v5143 = vld [vmem:[%s4 + $0x38] sm:$0xff]
        %v5144 = vld [vmem:[%s4 + $0x40] sm:$0xff]
        %v5145 = vld [vmem:[%s4 + $0x48] sm:$0xff]
        %v5146 = vld [vmem:[%s4 + $0x50] sm:$0xff]
        %v5147 = vld [vmem:[%s4 + $0x58] sm:$0xff]
        %v5148 = vld [vmem:[%s4 + $0x60] sm:$0xff]
        %v5149 = vld [vmem:[%s4 + $0x68] sm:$0xff]
        %v5150 = vld [vmem:[%s4 + $0x70] sm:$0xff]
        %v5151 = vld [vmem:[%s4 + $0x78] sm:$0xff]
        %v5152 = vld [vmem:[%s4 + $0x80] sm:$0xff]
        %v5153 = vld [vmem:[%s4 + $0x88] sm:$0xff]
        %v5155 = vsel %vm4387, %v5121, 0
        %v5158 = vsel %vm4387, %v5123, 0
        %v5161 = vsel %vm4387, %v5125, 0
        %v5164 = vsel %vm4387, %v5127, 0
        %v5167 = vsel %vm4387, %v5129, 0
        %v5170 = vsel %vm4387, %v5131, 0
        %v5173 = vsel %vm4387, %v5133, 0
        %v5176 = vsel %vm4387, %v5135, 0
        %5178 = vmatprep.subr.mxu0 0.0
        %5179 = vmatpush1.msra.mxu0 %v5136
        %5180 = vmatprep.subr.mxu0 0.0
        %5181 = vmatpush1.msra.mxu0 %v5137
        %5182 = vmatprep.subr.mxu0 0.0
        %5183 = vmatpush1.msra.mxu0 %v5138
        %5184 = vmatprep.subr.mxu0 0.0
        %5185 = vmatpush1.msra.mxu0 %v5139
        %5186 = vmatprep.subr.mxu0 0.0
        %5187 = vmatpush1.msra.mxu0 %v5140
        %5188 = vmatprep.subr.mxu0 0.0
        %5189 = vmatpush1.msra.mxu0 %v5141
        %5190 = vmatprep.subr.mxu0 0.0
        %5191 = vmatpush1.msra.mxu0 %v5142
        %5192 = vmatprep.subr.mxu0 0.0
        %5193 = vmatpush1.msra.mxu0 %v5143
        %5194 = vmatprep.subr.mxu0 0.0
        %5195 = vmatpush1.msra.mxu0 %v5144
        %5196 = vmatprep.subr.mxu0 0.0
        %5197 = vmatpush1.msra.mxu0 %v5145
        %5198 = vmatprep.subr.mxu0 0.0
        %5199 = vmatpush1.msra.mxu0 %v5146
        %5200 = vmatprep.subr.mxu0 0.0
        %5201 = vmatpush1.msra.mxu0 %v5147
        %5202 = vmatprep.subr.mxu0 0.0
        %5203 = vmatpush1.msra.mxu0 %v5148
        %5204 = vmatprep.subr.mxu0 0.0
        %5205 = vmatpush1.msra.mxu0 %v5149
        %5206 = vmatprep.subr.mxu0 0.0
        %5207 = vmatpush1.msra.mxu0 %v5150
        %5208 = vmatprep.subr.mxu0 0.0
        %5209 = vmatpush1.msra.mxu0 %v5151
        %5210 = vmatprep.subr.mxu0 0.0
        %5211 = vmatpush1.msra.mxu0 %v5152
        %5212 = vmatprep.subr.mxu0 0.0
        %5213 = vmatpush1.msra.mxu0 %v5153
        %5214 = vmatprep.subr.mxu0 0.0
        %5215 = vmatpush1.msra.mxu0 0.0
        %5216 = vmatprep.subr.mxu0 0.0
        %5217 = vmatpush1.msra.mxu0 0.0
        %5218 = vmatprep.subr.mxu0 0.0
        %5219 = vmatpush1.msra.mxu0 0.0
        %5220 = vmatprep.subr.mxu0 0.0
        %5221 = vmatpush1.msra.mxu0 0.0
        %5222 = vmatprep.subr.mxu0 0.0
        %5223 = vmatpush1.msra.mxu0 0.0
        %5224 = vmatprep.subr.mxu0 0.0
        %5225 = vmatpush1.msra.mxu0 0.0
        %5226 = vmatprep.subr.mxu0 0.0
        %5227 = vmatpush1.msra.mxu0 0.0
        %5228 = vmatprep.subr.mxu0 0.0
        %5229 = vmatpush1.msra.mxu0 0.0
        %5230 = vmatprep.subr.mxu0 0.0
        %5231 = vmatpush1.msra.mxu0 0.0
        %5232 = vmatprep.subr.mxu0 0.0
        %5233 = vmatpush1.msra.mxu0 0.0
        %5234 = vmatprep.subr.mxu0 0.0
        %5235 = vmatpush1.msra.mxu0 0.0
        %5236 = vmatprep.subr.mxu0 0.0
        %5237 = vmatpush1.msra.mxu0 0.0
        %5238 = vmatprep.subr.mxu0 0.0
        %5239 = vmatpush1.msra.mxu0 0.0
        %5240 = vmatprep.subr.mxu0 0.0
        %5241 = vmatpush1.msra.mxu0 0.0
        %5242 = vmatprep.mubr.f32.mxu0 %v5155
        %5243 = vmatmul.mubr.f32.gmra.mrb[0].mxu0 %v5120
        %v5244 = vpop.f32.mrb[0].mxu0
        %v5245 = vadd.f32 0.0, %v5244
        %v5246 = vpop.f32.mrb[0].mxu0
        %5247 = vmatprep.mubr.f32.mxu0 %v5158
        %5248 = vmatmul.mubr.f32.gmra.mrb[0].mxu0 %v5122
        %v5249 = vpop.f32.mrb[0].mxu0
        %v5250 = vadd.f32 0.0, %v5249
        %v5251 = vpop.f32.mrb[0].mxu0
        %5252 = vmatprep.mubr.f32.mxu0 %v5161
        %5253 = vmatmul.mubr.f32.gmra.mrb[0].mxu0 %v5124
        %v5254 = vpop.f32.mrb[0].mxu0
        %v5255 = vadd.f32 0.0, %v5254
        %v5256 = vpop.f32.mrb[0].mxu0
        %5257 = vmatprep.mubr.f32.mxu0 %v5164
        %5258 = vmatmul.mubr.f32.gmra.mrb[0].mxu0 %v5126
        %v5259 = vpop.f32.mrb[0].mxu0
        %v5260 = vadd.f32 0.0, %v5259
        %v5261 = vpop.f32.mrb[0].mxu0
        %5262 = vmatprep.mubr.f32.mxu0 %v5167
        %5263 = vmatmul.mubr.f32.gmra.mrb[0].mxu0 %v5128
        %v5264 = vpop.f32.mrb[0].mxu0
        %v5265 = vadd.f32 0.0, %v5264
        %v5266 = vpop.f32.mrb[0].mxu0
        %5267 = vmatprep.mubr.f32.mxu0 %v5170
        %5268 = vmatmul.mubr.f32.gmra.mrb[0].mxu0 %v5130
        %v5269 = vpop.f32.mrb[0].mxu0
        %v5270 = vadd.f32 0.0, %v5269
        %v5271 = vpop.f32.mrb[0].mxu0
        %5272 = vmatprep.mubr.f32.mxu0 %v5173
        %5273 = vmatmul.mubr.f32.gmra.mrb[0].mxu0 %v5132
        %v5274 = vpop.f32.mrb[0].mxu0
        %v5275 = vadd.f32 0.0, %v5274
        %v5276 = vpop.f32.mrb[0].mxu0
        %5277 = vmatprep.mubr.f32.mxu0 %v5176
        %5278 = vmatmul.mubr.f32.gmra.mrb[0].mxu0 %v5134
        %v5279 = vpop.f32.mrb[0].mxu0
        %v5280 = vadd.f32 0.0, %v5279
        %v5281 = vpop.f32.mrb[0].mxu0
        %5282 = vdwg.mxu0
        %v5283 = vld [vmem:[%s5] sm:$0x1]
        %v5285 = vlaneseq
        %v5286 = vshrl.u32 %v5285, 7
        %v5287 = vsub.s32 0, %v5286
        %v5288 = vrot.slane %v5283, %v5287
        %v5290 = vmul.f32 %v5245, %v5288
        %v5291 = vmul.f32 %v5250, %v5288
        %v5292 = vmul.f32 %v5255, %v5288
        %v5293 = vmul.f32 %v5260, %v5288
        %v5294 = vmul.f32 %v5265, %v5288
        %v5295 = vmul.f32 %v5270, %v5288
        %v5296 = vmul.f32 %v5275, %v5288
        %v5297 = vmul.f32 %v5280, %v5288
        %v5298 = vld [vmem:[%s6] sm:$0x1]
        %v5300 = vlaneseq
        %v5301 = vshrl.u32 %v5300, 7
        %v5302 = vsub.s32 0, %v5301
        %v5303 = vrot.slane %v5298, %v5302
        %v5305 = vadd.f32 %v5290, %v5303
        %v5306 = vadd.f32 %v5291, %v5303
        %v5307 = vadd.f32 %v5292, %v5303
        %v5308 = vadd.f32 %v5293, %v5303
        %v5309 = vadd.f32 %v5294, %v5303
        %v5310 = vadd.f32 %v5295, %v5303
        %v5311 = vadd.f32 %v5296, %v5303
        %v5312 = vadd.f32 %v5297, %v5303
        %v5313 = vmax.f32 %v5305, 0.0
        %v5314 = vmax.f32 %v5306, 0.0
        %v5315 = vmax.f32 %v5307, 0.0
        %v5316 = vmax.f32 %v5308, 0.0
        %v5317 = vmax.f32 %v5309, 0.0
        %v5318 = vmax.f32 %v5310, 0.0
        %v5319 = vmax.f32 %v5311, 0.0
        %v5320 = vmax.f32 %v5312, 0.0
        %v5329 = vcombine.high %v5313, %v5313
        %v5331 = vunpack.c.l.s4 1983009808
        %v5332 = vunpack.c.0.s8 %v5331
        %v5333 = vlaneseq
        %v5334 = vshrl.u32 %v5333, 7
        %v5335 = vsub.s32 %v5332, %v5334
        %v5336 = vrot.slane %v5313, %v5335
        %v5338 = vunpack.c.l.s4 1983009808
        %v5339 = vunpack.c.0.s8 %v5338
        %v5340 = vlaneseq
        %v5341 = vshrl.u32 %v5340, 7
        %v5342 = vsub.s32 %v5339, %v5341
        %v5343 = vrot.slane %v5329, %v5342
        %v5344 = vcombine.high %v5336, %v5336
        %v5345 = vcombine.high %v5343, %v5343
        %v5346 = vcombine.high %v5314, %v5314
        %v5348 = vunpack.c.l.s4 1983009808
        %v5349 = vunpack.c.0.s8 %v5348
        %v5350 = vlaneseq
        %v5351 = vshrl.u32 %v5350, 7
        %v5352 = vsub.s32 %v5349, %v5351
        %v5353 = vrot.slane %v5314, %v5352
        %v5355 = vunpack.c.l.s4 1983009808
        %v5356 = vunpack.c.0.s8 %v5355
        %v5357 = vlaneseq
        %v5358 = vshrl.u32 %v5357, 7
        %v5359 = vsub.s32 %v5356, %v5358
        %v5360 = vrot.slane %v5346, %v5359
        %v5361 = vcombine.high %v5353, %v5353
        %v5362 = vcombine.high %v5360, %v5360
        %v5363 = vcombine.high %v5315, %v5315
        %v5365 = vunpack.c.l.s4 1983009808
        %v5366 = vunpack.c.0.s8 %v5365
        %v5367 = vlaneseq
        %v5368 = vshrl.u32 %v5367, 7
        %v5369 = vsub.s32 %v5366, %v5368
        %v5370 = vrot.slane %v5315, %v5369
        %v5372 = vunpack.c.l.s4 1983009808
        %v5373 = vunpack.c.0.s8 %v5372
        %v5374 = vlaneseq
        %v5375 = vshrl.u32 %v5374, 7
        %v5376 = vsub.s32 %v5373, %v5375
        %v5377 = vrot.slane %v5363, %v5376
        %v5378 = vcombine.high %v5370, %v5370
        %v5379 = vcombine.high %v5377, %v5377
        %v5380 = vcombine.high %v5316, %v5316
        %v5382 = vunpack.c.l.s4 1983009808
        %v5383 = vunpack.c.0.s8 %v5382
        %v5384 = vlaneseq
        %v5385 = vshrl.u32 %v5384, 7
        %v5386 = vsub.s32 %v5383, %v5385
        %v5387 = vrot.slane %v5316, %v5386
        %v5389 = vunpack.c.l.s4 1983009808
        %v5390 = vunpack.c.0.s8 %v5389
        %v5391 = vlaneseq
        %v5392 = vshrl.u32 %v5391, 7
        %v5393 = vsub.s32 %v5390, %v5392
        %v5394 = vrot.slane %v5380, %v5393
        %v5395 = vcombine.high %v5387, %v5387
        %v5396 = vcombine.high %v5394, %v5394
        %v5397 = vcombine.high %v5317, %v5317
        %v5399 = vunpack.c.l.s4 1983009808
        %v5400 = vunpack.c.0.s8 %v5399
        %v5401 = vlaneseq
        %v5402 = vshrl.u32 %v5401, 7
        %v5403 = vsub.s32 %v5400, %v5402
        %v5404 = vrot.slane %v5317, %v5403
        %v5406 = vunpack.c.l.s4 1983009808
        %v5407 = vunpack.c.0.s8 %v5406
        %v5408 = vlaneseq
        %v5409 = vshrl.u32 %v5408, 7
        %v5410 = vsub.s32 %v5407, %v5409
        %v5411 = vrot.slane %v5397, %v5410
        %v5412 = vcombine.high %v5404, %v5404
        %v5413 = vcombine.high %v5411, %v5411
        %v5414 = vcombine.high %v5318, %v5318
        %v5416 = vunpack.c.l.s4 1983009808
        %v5417 = vunpack.c.0.s8 %v5416
        %v5418 = vlaneseq
        %v5419 = vshrl.u32 %v5418, 7
        %v5420 = vsub.s32 %v5417, %v5419
        %v5421 = vrot.slane %v5318, %v5420
        %v5423 = vunpack.c.l.s4 1983009808
        %v5424 = vunpack.c.0.s8 %v5423
        %v5425 = vlaneseq
        %v5426 = vshrl.u32 %v5425, 7
        %v5427 = vsub.s32 %v5424, %v5426
        %v5428 = vrot.slane %v5414, %v5427
        %v5429 = vcombine.high %v5421, %v5421
        %v5430 = vcombine.high %v5428, %v5428
        %v5431 = vcombine.high %v5319, %v5319
        %v5433 = vunpack.c.l.s4 1983009808
        %v5434 = vunpack.c.0.s8 %v5433
        %v5435 = vlaneseq
        %v5436 = vshrl.u32 %v5435, 7
        %v5437 = vsub.s32 %v5434, %v5436
        %v5438 = vrot.slane %v5319, %v5437
        %v5440 = vunpack.c.l.s4 1983009808
        %v5441 = vunpack.c.0.s8 %v5440
        %v5442 = vlaneseq
        %v5443 = vshrl.u32 %v5442, 7
        %v5444 = vsub.s32 %v5441, %v5443
        %v5445 = vrot.slane %v5431, %v5444
        %v5446 = vcombine.high %v5438, %v5438
        %v5447 = vcombine.high %v5445, %v5445
        %v5448 = vcombine.high %v5320, %v5320
        %v5450 = vunpack.c.l.s4 1983009808
        %v5451 = vunpack.c.0.s8 %v5450
        %v5452 = vlaneseq
        %v5453 = vshrl.u32 %v5452, 7
        %v5454 = vsub.s32 %v5451, %v5453
        %v5455 = vrot.slane %v5320, %v5454
        %v5457 = vunpack.c.l.s4 1983009808
        %v5458 = vunpack.c.0.s8 %v5457
        %v5459 = vlaneseq
        %v5460 = vshrl.u32 %v5459, 7
        %v5461 = vsub.s32 %v5458, %v5460
        %v5462 = vrot.slane %v5448, %v5461
        %v5463 = vcombine.high %v5455, %v5455
        %v5464 = vcombine.high %v5462, %v5462
        %vm5497 = vcmask 254976
        %v5498 = vsel %vm5497, %v5336, -inf
        %v5499 = vrot.slane %v5498, 4
        %v5500 = vmax.f32 %v5498, %v5499
        %v5501 = vrot.slane %v5500, 2
        %v5502 = vmax.f32 %v5500, %v5501
        %v5503 = vrot.slane %v5502, 1
        %v5504 = vmax.f32 %v5502, %v5503
        %v5505 = vsel %vm5497, %v5344, -inf
        %v5506 = vrot.slane %v5505, 4
        %v5507 = vmax.f32 %v5505, %v5506
        %v5508 = vrot.slane %v5507, 2
        %v5509 = vmax.f32 %v5507, %v5508
        %v5510 = vrot.slane %v5509, 1
        %v5511 = vmax.f32 %v5509, %v5510
        %v5512 = vsel %vm5497, %v5343, -inf
        %v5513 = vrot.slane %v5512, 4
        %v5514 = vmax.f32 %v5512, %v5513
        %v5515 = vrot.slane %v5514, 2
        %v5516 = vmax.f32 %v5514, %v5515
        %v5517 = vrot.slane %v5516, 1
        %v5518 = vmax.f32 %v5516, %v5517
        %v5519 = vsel %vm5497, %v5345, -inf
        %v5520 = vrot.slane %v5519, 4
        %v5521 = vmax.f32 %v5519, %v5520
        %v5522 = vrot.slane %v5521, 2
        %v5523 = vmax.f32 %v5521, %v5522
        %v5524 = vrot.slane %v5523, 1
        %v5525 = vmax.f32 %v5523, %v5524
        %v5526 = vsel %vm5497, %v5353, -inf
        %v5527 = vrot.slane %v5526, 4
        %v5528 = vmax.f32 %v5526, %v5527
        %v5529 = vrot.slane %v5528, 2
        %v5530 = vmax.f32 %v5528, %v5529
        %v5531 = vrot.slane %v5530, 1
        %v5532 = vmax.f32 %v5530, %v5531
        %v5533 = vsel %vm5497, %v5361, -inf
        %v5534 = vrot.slane %v5533, 4
        %v5535 = vmax.f32 %v5533, %v5534
        %v5536 = vrot.slane %v5535, 2
        %v5537 = vmax.f32 %v5535, %v5536
        %v5538 = vrot.slane %v5537, 1
        %v5539 = vmax.f32 %v5537, %v5538
        %v5540 = vsel %vm5497, %v5360, -inf
        %v5541 = vrot.slane %v5540, 4
        %v5542 = vmax.f32 %v5540, %v5541
        %v5543 = vrot.slane %v5542, 2
        %v5544 = vmax.f32 %v5542, %v5543
        %v5545 = vrot.slane %v5544, 1
        %v5546 = vmax.f32 %v5544, %v5545
        %v5547 = vsel %vm5497, %v5362, -inf
        %v5548 = vrot.slane %v5547, 4
        %v5549 = vmax.f32 %v5547, %v5548
        %v5550 = vrot.slane %v5549, 2
        %v5551 = vmax.f32 %v5549, %v5550
        %v5552 = vrot.slane %v5551, 1
        %v5553 = vmax.f32 %v5551, %v5552
        %v5554 = vsel %vm5497, %v5370, -inf
        %v5555 = vrot.slane %v5554, 4
        %v5556 = vmax.f32 %v5554, %v5555
        %v5557 = vrot.slane %v5556, 2
        %v5558 = vmax.f32 %v5556, %v5557
        %v5559 = vrot.slane %v5558, 1
        %v5560 = vmax.f32 %v5558, %v5559
        %v5561 = vsel %vm5497, %v5378, -inf
        %v5562 = vrot.slane %v5561, 4
        %v5563 = vmax.f32 %v5561, %v5562
        %v5564 = vrot.slane %v5563, 2
        %v5565 = vmax.f32 %v5563, %v5564
        %v5566 = vrot.slane %v5565, 1
        %v5567 = vmax.f32 %v5565, %v5566
        %v5568 = vsel %vm5497, %v5377, -inf
        %v5569 = vrot.slane %v5568, 4
        %v5570 = vmax.f32 %v5568, %v5569
        %v5571 = vrot.slane %v5570, 2
        %v5572 = vmax.f32 %v5570, %v5571
        %v5573 = vrot.slane %v5572, 1
        %v5574 = vmax.f32 %v5572, %v5573
        %v5575 = vsel %vm5497, %v5379, -inf
        %v5576 = vrot.slane %v5575, 4
        %v5577 = vmax.f32 %v5575, %v5576
        %v5578 = vrot.slane %v5577, 2
        %v5579 = vmax.f32 %v5577, %v5578
        %v5580 = vrot.slane %v5579, 1
        %v5581 = vmax.f32 %v5579, %v5580
        %v5582 = vsel %vm5497, %v5387, -inf
        %v5583 = vrot.slane %v5582, 4
        %v5584 = vmax.f32 %v5582, %v5583
        %v5585 = vrot.slane %v5584, 2
        %v5586 = vmax.f32 %v5584, %v5585
        %v5587 = vrot.slane %v5586, 1
        %v5588 = vmax.f32 %v5586, %v5587
        %v5589 = vsel %vm5497, %v5395, -inf
        %v5590 = vrot.slane %v5589, 4
        %v5591 = vmax.f32 %v5589, %v5590
        %v5592 = vrot.slane %v5591, 2
        %v5593 = vmax.f32 %v5591, %v5592
        %v5594 = vrot.slane %v5593, 1
        %v5595 = vmax.f32 %v5593, %v5594
        %v5596 = vsel %vm5497, %v5394, -inf
        %v5597 = vrot.slane %v5596, 4
        %v5598 = vmax.f32 %v5596, %v5597
        %v5599 = vrot.slane %v5598, 2
        %v5600 = vmax.f32 %v5598, %v5599
        %v5601 = vrot.slane %v5600, 1
        %v5602 = vmax.f32 %v5600, %v5601
        %v5603 = vsel %vm5497, %v5396, -inf
        %v5604 = vrot.slane %v5603, 4
        %v5605 = vmax.f32 %v5603, %v5604
        %v5606 = vrot.slane %v5605, 2
        %v5607 = vmax.f32 %v5605, %v5606
        %v5608 = vrot.slane %v5607, 1
        %v5609 = vmax.f32 %v5607, %v5608
        %v5610 = vsel %vm5497, %v5404, -inf
        %v5611 = vrot.slane %v5610, 4
        %v5612 = vmax.f32 %v5610, %v5611
        %v5613 = vrot.slane %v5612, 2
        %v5614 = vmax.f32 %v5612, %v5613
        %v5615 = vrot.slane %v5614, 1
        %v5616 = vmax.f32 %v5614, %v5615
        %v5617 = vsel %vm5497, %v5412, -inf
        %v5618 = vrot.slane %v5617, 4
        %v5619 = vmax.f32 %v5617, %v5618
        %v5620 = vrot.slane %v5619, 2
        %v5621 = vmax.f32 %v5619, %v5620
        %v5622 = vrot.slane %v5621, 1
        %v5623 = vmax.f32 %v5621, %v5622
        %v5624 = vsel %vm5497, %v5411, -inf
        %v5625 = vrot.slane %v5624, 4
        %v5626 = vmax.f32 %v5624, %v5625
        %v5627 = vrot.slane %v5626, 2
        %v5628 = vmax.f32 %v5626, %v5627
        %v5629 = vrot.slane %v5628, 1
        %v5630 = vmax.f32 %v5628, %v5629
        %v5631 = vsel %vm5497, %v5413, -inf
        %v5632 = vrot.slane %v5631, 4
        %v5633 = vmax.f32 %v5631, %v5632
        %v5634 = vrot.slane %v5633, 2
        %v5635 = vmax.f32 %v5633, %v5634
        %v5636 = vrot.slane %v5635, 1
        %v5637 = vmax.f32 %v5635, %v5636
        %v5638 = vsel %vm5497, %v5421, -inf
        %v5639 = vrot.slane %v5638, 4
        %v5640 = vmax.f32 %v5638, %v5639
        %v5641 = vrot.slane %v5640, 2
        %v5642 = vmax.f32 %v5640, %v5641
        %v5643 = vrot.slane %v5642, 1
        %v5644 = vmax.f32 %v5642, %v5643
        %v5645 = vsel %vm5497, %v5429, -inf
        %v5646 = vrot.slane %v5645, 4
        %v5647 = vmax.f32 %v5645, %v5646
        %v5648 = vrot.slane %v5647, 2
        %v5649 = vmax.f32 %v5647, %v5648
        %v5650 = vrot.slane %v5649, 1
        %v5651 = vmax.f32 %v5649, %v5650
        %v5652 = vsel %vm5497, %v5428, -inf
        %v5653 = vrot.slane %v5652, 4
        %v5654 = vmax.f32 %v5652, %v5653
        %v5655 = vrot.slane %v5654, 2
        %v5656 = vmax.f32 %v5654, %v5655
        %v5657 = vrot.slane %v5656, 1
        %v5658 = vmax.f32 %v5656, %v5657
        %v5659 = vsel %vm5497, %v5430, -inf
        %v5660 = vrot.slane %v5659, 4
        %v5661 = vmax.f32 %v5659, %v5660
        %v5662 = vrot.slane %v5661, 2
        %v5663 = vmax.f32 %v5661, %v5662
        %v5664 = vrot.slane %v5663, 1
        %v5665 = vmax.f32 %v5663, %v5664
        %v5666 = vsel %vm5497, %v5438, -inf
        %v5667 = vrot.slane %v5666, 4
        %v5668 = vmax.f32 %v5666, %v5667
        %v5669 = vrot.slane %v5668, 2
        %v5670 = vmax.f32 %v5668, %v5669
        %v5671 = vrot.slane %v5670, 1
        %v5672 = vmax.f32 %v5670, %v5671
        %v5673 = vsel %vm5497, %v5446, -inf
        %v5674 = vrot.slane %v5673, 4
        %v5675 = vmax.f32 %v5673, %v5674
        %v5676 = vrot.slane %v5675, 2
        %v5677 = vmax.f32 %v5675, %v5676
        %v5678 = vrot.slane %v5677, 1
        %v5679 = vmax.f32 %v5677, %v5678
        %v5680 = vsel %vm5497, %v5445, -inf
        %v5681 = vrot.slane %v5680, 4
        %v5682 = vmax.f32 %v5680, %v5681
        %v5683 = vrot.slane %v5682, 2
        %v5684 = vmax.f32 %v5682, %v5683
        %v5685 = vrot.slane %v5684, 1
        %v5686 = vmax.f32 %v5684, %v5685
        %v5687 = vsel %vm5497, %v5447, -inf
        %v5688 = vrot.slane %v5687, 4
        %v5689 = vmax.f32 %v5687, %v5688
        %v5690 = vrot.slane %v5689, 2
        %v5691 = vmax.f32 %v5689, %v5690
        %v5692 = vrot.slane %v5691, 1
        %v5693 = vmax.f32 %v5691, %v5692
        %v5694 = vsel %vm5497, %v5455, -inf
        %v5695 = vrot.slane %v5694, 4
        %v5696 = vmax.f32 %v5694, %v5695
        %v5697 = vrot.slane %v5696, 2
        %v5698 = vmax.f32 %v5696, %v5697
        %v5699 = vrot.slane %v5698, 1
        %v5700 = vmax.f32 %v5698, %v5699
        %v5701 = vsel %vm5497, %v5463, -inf
        %v5702 = vrot.slane %v5701, 4
        %v5703 = vmax.f32 %v5701, %v5702
        %v5704 = vrot.slane %v5703, 2
        %v5705 = vmax.f32 %v5703, %v5704
        %v5706 = vrot.slane %v5705, 1
        %v5707 = vmax.f32 %v5705, %v5706
        %v5708 = vsel %vm5497, %v5462, -inf
        %v5709 = vrot.slane %v5708, 4
        %v5710 = vmax.f32 %v5708, %v5709
        %v5711 = vrot.slane %v5710, 2
        %v5712 = vmax.f32 %v5710, %v5711
        %v5713 = vrot.slane %v5712, 1
        %v5714 = vmax.f32 %v5712, %v5713
        %v5715 = vsel %vm5497, %v5464, -inf
        %v5716 = vrot.slane %v5715, 4
        %v5717 = vmax.f32 %v5715, %v5716
        %v5718 = vrot.slane %v5717, 2
        %v5719 = vmax.f32 %v5717, %v5718
        %v5720 = vrot.slane %v5719, 1
        %v5721 = vmax.f32 %v5719, %v5720
        %vm5722 = vcmask 261120
        %v5723 = vsel %vm5722, %v5504, -inf
        %v5724 = vsel %vm5722, %v5532, -inf
        %v5725 = vmax.f32 %v5723, %v5724
        %v5726 = vsel %vm5722, %v5511, -inf
        %v5727 = vsel %vm5722, %v5539, -inf
        %v5728 = vmax.f32 %v5726, %v5727
        %v5729 = vsel %vm5722, %v5518, -inf
        %v5730 = vsel %vm5722, %v5546, -inf
        %v5731 = vmax.f32 %v5729, %v5730
        %v5732 = vsel %vm5722, %v5525, -inf
        %v5733 = vsel %vm5722, %v5553, -inf
        %v5734 = vmax.f32 %v5732, %v5733
        %v5735 = vsel %vm5722, %v5560, -inf
        %v5736 = vsel %vm5722, %v5588, -inf
        %v5737 = vmax.f32 %v5735, %v5736
        %v5738 = vsel %vm5722, %v5567, -inf
        %v5739 = vsel %vm5722, %v5595, -inf
        %v5740 = vmax.f32 %v5738, %v5739
        %v5741 = vsel %vm5722, %v5574, -inf
        %v5742 = vsel %vm5722, %v5602, -inf
        %v5743 = vmax.f32 %v5741, %v5742
        %v5744 = vsel %vm5722, %v5581, -inf
        %v5745 = vsel %vm5722, %v5609, -inf
        %v5746 = vmax.f32 %v5744, %v5745
        %v5747 = vsel %vm5722, %v5616, -inf
        %v5748 = vsel %vm5722, %v5644, -inf
        %v5749 = vmax.f32 %v5747, %v5748
        %v5750 = vsel %vm5722, %v5623, -inf
        %v5751 = vsel %vm5722, %v5651, -inf
        %v5752 = vmax.f32 %v5750, %v5751
        %v5753 = vsel %vm5722, %v5630, -inf
        %v5754 = vsel %vm5722, %v5658, -inf
        %v5755 = vmax.f32 %v5753, %v5754
        %v5756 = vsel %vm5722, %v5637, -inf
        %v5757 = vsel %vm5722, %v5665, -inf
        %v5758 = vmax.f32 %v5756, %v5757
        %v5759 = vsel %vm5722, %v5672, -inf
        %v5760 = vsel %vm5722, %v5700, -inf
        %v5761 = vmax.f32 %v5759, %v5760
        %v5762 = vsel %vm5722, %v5679, -inf
        %v5763 = vsel %vm5722, %v5707, -inf
        %v5764 = vmax.f32 %v5762, %v5763
        %v5765 = vsel %vm5722, %v5686, -inf
        %v5766 = vsel %vm5722, %v5714, -inf
        %v5767 = vmax.f32 %v5765, %v5766
        %v5768 = vsel %vm5722, %v5693, -inf
        %v5769 = vsel %vm5722, %v5721, -inf
        %v5770 = vmax.f32 %v5768, %v5769
        %vm5771 = vcmask 259072
        %5772 = vst.msk [vmem:[#allocation6] sm:$0x3f] %vm5771, 0.0
        %5773 = vst.msk [vmem:[#allocation6 + $0x8] sm:$0x3f] %vm5771, 0.0
        %5774 = vst.msk [vmem:[#allocation6 + $0x10] sm:$0x3f] %vm5771, 0.0
        %5775 = vst.msk [vmem:[#allocation6 + $0x18] sm:$0x3f] %vm5771, 0.0
        %5776 = vst.msk [vmem:[#allocation6 + $0x20] sm:$0x3f] %vm5771, 0.0
        %5777 = vst.msk [vmem:[#allocation6 + $0x28] sm:$0x3f] %vm5771, 0.0
        %v5794 = vsel %vm4664, %v5728, %v5725
        %v5795 = vsel %vm4666, %v5731, %v5794
        %v5796 = vsel %vm4668, %v5734, %v5795
        %v5797 = vsel %vm4664, %v5740, %v5737
        %v5798 = vsel %vm4666, %v5743, %v5797
        %v5799 = vsel %vm4668, %v5746, %v5798
        %v5800 = vsel %vm4664, %v5752, %v5749
        %v5801 = vsel %vm4666, %v5755, %v5800
        %v5802 = vsel %vm4668, %v5758, %v5801
        %v5803 = vsel %vm4664, %v5764, %v5761
        %v5804 = vsel %vm4666, %v5767, %v5803
        %v5805 = vsel %vm4668, %v5770, %v5804
        %s5810 = scalar_lea.vmem [#allocation6], 8
        %vm5811 = vcmask 257024
        %5812 = vst.msk [vmem:[%s5810 + $0x1] sm:$0xf] %vm5811, %v5796
        %5813 = vst.msk [vmem:[%s5810 + $0x9] sm:$0xf] %vm5811, %v5799
        %5814 = vst.msk [vmem:[%s5810 + $0x11] sm:$0xf] %vm5811, %v5802
        %5815 = vst.msk [vmem:[%s5810 + $0x19] sm:$0xf] %vm5811, %v5805
        %v5816 = vld [vmem:[#allocation6] sm:$0xf]
        %v5817 = vld [vmem:[#allocation6 + $0x8] sm:$0xf]
        %v5818 = vld [vmem:[#allocation6 + $0x10] sm:$0xf]
        %v5819 = vld [vmem:[#allocation6 + $0x18] sm:$0xf]
        %v5824 = vcombine.low %v5816, %v5817
        %v5825 = vcombine.low %v5818, %v5819
        %5828 = vst.msk [vmem:[#allocation7] sm:$0xff] %vm5722, %v5824
        %5829 = vst.msk [vmem:[#allocation7 + $0x18] sm:$0xff] %vm5722, %v5825
        %v5830 = vld [vmem:[#allocation6 + $0x1] sm:$0xf]
        %v5831 = vld [vmem:[#allocation6 + $0x9] sm:$0xf]
        %v5832 = vld [vmem:[#allocation6 + $0x11] sm:$0xf]
        %v5833 = vld [vmem:[#allocation6 + $0x19] sm:$0xf]
        %v5838 = vcombine.low %v5830, %v5831
        %v5839 = vcombine.low %v5832, %v5833
        %5840 = vrot.lane.b32.xlu0 %v5838, 32
        %v5841 = vpop.permute.xlu0 %5840
        %5842 = vrot.lane.b32.xlu0 %v5839, 32
        %v5843 = vpop.permute.xlu0 %5842
        %vm5846 = vcmask 523520
        %5847 = vst.msk [vmem:[#allocation7] sm:$0xff] %vm5846, %v5841
        %5848 = vst.msk [vmem:[#allocation7 + $0x18] sm:$0xff] %vm5846, %v5843
        %v5849 = vld [vmem:[#allocation6 + $0x2] sm:$0xf]
        %v5850 = vld [vmem:[#allocation6 + $0xa] sm:$0xf]
        %v5851 = vld [vmem:[#allocation6 + $0x12] sm:$0xf]
        %v5852 = vld [vmem:[#allocation6 + $0x1a] sm:$0xf]
        %v5857 = vcombine.low %v5849, %v5850
        %v5858 = vcombine.low %v5851, %v5852
        %5859 = vrot.lane.b32.xlu0 %v5857, 64
        %v5860 = vpop.permute.xlu0 %5859
        %5861 = vrot.lane.b32.xlu0 %v5858, 64
        %v5862 = vpop.permute.xlu0 %5861
        %vm5865 = vcmask 785920
        %5866 = vst.msk [vmem:[#allocation7] sm:$0xff] %vm5865, %v5860
        %5867 = vst.msk [vmem:[#allocation7 + $0x18] sm:$0xff] %vm5865, %v5862
        %v5868 = vld [vmem:[%s5810] sm:$0xf]
        %v5869 = vld [vmem:[%s5810 + $0x8] sm:$0xf]
        %v5870 = vld [vmem:[%s5810 + $0x10] sm:$0xf]
        %v5871 = vld [vmem:[%s5810 + $0x18] sm:$0xf]
        %v5876 = vcombine.low %v5868, %v5869
        %v5877 = vcombine.low %v5870, %v5871
        %5878 = vrot.lane.b32.xlu0 %v5876, 96
        %v5879 = vpop.permute.xlu0 %5878
        %5880 = vrot.lane.b32.xlu0 %v5877, 96
        %v5881 = vpop.permute.xlu0 %5880
        %vm5884 = vcmask 1048320
        %5885 = vst.msk [vmem:[#allocation7] sm:$0xff] %vm5884, %v5879
        %5886 = vst.msk [vmem:[#allocation7 + $0x18] sm:$0xff] %vm5884, %v5881
        %v5887 = vld [vmem:[%s5810 + $0x1] sm:$0xf]
        %v5888 = vld [vmem:[%s5810 + $0x9] sm:$0xf]
        %v5889 = vld [vmem:[%s5810 + $0x11] sm:$0xf]
        %v5890 = vld [vmem:[%s5810 + $0x19] sm:$0xf]
        %v5895 = vcombine.low %v5887, %v5888
        %v5896 = vcombine.low %v5889, %v5890
        %5899 = vst.msk [vmem:[#allocation7 + $0x8] sm:$0xff] %vm5722, %v5895
        %5900 = vst.msk [vmem:[#allocation7 + $0x20] sm:$0xff] %vm5722, %v5896
        %v5901 = vld [vmem:[%s5810 + $0x2] sm:$0xf]
        %v5902 = vld [vmem:[%s5810 + $0xa] sm:$0xf]
        %v5903 = vld [vmem:[%s5810 + $0x12] sm:$0xf]
        %v5904 = vld [vmem:[%s5810 + $0x1a] sm:$0xf]
        %v5909 = vcombine.low %v5901, %v5902
        %v5910 = vcombine.low %v5903, %v5904
        %5911 = vrot.lane.b32.xlu0 %v5909, 32
        %v5912 = vpop.permute.xlu0 %5911
        %5913 = vrot.lane.b32.xlu0 %v5910, 32
        %v5914 = vpop.permute.xlu0 %5913
        %5917 = vst.msk [vmem:[#allocation7 + $0x8] sm:$0xff] %vm5846, %v5912
        %5918 = vst.msk [vmem:[#allocation7 + $0x20] sm:$0xff] %vm5846, %v5914
        %s5919 = scalar_lea.vmem [#allocation6], 16
        %v5920 = vld [vmem:[%s5919] sm:$0xf]
        %v5921 = vld [vmem:[%s5919 + $0x8] sm:$0xf]
        %v5922 = vld [vmem:[%s5919 + $0x10] sm:$0xf]
        %v5923 = vld [vmem:[%s5919 + $0x18] sm:$0xf]
        %v5928 = vcombine.low %v5920, %v5921
        %v5929 = vcombine.low %v5922, %v5923
        %5930 = vrot.lane.b32.xlu0 %v5928, 64
        %v5931 = vpop.permute.xlu0 %5930
        %5932 = vrot.lane.b32.xlu0 %v5929, 64
        %v5933 = vpop.permute.xlu0 %5932
        %5936 = vst.msk [vmem:[#allocation7 + $0x8] sm:$0xff] %vm5865, %v5931
        %5937 = vst.msk [vmem:[#allocation7 + $0x20] sm:$0xff] %vm5865, %v5933
        %v5938 = vld [vmem:[%s5919 + $0x1] sm:$0xf]
        %v5939 = vld [vmem:[%s5919 + $0x9] sm:$0xf]
        %v5940 = vld [vmem:[%s5919 + $0x11] sm:$0xf]
        %v5941 = vld [vmem:[%s5919 + $0x19] sm:$0xf]
        %v5946 = vcombine.low %v5938, %v5939
        %v5947 = vcombine.low %v5940, %v5941
        %5948 = vrot.lane.b32.xlu0 %v5946, 96
        %v5949 = vpop.permute.xlu0 %5948
        %5950 = vrot.lane.b32.xlu0 %v5947, 96
        %v5951 = vpop.permute.xlu0 %5950
        %5954 = vst.msk [vmem:[#allocation7 + $0x8] sm:$0xff] %vm5884, %v5949
        %5955 = vst.msk [vmem:[#allocation7 + $0x20] sm:$0xff] %vm5884, %v5951
        %v5956 = vld [vmem:[%s5919 + $0x2] sm:$0xf]
        %v5957 = vld [vmem:[%s5919 + $0xa] sm:$0xf]
        %v5958 = vld [vmem:[%s5919 + $0x12] sm:$0xf]
        %v5959 = vld [vmem:[%s5919 + $0x1a] sm:$0xf]
        %v5964 = vcombine.low %v5956, %v5957
        %v5965 = vcombine.low %v5958, %v5959
        %5968 = vst.msk [vmem:[#allocation7 + $0x10] sm:$0xff] %vm5722, %v5964
        %5969 = vst.msk [vmem:[#allocation7 + $0x28] sm:$0xff] %vm5722, %v5965
        %v5970 = vld [vmem:[#allocation7] sm:$0xff]
        %v5971 = vld [vmem:[#allocation7 + $0x8] sm:$0xff]
        %v5972 = vld [vmem:[#allocation7 + $0x10] sm:$0xff]
        %v5973 = vld [vmem:[#allocation7 + $0x18] sm:$0xff]
        %v5974 = vld [vmem:[#allocation7 + $0x20] sm:$0xff]
        %v5975 = vld [vmem:[#allocation7 + $0x28] sm:$0xff]
        %v5976 = vld [vmem:[%s7] sm:$0xff]
        %v5977 = vld [vmem:[%s7 + $0x8] sm:$0xff]
        %v5978 = vld [vmem:[%s7 + $0x10] sm:$0xff]
        %v5979 = vld [vmem:[%s7 + $0x18] sm:$0xff]
        %v5980 = vld [vmem:[%s7 + $0x20] sm:$0xff]
        %v5981 = vld [vmem:[%s7 + $0x28] sm:$0xff]
        %v5982 = vld [vmem:[%s7 + $0x30] sm:$0xff]
        %v5983 = vld [vmem:[%s7 + $0x38] sm:$0xff]
        %v5984 = vld [vmem:[%s7 + $0x40] sm:$0xff]
        %v5985 = vld [vmem:[%s7 + $0x48] sm:$0xff]
        %v5986 = vld [vmem:[%s7 + $0x50] sm:$0xff]
        %v5987 = vld [vmem:[%s7 + $0x58] sm:$0xff]
        %v5988 = vld [vmem:[%s7 + $0x60] sm:$0xff]
        %v5989 = vld [vmem:[%s7 + $0x68] sm:$0xff]
        %v5990 = vld [vmem:[%s7 + $0x70] sm:$0xff]
        %v5991 = vld [vmem:[%s7 + $0x78] sm:$0xff]
        %v5992 = vld [vmem:[%s7 + $0x80] sm:$0xff]
        %v5993 = vld [vmem:[%s7 + $0x88] sm:$0xff]
        %v5994 = vld [vmem:[%s7 + $0x90] sm:$0xff]
        %v5995 = vld [vmem:[%s7 + $0x98] sm:$0xff]
        %v5996 = vld [vmem:[%s7 + $0xa0] sm:$0xff]
        %v5997 = vld [vmem:[%s7 + $0xa8] sm:$0xff]
        %v5998 = vld [vmem:[%s7 + $0xb0] sm:$0xff]
        %v5999 = vld [vmem:[%s7 + $0xb8] sm:$0xff]
        %v6000 = vld [vmem:[%s7 + $0xc0] sm:$0xff]
        %v6001 = vld [vmem:[%s7 + $0xc8] sm:$0xff]
        %v6002 = vld [vmem:[%s7 + $0xd0] sm:$0xff]
        %v6003 = vld [vmem:[%s7 + $0xd8] sm:$0xff]
        %v6004 = vld [vmem:[%s7 + $0xe0] sm:$0xff]
        %v6005 = vld [vmem:[%s7 + $0xe8] sm:$0xff]
        %v6006 = vld [vmem:[%s7 + $0xf0] sm:$0xff]
        %v6007 = vld [vmem:[%s7 + $0xf8] sm:$0xff]
        %v6008 = vld [vmem:[%s7 + $0x100] sm:$0xff]
        %v6009 = vld [vmem:[%s7 + $0x108] sm:$0xff]
        %v6010 = vld [vmem:[%s7 + $0x110] sm:$0xff]
        %v6011 = vld [vmem:[%s7 + $0x118] sm:$0xff]
        %v6013 = vsel %vm5722, %v5972, 0
        %v6016 = vsel %vm5722, %v5975, 0
        %6018 = vmatprep.subr.mxu0 0.0
        %6019 = vmatpush1.msra.mxu0 %v5976
        %6020 = vmatprep.subr.mxu0 0.0
        %6021 = vmatpush1.msra.mxu0 %v5977
        %6022 = vmatprep.subr.mxu0 0.0
        %6023 = vmatpush1.msra.mxu0 %v5978
        %6024 = vmatprep.subr.mxu0 0.0
        %6025 = vmatpush1.msra.mxu0 %v5979
        %6026 = vmatprep.subr.mxu0 0.0
        %6027 = vmatpush1.msra.mxu0 %v5980
        %6028 = vmatprep.subr.mxu0 0.0
        %6029 = vmatpush1.msra.mxu0 %v5981
        %6030 = vmatprep.subr.mxu0 0.0
        %6031 = vmatpush1.msra.mxu0 %v5982
        %6032 = vmatprep.subr.mxu0 0.0
        %6033 = vmatpush1.msra.mxu0 %v5983
        %6034 = vmatprep.subr.mxu0 0.0
        %6035 = vmatpush1.msra.mxu0 %v5984
        %6036 = vmatprep.subr.mxu0 0.0
        %6037 = vmatpush1.msra.mxu0 %v5985
        %6038 = vmatprep.subr.mxu0 0.0
        %6039 = vmatpush1.msra.mxu0 %v5986
        %6040 = vmatprep.subr.mxu0 0.0
        %6041 = vmatpush1.msra.mxu0 %v5987
        %6042 = vmatprep.subr.mxu0 0.0
        %6043 = vmatpush1.msra.mxu0 %v5988
        %6044 = vmatprep.subr.mxu0 0.0
        %6045 = vmatpush1.msra.mxu0 %v5989
        %6046 = vmatprep.subr.mxu0 0.0
        %6047 = vmatpush1.msra.mxu0 %v5990
        %6048 = vmatprep.subr.mxu0 0.0
        %6049 = vmatpush1.msra.mxu0 %v5991
        %6050 = vmatprep.subr.mxu0 0.0
        %6051 = vmatpush1.msra.mxu0 %v5992
        %6052 = vmatprep.subr.mxu0 0.0
        %6053 = vmatpush1.msra.mxu0 %v5993
        %6054 = vmatprep.subr.mxu0 0.0
        %6055 = vmatpush1.msra.mxu0 %v5994
        %6056 = vmatprep.subr.mxu0 0.0
        %6057 = vmatpush1.msra.mxu0 %v5995
        %6058 = vmatprep.subr.mxu0 0.0
        %6059 = vmatpush1.msra.mxu0 %v5996
        %6060 = vmatprep.subr.mxu0 0.0
        %6061 = vmatpush1.msra.mxu0 %v5997
        %6062 = vmatprep.subr.mxu0 0.0
        %6063 = vmatpush1.msra.mxu0 %v5998
        %6064 = vmatprep.subr.mxu0 0.0
        %6065 = vmatpush1.msra.mxu0 %v5999
        %6066 = vmatprep.subr.mxu0 0.0
        %6067 = vmatpush1.msra.mxu0 %v6000
        %6068 = vmatprep.subr.mxu0 0.0
        %6069 = vmatpush1.msra.mxu0 %v6001
        %6070 = vmatprep.subr.mxu0 0.0
        %6071 = vmatpush1.msra.mxu0 %v6002
        %6072 = vmatprep.subr.mxu0 0.0
        %6073 = vmatpush1.msra.mxu0 %v6003
        %6074 = vmatprep.subr.mxu0 0.0
        %6075 = vmatpush1.msra.mxu0 %v6004
        %6076 = vmatprep.subr.mxu0 0.0
        %6077 = vmatpush1.msra.mxu0 %v6005
        %6078 = vmatprep.subr.mxu0 0.0
        %6079 = vmatpush1.msra.mxu0 %v6006
        %6080 = vmatprep.subr.mxu0 0.0
        %6081 = vmatpush1.msra.mxu0 %v6007
        %6082 = vmatprep.mubr.f32.mxu0 %v5971
        %6083 = vmatmul.mubr.f32.gmra.mrb[0].mxu0 %v5970
        %v6084 = vpop.f32.mrb[0].mxu0
        %v6085 = vadd.f32 0.0, %v6084
        %v6086 = vpop.f32.mrb[0].mxu0
        %6087 = vmatprep.mubr.f32.mxu0 %v5974
        %6088 = vmatmul.mubr.f32.gmra.mrb[0].mxu0 %v5973
        %v6089 = vpop.f32.mrb[0].mxu0
        %v6090 = vadd.f32 0.0, %v6089
        %v6091 = vpop.f32.mrb[0].mxu0
        %6092 = vdwg.mxu0
        %6093 = vmatprep.subr.mxu0 0.0
        %6094 = vmatpush1.msra.mxu0 %v6008
        %6095 = vmatprep.subr.mxu0 0.0
        %6096 = vmatpush1.msra.mxu0 %v6009
        %6097 = vmatprep.subr.mxu0 0.0
        %6098 = vmatpush1.msra.mxu0 %v6010
        %6099 = vmatprep.subr.mxu0 0.0
        %6100 = vmatpush1.msra.mxu0 %v6011
        %6101 = vmatprep.subr.mxu0 0.0
        %6102 = vmatpush1.msra.mxu0 0.0
        %6103 = vmatprep.subr.mxu0 0.0
        %6104 = vmatpush1.msra.mxu0 0.0
        %6105 = vmatprep.subr.mxu0 0.0
        %6106 = vmatpush1.msra.mxu0 0.0
        %6107 = vmatprep.subr.mxu0 0.0
        %6108 = vmatpush1.msra.mxu0 0.0
        %6109 = vmatprep.subr.mxu0 0.0
        %6110 = vmatpush1.msra.mxu0 0.0
        %6111 = vmatprep.subr.mxu0 0.0
        %6112 = vmatpush1.msra.mxu0 0.0
        %6113 = vmatprep.subr.mxu0 0.0
        %6114 = vmatpush1.msra.mxu0 0.0
        %6115 = vmatprep.subr.mxu0 0.0
        %6116 = vmatpush1.msra.mxu0 0.0
        %6117 = vmatprep.subr.mxu0 0.0
        %6118 = vmatpush1.msra.mxu0 0.0
        %6119 = vmatprep.subr.mxu0 0.0
        %6120 = vmatpush1.msra.mxu0 0.0
        %6121 = vmatprep.subr.mxu0 0.0
        %6122 = vmatpush1.msra.mxu0 0.0
        %6123 = vmatprep.subr.mxu0 0.0
        %6124 = vmatpush1.msra.mxu0 0.0
        %6125 = vmatprep.subr.mxu0 0.0
        %6126 = vmatpush1.msra.mxu0 0.0
        %6127 = vmatprep.subr.mxu0 0.0
        %6128 = vmatpush1.msra.mxu0 0.0
        %6129 = vmatprep.subr.mxu0 0.0
        %6130 = vmatpush1.msra.mxu0 0.0
        %6131 = vmatprep.subr.mxu0 0.0
        %6132 = vmatpush1.msra.mxu0 0.0
        %6133 = vmatprep.subr.mxu0 0.0
        %6134 = vmatpush1.msra.mxu0 0.0
        %6135 = vmatprep.subr.mxu0 0.0
        %6136 = vmatpush1.msra.mxu0 0.0
        %6137 = vmatprep.subr.mxu0 0.0
        %6138 = vmatpush1.msra.mxu0 0.0
        %6139 = vmatprep.subr.mxu0 0.0
        %6140 = vmatpush1.msra.mxu0 0.0
        %6141 = vmatprep.subr.mxu0 0.0
        %6142 = vmatpush1.msra.mxu0 0.0
        %6143 = vmatprep.subr.mxu0 0.0
        %6144 = vmatpush1.msra.mxu0 0.0
        %6145 = vmatprep.subr.mxu0 0.0
        %6146 = vmatpush1.msra.mxu0 0.0
        %6147 = vmatprep.subr.mxu0 0.0
        %6148 = vmatpush1.msra.mxu0 0.0
        %6149 = vmatprep.subr.mxu0 0.0
        %6150 = vmatpush1.msra.mxu0 0.0
        %6151 = vmatprep.subr.mxu0 0.0
        %6152 = vmatpush1.msra.mxu0 0.0
        %6153 = vmatprep.subr.mxu0 0.0
        %6154 = vmatpush1.msra.mxu0 0.0
        %6155 = vmatprep.subr.mxu0 0.0
        %6156 = vmatpush1.msra.mxu0 0.0
        %6157 = vmatprep.mubr.f32.mxu0 0.0
        %6158 = vmatmul.mubr.f32.gmra.mrb[0].mxu0 %v6013
        %v6159 = vpop.f32.mrb[0].mxu0
        %v6160 = vadd.f32 %v6085, %v6159
        %v6161 = vpop.f32.mrb[0].mxu0
        %6162 = vmatprep.mubr.f32.mxu0 0.0
        %6163 = vmatmul.mubr.f32.gmra.mrb[0].mxu0 %v6016
        %v6164 = vpop.f32.mrb[0].mxu0
        %v6165 = vadd.f32 %v6090, %v6164
        %v6166 = vpop.f32.mrb[0].mxu0
        %6167 = vdwg.mxu0
        %v6168 = vld [vmem:[%s8] sm:$0x1]
        %v6170 = vlaneseq
        %v6171 = vshrl.u32 %v6170, 7
        %v6172 = vsub.s32 0, %v6171
        %v6173 = vrot.slane %v6168, %v6172
        %v6175 = vmul.f32 %v6160, %v6173
        %v6176 = vmul.f32 %v6165, %v6173
        %v6177 = vld [vmem:[%s9] sm:$0x1]
        %v6179 = vlaneseq
        %v6180 = vshrl.u32 %v6179, 7
        %v6181 = vsub.s32 0, %v6180
        %v6182 = vrot.slane %v6177, %v6181
        %v6184 = vadd.f32 %v6175, %v6182
        %v6185 = vadd.f32 %v6176, %v6182
        %v6186 = vmax.f32 %v6184, 0.0
        %v6187 = vmax.f32 %v6185, 0.0
        %v6190 = vcombine.high %v6186, %v6186
        %v6192 = vunpack.c.l.s4 1983009808
        %v6193 = vunpack.c.0.s8 %v6192
        %v6194 = vlaneseq
        %v6195 = vshrl.u32 %v6194, 7
        %v6196 = vsub.s32 %v6193, %v6195
        %v6197 = vrot.slane %v6186, %v6196
        %v6199 = vunpack.c.l.s4 1983009808
        %v6200 = vunpack.c.0.s8 %v6199
        %v6201 = vlaneseq
        %v6202 = vshrl.u32 %v6201, 7
        %v6203 = vsub.s32 %v6200, %v6202
        %v6204 = vrot.slane %v6190, %v6203
        %v6205 = vcombine.high %v6197, %v6197
        %v6206 = vcombine.high %v6204, %v6204
        %v6207 = vcombine.high %v6187, %v6187
        %v6209 = vunpack.c.l.s4 1983009808
        %v6210 = vunpack.c.0.s8 %v6209
        %v6211 = vlaneseq
        %v6212 = vshrl.u32 %v6211, 7
        %v6213 = vsub.s32 %v6210, %v6212
        %v6214 = vrot.slane %v6187, %v6213
        %v6216 = vunpack.c.l.s4 1983009808
        %v6217 = vunpack.c.0.s8 %v6216
        %v6218 = vlaneseq
        %v6219 = vshrl.u32 %v6218, 7
        %v6220 = vsub.s32 %v6217, %v6219
        %v6221 = vrot.slane %v6207, %v6220
        %v6222 = vcombine.high %v6214, %v6214
        %v6223 = vcombine.high %v6221, %v6221
        %vm6232 = vcmask 517120
        %v6233 = vsel %vm6232, %v6197, -inf
        %v6234 = vrot.slane %v6233, 4
        %v6235 = vmax.f32 %v6233, %v6234
        %v6236 = vrot.slane %v6235, 2
        %v6237 = vmax.f32 %v6235, %v6236
        %v6238 = vrot.slane %v6237, 1
        %v6239 = vmax.f32 %v6237, %v6238
        %v6240 = vsel %vm6232, %v6205, -inf
        %v6241 = vrot.slane %v6240, 4
        %v6242 = vmax.f32 %v6240, %v6241
        %v6243 = vrot.slane %v6242, 2
        %v6244 = vmax.f32 %v6242, %v6243
        %v6245 = vrot.slane %v6244, 1
        %v6246 = vmax.f32 %v6244, %v6245
        %v6247 = vsel %vm6232, %v6204, -inf
        %v6248 = vrot.slane %v6247, 4
        %v6249 = vmax.f32 %v6247, %v6248
        %v6250 = vrot.slane %v6249, 2
        %v6251 = vmax.f32 %v6249, %v6250
        %v6252 = vrot.slane %v6251, 1
        %v6253 = vmax.f32 %v6251, %v6252
        %v6254 = vsel %vm6232, %v6206, -inf
        %v6255 = vrot.slane %v6254, 4
        %v6256 = vmax.f32 %v6254, %v6255
        %v6257 = vrot.slane %v6256, 2
        %v6258 = vmax.f32 %v6256, %v6257
        %v6259 = vrot.slane %v6258, 1
        %v6260 = vmax.f32 %v6258, %v6259
        %v6261 = vsel %vm6232, %v6214, -inf
        %v6262 = vrot.slane %v6261, 4
        %v6263 = vmax.f32 %v6261, %v6262
        %v6264 = vrot.slane %v6263, 2
        %v6265 = vmax.f32 %v6263, %v6264
        %v6266 = vrot.slane %v6265, 1
        %v6267 = vmax.f32 %v6265, %v6266
        %v6268 = vsel %vm6232, %v6222, -inf
        %v6269 = vrot.slane %v6268, 4
        %v6270 = vmax.f32 %v6268, %v6269
        %v6271 = vrot.slane %v6270, 2
        %v6272 = vmax.f32 %v6270, %v6271
        %v6273 = vrot.slane %v6272, 1
        %v6274 = vmax.f32 %v6272, %v6273
        %v6275 = vsel %vm6232, %v6221, -inf
        %v6276 = vrot.slane %v6275, 4
        %v6277 = vmax.f32 %v6275, %v6276
        %v6278 = vrot.slane %v6277, 2
        %v6279 = vmax.f32 %v6277, %v6278
        %v6280 = vrot.slane %v6279, 1
        %v6281 = vmax.f32 %v6279, %v6280
        %v6282 = vsel %vm6232, %v6223, -inf
        %v6283 = vrot.slane %v6282, 4
        %v6284 = vmax.f32 %v6282, %v6283
        %v6285 = vrot.slane %v6284, 2
        %v6286 = vmax.f32 %v6284, %v6285
        %v6287 = vrot.slane %v6286, 1
        %v6288 = vmax.f32 %v6286, %v6287
        %vm6289 = vcmask 523264
        %v6290 = vsel %vm6289, %v6239, -inf
        %v6291 = vsel %vm6289, %v6253, -inf
        %v6292 = vmax.f32 %v6290, %v6291
        %v6293 = vsel %vm6289, %v6246, -inf
        %v6294 = vsel %vm6289, %v6260, -inf
        %v6295 = vmax.f32 %v6293, %v6294
        %v6296 = vsel %vm6289, %v6267, -inf
        %v6297 = vsel %vm6289, %v6281, -inf
        %v6298 = vmax.f32 %v6296, %v6297
        %v6299 = vsel %vm6289, %v6274, -inf
        %v6300 = vsel %vm6289, %v6288, -inf
        %v6301 = vmax.f32 %v6299, %v6300
        %vm6302 = vcmask 519168
        %6303 = vst.msk [vmem:[#allocation8] sm:$0xf] %vm6302, 0.0
        %6304 = vst.msk [vmem:[#allocation8 + $0x4] sm:$0xf] %vm6302, 0.0
        %6305 = vst.msk [vmem:[#allocation8 + $0x8] sm:$0xf] %vm6302, 0.0
        %6306 = vst.msk [vmem:[#allocation8 + $0xc] sm:$0xf] %vm6302, 0.0
        %v6311 = vsel %vm4664, %v6295, %v6292
        %v6312 = vsel %vm4664, %v6301, %v6298
        %s6315 = scalar_lea.vmem [#allocation8], 4
        %6316 = vst.msk [vmem:[%s6315 + $0x1] sm:$0x3] %vm6232, %v6311
        %6317 = vst.msk [vmem:[%s6315 + $0x5] sm:$0x3] %vm6232, %v6312
        %v6318 = vld [vmem:[#allocation8] sm:$0x3]
        %v6319 = vld [vmem:[#allocation8 + $0x4] sm:$0x3]
        %v6322 = vcombine.low %v6318, %v6319
        %v6324 = vunpack.c.l.s4 1983009808
        %v6325 = vunpack.c.0.s8 %v6324
        %v6326 = vlaneseq
        %v6327 = vshrl.u32 %v6326, 7
        %v6328 = vsub.s32 %v6325, %v6327
        %v6329 = vrot.slane %v6322, %v6328
        %6331 = vst.msk [vmem:[#allocation9] sm:$0xf] %vm6302, %v6329
        %v6332 = vld [vmem:[#allocation8 + $0x1] sm:$0x3]
        %v6333 = vld [vmem:[#allocation8 + $0x5] sm:$0x3]
        %v6336 = vcombine.low %v6332, %v6333
        %v6338 = vunpack.c.l.s4 1983009808
        %v6339 = vunpack.c.0.s8 %v6338
        %v6340 = vlaneseq
        %v6341 = vshrl.u32 %v6340, 7
        %v6342 = vsub.s32 %v6339, %v6341
        %v6343 = vrot.slane %v6336, %v6342
        %6344 = vrot.lane.b32.xlu0 %v6343, 64
        %v6345 = vpop.permute.xlu0 %6344
        %vm6347 = vcmask 1043968
        %6348 = vst.msk [vmem:[#allocation9] sm:$0xf] %vm6347, %v6345
        %v6349 = vld [vmem:[#allocation8 + $0x2] sm:$0x3]
        %v6350 = vld [vmem:[#allocation8 + $0x6] sm:$0x3]
        %v6353 = vcombine.low %v6349, %v6350
        %v6355 = vunpack.c.l.s4 1983009808
        %v6356 = vunpack.c.0.s8 %v6355
        %v6357 = vlaneseq
        %v6358 = vshrl.u32 %v6357, 7
        %v6359 = vsub.s32 %v6356, %v6358
        %v6360 = vrot.slane %v6353, %v6359
        %6362 = vst.msk [vmem:[#allocation9 + $0x4] sm:$0xf] %vm6302, %v6360
        %v6363 = vld [vmem:[%s6315] sm:$0x3]
        %v6364 = vld [vmem:[%s6315 + $0x4] sm:$0x3]
        %v6367 = vcombine.low %v6363, %v6364
        %v6369 = vunpack.c.l.s4 1983009808
        %v6370 = vunpack.c.0.s8 %v6369
        %v6371 = vlaneseq
        %v6372 = vshrl.u32 %v6371, 7
        %v6373 = vsub.s32 %v6370, %v6372
        %v6374 = vrot.slane %v6367, %v6373
        %6375 = vrot.lane.b32.xlu0 %v6374, 64
        %v6376 = vpop.permute.xlu0 %6375
        %6378 = vst.msk [vmem:[#allocation9 + $0x4] sm:$0xf] %vm6347, %v6376
        %v6379 = vld [vmem:[%s6315 + $0x1] sm:$0x3]
        %v6380 = vld [vmem:[%s6315 + $0x5] sm:$0x3]
        %v6383 = vcombine.low %v6379, %v6380
        %v6385 = vunpack.c.l.s4 1983009808
        %v6386 = vunpack.c.0.s8 %v6385
        %v6387 = vlaneseq
        %v6388 = vshrl.u32 %v6387, 7
        %v6389 = vsub.s32 %v6386, %v6388
        %v6390 = vrot.slane %v6383, %v6389
        %6392 = vst.msk [vmem:[#allocation9 + $0x8] sm:$0xf] %vm6302, %v6390
        %v6393 = vld [vmem:[%s6315 + $0x2] sm:$0x3]
        %v6394 = vld [vmem:[%s6315 + $0x6] sm:$0x3]
        %v6397 = vcombine.low %v6393, %v6394
        %v6399 = vunpack.c.l.s4 1983009808
        %v6400 = vunpack.c.0.s8 %v6399
        %v6401 = vlaneseq
        %v6402 = vshrl.u32 %v6401, 7
        %v6403 = vsub.s32 %v6400, %v6402
        %v6404 = vrot.slane %v6397, %v6403
        %6405 = vrot.lane.b32.xlu0 %v6404, 64
        %v6406 = vpop.permute.xlu0 %6405
        %6408 = vst.msk [vmem:[#allocation9 + $0x8] sm:$0xf] %vm6347, %v6406
        %s6409 = scalar_lea.vmem [#allocation8], 8
        %v6410 = vld [vmem:[%s6409] sm:$0x3]
        %v6411 = vld [vmem:[%s6409 + $0x4] sm:$0x3]
        %v6414 = vcombine.low %v6410, %v6411
        %v6416 = vunpack.c.l.s4 1983009808
        %v6417 = vunpack.c.0.s8 %v6416
        %v6418 = vlaneseq
        %v6419 = vshrl.u32 %v6418, 7
        %v6420 = vsub.s32 %v6417, %v6419
        %v6421 = vrot.slane %v6414, %v6420
        %6423 = vst.msk [vmem:[#allocation9 + $0xc] sm:$0xf] %vm6302, %v6421
        %v6424 = vld [vmem:[%s6409 + $0x1] sm:$0x3]
        %v6425 = vld [vmem:[%s6409 + $0x5] sm:$0x3]
        %v6428 = vcombine.low %v6424, %v6425
        %v6430 = vunpack.c.l.s4 1983009808
        %v6431 = vunpack.c.0.s8 %v6430
        %v6432 = vlaneseq
        %v6433 = vshrl.u32 %v6432, 7
        %v6434 = vsub.s32 %v6431, %v6433
        %v6435 = vrot.slane %v6428, %v6434
        %6436 = vrot.lane.b32.xlu0 %v6435, 64
        %v6437 = vpop.permute.xlu0 %6436
        %6439 = vst.msk [vmem:[#allocation9 + $0xc] sm:$0xf] %vm6347, %v6437
        %v6440 = vld [vmem:[%s6409 + $0x2] sm:$0x3]
        %v6441 = vld [vmem:[%s6409 + $0x6] sm:$0x3]
        %v6444 = vcombine.low %v6440, %v6441
        %v6446 = vunpack.c.l.s4 1983009808
        %v6447 = vunpack.c.0.s8 %v6446
        %v6448 = vlaneseq
        %v6449 = vshrl.u32 %v6448, 7
        %v6450 = vsub.s32 %v6447, %v6449
        %v6451 = vrot.slane %v6444, %v6450
        %6453 = vst.msk [vmem:[#allocation9 + $0x10] sm:$0xf] %vm6302, %v6451
        %v6454 = vld [vmem:[#allocation9] sm:$0xff]
        %v6455 = vld [vmem:[#allocation9 + $0x8] sm:$0xff]
        %v6456 = vld [vmem:[#allocation9 + $0x10] sm:$0xf]
        %v6457 = vld [vmem:[%s10] sm:$0xff]
        %v6458 = vld [vmem:[%s10 + $0x8] sm:$0xff]
        %v6459 = vld [vmem:[%s10 + $0x10] sm:$0xff]
        %v6460 = vld [vmem:[%s10 + $0x18] sm:$0xff]
        %v6461 = vld [vmem:[%s10 + $0x20] sm:$0xff]
        %v6462 = vld [vmem:[%s10 + $0x28] sm:$0xff]
        %v6463 = vld [vmem:[%s10 + $0x30] sm:$0xff]
        %v6464 = vld [vmem:[%s10 + $0x38] sm:$0xff]
        %v6465 = vld [vmem:[%s10 + $0x40] sm:$0xff]
        %v6466 = vld [vmem:[%s10 + $0x48] sm:$0xff]
        %v6467 = vld [vmem:[%s10 + $0x50] sm:$0xff]
        %v6468 = vld [vmem:[%s10 + $0x58] sm:$0xff]
        %v6469 = vld [vmem:[%s10 + $0x60] sm:$0xff]
        %v6470 = vld [vmem:[%s10 + $0x68] sm:$0xff]
        %v6471 = vld [vmem:[%s10 + $0x70] sm:$0xff]
        %v6472 = vld [vmem:[%s10 + $0x78] sm:$0xff]
        %v6473 = vld [vmem:[%s10 + $0x80] sm:$0xff]
        %v6474 = vld [vmem:[%s10 + $0x88] sm:$0xff]
        %v6475 = vld [vmem:[%s10 + $0x90] sm:$0xff]
        %v6476 = vld [vmem:[%s10 + $0x98] sm:$0xff]
        %v6477 = vld [vmem:[%s10 + $0xa0] sm:$0xff]
        %v6478 = vld [vmem:[%s10 + $0xa8] sm:$0xff]
        %v6479 = vld [vmem:[%s10 + $0xb0] sm:$0xff]
        %v6480 = vld [vmem:[%s10 + $0xb8] sm:$0xff]
        %v6481 = vld [vmem:[%s10 + $0xc0] sm:$0xff]
        %v6482 = vld [vmem:[%s10 + $0xc8] sm:$0xff]
        %v6483 = vld [vmem:[%s10 + $0xd0] sm:$0xff]
        %v6484 = vld [vmem:[%s10 + $0xd8] sm:$0xff]
        %v6485 = vld [vmem:[%s10 + $0xe0] sm:$0xff]
        %v6486 = vld [vmem:[%s10 + $0xe8] sm:$0xff]
        %v6487 = vld [vmem:[%s10 + $0xf0] sm:$0xff]
        %v6488 = vld [vmem:[%s10 + $0xf8] sm:$0xff]
        %v6489 = vld [vmem:[%s10 + $0x100] sm:$0xff]
        %v6490 = vld [vmem:[%s10 + $0x108] sm:$0xff]
        %v6491 = vld [vmem:[%s10 + $0x110] sm:$0xff]
        %v6492 = vld [vmem:[%s10 + $0x118] sm:$0xff]
        %v6493 = vld [vmem:[%s10 + $0x120] sm:$0xff]
        %v6494 = vld [vmem:[%s10 + $0x128] sm:$0xff]
        %v6495 = vld [vmem:[%s10 + $0x130] sm:$0xff]
        %v6496 = vld [vmem:[%s10 + $0x138] sm:$0xff]
        %v6497 = vld [vmem:[%s10 + $0x140] sm:$0xff]
        %v6498 = vld [vmem:[%s10 + $0x148] sm:$0xff]
        %v6499 = vld [vmem:[%s10 + $0x150] sm:$0xff]
        %v6500 = vld [vmem:[%s10 + $0x158] sm:$0xff]
        %v6501 = vld [vmem:[%s10 + $0x160] sm:$0xff]
        %v6502 = vld [vmem:[%s10 + $0x168] sm:$0xff]
        %v6503 = vld [vmem:[%s10 + $0x170] sm:$0xff]
        %v6504 = vld [vmem:[%s10 + $0x178] sm:$0xff]
        %v6505 = vld [vmem:[%s10 + $0x180] sm:$0xff]
        %v6506 = vld [vmem:[%s10 + $0x188] sm:$0xff]
        %v6507 = vld [vmem:[%s10 + $0x190] sm:$0xff]
        %v6508 = vld [vmem:[%s10 + $0x198] sm:$0xff]
        %v6509 = vld [vmem:[%s10 + $0x1a0] sm:$0xff]
        %v6510 = vld [vmem:[%s10 + $0x1a8] sm:$0xff]
        %v6511 = vld [vmem:[%s10 + $0x1b0] sm:$0xff]
        %v6512 = vld [vmem:[%s10 + $0x1b8] sm:$0xff]
        %v6513 = vld [vmem:[%s10 + $0x1c0] sm:$0xff]
        %v6514 = vld [vmem:[%s10 + $0x1c8] sm:$0xff]
        %v6515 = vld [vmem:[%s10 + $0x1d0] sm:$0xff]
        %v6516 = vld [vmem:[%s10 + $0x1d8] sm:$0xff]
        %v6517 = vld [vmem:[%s10 + $0x1e0] sm:$0xff]
        %v6518 = vld [vmem:[%s10 + $0x1e8] sm:$0xff]
        %v6519 = vld [vmem:[%s10 + $0x1f0] sm:$0xff]
        %v6520 = vld [vmem:[%s10 + $0x1f8] sm:$0xff]
        %v6521 = vld [vmem:[%s10 + $0x200] sm:$0xff]
        %v6522 = vld [vmem:[%s10 + $0x208] sm:$0xff]
        %v6523 = vld [vmem:[%s10 + $0x210] sm:$0xff]
        %v6524 = vld [vmem:[%s10 + $0x218] sm:$0xff]
        %v6525 = vld [vmem:[%s10 + $0x220] sm:$0xff]
        %v6526 = vld [vmem:[%s10 + $0x228] sm:$0xff]
        %v6527 = vld [vmem:[%s10 + $0x230] sm:$0xff]
        %v6528 = vld [vmem:[%s10 + $0x238] sm:$0xff]
        %v6532 = vcombine.high %v6454, %v6454
        %v6533 = vcombine.high %v6455, %v6455
        %v6536 = vsel %vm6289, %v6456, 0
        %6538 = vmatprep.subr.mxu0 0.0
        %6539 = vmatpush1.msra.mxu0 %v6457
        %6540 = vmatprep.subr.mxu0 0.0
        %6541 = vmatpush1.msra.mxu0 %v6458
        %6542 = vmatprep.subr.mxu0 0.0
        %6543 = vmatpush1.msra.mxu0 %v6459
        %6544 = vmatprep.subr.mxu0 0.0
        %6545 = vmatpush1.msra.mxu0 %v6460
        %6546 = vmatprep.subr.mxu0 0.0
        %6547 = vmatpush1.msra.mxu0 %v6461
        %6548 = vmatprep.subr.mxu0 0.0
        %6549 = vmatpush1.msra.mxu0 %v6462
        %6550 = vmatprep.subr.mxu0 0.0
        %6551 = vmatpush1.msra.mxu0 %v6463
        %6552 = vmatprep.subr.mxu0 0.0
        %6553 = vmatpush1.msra.mxu0 %v6464
        %6554 = vmatprep.subr.mxu0 0.0
        %6555 = vmatpush1.msra.mxu0 %v6465
        %6556 = vmatprep.subr.mxu0 0.0
        %6557 = vmatpush1.msra.mxu0 %v6466
        %6558 = vmatprep.subr.mxu0 0.0
        %6559 = vmatpush1.msra.mxu0 %v6467
        %6560 = vmatprep.subr.mxu0 0.0
        %6561 = vmatpush1.msra.mxu0 %v6468
        %6562 = vmatprep.subr.mxu0 0.0
        %6563 = vmatpush1.msra.mxu0 %v6469
        %6564 = vmatprep.subr.mxu0 0.0
        %6565 = vmatpush1.msra.mxu0 %v6470
        %6566 = vmatprep.subr.mxu0 0.0
        %6567 = vmatpush1.msra.mxu0 %v6471
        %6568 = vmatprep.subr.mxu0 0.0
        %6569 = vmatpush1.msra.mxu0 %v6472
        %6570 = vmatprep.subr.mxu0 0.0
        %6571 = vmatpush1.msra.mxu0 %v6473
        %6572 = vmatprep.subr.mxu0 0.0
        %6573 = vmatpush1.msra.mxu0 %v6474
        %6574 = vmatprep.subr.mxu0 0.0
        %6575 = vmatpush1.msra.mxu0 %v6475
        %6576 = vmatprep.subr.mxu0 0.0
        %6577 = vmatpush1.msra.mxu0 %v6476
        %6578 = vmatprep.subr.mxu0 0.0
        %6579 = vmatpush1.msra.mxu0 %v6477
        %6580 = vmatprep.subr.mxu0 0.0
        %6581 = vmatpush1.msra.mxu0 %v6478
        %6582 = vmatprep.subr.mxu0 0.0
        %6583 = vmatpush1.msra.mxu0 %v6479
        %6584 = vmatprep.subr.mxu0 0.0
        %6585 = vmatpush1.msra.mxu0 %v6480
        %6586 = vmatprep.subr.mxu0 0.0
        %6587 = vmatpush1.msra.mxu0 %v6481
        %6588 = vmatprep.subr.mxu0 0.0
        %6589 = vmatpush1.msra.mxu0 %v6482
        %6590 = vmatprep.subr.mxu0 0.0
        %6591 = vmatpush1.msra.mxu0 %v6483
        %6592 = vmatprep.subr.mxu0 0.0
        %6593 = vmatpush1.msra.mxu0 %v6484
        %6594 = vmatprep.subr.mxu0 0.0
        %6595 = vmatpush1.msra.mxu0 %v6485
        %6596 = vmatprep.subr.mxu0 0.0
        %6597 = vmatpush1.msra.mxu0 %v6486
        %6598 = vmatprep.subr.mxu0 0.0
        %6599 = vmatpush1.msra.mxu0 %v6487
        %6600 = vmatprep.subr.mxu0 0.0
        %6601 = vmatpush1.msra.mxu0 %v6488
        %6602 = vmatprep.mubr.f32.mxu0 %v6532
        %6603 = vmatmul.mubr.f32.gmra.mrb[0].mxu0 %v6454
        %v6604 = vpop.f32.mrb[0].mxu0
        %v6605 = vadd.f32 0.0, %v6604
        %v6606 = vpop.f32.mrb[0].mxu0
        %6607 = vdwg.mxu0
        %6608 = vmatprep.subr.mxu0 0.0
        %6609 = vmatpush1.msra.mxu0 %v6489
        %6610 = vmatprep.subr.mxu0 0.0
        %6611 = vmatpush1.msra.mxu0 %v6490
        %6612 = vmatprep.subr.mxu0 0.0
        %6613 = vmatpush1.msra.mxu0 %v6491
        %6614 = vmatprep.subr.mxu0 0.0
        %6615 = vmatpush1.msra.mxu0 %v6492
        %6616 = vmatprep.subr.mxu0 0.0
        %6617 = vmatpush1.msra.mxu0 %v6493
        %6618 = vmatprep.subr.mxu0 0.0
        %6619 = vmatpush1.msra.mxu0 %v6494
        %6620 = vmatprep.subr.mxu0 0.0
        %6621 = vmatpush1.msra.mxu0 %v6495
        %6622 = vmatprep.subr.mxu0 0.0
        %6623 = vmatpush1.msra.mxu0 %v6496
        %6624 = vmatprep.subr.mxu0 0.0
        %6625 = vmatpush1.msra.mxu0 %v6497
        %6626 = vmatprep.subr.mxu0 0.0
        %6627 = vmatpush1.msra.mxu0 %v6498
        %6628 = vmatprep.subr.mxu0 0.0
        %6629 = vmatpush1.msra.mxu0 %v6499
        %6630 = vmatprep.subr.mxu0 0.0
        %6631 = vmatpush1.msra.mxu0 %v6500
        %6632 = vmatprep.subr.mxu0 0.0
        %6633 = vmatpush1.msra.mxu0 %v6501
        %6634 = vmatprep.subr.mxu0 0.0
        %6635 = vmatpush1.msra.mxu0 %v6502
        %6636 = vmatprep.subr.mxu0 0.0
        %6637 = vmatpush1.msra.mxu0 %v6503
        %6638 = vmatprep.subr.mxu0 0.0
        %6639 = vmatpush1.msra.mxu0 %v6504
        %6640 = vmatprep.subr.mxu0 0.0
        %6641 = vmatpush1.msra.mxu0 %v6505
        %6642 = vmatprep.subr.mxu0 0.0
        %6643 = vmatpush1.msra.mxu0 %v6506
        %6644 = vmatprep.subr.mxu0 0.0
        %6645 = vmatpush1.msra.mxu0 %v6507
        %6646 = vmatprep.subr.mxu0 0.0
        %6647 = vmatpush1.msra.mxu0 %v6508
        %6648 = vmatprep.subr.mxu0 0.0
        %6649 = vmatpush1.msra.mxu0 %v6509
        %6650 = vmatprep.subr.mxu0 0.0
        %6651 = vmatpush1.msra.mxu0 %v6510
        %6652 = vmatprep.subr.mxu0 0.0
        %6653 = vmatpush1.msra.mxu0 %v6511
        %6654 = vmatprep.subr.mxu0 0.0
        %6655 = vmatpush1.msra.mxu0 %v6512
        %6656 = vmatprep.subr.mxu0 0.0
        %6657 = vmatpush1.msra.mxu0 %v6513
        %6658 = vmatprep.subr.mxu0 0.0
        %6659 = vmatpush1.msra.mxu0 %v6514
        %6660 = vmatprep.subr.mxu0 0.0
        %6661 = vmatpush1.msra.mxu0 %v6515
        %6662 = vmatprep.subr.mxu0 0.0
        %6663 = vmatpush1.msra.mxu0 %v6516
        %6664 = vmatprep.subr.mxu0 0.0
        %6665 = vmatpush1.msra.mxu0 %v6517
        %6666 = vmatprep.subr.mxu0 0.0
        %6667 = vmatpush1.msra.mxu0 %v6518
        %6668 = vmatprep.subr.mxu0 0.0
        %6669 = vmatpush1.msra.mxu0 %v6519
        %6670 = vmatprep.subr.mxu0 0.0
        %6671 = vmatpush1.msra.mxu0 %v6520
        %6672 = vmatprep.mubr.f32.mxu0 %v6533
        %6673 = vmatmul.mubr.f32.gmra.mrb[0].mxu0 %v6455
        %v6674 = vpop.f32.mrb[0].mxu0
        %v6675 = vadd.f32 %v6605, %v6674
        %v6676 = vpop.f32.mrb[0].mxu0
        %6677 = vdwg.mxu0
        %6678 = vmatprep.subr.mxu0 0.0
        %6679 = vmatpush1.msra.mxu0 %v6521
        %6680 = vmatprep.subr.mxu0 0.0
        %6681 = vmatpush1.msra.mxu0 %v6522
        %6682 = vmatprep.subr.mxu0 0.0
        %6683 = vmatpush1.msra.mxu0 %v6523
        %6684 = vmatprep.subr.mxu0 0.0
        %6685 = vmatpush1.msra.mxu0 %v6524
        %6686 = vmatprep.subr.mxu0 0.0
        %6687 = vmatpush1.msra.mxu0 %v6525
        %6688 = vmatprep.subr.mxu0 0.0
        %6689 = vmatpush1.msra.mxu0 %v6526
        %6690 = vmatprep.subr.mxu0 0.0
        %6691 = vmatpush1.msra.mxu0 %v6527
        %6692 = vmatprep.subr.mxu0 0.0
        %6693 = vmatpush1.msra.mxu0 %v6528
        %6694 = vmatprep.subr.mxu0 0.0
        %6695 = vmatpush1.msra.mxu0 0.0
        %6696 = vmatprep.subr.mxu0 0.0
        %6697 = vmatpush1.msra.mxu0 0.0
        %6698 = vmatprep.subr.mxu0 0.0
        %6699 = vmatpush1.msra.mxu0 0.0
        %6700 = vmatprep.subr.mxu0 0.0
        %6701 = vmatpush1.msra.mxu0 0.0
        %6702 = vmatprep.subr.mxu0 0.0
        %6703 = vmatpush1.msra.mxu0 0.0
        %6704 = vmatprep.subr.mxu0 0.0
        %6705 = vmatpush1.msra.mxu0 0.0
        %6706 = vmatprep.subr.mxu0 0.0
        %6707 = vmatpush1.msra.mxu0 0.0
        %6708 = vmatprep.subr.mxu0 0.0
        %6709 = vmatpush1.msra.mxu0 0.0
        %6710 = vmatprep.subr.mxu0 0.0
        %6711 = vmatpush1.msra.mxu0 0.0
        %6712 = vmatprep.subr.mxu0 0.0
        %6713 = vmatpush1.msra.mxu0 0.0
        %6714 = vmatprep.subr.mxu0 0.0
        %6715 = vmatpush1.msra.mxu0 0.0
        %6716 = vmatprep.subr.mxu0 0.0
        %6717 = vmatpush1.msra.mxu0 0.0
        %6718 = vmatprep.subr.mxu0 0.0
        %6719 = vmatpush1.msra.mxu0 0.0
        %6720 = vmatprep.subr.mxu0 0.0
        %6721 = vmatpush1.msra.mxu0 0.0
        %6722 = vmatprep.subr.mxu0 0.0
        %6723 = vmatpush1.msra.mxu0 0.0
        %6724 = vmatprep.subr.mxu0 0.0
        %6725 = vmatpush1.msra.mxu0 0.0
        %6726 = vmatprep.subr.mxu0 0.0
        %6727 = vmatpush1.msra.mxu0 0.0
        %6728 = vmatprep.subr.mxu0 0.0
        %6729 = vmatpush1.msra.mxu0 0.0
        %6730 = vmatprep.subr.mxu0 0.0
        %6731 = vmatpush1.msra.mxu0 0.0
        %6732 = vmatprep.subr.mxu0 0.0
        %6733 = vmatpush1.msra.mxu0 0.0
        %6734 = vmatprep.subr.mxu0 0.0
        %6735 = vmatpush1.msra.mxu0 0.0
        %6736 = vmatprep.subr.mxu0 0.0
        %6737 = vmatpush1.msra.mxu0 0.0
        %6738 = vmatprep.subr.mxu0 0.0
        %6739 = vmatpush1.msra.mxu0 0.0
        %6740 = vmatprep.subr.mxu0 0.0
        %6741 = vmatpush1.msra.mxu0 0.0
        %6742 = vmatprep.mubr.f32.mxu0 0.0
        %6743 = vmatmul.mubr.f32.gmra.mrb[0].mxu0 %v6536
        %v6744 = vpop.f32.mrb[0].mxu0
        %v6745 = vadd.f32 %v6675, %v6744
        %v6746 = vpop.f32.mrb[0].mxu0
        %6747 = vdwg.mxu0
        %v6748 = vld [vmem:[%s11] sm:$0x1]
        %v6750 = vlaneseq
        %v6751 = vshrl.u32 %v6750, 7
        %v6752 = vsub.s32 0, %v6751
        %v6753 = vrot.slane %v6748, %v6752
        %v6755 = vmul.f32 %v6745, %v6753
        %v6756 = vld [vmem:[%s12] sm:$0x1]
        %v6758 = vlaneseq
        %v6759 = vshrl.u32 %v6758, 7
        %v6760 = vsub.s32 0, %v6759
        %v6761 = vrot.slane %v6756, %v6760
        %v6763 = vadd.f32 %v6755, %v6761
        %v6764 = vmax.f32 %v6763, 0.0
        %v6765 = vsel %vm2447, %v6764, 0.0
        %v6766 = vrot.slane %v6765, 4
        %v6767 = vadd.f32 %v6765, %v6766
        %v6768 = vrot.slane %v6767, 2
        %v6769 = vadd.f32 %v6767, %v6768
        %v6770 = vrot.slane %v6769, 1
        %v6771 = vadd.f32 %v6769, %v6770
        %v6772 = vrcp.pop 4.0
        %v6773 = vmul.f32 %v6771, %v6772
        %6774 = vst [vmem:[%s577] sm:$0x1] %v6773
        %v6775 = vld [vmem:[%s13] sm:$0xff]
        %v6776 = vld [vmem:[%s13 + $0x8] sm:$0xff]
        %v6777 = vld [vmem:[%s13 + $0x10] sm:$0xff]
        %v6778 = vld [vmem:[%s13 + $0x18] sm:$0xff]
        %v6779 = vld [vmem:[%s13 + $0x20] sm:$0xff]
        %v6780 = vld [vmem:[%s13 + $0x28] sm:$0xff]
        %v6781 = vld [vmem:[%s13 + $0x30] sm:$0xff]
        %v6782 = vld [vmem:[%s13 + $0x38] sm:$0xff]
        %v6783 = vld [vmem:[%s13 + $0x40] sm:$0xff]
        %v6784 = vld [vmem:[%s13 + $0x48] sm:$0xff]
        %v6785 = vld [vmem:[%s13 + $0x50] sm:$0xff]
        %v6786 = vld [vmem:[%s13 + $0x58] sm:$0xff]
        %v6787 = vld [vmem:[%s13 + $0x60] sm:$0xff]
        %v6788 = vld [vmem:[%s13 + $0x68] sm:$0xff]
        %v6789 = vld [vmem:[%s13 + $0x70] sm:$0xff]
        %v6790 = vld [vmem:[%s13 + $0x78] sm:$0xff]
        %v6791 = vld [vmem:[%s14] sm:$0x1]
        %6792 = vmatprep.subr.mxu0 0.0
        %6793 = vmatpush1.msra.mxu0 %v6775
        %6794 = vmatprep.subr.mxu0 0.0
        %6795 = vmatpush1.msra.mxu0 %v6776
        %6796 = vmatprep.subr.mxu0 0.0
        %6797 = vmatpush1.msra.mxu0 %v6777
        %6798 = vmatprep.subr.mxu0 0.0
        %6799 = vmatpush1.msra.mxu0 %v6778
        %6800 = vmatprep.subr.mxu0 0.0
        %6801 = vmatpush1.msra.mxu0 %v6779
        %6802 = vmatprep.subr.mxu0 0.0
        %6803 = vmatpush1.msra.mxu0 %v6780
        %6804 = vmatprep.subr.mxu0 0.0
        %6805 = vmatpush1.msra.mxu0 %v6781
        %6806 = vmatprep.subr.mxu0 0.0
        %6807 = vmatpush1.msra.mxu0 %v6782
        %6808 = vmatprep.subr.mxu0 0.0
        %6809 = vmatpush1.msra.mxu0 %v6783
        %6810 = vmatprep.subr.mxu0 0.0
        %6811 = vmatpush1.msra.mxu0 %v6784
        %6812 = vmatprep.subr.mxu0 0.0
        %6813 = vmatpush1.msra.mxu0 %v6785
        %6814 = vmatprep.subr.mxu0 0.0
        %6815 = vmatpush1.msra.mxu0 %v6786
        %6816 = vmatprep.subr.mxu0 0.0
        %6817 = vmatpush1.msra.mxu0 %v6787
        %6818 = vmatprep.subr.mxu0 0.0
        %6819 = vmatpush1.msra.mxu0 %v6788
        %6820 = vmatprep.subr.mxu0 0.0
        %6821 = vmatpush1.msra.mxu0 %v6789
        %6822 = vmatprep.subr.mxu0 0.0
        %6823 = vmatpush1.msra.mxu0 %v6790
        %6824 = vmatprep.subr.mxu0 0.0
        %6825 = vmatpush1.msra.mxu0 0.0
        %6826 = vmatprep.subr.mxu0 0.0
        %6827 = vmatpush1.msra.mxu0 0.0
        %6828 = vmatprep.subr.mxu0 0.0
        %6829 = vmatpush1.msra.mxu0 0.0
        %6830 = vmatprep.subr.mxu0 0.0
        %6831 = vmatpush1.msra.mxu0 0.0
        %6832 = vmatprep.subr.mxu0 0.0
        %6833 = vmatpush1.msra.mxu0 0.0
        %6834 = vmatprep.subr.mxu0 0.0
        %6835 = vmatpush1.msra.mxu0 0.0
        %6836 = vmatprep.subr.mxu0 0.0
        %6837 = vmatpush1.msra.mxu0 0.0
        %6838 = vmatprep.subr.mxu0 0.0
        %6839 = vmatpush1.msra.mxu0 0.0
        %6840 = vmatprep.subr.mxu0 0.0
        %6841 = vmatpush1.msra.mxu0 0.0
        %6842 = vmatprep.subr.mxu0 0.0
        %6843 = vmatpush1.msra.mxu0 0.0
        %6844 = vmatprep.subr.mxu0 0.0
        %6845 = vmatpush1.msra.mxu0 0.0
        %6846 = vmatprep.subr.mxu0 0.0
        %6847 = vmatpush1.msra.mxu0 0.0
        %6848 = vmatprep.subr.mxu0 0.0
        %6849 = vmatpush1.msra.mxu0 0.0
        %6850 = vmatprep.subr.mxu0 0.0
        %6851 = vmatpush1.msra.mxu0 0.0
        %6852 = vmatprep.subr.mxu0 0.0
        %6853 = vmatpush1.msra.mxu0 0.0
        %6854 = vmatprep.subr.mxu0 0.0
        %6855 = vmatpush1.msra.mxu0 0.0
        %6856 = vmatprep.mubr.f32.mxu0 0.0
        %6857 = vmatmul.mubr.f32.gmra.mrb[0].mxu0 %v6773
        %v6858 = vpop.f32.mrb[0].mxu0
        %v6859 = vadd.f32 %v6791, %v6858
        %v6860 = vpop.f32.mrb[0].mxu0
        %6861 = vdwg.mxu0
        %v6862 = vmax.f32 %v6859, 0.0
        %v6863 = vld [vmem:[%s15] sm:$0xff]
        %v6864 = vld [vmem:[%s15 + $0x8] sm:$0xff]
        %v6865 = vld [vmem:[%s15 + $0x10] sm:$0xff]
        %v6866 = vld [vmem:[%s15 + $0x18] sm:$0xff]
        %v6867 = vld [vmem:[%s15 + $0x20] sm:$0xff]
        %v6868 = vld [vmem:[%s15 + $0x28] sm:$0xff]
        %v6869 = vld [vmem:[%s15 + $0x30] sm:$0xff]
        %v6870 = vld [vmem:[%s15 + $0x38] sm:$0xff]
        %v6871 = vld [vmem:[%s16] sm:$0x1]
        %v6873 = vsel %vm6289, %v6862, 0
        %6875 = vmatprep.subr.mxu0 0.0
        %6876 = vmatpush1.msra.mxu0 %v6863
        %6877 = vmatprep.subr.mxu0 0.0
        %6878 = vmatpush1.msra.mxu0 %v6864
        %6879 = vmatprep.subr.mxu0 0.0
        %6880 = vmatpush1.msra.mxu0 %v6865
        %6881 = vmatprep.subr.mxu0 0.0
        %6882 = vmatpush1.msra.mxu0 %v6866
        %6883 = vmatprep.subr.mxu0 0.0
        %6884 = vmatpush1.msra.mxu0 %v6867
        %6885 = vmatprep.subr.mxu0 0.0
        %6886 = vmatpush1.msra.mxu0 %v6868
        %6887 = vmatprep.subr.mxu0 0.0
        %6888 = vmatpush1.msra.mxu0 %v6869
        %6889 = vmatprep.subr.mxu0 0.0
        %6890 = vmatpush1.msra.mxu0 %v6870
        %6891 = vmatprep.subr.mxu0 0.0
        %6892 = vmatpush1.msra.mxu0 0.0
        %6893 = vmatprep.subr.mxu0 0.0
        %6894 = vmatpush1.msra.mxu0 0.0
        %6895 = vmatprep.subr.mxu0 0.0
        %6896 = vmatpush1.msra.mxu0 0.0
        %6897 = vmatprep.subr.mxu0 0.0
        %6898 = vmatpush1.msra.mxu0 0.0
        %6899 = vmatprep.subr.mxu0 0.0
        %6900 = vmatpush1.msra.mxu0 0.0
        %6901 = vmatprep.subr.mxu0 0.0
        %6902 = vmatpush1.msra.mxu0 0.0
        %6903 = vmatprep.subr.mxu0 0.0
        %6904 = vmatpush1.msra.mxu0 0.0
        %6905 = vmatprep.subr.mxu0 0.0
        %6906 = vmatpush1.msra.mxu0 0.0
        %6907 = vmatprep.subr.mxu0 0.0
        %6908 = vmatpush1.msra.mxu0 0.0
        %6909 = vmatprep.subr.mxu0 0.0
        %6910 = vmatpush1.msra.mxu0 0.0
        %6911 = vmatprep.subr.mxu0 0.0
        %6912 = vmatpush1.msra.mxu0 0.0
        %6913 = vmatprep.subr.mxu0 0.0
        %6914 = vmatpush1.msra.mxu0 0.0
        %6915 = vmatprep.subr.mxu0 0.0
        %6916 = vmatpush1.msra.mxu0 0.0
        %6917 = vmatprep.subr.mxu0 0.0
        %6918 = vmatpush1.msra.mxu0 0.0
        %6919 = vmatprep.subr.mxu0 0.0
        %6920 = vmatpush1.msra.mxu0 0.0
        %6921 = vmatprep.subr.mxu0 0.0
        %6922 = vmatpush1.msra.mxu0 0.0
        %6923 = vmatprep.subr.mxu0 0.0
        %6924 = vmatpush1.msra.mxu0 0.0
        %6925 = vmatprep.subr.mxu0 0.0
        %6926 = vmatpush1.msra.mxu0 0.0
        %6927 = vmatprep.subr.mxu0 0.0
        %6928 = vmatpush1.msra.mxu0 0.0
        %6929 = vmatprep.subr.mxu0 0.0
        %6930 = vmatpush1.msra.mxu0 0.0
        %6931 = vmatprep.subr.mxu0 0.0
        %6932 = vmatpush1.msra.mxu0 0.0
        %6933 = vmatprep.subr.mxu0 0.0
        %6934 = vmatpush1.msra.mxu0 0.0
        %6935 = vmatprep.subr.mxu0 0.0
        %6936 = vmatpush1.msra.mxu0 0.0
        %6937 = vmatprep.subr.mxu0 0.0
        %6938 = vmatpush1.msra.mxu0 0.0
        %6939 = vmatprep.mubr.f32.mxu0 0.0
        %6940 = vmatmul.mubr.f32.gmra.mrb[0].mxu0 %v6873
        %v6941 = vpop.f32.mrb[0].mxu0
        %v6942 = vadd.f32 %v6871, %v6941
        %v6943 = vpop.f32.mrb[0].mxu0
        %6944 = vdwg.mxu0
        %vm6945 = vcmask 122880
        %6946 = vst.msk [vmem:[%s571] sm:$0x1] %vm6945, %v6942
        %s6947 = sand.u32 %s406, 1
        %s6948 = scalar_lea.sflag [#allocation11], %s6947
        %s6949 = sand.u32 %s406, 1
        %s6950 = scalar_lea.vmem [#allocation10], %s6949
        %s6951 = sand.u32 %s432, 1
        %s6952 = scalar_lea.sflag [#allocation13], %s6951
        %s6953 = sand.u32 %s432, 1
        %s6954 = scalar_lea.vmem [#allocation12], %s6953
        // Predicated region
        $region89: #{tpu_custom_call.1} parent=87 // pred_check
          %p6955 = pneg %p416
        $region90: #{tpu_custom_call.1} parent=87 // pred_check_branch
          %6957 = sbr.rel (%p6955) target = $region92
        $region91: #{tpu_custom_call.1} parent=87 // pred_region
          %s6959 = ssub.s32 16, 16
          %6960 = vsyncadd %s6948, %s6959
          %s6961 = smul.addr %s36, 16
          %s6962 = scalar_lea.hbm %s17, %s6961
          %s6964 = sshll.u32 %s6950, 4
          %s6965 = int_to_ptr.vmem [resolvable:$true] %s6964
          %6967 = dma.vmem_to_hbm [thread:$0]  %s6965, 16, %s6962, %s6948
        $region92: #{tpu_custom_call.1} parent=87 // pred_fallthru
          _
        // Predicated region
        $region93: #{tpu_custom_call.1} parent=87 // pred_check
          %p6968 = pneg %p442
        $region94: #{tpu_custom_call.1} parent=87 // pred_check_branch
          %6970 = sbr.rel (%p6968) target = $region96
        $region95: #{tpu_custom_call.1} parent=87 // pred_region
          %s6972 = ssub.s32 16, 16
          %6973 = vsyncadd %s6952, %s6972
          %s6974 = smul.addr %s36, 16
          %s6975 = scalar_lea.hbm %s18, %s6974
          %s6977 = sshll.u32 %s6954, 4
          %s6978 = int_to_ptr.vmem [resolvable:$true] %s6977
          %6980 = dma.vmem_to_hbm [thread:$0]  %s6978, 16, %s6975, %s6952
        $region96: #{tpu_custom_call.1} parent=87 // pred_fallthru
          _
      $region88: #{tpu_custom_call.1} parent=5 // pred_fallthru
        _
      %p6981 = scmp.le.s32.totalorder 2, %s31
      // Predicated region
      $region97: #{tpu_custom_call.1} parent=5 // pred_check
        %p6982 = pneg %p6981
      $region98: #{tpu_custom_call.1} parent=5 // pred_check_branch
        %6984 = sbr.rel (%p6982) target = $region100
      $region99: #{tpu_custom_call.1} parent=5 // pred_region
        %s6985 = ssub.s32 %s31, 2
        // Predicated region
        $region101: #{tpu_custom_call.1} parent=99 // pred_check
          %p6986 = pneg %p422
        $region102: #{tpu_custom_call.1} parent=99 // pred_check_branch
          %6988 = sbr.rel (%p6986) target = $region104
        $region103: #{tpu_custom_call.1} parent=99 // pred_region
          %s6989 = sand.u32 %s407, 1
          %s6990 = scalar_lea.sflag [#allocation11], %s6989
          %s6991 = sand.u32 %s407, 1
          %s6992 = scalar_lea.vmem [#allocation10], %s6991
          %6993 = dma.done %s6990, 16
        $region104: #{tpu_custom_call.1} parent=99 // pred_fallthru
          _
        // Predicated region
        $region105: #{tpu_custom_call.1} parent=99 // pred_check
          %p6994 = pneg %p448
        $region106: #{tpu_custom_call.1} parent=99 // pred_check_branch
          %6996 = sbr.rel (%p6994) target = $region108
        $region107: #{tpu_custom_call.1} parent=99 // pred_region
          %s6997 = sand.u32 %s433, 1
          %s6998 = scalar_lea.sflag [#allocation13], %s6997
          %s6999 = sand.u32 %s433, 1
          %s7000 = scalar_lea.vmem [#allocation12], %s6999
          %7001 = dma.done %s6998, 16
        $region108: #{tpu_custom_call.1} parent=99 // pred_fallthru
          _
      $region100: #{tpu_custom_call.1} parent=5 // pred_fallthru
        _
    $region6: #{tpu_custom_call.1} parent=1 // loop_footer
      %s35 = sadd.s32 1, %s31
    $region7: #{tpu_custom_call.1} parent=1 // loop_footer_branch
      %30 = sbr.rel target = $region3
    $region8: #{tpu_custom_call.1} parent=1 // loop_exit
      _
    %7002 = vsyncpa [#allocation11], 1
    %s7003 = scalar_lea.sflag [#allocation11], 1
    %7004 = vsyncpa %s7003, 1
    %7005 = vsyncpa [#allocation13], 1
    %s7006 = scalar_lea.sflag [#allocation13], 1
    %7007 = vsyncpa %s7006, 1

</llo_original>
